<compile_context>
chip_gen: v7x
topology: tpu7x:2x2x1
jax: 0.10.0
libtpu: 0.0.40
codegen_flags: <defaults>
</compile_context>

<pallas_src>
import functools

import jax
import jax.numpy as jnp
from jax.experimental import pallas as pl
from jax.experimental.pallas import tpu as pltpu


# Image interior is stored at sublane offset PAD_OFF (=8, f32 tile aligned) in
# the padded scratch, so the interior store is an aligned, unmasked store.
# The logical zero-pad column lives at offset PAD_OFF - 1.
PAD_OFF = 8


def _conv3x3_relu(pad_ref, w_ref, b_ref, Hc, Wc, mxu_dtype):
    """3x3 conv (padding pre-materialized in pad_ref) + bias + ReLU.

    pad_ref: (Hc+2, Wc+PAD_OFF+1, Cin) f32 scratch; image at
             [1:Hc+1, PAD_OFF:PAD_OFF+Wc, :], zeros elsewhere.
    w_ref:   (3, 3, Cin, Cout) in mxu_dtype.   b_ref: (1, Cout) f32.
    """
    cout = w_ref.shape[-1]
    acc = jnp.zeros((Hc, Wc, cout), jnp.float32)
    for dy in range(3):
        for dx in range(3):
            c0 = PAD_OFF - 1 + dx
            patch = pad_ref[dy:dy + Hc, c0:c0 + Wc, :]          # (Hc, Wc, Cin)
            acc = acc + jax.lax.dot_general(
                patch.astype(mxu_dtype), w_ref[dy, dx],
                (((2,), (0,)), ((), ())),
                preferred_element_type=jnp.float32)             # (Hc, Wc, Cout)
    return jnp.maximum(acc + b_ref[0], 0.0)                     # f32 VPU epilogue


def _maxpool2(y):
    """2x2 max pool, stride 2, on (H, W, C)."""
    H, W, C = y.shape
    a = y.reshape(H // 2, 2, W, C)                  # split of outer dim: layout no-op
    r = jnp.maximum(a[:, 0], a[:, 1])               # (H/2, W, C)
    b = r.reshape(H // 2, W // 2, 2, C)             # tiny in-VMEM repack
    return jnp.maximum(b[:, :, 0], b[:, :, 1])      # (H/2, W/2, C)


def _unet_fused_kernel(x_ref, w1_ref, b1_ref, w2_ref, b2_ref,
                       w3_ref, b3_ref, w4_ref, b4_ref,
                       out_ref, pad1_ref, pad2_ref, *, H, W, mxu_dtype):
    H2, W2 = H // 2, W // 2

    # ---------------- encoder: conv1(3->32) + ReLU + pool ----------------
    pad1_ref[...] = jnp.zeros(pad1_ref.shape, pad1_ref.dtype)
    pad1_ref[1:H + 1, PAD_OFF:PAD_OFF + W, :] = x_ref[0]
    h1 = _conv3x3_relu(pad1_ref, w1_ref, b1_ref, H, W, mxu_dtype)   # (H, W, 32)
    p1 = _maxpool2(h1)                                              # (H/2, W/2, 32)

    # ---------------- encoder: conv2(32->64) + ReLU + pool ----------------
    pad2_ref[...] = jnp.zeros(pad2_ref.shape, pad2_ref.dtype)
    pad2_ref[1:H2 + 1, PAD_OFF:PAD_OFF + W2, :] = p1
    h2 = _conv3x3_relu(pad2_ref, w2_ref, b2_ref, H2, W2, mxu_dtype)  # (H/2, W/2, 64)
    p2 = _maxpool2(h2)                                               # (H/4, W/4, 64)

    # ---------------- decoder: both ConvTranspose layers, 2 matmuls -------
    # d[i, j, t*32 + c] = ReLU(p2[i,j] . w3[ky,kx,:,c] + b3[c]),  t = 2*ky+kx
    d = jax.lax.dot_general(p2.astype(mxu_dtype), w3_ref[...],
                            (((2,), (0,)), ((), ())),
                            preferred_element_type=jnp.float32)      # (H/4, W/4, 128)
    d = jnp.maximum(d + b3_ref[0], 0.0)
    # f[i, j, dy*4 + dx] = pre-sigmoid value of output pixel (4i+dy, 4j+dx)
    f = jax.lax.dot_general(d.astype(mxu_dtype), w4_ref[...],
                            (((2,), (0,)), ((), ())),
                            preferred_element_type=jnp.float32)      # (H/4, W/4, 16)
    out_ref[0] = jax.nn.sigmoid(f + b4_ref[0])


def _prep_params(params, mxu_dtype):
    """Reshape weights into MXU-friendly matmul operands (done once per call)."""
    w1 = params["w1"].astype(mxu_dtype)                                # (3,3,3,32)
    w2 = params["w2"].astype(mxu_dtype)                                # (3,3,32,64)
    # ConvTranspose#1: fuse the 4 taps -> RHS (64, 128), cols = (ky,kx,cout).
    w3 = jnp.transpose(params["w3"], (2, 0, 1, 3)).reshape(64, 128).astype(mxu_dtype)
    b3 = jnp.tile(params["b3"], (1, 4))                                # (1, 128)
    # ConvTranspose#2 folded in: (128,16) block-sparse RHS mapping the 128
    # tap-major decoder channels to the 4x4 output patch of each e2 pixel.
    w4t = jnp.transpose(params["w4"][..., 0], (2, 0, 1))               # (32, ky2, kx2)
    w4big = jnp.zeros((2, 2, 32, 4, 4), jnp.float32)                   # (ky1,kx1,c,dy,dx)
    for ky1 in range(2):
        for kx1 in range(2):
            w4big = w4big.at[ky1, kx1, :,
                             2 * ky1:2 * ky1 + 2,
                             2 * kx1:2 * kx1 + 2].set(w4t)
    w4big = w4big.reshape(128, 16).astype(mxu_dtype)
    b4 = jnp.tile(params["b4"], (1, 16))                               # (1, 16)
    return w1, params["b1"], w2, params["b2"], w3, b3, w4big, b4


def simple_unet_forward(x_nchw, params, *, mxu_dtype=jnp.bfloat16):
    N, C, H, W = x_nchw.shape
    assert C == 3 and H % 4 == 0 and W % 4 == 0, (N, C, H, W)
    hq, wq = H // 4, W // 4

    x = jnp.transpose(x_nchw, (0, 2, 3, 1))                            # NCHW -> NHWC
    w1, b1, w2, b2, w3, b3, w4b, b4 = _prep_params(params, mxu_dtype)

    kernel = functools.partial(_unet_fused_kernel, H=H, W=W, mxu_dtype=mxu_dtype)
    y = pl.pallas_call(
        kernel,
        out_shape=jax.ShapeDtypeStruct((N, hq, wq, 16), jnp.float32),
        grid=(N,),
        in_specs=[
            pl.BlockSpec((1, H, W, 3), lambda n: (n, 0, 0, 0)),
            pl.BlockSpec((3, 3, 3, 32), lambda n: (0, 0, 0, 0)),
            pl.BlockSpec((1, 32), lambda n: (0, 0)),
            pl.BlockSpec((3, 3, 32, 64), lambda n: (0, 0, 0, 0)),
            pl.BlockSpec((1, 64), lambda n: (0, 0)),
            pl.BlockSpec((64, 128), lambda n: (0, 0)),
            pl.BlockSpec((1, 128), lambda n: (0, 0)),
            pl.BlockSpec((128, 16), lambda n: (0, 0)),
            pl.BlockSpec((1, 16), lambda n: (0, 0)),
        ],
        out_specs=pl.BlockSpec((1, hq, wq, 16), lambda n: (n, 0, 0, 0)),
        scratch_shapes=[
            pltpu.VMEM((H + 2, W + PAD_OFF + 1, 3), jnp.float32),       # padded input
            pltpu.VMEM((H // 2 + 2, W // 2 + PAD_OFF + 1, 32), jnp.float32),
        ],
        compiler_params=pltpu.CompilerParams(
            dimension_semantics=("parallel",)),                         # v7x: 2 TCs
    )(x, w1, b1, w2, b2, w3, b3, w4b, b4)

    # (N, H/4, W/4, dy*4+dx)  ->  (N, 1, H, W); tiny wrapper-side un-interleave.
    y = y.reshape(N, hq, wq, 4, 4)
    y = jnp.transpose(y, (0, 1, 3, 2, 4))
    return y.reshape(N, 1, H, W)


# ----------------------------------------------------------------------------
# Pure-JAX reference (independent path) to validate the kernel.
# ----------------------------------------------------------------------------
def ref_forward(x_nchw, params):
    x = jnp.transpose(x_nchw, (0, 2, 3, 1))

    def conv_relu(x, w, b):
        y = jax.lax.conv_general_dilated(
            x, w, (1, 1), ((1, 1), (1, 1)),
            dimension_numbers=("NHWC", "HWIO", "NHWC"))
        return jnp.maximum(y + b, 0.0)

    def pool(x):
        N, H, W, C = x.shape
        return jnp.max(x.reshape(N, H // 2, 2, W // 2, 2, C), axis=(2, 4))

    def deconv(x, w, b, act):
        N, H, W, Cin = x.shape
        Cout = w.shape[-1]
        out = jnp.zeros((N, 2 * H, 2 * W, Cout), jnp.float32)
        for ky in range(2):
            for kx in range(2):
                out = out.at[:, ky::2, kx::2, :].set(
                    jnp.einsum("nhwc,cd->nhwd", x, w[ky, kx]))
        out = out + b
        return jnp.maximum(out, 0.0) if act == "relu" else jax.nn.sigmoid(out)

    h = pool(conv_relu(x, params["w1"], params["b1"]))
    h = pool(conv_relu(h, params["w2"], params["b2"]))
    h = deconv(h, params["w3"], params["b3"], "relu")
    h = deconv(h, params["w4"], params["b4"], "sigmoid")
    return jnp.transpose(h, (0, 3, 1, 2))


def init_params(key):
    ks = jax.random.split(key, 8)

    def u(k, shape, fan_in):
        bound = 1.0 / jnp.sqrt(float(fan_in))
        return jax.random.uniform(k, shape, jnp.float32, -bound, bound)

    return {
        # Conv2d(3,32,3): PyTorch (32,3,3,3) -> HWIO (3,3,3,32)
        "w1": u(ks[0], (3, 3, 3, 32), 3 * 9),
        "b1": u(ks[1], (1, 32), 3 * 9),
        # Conv2d(32,64,3) -> HWIO (3,3,32,64)
        "w2": u(ks[2], (3, 3, 32, 64), 32 * 9),
        "b2": u(ks[3], (1, 64), 32 * 9),
        # ConvTranspose2d(64,32,2,2): PyTorch (64,32,2,2) -> (2,2,64,32)
        "w3": u(ks[4], (2, 2, 64, 32), 64 * 4),
        "b3": u(ks[5], (1, 32), 64 * 4),
        # ConvTranspose2d(32,1,2,2): PyTorch (32,1,2,2) -> (2,2,32,1)
        "w4": u(ks[6], (2, 2, 32, 1), 32 * 4),
        "b4": u(ks[7], (1, 1), 32 * 4),
    }


if __name__ == "__main__":
    key = jax.random.PRNGKey(0)
    kp, kx = jax.random.split(key)
    params = init_params(kp)

    x = jax.random.normal(kx, (2, 3, 16, 16), jnp.float32)   # NCHW, 3 input channels

    ref = jax.block_until_ready(ref_forward(x, params))

    # Exact path (f32 MXU inputs): tight tolerance against the reference.
    fwd_f32 = jax.jit(functools.partial(simple_unet_forward, mxu_dtype=jnp.float32))
    out = jax.block_until_ready(fwd_f32(x, params))
    assert out.shape == (2, 1, 16, 16), out.shape
    assert jnp.allclose(out, ref, rtol=1e-4, atol=1e-4), \
        float(jnp.max(jnp.abs(out - ref)))

    # Fast path for v6e/v7x: bf16 MXU inputs, f32 accumulate + f32 elementwise.
    fwd_bf16 = jax.jit(functools.partial(simple_unet_forward, mxu_dtype=jnp.bfloat16))
    out_bf16 = jax.block_until_ready(fwd_bf16(x, params))
    assert jnp.allclose(out_bf16, ref, rtol=5e-2, atol=5e-2), \
        float(jnp.max(jnp.abs(out_bf16 - ref)))

    print("KERNEL_OK")
</pallas_src>

<mosaic_0001>
module attributes {stable_mosaic.version = 11 : i64} {
  func.func @_unet_fused_kernel(%arg0: i32, %arg1: memref<1x16x16x3xf32, #tpu.memory_space<vmem>>, %arg2: memref<3x3x3x32xf32, #tpu.memory_space<vmem>>, %arg3: memref<1x32xf32, #tpu.memory_space<vmem>>, %arg4: memref<3x3x32x64xf32, #tpu.memory_space<vmem>>, %arg5: memref<1x64xf32, #tpu.memory_space<vmem>>, %arg6: memref<64x128xf32, #tpu.memory_space<vmem>>, %arg7: memref<1x128xf32, #tpu.memory_space<vmem>>, %arg8: memref<128x16xf32, #tpu.memory_space<vmem>>, %arg9: memref<1x16xf32, #tpu.memory_space<vmem>>, %arg10: memref<1x4x4x16xf32, #tpu.memory_space<vmem>>, %arg11: memref<18x25x3xf32, #tpu.memory_space<vmem>>, %arg12: memref<10x17x32xf32, #tpu.memory_space<vmem>>) attributes {dimension_semantics = [#tpu.dimension_semantics<parallel>], iteration_bounds = array<i64: 2>, scalar_prefetch = 0 : i64, scratch_operands = 2 : i64, tpu.core_type = #tpu.core_type<tc>, window_params = [{transform_indices = @transform_0, window_bounds = array<i64: 1, 16, 16, 3>}, {pipeline_mode = #tpu.pipeline_mode<synchronous>, transform_indices = @transform_1, window_bounds = array<i64: 3, 3, 3, 32>}, {pipeline_mode = #tpu.pipeline_mode<synchronous>, transform_indices = @transform_2, window_bounds = array<i64: 1, 32>}, {pipeline_mode = #tpu.pipeline_mode<synchronous>, transform_indices = @transform_3, window_bounds = array<i64: 3, 3, 32, 64>}, {pipeline_mode = #tpu.pipeline_mode<synchronous>, transform_indices = @transform_4, window_bounds = array<i64: 1, 64>}, {pipeline_mode = #tpu.pipeline_mode<synchronous>, transform_indices = @transform_5, window_bounds = array<i64: 64, 128>}, {pipeline_mode = #tpu.pipeline_mode<synchronous>, transform_indices = @transform_6, window_bounds = array<i64: 1, 128>}, {pipeline_mode = #tpu.pipeline_mode<synchronous>, transform_indices = @transform_7, window_bounds = array<i64: 128, 16>}, {pipeline_mode = #tpu.pipeline_mode<synchronous>, transform_indices = @transform_8, window_bounds = array<i64: 1, 16>}, {transform_indices = @transform_9, window_bounds = array<i64: 1, 4, 4, 16>}]} {
    %cst = arith.constant 0.000000e+00 : f32
    %0 = vector.broadcast %cst : f32 to vector<18x25x3xf32>
    %c0 = arith.constant 0 : index
    %c0_0 = arith.constant 0 : index
    %c0_1 = arith.constant 0 : index
    %1 = vector.load %arg11[%c0, %c0_0, %c0_1] : memref<18x25x3xf32, #tpu.memory_space<vmem>>, vector<18x25x3xf32>
    tpu.vector_store %arg11[%c0, %c0_0, %c0_1], %0 {strides = array<i32>} : memref<18x25x3xf32, #tpu.memory_space<vmem>>, vector<18x25x3xf32>,
    %c0_2 = arith.constant 0 : index
    %c0_3 = arith.constant 0 : index
    %c0_4 = arith.constant 0 : index
    %c0_5 = arith.constant 0 : index
    %2 = vector.load %arg1[%c0_2, %c0_3, %c0_4, %c0_5] : memref<1x16x16x3xf32, #tpu.memory_space<vmem>>, vector<1x16x16x3xf32>
    %3 = vector.shape_cast %2 : vector<1x16x16x3xf32> to vector<16x16x3xf32>
    %c1 = arith.constant 1 : index
    %c8 = arith.constant 8 : index
    %c0_6 = arith.constant 0 : index
    %4 = vector.load %arg11[%c1, %c8, %c0_6] : memref<18x25x3xf32, #tpu.memory_space<vmem>>, vector<16x16x3xf32>
    tpu.vector_store %arg11[%c1, %c8, %c0_6], %3 {strides = array<i32>} : memref<18x25x3xf32, #tpu.memory_space<vmem>>, vector<16x16x3xf32>,
    %cst_7 = arith.constant 0.000000e+00 : f32
    %5 = vector.broadcast %cst_7 : f32 to vector<16x16x32xf32>
    %c0_8 = arith.constant 0 : index
    %c7 = arith.constant 7 : index
    %c0_9 = arith.constant 0 : index
    %6 = vector.load %arg11[%c0_8, %c7, %c0_9] : memref<18x25x3xf32, #tpu.memory_space<vmem>>, vector<16x16x3xf32>
    %c0_10 = arith.constant 0 : index
    %c0_11 = arith.constant 0 : index
    %c0_12 = arith.constant 0 : index
    %c0_13 = arith.constant 0 : index
    %7 = vector.load %arg2[%c0_10, %c0_11, %c0_12, %c0_13] : memref<3x3x3x32xf32, #tpu.memory_space<vmem>>, vector<1x1x3x32xf32>
    %8 = vector.shape_cast %7 : vector<1x1x3x32xf32> to vector<3x32xf32>
    %cst_14 = arith.constant dense<0.000000e+00> : vector<16x16x32xf32>
    %9 = tpu.matmul %6, %8, %cst_14 {dimension_numbers = #tpu.dot_dimension_numbers<[2], [0], [0, 1], [1], [0, 0, 0, 1, 1, 1], [], []>} : vector<16x16x3xf32>, vector<3x32xf32>, vector<16x16x32xf32> -> vector<16x16x32xf32>
    %10 = arith.addf %5, %9 : vector<16x16x32xf32>
    %c0_15 = arith.constant 0 : index
    %c8_16 = arith.constant 8 : index
    %c0_17 = arith.constant 0 : index
    %11 = vector.load %arg11[%c0_15, %c8_16, %c0_17] : memref<18x25x3xf32, #tpu.memory_space<vmem>>, vector<16x16x3xf32>
    %c0_18 = arith.constant 0 : index
    %c1_19 = arith.constant 1 : index
    %c0_20 = arith.constant 0 : index
    %c0_21 = arith.constant 0 : index
    %12 = vector.load %arg2[%c0_18, %c1_19, %c0_20, %c0_21] : memref<3x3x3x32xf32, #tpu.memory_space<vmem>>, vector<1x1x3x32xf32>
    %13 = vector.shape_cast %12 : vector<1x1x3x32xf32> to vector<3x32xf32>
    %cst_22 = arith.constant dense<0.000000e+00> : vector<16x16x32xf32>
    %14 = tpu.matmul %11, %13, %cst_22 {dimension_numbers = #tpu.dot_dimension_numbers<[2], [0], [0, 1], [1], [0, 0, 0, 1, 1, 1], [], []>} : vector<16x16x3xf32>, vector<3x32xf32>, vector<16x16x32xf32> -> vector<16x16x32xf32>
    %15 = arith.addf %10, %14 : vector<16x16x32xf32>
    %c0_23 = arith.constant 0 : index
    %c9 = arith.constant 9 : index
    %c0_24 = arith.constant 0 : index
    %16 = vector.load %arg11[%c0_23, %c9, %c0_24] : memref<18x25x3xf32, #tpu.memory_space<vmem>>, vector<16x16x3xf32>
    %c0_25 = arith.constant 0 : index
    %c2 = arith.constant 2 : index
    %c0_26 = arith.constant 0 : index
    %c0_27 = arith.constant 0 : index
    %17 = vector.load %arg2[%c0_25, %c2, %c0_26, %c0_27] : memref<3x3x3x32xf32, #tpu.memory_space<vmem>>, vector<1x1x3x32xf32>
    %18 = vector.shape_cast %17 : vector<1x1x3x32xf32> to vector<3x32xf32>
    %cst_28 = arith.constant dense<0.000000e+00> : vector<16x16x32xf32>
    %19 = tpu.matmul %16, %18, %cst_28 {dimension_numbers = #tpu.dot_dimension_numbers<[2], [0], [0, 1], [1], [0, 0, 0, 1, 1, 1], [], []>} : vector<16x16x3xf32>, vector<3x32xf32>, vector<16x16x32xf32> -> vector<16x16x32xf32>
    %20 = arith.addf %15, %19 : vector<16x16x32xf32>
    %c1_29 = arith.constant 1 : index
    %c7_30 = arith.constant 7 : index
    %c0_31 = arith.constant 0 : index
    %21 = vector.load %arg11[%c1_29, %c7_30, %c0_31] : memref<18x25x3xf32, #tpu.memory_space<vmem>>, vector<16x16x3xf32>
    %c1_32 = arith.constant 1 : index
    %c0_33 = arith.constant 0 : index
    %c0_34 = arith.constant 0 : index
    %c0_35 = arith.constant 0 : index
    %22 = vector.load %arg2[%c1_32, %c0_33, %c0_34, %c0_35] : memref<3x3x3x32xf32, #tpu.memory_space<vmem>>, vector<1x1x3x32xf32>
    %23 = vector.shape_cast %22 : vector<1x1x3x32xf32> to vector<3x32xf32>
    %cst_36 = arith.constant dense<0.000000e+00> : vector<16x16x32xf32>
    %24 = tpu.matmul %21, %23, %cst_36 {dimension_numbers = #tpu.dot_dimension_numbers<[2], [0], [0, 1], [1], [0, 0, 0, 1, 1, 1], [], []>} : vector<16x16x3xf32>, vector<3x32xf32>, vector<16x16x32xf32> -> vector<16x16x32xf32>
    %25 = arith.addf %20, %24 : vector<16x16x32xf32>
    %c1_37 = arith.constant 1 : index
    %c8_38 = arith.constant 8 : index
    %c0_39 = arith.constant 0 : index
    %26 = vector.load %arg11[%c1_37, %c8_38, %c0_39] : memref<18x25x3xf32, #tpu.memory_space<vmem>>, vector<16x16x3xf32>
    %c1_40 = arith.constant 1 : index
    %c1_41 = arith.constant 1 : index
    %c0_42 = arith.constant 0 : index
    %c0_43 = arith.constant 0 : index
    %27 = vector.load %arg2[%c1_40, %c1_41, %c0_42, %c0_43] : memref<3x3x3x32xf32, #tpu.memory_space<vmem>>, vector<1x1x3x32xf32>
    %28 = vector.shape_cast %27 : vector<1x1x3x32xf32> to vector<3x32xf32>
    %cst_44 = arith.constant dense<0.000000e+00> : vector<16x16x32xf32>
    %29 = tpu.matmul %26, %28, %cst_44 {dimension_numbers = #tpu.dot_dimension_numbers<[2], [0], [0, 1], [1], [0, 0, 0, 1, 1, 1], [], []>} : vector<16x16x3xf32>, vector<3x32xf32>, vector<16x16x32xf32> -> vector<16x16x32xf32>
    %30 = arith.addf %25, %29 : vector<16x16x32xf32>
    %c1_45 = arith.constant 1 : index
    %c9_46 = arith.constant 9 : index
    %c0_47 = arith.constant 0 : index
    %31 = vector.load %arg11[%c1_45, %c9_46, %c0_47] : memref<18x25x3xf32, #tpu.memory_space<vmem>>, vector<16x16x3xf32>
    %c1_48 = arith.constant 1 : index
    %c2_49 = arith.constant 2 : index
    %c0_50 = arith.constant 0 : index
    %c0_51 = arith.constant 0 : index
    %32 = vector.load %arg2[%c1_48, %c2_49, %c0_50, %c0_51] : memref<3x3x3x32xf32, #tpu.memory_space<vmem>>, vector<1x1x3x32xf32>
    %33 = vector.shape_cast %32 : vector<1x1x3x32xf32> to vector<3x32xf32>
    %cst_52 = arith.constant dense<0.000000e+00> : vector<16x16x32xf32>
    %34 = tpu.matmul %31, %33, %cst_52 {dimension_numbers = #tpu.dot_dimension_numbers<[2], [0], [0, 1], [1], [0, 0, 0, 1, 1, 1], [], []>} : vector<16x16x3xf32>, vector<3x32xf32>, vector<16x16x32xf32> -> vector<16x16x32xf32>
    %35 = arith.addf %30, %34 : vector<16x16x32xf32>
    %c2_53 = arith.constant 2 : index
    %c7_54 = arith.constant 7 : index
    %c0_55 = arith.constant 0 : index
    %36 = vector.load %arg11[%c2_53, %c7_54, %c0_55] : memref<18x25x3xf32, #tpu.memory_space<vmem>>, vector<16x16x3xf32>
    %c2_56 = arith.constant 2 : index
    %c0_57 = arith.constant 0 : index
    %c0_58 = arith.constant 0 : index
    %c0_59 = arith.constant 0 : index
    %37 = vector.load %arg2[%c2_56, %c0_57, %c0_58, %c0_59] : memref<3x3x3x32xf32, #tpu.memory_space<vmem>>, vector<1x1x3x32xf32>
    %38 = vector.shape_cast %37 : vector<1x1x3x32xf32> to vector<3x32xf32>
    %cst_60 = arith.constant dense<0.000000e+00> : vector<16x16x32xf32>
    %39 = tpu.matmul %36, %38, %cst_60 {dimension_numbers = #tpu.dot_dimension_numbers<[2], [0], [0, 1], [1], [0, 0, 0, 1, 1, 1], [], []>} : vector<16x16x3xf32>, vector<3x32xf32>, vector<16x16x32xf32> -> vector<16x16x32xf32>
    %40 = arith.addf %35, %39 : vector<16x16x32xf32>
    %c2_61 = arith.constant 2 : index
    %c8_62 = arith.constant 8 : index
    %c0_63 = arith.constant 0 : index
    %41 = vector.load %arg11[%c2_61, %c8_62, %c0_63] : memref<18x25x3xf32, #tpu.memory_space<vmem>>, vector<16x16x3xf32>
    %c2_64 = arith.constant 2 : index
    %c1_65 = arith.constant 1 : index
    %c0_66 = arith.constant 0 : index
    %c0_67 = arith.constant 0 : index
    %42 = vector.load %arg2[%c2_64, %c1_65, %c0_66, %c0_67] : memref<3x3x3x32xf32, #tpu.memory_space<vmem>>, vector<1x1x3x32xf32>
    %43 = vector.shape_cast %42 : vector<1x1x3x32xf32> to vector<3x32xf32>
    %cst_68 = arith.constant dense<0.000000e+00> : vector<16x16x32xf32>
    %44 = tpu.matmul %41, %43, %cst_68 {dimension_numbers = #tpu.dot_dimension_numbers<[2], [0], [0, 1], [1], [0, 0, 0, 1, 1, 1], [], []>} : vector<16x16x3xf32>, vector<3x32xf32>, vector<16x16x32xf32> -> vector<16x16x32xf32>
    %45 = arith.addf %40, %44 : vector<16x16x32xf32>
    %c2_69 = arith.constant 2 : index
    %c9_70 = arith.constant 9 : index
    %c0_71 = arith.constant 0 : index
    %46 = vector.load %arg11[%c2_69, %c9_70, %c0_71] : memref<18x25x3xf32, #tpu.memory_space<vmem>>, vector<16x16x3xf32>
    %c2_72 = arith.constant 2 : index
    %c2_73 = arith.constant 2 : index
    %c0_74 = arith.constant 0 : index
    %c0_75 = arith.constant 0 : index
    %47 = vector.load %arg2[%c2_72, %c2_73, %c0_74, %c0_75] : memref<3x3x3x32xf32, #tpu.memory_space<vmem>>, vector<1x1x3x32xf32>
    %48 = vector.shape_cast %47 : vector<1x1x3x32xf32> to vector<3x32xf32>
    %cst_76 = arith.constant dense<0.000000e+00> : vector<16x16x32xf32>
    %49 = tpu.matmul %46, %48, %cst_76 {dimension_numbers = #tpu.dot_dimension_numbers<[2], [0], [0, 1], [1], [0, 0, 0, 1, 1, 1], [], []>} : vector<16x16x3xf32>, vector<3x32xf32>, vector<16x16x32xf32> -> vector<16x16x32xf32>
    %50 = arith.addf %45, %49 : vector<16x16x32xf32>
    %c0_77 = arith.constant 0 : index
    %c0_78 = arith.constant 0 : index
    %51 = vector.load %arg3[%c0_77, %c0_78] : memref<1x32xf32, #tpu.memory_space<vmem>>, vector<1x32xf32>
    %52 = vector.shape_cast %51 : vector<1x32xf32> to vector<32xf32>
    %53 = vector.shape_cast %52 : vector<32xf32> to vector<1x1x32xf32>
    %54 = vector.broadcast %53 : vector<1x1x32xf32> to vector<16x16x32xf32>
    %55 = arith.addf %50, %54 : vector<16x16x32xf32>
    %cst_79 = arith.constant 0.000000e+00 : f32
    %56 = vector.broadcast %cst_79 : f32 to vector<16x16x32xf32>
    %57 = arith.maximumf %55, %56 : vector<16x16x32xf32>
    %58 = vector.shape_cast %57 : vector<16x16x32xf32> to vector<8x2x16x32xf32>
    %59 = vector.extract_strided_slice %58 {offsets = [0, 0, 0, 0], sizes = [8, 1, 16, 32], strides = [1, 1, 1, 1]} : vector<8x2x16x32xf32> to vector<8x1x16x32xf32>
    %60 = vector.shape_cast %59 : vector<8x1x16x32xf32> to vector<8x16x32xf32>
    %61 = vector.extract_strided_slice %58 {offsets = [0, 1, 0, 0], sizes = [8, 1, 16, 32], strides = [1, 1, 1, 1]} : vector<8x2x16x32xf32> to vector<8x1x16x32xf32>
    %62 = vector.shape_cast %61 : vector<8x1x16x32xf32> to vector<8x16x32xf32>
    %63 = arith.maximumf %60, %62 : vector<8x16x32xf32>
    %64 = vector.shape_cast %63 : vector<8x16x32xf32> to vector<8x8x2x32xf32>
    %65 = vector.extract_strided_slice %64 {offsets = [0, 0, 0, 0], sizes = [8, 8, 1, 32], strides = [1, 1, 1, 1]} : vector<8x8x2x32xf32> to vector<8x8x1x32xf32>
    %66 = vector.shape_cast %65 : vector<8x8x1x32xf32> to vector<8x8x32xf32>
    %67 = vector.extract_strided_slice %64 {offsets = [0, 0, 1, 0], sizes = [8, 8, 1, 32], strides = [1, 1, 1, 1]} : vector<8x8x2x32xf32> to vector<8x8x1x32xf32>
    %68 = vector.shape_cast %67 : vector<8x8x1x32xf32> to vector<8x8x32xf32>
    %69 = arith.maximumf %66, %68 : vector<8x8x32xf32>
    %cst_80 = arith.constant 0.000000e+00 : f32
    %70 = vector.broadcast %cst_80 : f32 to vector<10x17x32xf32>
    %c0_81 = arith.constant 0 : index
    %c0_82 = arith.constant 0 : index
    %c0_83 = arith.constant 0 : index
    %71 = vector.load %arg12[%c0_81, %c0_82, %c0_83] : memref<10x17x32xf32, #tpu.memory_space<vmem>>, vector<10x17x32xf32>
    tpu.vector_store %arg12[%c0_81, %c0_82, %c0_83], %70 {strides = array<i32>} : memref<10x17x32xf32, #tpu.memory_space<vmem>>, vector<10x17x32xf32>,
    %c1_84 = arith.constant 1 : index
    %c8_85 = arith.constant 8 : index
    %c0_86 = arith.constant 0 : index
    %72 = vector.load %arg12[%c1_84, %c8_85, %c0_86] : memref<10x17x32xf32, #tpu.memory_space<vmem>>, vector<8x8x32xf32>
    tpu.vector_store %arg12[%c1_84, %c8_85, %c0_86], %69 {strides = array<i32>} : memref<10x17x32xf32, #tpu.memory_space<vmem>>, vector<8x8x32xf32>,
    %cst_87 = arith.constant 0.000000e+00 : f32
    %73 = vector.broadcast %cst_87 : f32 to vector<8x8x64xf32>
    %c0_88 = arith.constant 0 : index
    %c7_89 = arith.constant 7 : index
    %c0_90 = arith.constant 0 : index
    %74 = vector.load %arg12[%c0_88, %c7_89, %c0_90] : memref<10x17x32xf32, #tpu.memory_space<vmem>>, vector<8x8x32xf32>
    %c0_91 = arith.constant 0 : index
    %c0_92 = arith.constant 0 : index
    %c0_93 = arith.constant 0 : index
    %c0_94 = arith.constant 0 : index
    %75 = vector.load %arg4[%c0_91, %c0_92, %c0_93, %c0_94] : memref<3x3x32x64xf32, #tpu.memory_space<vmem>>, vector<1x1x32x64xf32>
    %76 = vector.shape_cast %75 : vector<1x1x32x64xf32> to vector<32x64xf32>
    %cst_95 = arith.constant dense<0.000000e+00> : vector<8x8x64xf32>
    %77 = tpu.matmul %74, %76, %cst_95 {dimension_numbers = #tpu.dot_dimension_numbers<[2], [0], [0, 1], [1], [0, 0, 0, 1, 1, 1], [], []>} : vector<8x8x32xf32>, vector<32x64xf32>, vector<8x8x64xf32> -> vector<8x8x64xf32>
    %78 = arith.addf %73, %77 : vector<8x8x64xf32>
    %c0_96 = arith.constant 0 : index
    %c8_97 = arith.constant 8 : index
    %c0_98 = arith.constant 0 : index
    %79 = vector.load %arg12[%c0_96, %c8_97, %c0_98] : memref<10x17x32xf32, #tpu.memory_space<vmem>>, vector<8x8x32xf32>
    %c0_99 = arith.constant 0 : index
    %c1_100 = arith.constant 1 : index
    %c0_101 = arith.constant 0 : index
    %c0_102 = arith.constant 0 : index
    %80 = vector.load %arg4[%c0_99, %c1_100, %c0_101, %c0_102] : memref<3x3x32x64xf32, #tpu.memory_space<vmem>>, vector<1x1x32x64xf32>
    %81 = vector.shape_cast %80 : vector<1x1x32x64xf32> to vector<32x64xf32>
    %cst_103 = arith.constant dense<0.000000e+00> : vector<8x8x64xf32>
    %82 = tpu.matmul %79, %81, %cst_103 {dimension_numbers = #tpu.dot_dimension_numbers<[2], [0], [0, 1], [1], [0, 0, 0, 1, 1, 1], [], []>} : vector<8x8x32xf32>, vector<32x64xf32>, vector<8x8x64xf32> -> vector<8x8x64xf32>
    %83 = arith.addf %78, %82 : vector<8x8x64xf32>
    %c0_104 = arith.constant 0 : index
    %c9_105 = arith.constant 9 : index
    %c0_106 = arith.constant 0 : index
    %84 = vector.load %arg12[%c0_104, %c9_105, %c0_106] : memref<10x17x32xf32, #tpu.memory_space<vmem>>, vector<8x8x32xf32>
    %c0_107 = arith.constant 0 : index
    %c2_108 = arith.constant 2 : index
    %c0_109 = arith.constant 0 : index
    %c0_110 = arith.constant 0 : index
    %85 = vector.load %arg4[%c0_107, %c2_108, %c0_109, %c0_110] : memref<3x3x32x64xf32, #tpu.memory_space<vmem>>, vector<1x1x32x64xf32>
    %86 = vector.shape_cast %85 : vector<1x1x32x64xf32> to vector<32x64xf32>
    %cst_111 = arith.constant dense<0.000000e+00> : vector<8x8x64xf32>
    %87 = tpu.matmul %84, %86, %cst_111 {dimension_numbers = #tpu.dot_dimension_numbers<[2], [0], [0, 1], [1], [0, 0, 0, 1, 1, 1], [], []>} : vector<8x8x32xf32>, vector<32x64xf32>, vector<8x8x64xf32> -> vector<8x8x64xf32>
    %88 = arith.addf %83, %87 : vector<8x8x64xf32>
    %c1_112 = arith.constant 1 : index
    %c7_113 = arith.constant 7 : index
    %c0_114 = arith.constant 0 : index
    %89 = vector.load %arg12[%c1_112, %c7_113, %c0_114] : memref<10x17x32xf32, #tpu.memory_space<vmem>>, vector<8x8x32xf32>
    %c1_115 = arith.constant 1 : index
    %c0_116 = arith.constant 0 : index
    %c0_117 = arith.constant 0 : index
    %c0_118 = arith.constant 0 : index
    %90 = vector.load %arg4[%c1_115, %c0_116, %c0_117, %c0_118] : memref<3x3x32x64xf32, #tpu.memory_space<vmem>>, vector<1x1x32x64xf32>
    %91 = vector.shape_cast %90 : vector<1x1x32x64xf32> to vector<32x64xf32>
    %cst_119 = arith.constant dense<0.000000e+00> : vector<8x8x64xf32>
    %92 = tpu.matmul %89, %91, %cst_119 {dimension_numbers = #tpu.dot_dimension_numbers<[2], [0], [0, 1], [1], [0, 0, 0, 1, 1, 1], [], []>} : vector<8x8x32xf32>, vector<32x64xf32>, vector<8x8x64xf32> -> vector<8x8x64xf32>
    %93 = arith.addf %88, %92 : vector<8x8x64xf32>
    %c1_120 = arith.constant 1 : index
    %c8_121 = arith.constant 8 : index
    %c0_122 = arith.constant 0 : index
    %94 = vector.load %arg12[%c1_120, %c8_121, %c0_122] : memref<10x17x32xf32, #tpu.memory_space<vmem>>, vector<8x8x32xf32>
    %c1_123 = arith.constant 1 : index
    %c1_124 = arith.constant 1 : index
    %c0_125 = arith.constant 0 : index
    %c0_126 = arith.constant 0 : index
    %95 = vector.load %arg4[%c1_123, %c1_124, %c0_125, %c0_126] : memref<3x3x32x64xf32, #tpu.memory_space<vmem>>, vector<1x1x32x64xf32>
    %96 = vector.shape_cast %95 : vector<1x1x32x64xf32> to vector<32x64xf32>
    %cst_127 = arith.constant dense<0.000000e+00> : vector<8x8x64xf32>
    %97 = tpu.matmul %94, %96, %cst_127 {dimension_numbers = #tpu.dot_dimension_numbers<[2], [0], [0, 1], [1], [0, 0, 0, 1, 1, 1], [], []>} : vector<8x8x32xf32>, vector<32x64xf32>, vector<8x8x64xf32> -> vector<8x8x64xf32>
    %98 = arith.addf %93, %97 : vector<8x8x64xf32>
    %c1_128 = arith.constant 1 : index
    %c9_129 = arith.constant 9 : index
    %c0_130 = arith.constant 0 : index
    %99 = vector.load %arg12[%c1_128, %c9_129, %c0_130] : memref<10x17x32xf32, #tpu.memory_space<vmem>>, vector<8x8x32xf32>
    %c1_131 = arith.constant 1 : index
    %c2_132 = arith.constant 2 : index
    %c0_133 = arith.constant 0 : index
    %c0_134 = arith.constant 0 : index
    %100 = vector.load %arg4[%c1_131, %c2_132, %c0_133, %c0_134] : memref<3x3x32x64xf32, #tpu.memory_space<vmem>>, vector<1x1x32x64xf32>
    %101 = vector.shape_cast %100 : vector<1x1x32x64xf32> to vector<32x64xf32>
    %cst_135 = arith.constant dense<0.000000e+00> : vector<8x8x64xf32>
    %102 = tpu.matmul %99, %101, %cst_135 {dimension_numbers = #tpu.dot_dimension_numbers<[2], [0], [0, 1], [1], [0, 0, 0, 1, 1, 1], [], []>} : vector<8x8x32xf32>, vector<32x64xf32>, vector<8x8x64xf32> -> vector<8x8x64xf32>
    %103 = arith.addf %98, %102 : vector<8x8x64xf32>
    %c2_136 = arith.constant 2 : index
    %c7_137 = arith.constant 7 : index
    %c0_138 = arith.constant 0 : index
    %104 = vector.load %arg12[%c2_136, %c7_137, %c0_138] : memref<10x17x32xf32, #tpu.memory_space<vmem>>, vector<8x8x32xf32>
    %c2_139 = arith.constant 2 : index
    %c0_140 = arith.constant 0 : index
    %c0_141 = arith.constant 0 : index
    %c0_142 = arith.constant 0 : index
    %105 = vector.load %arg4[%c2_139, %c0_140, %c0_141, %c0_142] : memref<3x3x32x64xf32, #tpu.memory_space<vmem>>, vector<1x1x32x64xf32>
    %106 = vector.shape_cast %105 : vector<1x1x32x64xf32> to vector<32x64xf32>
    %cst_143 = arith.constant dense<0.000000e+00> : vector<8x8x64xf32>
    %107 = tpu.matmul %104, %106, %cst_143 {dimension_numbers = #tpu.dot_dimension_numbers<[2], [0], [0, 1], [1], [0, 0, 0, 1, 1, 1], [], []>} : vector<8x8x32xf32>, vector<32x64xf32>, vector<8x8x64xf32> -> vector<8x8x64xf32>
    %108 = arith.addf %103, %107 : vector<8x8x64xf32>
    %c2_144 = arith.constant 2 : index
    %c8_145 = arith.constant 8 : index
    %c0_146 = arith.constant 0 : index
    %109 = vector.load %arg12[%c2_144, %c8_145, %c0_146] : memref<10x17x32xf32, #tpu.memory_space<vmem>>, vector<8x8x32xf32>
    %c2_147 = arith.constant 2 : index
    %c1_148 = arith.constant 1 : index
    %c0_149 = arith.constant 0 : index
    %c0_150 = arith.constant 0 : index
    %110 = vector.load %arg4[%c2_147, %c1_148, %c0_149, %c0_150] : memref<3x3x32x64xf32, #tpu.memory_space<vmem>>, vector<1x1x32x64xf32>
    %111 = vector.shape_cast %110 : vector<1x1x32x64xf32> to vector<32x64xf32>
    %cst_151 = arith.constant dense<0.000000e+00> : vector<8x8x64xf32>
    %112 = tpu.matmul %109, %111, %cst_151 {dimension_numbers = #tpu.dot_dimension_numbers<[2], [0], [0, 1], [1], [0, 0, 0, 1, 1, 1], [], []>} : vector<8x8x32xf32>, vector<32x64xf32>, vector<8x8x64xf32> -> vector<8x8x64xf32>
    %113 = arith.addf %108, %112 : vector<8x8x64xf32>
    %c2_152 = arith.constant 2 : index
    %c9_153 = arith.constant 9 : index
    %c0_154 = arith.constant 0 : index
    %114 = vector.load %arg12[%c2_152, %c9_153, %c0_154] : memref<10x17x32xf32, #tpu.memory_space<vmem>>, vector<8x8x32xf32>
    %c2_155 = arith.constant 2 : index
    %c2_156 = arith.constant 2 : index
    %c0_157 = arith.constant 0 : index
    %c0_158 = arith.constant 0 : index
    %115 = vector.load %arg4[%c2_155, %c2_156, %c0_157, %c0_158] : memref<3x3x32x64xf32, #tpu.memory_space<vmem>>, vector<1x1x32x64xf32>
    %116 = vector.shape_cast %115 : vector<1x1x32x64xf32> to vector<32x64xf32>
    %cst_159 = arith.constant dense<0.000000e+00> : vector<8x8x64xf32>
    %117 = tpu.matmul %114, %116, %cst_159 {dimension_numbers = #tpu.dot_dimension_numbers<[2], [0], [0, 1], [1], [0, 0, 0, 1, 1, 1], [], []>} : vector<8x8x32xf32>, vector<32x64xf32>, vector<8x8x64xf32> -> vector<8x8x64xf32>
    %118 = arith.addf %113, %117 : vector<8x8x64xf32>
    %c0_160 = arith.constant 0 : index
    %c0_161 = arith.constant 0 : index
    %119 = vector.load %arg5[%c0_160, %c0_161] : memref<1x64xf32, #tpu.memory_space<vmem>>, vector<1x64xf32>
    %120 = vector.shape_cast %119 : vector<1x64xf32> to vector<64xf32>
    %121 = vector.shape_cast %120 : vector<64xf32> to vector<1x1x64xf32>
    %122 = vector.broadcast %121 : vector<1x1x64xf32> to vector<8x8x64xf32>
    %123 = arith.addf %118, %122 : vector<8x8x64xf32>
    %cst_162 = arith.constant 0.000000e+00 : f32
    %124 = vector.broadcast %cst_162 : f32 to vector<8x8x64xf32>
    %125 = arith.maximumf %123, %124 : vector<8x8x64xf32>
    %126 = vector.shape_cast %125 : vector<8x8x64xf32> to vector<4x2x8x64xf32>
    %127 = vector.extract_strided_slice %126 {offsets = [0, 0, 0, 0], sizes = [4, 1, 8, 64], strides = [1, 1, 1, 1]} : vector<4x2x8x64xf32> to vector<4x1x8x64xf32>
    %128 = vector.shape_cast %127 : vector<4x1x8x64xf32> to vector<4x8x64xf32>
    %129 = vector.extract_strided_slice %126 {offsets = [0, 1, 0, 0], sizes = [4, 1, 8, 64], strides = [1, 1, 1, 1]} : vector<4x2x8x64xf32> to vector<4x1x8x64xf32>
    %130 = vector.shape_cast %129 : vector<4x1x8x64xf32> to vector<4x8x64xf32>
    %131 = arith.maximumf %128, %130 : vector<4x8x64xf32>
    %132 = vector.shape_cast %131 : vector<4x8x64xf32> to vector<4x4x2x64xf32>
    %133 = vector.extract_strided_slice %132 {offsets = [0, 0, 0, 0], sizes = [4, 4, 1, 64], strides = [1, 1, 1, 1]} : vector<4x4x2x64xf32> to vector<4x4x1x64xf32>
    %134 = vector.shape_cast %133 : vector<4x4x1x64xf32> to vector<4x4x64xf32>
    %135 = vector.extract_strided_slice %132 {offsets = [0, 0, 1, 0], sizes = [4, 4, 1, 64], strides = [1, 1, 1, 1]} : vector<4x4x2x64xf32> to vector<4x4x1x64xf32>
    %136 = vector.shape_cast %135 : vector<4x4x1x64xf32> to vector<4x4x64xf32>
    %137 = arith.maximumf %134, %136 : vector<4x4x64xf32>
    %c0_163 = arith.constant 0 : index
    %c0_164 = arith.constant 0 : index
    %138 = vector.load %arg6[%c0_163, %c0_164] : memref<64x128xf32, #tpu.memory_space<vmem>>, vector<64x128xf32>
    %cst_165 = arith.constant dense<0.000000e+00> : vector<4x4x128xf32>
    %139 = tpu.matmul %137, %138, %cst_165 {dimension_numbers = #tpu.dot_dimension_numbers<[2], [0], [0, 1], [1], [0, 0, 0, 1, 1, 1], [], []>} : vector<4x4x64xf32>, vector<64x128xf32>, vector<4x4x128xf32> -> vector<4x4x128xf32>
    %c0_166 = arith.constant 0 : index
    %c0_167 = arith.constant 0 : index
    %140 = vector.load %arg7[%c0_166, %c0_167] : memref<1x128xf32, #tpu.memory_space<vmem>>, vector<1x128xf32>
    %141 = vector.shape_cast %140 : vector<1x128xf32> to vector<128xf32>
    %142 = vector.shape_cast %141 : vector<128xf32> to vector<1x1x128xf32>
    %143 = vector.broadcast %142 : vector<1x1x128xf32> to vector<4x4x128xf32>
    %144 = arith.addf %139, %143 : vector<4x4x128xf32>
    %cst_168 = arith.constant 0.000000e+00 : f32
    %145 = vector.broadcast %cst_168 : f32 to vector<4x4x128xf32>
    %146 = arith.maximumf %144, %145 : vector<4x4x128xf32>
    %c0_169 = arith.constant 0 : index
    %c0_170 = arith.constant 0 : index
    %147 = vector.load %arg8[%c0_169, %c0_170] : memref<128x16xf32, #tpu.memory_space<vmem>>, vector<128x16xf32>
    %cst_171 = arith.constant dense<0.000000e+00> : vector<4x4x16xf32>
    %148 = tpu.matmul %146, %147, %cst_171 {dimension_numbers = #tpu.dot_dimension_numbers<[2], [0], [0, 1], [1], [0, 0, 0, 1, 1, 1], [], []>} : vector<4x4x128xf32>, vector<128x16xf32>, vector<4x4x16xf32> -> vector<4x4x16xf32>
    %c0_172 = arith.constant 0 : index
    %c0_173 = arith.constant 0 : index
    %149 = vector.load %arg9[%c0_172, %c0_173] : memref<1x16xf32, #tpu.memory_space<vmem>>, vector<1x16xf32>
    %150 = vector.shape_cast %149 : vector<1x16xf32> to vector<16xf32>
    %151 = vector.shape_cast %150 : vector<16xf32> to vector<1x1x16xf32>
    %152 = vector.broadcast %151 : vector<1x1x16xf32> to vector<4x4x16xf32>
    %153 = arith.addf %148, %152 : vector<4x4x16xf32>
    %154 = arith.negf %153 : vector<4x4x16xf32>
    %155 = math.exp %154 : vector<4x4x16xf32>
    %cst_174 = arith.constant 1.000000e+00 : f32
    %156 = vector.broadcast %cst_174 : f32 to vector<4x4x16xf32>
    %157 = arith.addf %156, %155 : vector<4x4x16xf32>
    %158 = arith.divf %156, %157 : vector<4x4x16xf32>
    %c0_175 = arith.constant 0 : index
    %c0_176 = arith.constant 0 : index
    %c0_177 = arith.constant 0 : index
    %c0_178 = arith.constant 0 : index
    %159 = vector.load %arg10[%c0_175, %c0_176, %c0_177, %c0_178] : memref<1x4x4x16xf32, #tpu.memory_space<vmem>>, vector<1x4x4x16xf32>
    %160 = vector.shape_cast %159 : vector<1x4x4x16xf32> to vector<4x4x16xf32>
    %161 = vector.shape_cast %158 : vector<4x4x16xf32> to vector<1x4x4x16xf32>
    tpu.vector_store %arg10[%c0_175, %c0_176, %c0_177, %c0_178], %161 {strides = array<i32>} : memref<1x4x4x16xf32, #tpu.memory_space<vmem>>, vector<1x4x4x16xf32>,
    return
  }
  func.func @transform_0(%arg0: i32) -> (i32, i32, i32, i32) {
    %c0_i32 = arith.constant 0 : i32
    %c0_i32_0 = arith.constant 0 : i32
    %c0_i32_1 = arith.constant 0 : i32
    %c0_i32_2 = arith.constant 0 : i32
    return %arg0, %c0_i32, %c0_i32_0, %c0_i32_1 : i32, i32, i32, i32
  }
  func.func @transform_1(%arg0: i32) -> (i32, i32, i32, i32) {
    %c0_i32 = arith.constant 0 : i32
    %c0_i32_0 = arith.constant 0 : i32
    %c0_i32_1 = arith.constant 0 : i32
    %c0_i32_2 = arith.constant 0 : i32
    %c0_i32_3 = arith.constant 0 : i32
    return %c0_i32, %c0_i32_0, %c0_i32_1, %c0_i32_2 : i32, i32, i32, i32
  }
  func.func @transform_2(%arg0: i32) -> (i32, i32) {
    %c0_i32 = arith.constant 0 : i32
    %c0_i32_0 = arith.constant 0 : i32
    %c0_i32_1 = arith.constant 0 : i32
    return %c0_i32, %c0_i32_0 : i32, i32
  }
  func.func @transform_3(%arg0: i32) -> (i32, i32, i32, i32) {
    %c0_i32 = arith.constant 0 : i32
    %c0_i32_0 = arith.constant 0 : i32
    %c0_i32_1 = arith.constant 0 : i32
    %c0_i32_2 = arith.constant 0 : i32
    %c0_i32_3 = arith.constant 0 : i32
    return %c0_i32, %c0_i32_0, %c0_i32_1, %c0_i32_2 : i32, i32, i32, i32
  }
  func.func @transform_4(%arg0: i32) -> (i32, i32) {
    %c0_i32 = arith.constant 0 : i32
    %c0_i32_0 = arith.constant 0 : i32
    %c0_i32_1 = arith.constant 0 : i32
    return %c0_i32, %c0_i32_0 : i32, i32
  }
  func.func @transform_5(%arg0: i32) -> (i32, i32) {
    %c0_i32 = arith.constant 0 : i32
    %c0_i32_0 = arith.constant 0 : i32
    %c0_i32_1 = arith.constant 0 : i32
    return %c0_i32, %c0_i32_0 : i32, i32
  }
  func.func @transform_6(%arg0: i32) -> (i32, i32) {
    %c0_i32 = arith.constant 0 : i32
    %c0_i32_0 = arith.constant 0 : i32
    %c0_i32_1 = arith.constant 0 : i32
    return %c0_i32, %c0_i32_0 : i32, i32
  }
  func.func @transform_7(%arg0: i32) -> (i32, i32) {
    %c0_i32 = arith.constant 0 : i32
    %c0_i32_0 = arith.constant 0 : i32
    %c0_i32_1 = arith.constant 0 : i32
    return %c0_i32, %c0_i32_0 : i32, i32
  }
  func.func @transform_8(%arg0: i32) -> (i32, i32) {
    %c0_i32 = arith.constant 0 : i32
    %c0_i32_0 = arith.constant 0 : i32
    %c0_i32_1 = arith.constant 0 : i32
    return %c0_i32, %c0_i32_0 : i32, i32
  }
  func.func @transform_9(%arg0: i32) -> (i32, i32, i32, i32) {
    %c0_i32 = arith.constant 0 : i32
    %c0_i32_0 = arith.constant 0 : i32
    %c0_i32_1 = arith.constant 0 : i32
    %c0_i32_2 = arith.constant 0 : i32
    return %arg0, %c0_i32, %c0_i32_0, %c0_i32_1 : i32, i32, i32, i32
  }
}

</mosaic_0001>

<llo_original>
// kernel: simple_unet_forward.1
$region0: #{simple_unet_forward.1}
  #allocation0 [shape = 'u32[]', space=smem, size = 0x4, offset = 0x4, fixed_abs, tag = 'smem constant byte address 0x4 - core index']
  #allocation1 [shape = 'u32[144,128]{1,0:T(1,128)}', space=vmem, size = 0x12000, scoped, tag = 'internal scratch']
  #allocation2 [shape = 'f32[18,25,3]{2,1,0:T(8,128)}', space=vmem, size = 0x48000, scoped, tag = 'scratch operand']
  #allocation3 [shape = 'f32[10,17,32]{2,1,0:T(8,128)}', space=vmem, size = 0x1e000, scoped, tag = 'scratch operand']
  %s0 = inlined_call_operand.vmem [shape: f32[2,16,16,3], index: 0, kind: input, shape index: {}]
  %s1 = inlined_call_operand.vmem [shape: f32[3,3,3,32], index: 1, kind: input, shape index: {}]
  %s2 = inlined_call_operand.vmem [shape: f32[1,32], index: 2, kind: input, shape index: {}]
  %s3 = inlined_call_operand.vmem [shape: f32[3,3,32,64], index: 3, kind: input, shape index: {}]
  %s4 = inlined_call_operand.vmem [shape: f32[1,64], index: 4, kind: input, shape index: {}]
  %s5 = inlined_call_operand.vmem [shape: f32[64,128], index: 5, kind: input, shape index: {}]
  %s6 = inlined_call_operand.vmem [shape: f32[1,128], index: 6, kind: input, shape index: {}]
  %s7 = inlined_call_operand.vmem [shape: f32[128,16], index: 7, kind: input, shape index: {}]
  %s8 = inlined_call_operand.vmem [shape: f32[1,16], index: 8, kind: input, shape index: {}]
  %s9 = inlined_call_operand.vmem [shape: f32[2,4,4,16], index: 9, kind: output, shape index: {}]
  %s10 = sld [smem:[#allocation0]]
  $region69: #{simple_unet_forward.1} parent=0
    _
  %s12 = ssub.s32 1, %s10
  %s13 = scalar_select 0, %s12, %s10
  loop: start=0, step=1, limit=4
  $region2: #{simple_unet_forward.1} parent=0 // loop_pre_header
    _
  $region3: #{simple_unet_forward.1} parent=0 // loop_header
    %s15 = sphi 0, %s19
    %p16 = scmp.ge.s32.totalorder %s15, 4
    %s25 = sphi 0, %s27
    %s28 = sphi 0, %s25
    %s29 = sphi 0, %s28
    %s45 = sphi 0, %s29
    %s49 = sphi 0, %s49
    %s51 = sphi 0, %s49
    %s52 = sphi 0, %s51
    %s66 = sphi 0, %s52
    %s70 = sphi 0, %s70
    %s72 = sphi 0, %s70
    %s73 = sphi 0, %s72
    %s87 = sphi 0, %s73
    %s91 = sphi 0, %s91
    %s93 = sphi 0, %s91
    %s94 = sphi 0, %s93
    %s108 = sphi 0, %s94
    %s112 = sphi 0, %s112
    %s114 = sphi 0, %s112
    %s115 = sphi 0, %s114
    %s129 = sphi 0, %s115
    %s133 = sphi 0, %s133
    %s135 = sphi 0, %s133
    %s136 = sphi 0, %s135
    %s150 = sphi 0, %s136
    %s154 = sphi 0, %s154
    %s156 = sphi 0, %s154
    %s157 = sphi 0, %s156
    %s171 = sphi 0, %s157
    %s175 = sphi 0, %s175
    %s177 = sphi 0, %s175
    %s178 = sphi 0, %s177
    %s192 = sphi 0, %s178
    %s196 = sphi 0, %s196
    %s198 = sphi 0, %s196
    %s199 = sphi 0, %s198
    %s213 = sphi 0, %s199
    %s219 = sphi 0, %s221
    %s222 = sphi 0, %s219
    %s223 = sphi 0, %s222
    %s239 = sphi 0, %s223
  $region4: #{simple_unet_forward.1} parent=0 // loop_header_branch
    %18 = sbr.rel (%p16) target = $region8
  $region5: #{simple_unet_forward.1} parent=0 // loop_body
    %s20 = ssub.s32 %s15, 1
    %s21 = ssub.s32 %s15, 2
    %s22 = sadd.s32 %s15, 1
    %s23 = ssub.s32 %s15, %s22
    %p24 = scmp.eq.s32.totalorder %s23, 0
    %s26 = sadd.s32 %s25, 1
    %s27 = scalar_select %p24, %s25, %s26
    %p30 = pneg %p24
    %p31 = scmp.eq.s32.totalorder %s15, 1
    %p32 = por %p30, %p31
    %p33 = scmp.ne.s32.totalorder %s25, %s28
    %p34 = scmp.eq.s32.totalorder %s15, 0
    %p35 = por %p33, %p34
    %p36 = scmp.ne.s32.totalorder %s25, %s28
    %p37 = scmp.eq.s32.totalorder %s20, 1
    %p38 = por %p36, %p37
    %p39 = scmp.ne.s32.totalorder %s28, %s29
    %p40 = scmp.eq.s32.totalorder %s20, 0
    %p41 = por %p39, %p40
    %p42 = scmp.ne.s32.totalorder %s28, %s29
    %p43 = scmp.eq.s32.totalorder %s21, 1
    %p44 = por %p42, %p43
    %p46 = scmp.ne.s32.totalorder %s29, %s45
    %p47 = scmp.eq.s32.totalorder %s21, 0
    %p48 = por %p46, %p47
    %s50 = sadd.s32 %s49, 1
    %p53 = scmp.eq.s32.totalorder %s15, 1
    %p54 = scmp.ne.s32.totalorder %s49, %s51
    %p55 = scmp.eq.s32.totalorder %s15, 0
    %p56 = por %p54, %p55
    %p57 = scmp.ne.s32.totalorder %s49, %s51
    %p58 = scmp.eq.s32.totalorder %s20, 1
    %p59 = por %p57, %p58
    %p60 = scmp.ne.s32.totalorder %s51, %s52
    %p61 = scmp.eq.s32.totalorder %s20, 0
    %p62 = por %p60, %p61
    %p63 = scmp.ne.s32.totalorder %s51, %s52
    %p64 = scmp.eq.s32.totalorder %s21, 1
    %p65 = por %p63, %p64
    %p67 = scmp.ne.s32.totalorder %s52, %s66
    %p68 = scmp.eq.s32.totalorder %s21, 0
    %p69 = por %p67, %p68
    %s71 = sadd.s32 %s70, 1
    %p74 = scmp.eq.s32.totalorder %s15, 1
    %p75 = scmp.ne.s32.totalorder %s70, %s72
    %p76 = scmp.eq.s32.totalorder %s15, 0
    %p77 = por %p75, %p76
    %p78 = scmp.ne.s32.totalorder %s70, %s72
    %p79 = scmp.eq.s32.totalorder %s20, 1
    %p80 = por %p78, %p79
    %p81 = scmp.ne.s32.totalorder %s72, %s73
    %p82 = scmp.eq.s32.totalorder %s20, 0
    %p83 = por %p81, %p82
    %p84 = scmp.ne.s32.totalorder %s72, %s73
    %p85 = scmp.eq.s32.totalorder %s21, 1
    %p86 = por %p84, %p85
    %p88 = scmp.ne.s32.totalorder %s73, %s87
    %p89 = scmp.eq.s32.totalorder %s21, 0
    %p90 = por %p88, %p89
    %s92 = sadd.s32 %s91, 1
    %p95 = scmp.eq.s32.totalorder %s15, 1
    %p96 = scmp.ne.s32.totalorder %s91, %s93
    %p97 = scmp.eq.s32.totalorder %s15, 0
    %p98 = por %p96, %p97
    %p99 = scmp.ne.s32.totalorder %s91, %s93
    %p100 = scmp.eq.s32.totalorder %s20, 1
    %p101 = por %p99, %p100
    %p102 = scmp.ne.s32.totalorder %s93, %s94
    %p103 = scmp.eq.s32.totalorder %s20, 0
    %p104 = por %p102, %p103
    %p105 = scmp.ne.s32.totalorder %s93, %s94
    %p106 = scmp.eq.s32.totalorder %s21, 1
    %p107 = por %p105, %p106
    %p109 = scmp.ne.s32.totalorder %s94, %s108
    %p110 = scmp.eq.s32.totalorder %s21, 0
    %p111 = por %p109, %p110
    %s113 = sadd.s32 %s112, 1
    %p116 = scmp.eq.s32.totalorder %s15, 1
    %p117 = scmp.ne.s32.totalorder %s112, %s114
    %p118 = scmp.eq.s32.totalorder %s15, 0
    %p119 = por %p117, %p118
    %p120 = scmp.ne.s32.totalorder %s112, %s114
    %p121 = scmp.eq.s32.totalorder %s20, 1
    %p122 = por %p120, %p121
    %p123 = scmp.ne.s32.totalorder %s114, %s115
    %p124 = scmp.eq.s32.totalorder %s20, 0
    %p125 = por %p123, %p124
    %p126 = scmp.ne.s32.totalorder %s114, %s115
    %p127 = scmp.eq.s32.totalorder %s21, 1
    %p128 = por %p126, %p127
    %p130 = scmp.ne.s32.totalorder %s115, %s129
    %p131 = scmp.eq.s32.totalorder %s21, 0
    %p132 = por %p130, %p131
    %s134 = sadd.s32 %s133, 1
    %p137 = scmp.eq.s32.totalorder %s15, 1
    %p138 = scmp.ne.s32.totalorder %s133, %s135
    %p139 = scmp.eq.s32.totalorder %s15, 0
    %p140 = por %p138, %p139
    %p141 = scmp.ne.s32.totalorder %s133, %s135
    %p142 = scmp.eq.s32.totalorder %s20, 1
    %p143 = por %p141, %p142
    %p144 = scmp.ne.s32.totalorder %s135, %s136
    %p145 = scmp.eq.s32.totalorder %s20, 0
    %p146 = por %p144, %p145
    %p147 = scmp.ne.s32.totalorder %s135, %s136
    %p148 = scmp.eq.s32.totalorder %s21, 1
    %p149 = por %p147, %p148
    %p151 = scmp.ne.s32.totalorder %s136, %s150
    %p152 = scmp.eq.s32.totalorder %s21, 0
    %p153 = por %p151, %p152
    %s155 = sadd.s32 %s154, 1
    %p158 = scmp.eq.s32.totalorder %s15, 1
    %p159 = scmp.ne.s32.totalorder %s154, %s156
    %p160 = scmp.eq.s32.totalorder %s15, 0
    %p161 = por %p159, %p160
    %p162 = scmp.ne.s32.totalorder %s154, %s156
    %p163 = scmp.eq.s32.totalorder %s20, 1
    %p164 = por %p162, %p163
    %p165 = scmp.ne.s32.totalorder %s156, %s157
    %p166 = scmp.eq.s32.totalorder %s20, 0
    %p167 = por %p165, %p166
    %p168 = scmp.ne.s32.totalorder %s156, %s157
    %p169 = scmp.eq.s32.totalorder %s21, 1
    %p170 = por %p168, %p169
    %p172 = scmp.ne.s32.totalorder %s157, %s171
    %p173 = scmp.eq.s32.totalorder %s21, 0
    %p174 = por %p172, %p173
    %s176 = sadd.s32 %s175, 1
    %p179 = scmp.eq.s32.totalorder %s15, 1
    %p180 = scmp.ne.s32.totalorder %s175, %s177
    %p181 = scmp.eq.s32.totalorder %s15, 0
    %p182 = por %p180, %p181
    %p183 = scmp.ne.s32.totalorder %s175, %s177
    %p184 = scmp.eq.s32.totalorder %s20, 1
    %p185 = por %p183, %p184
    %p186 = scmp.ne.s32.totalorder %s177, %s178
    %p187 = scmp.eq.s32.totalorder %s20, 0
    %p188 = por %p186, %p187
    %p189 = scmp.ne.s32.totalorder %s177, %s178
    %p190 = scmp.eq.s32.totalorder %s21, 1
    %p191 = por %p189, %p190
    %p193 = scmp.ne.s32.totalorder %s178, %s192
    %p194 = scmp.eq.s32.totalorder %s21, 0
    %p195 = por %p193, %p194
    %s197 = sadd.s32 %s196, 1
    %p200 = scmp.eq.s32.totalorder %s15, 1
    %p201 = scmp.ne.s32.totalorder %s196, %s198
    %p202 = scmp.eq.s32.totalorder %s15, 0
    %p203 = por %p201, %p202
    %p204 = scmp.ne.s32.totalorder %s196, %s198
    %p205 = scmp.eq.s32.totalorder %s20, 1
    %p206 = por %p204, %p205
    %p207 = scmp.ne.s32.totalorder %s198, %s199
    %p208 = scmp.eq.s32.totalorder %s20, 0
    %p209 = por %p207, %p208
    %p210 = scmp.ne.s32.totalorder %s198, %s199
    %p211 = scmp.eq.s32.totalorder %s21, 1
    %p212 = por %p210, %p211
    %p214 = scmp.ne.s32.totalorder %s199, %s213
    %p215 = scmp.eq.s32.totalorder %s21, 0
    %p216 = por %p214, %p215
    %s217 = ssub.s32 %s15, %s22
    %p218 = scmp.eq.s32.totalorder %s217, 0
    %s220 = sadd.s32 %s219, 1
    %s221 = scalar_select %p218, %s219, %s220
    %p224 = pneg %p218
    %p225 = scmp.eq.s32.totalorder %s15, 1
    %p226 = por %p224, %p225
    %p227 = scmp.ne.s32.totalorder %s219, %s222
    %p228 = scmp.eq.s32.totalorder %s15, 0
    %p229 = por %p227, %p228
    %p230 = scmp.ne.s32.totalorder %s219, %s222
    %p231 = scmp.eq.s32.totalorder %s20, 1
    %p232 = por %p230, %p231
    %p233 = scmp.ne.s32.totalorder %s222, %s223
    %p234 = scmp.eq.s32.totalorder %s20, 0
    %p235 = por %p233, %p234
    %p236 = scmp.ne.s32.totalorder %s222, %s223
    %p237 = scmp.eq.s32.totalorder %s21, 1
    %p238 = por %p236, %p237
    %p240 = scmp.ne.s32.totalorder %s223, %s239
    %p241 = scmp.eq.s32.totalorder %s21, 0
    %p242 = por %p240, %p241
    %p243 = scmp.le.s32.totalorder 1, %s15
    %p244 = scmp.lt.s32.totalorder %s15, 3
    %p245 = pnand %p243, %p244
    %p246 = pneg %p245
    // Predicated region
    $region9: #{simple_unet_forward.1} parent=5 // pred_check
      _
    $region10: #{simple_unet_forward.1} parent=5 // pred_check_branch
      %248 = sbr.rel (%p245) target = $region12
    $region11: #{simple_unet_forward.1} parent=5 // pred_region
      %s249 = ssub.s32 %s15, 1
      // Predicated region
      $region13: #{simple_unet_forward.1} parent=11 // pred_check
        %p250 = pneg %p62
      $region14: #{simple_unet_forward.1} parent=11 // pred_check_branch
        %252 = sbr.rel (%p250) target = $region16
      $region15: #{simple_unet_forward.1} parent=11 // pred_region
        _
      $region16: #{simple_unet_forward.1} parent=11 // pred_fallthru
        _
      // Predicated region
      $region17: #{simple_unet_forward.1} parent=11 // pred_check
        %p253 = pneg %p83
      $region18: #{simple_unet_forward.1} parent=11 // pred_check_branch
        %255 = sbr.rel (%p253) target = $region20
      $region19: #{simple_unet_forward.1} parent=11 // pred_region
        _
      $region20: #{simple_unet_forward.1} parent=11 // pred_fallthru
        _
      // Predicated region
      $region21: #{simple_unet_forward.1} parent=11 // pred_check
        %p256 = pneg %p104
      $region22: #{simple_unet_forward.1} parent=11 // pred_check_branch
        %258 = sbr.rel (%p256) target = $region24
      $region23: #{simple_unet_forward.1} parent=11 // pred_region
        _
      $region24: #{simple_unet_forward.1} parent=11 // pred_fallthru
        _
      // Predicated region
      $region25: #{simple_unet_forward.1} parent=11 // pred_check
        %p259 = pneg %p125
      $region26: #{simple_unet_forward.1} parent=11 // pred_check_branch
        %261 = sbr.rel (%p259) target = $region28
      $region27: #{simple_unet_forward.1} parent=11 // pred_region
        _
      $region28: #{simple_unet_forward.1} parent=11 // pred_fallthru
        _
      // Predicated region
      $region29: #{simple_unet_forward.1} parent=11 // pred_check
        %p262 = pneg %p146
      $region30: #{simple_unet_forward.1} parent=11 // pred_check_branch
        %264 = sbr.rel (%p262) target = $region32
      $region31: #{simple_unet_forward.1} parent=11 // pred_region
        _
      $region32: #{simple_unet_forward.1} parent=11 // pred_fallthru
        _
      // Predicated region
      $region33: #{simple_unet_forward.1} parent=11 // pred_check
        %p265 = pneg %p167
      $region34: #{simple_unet_forward.1} parent=11 // pred_check_branch
        %267 = sbr.rel (%p265) target = $region36
      $region35: #{simple_unet_forward.1} parent=11 // pred_region
        _
      $region36: #{simple_unet_forward.1} parent=11 // pred_fallthru
        _
      // Predicated region
      $region37: #{simple_unet_forward.1} parent=11 // pred_check
        %p268 = pneg %p188
      $region38: #{simple_unet_forward.1} parent=11 // pred_check_branch
        %270 = sbr.rel (%p268) target = $region40
      $region39: #{simple_unet_forward.1} parent=11 // pred_region
        _
      $region40: #{simple_unet_forward.1} parent=11 // pred_fallthru
        _
      // Predicated region
      $region41: #{simple_unet_forward.1} parent=11 // pred_check
        %p271 = pneg %p209
      $region42: #{simple_unet_forward.1} parent=11 // pred_check_branch
        %273 = sbr.rel (%p271) target = $region44
      $region43: #{simple_unet_forward.1} parent=11 // pred_region
        _
      $region44: #{simple_unet_forward.1} parent=11 // pred_fallthru
        _
    $region12: #{simple_unet_forward.1} parent=5 // pred_fallthru
      _
    %p274 = scmp.lt.s32.totalorder %s15, 2
    // Predicated region
    $region45: #{simple_unet_forward.1} parent=5 // pred_check
      %p275 = pneg %p274
    $region46: #{simple_unet_forward.1} parent=5 // pred_check_branch
      %277 = sbr.rel (%p275) target = $region48
    $region47: #{simple_unet_forward.1} parent=5 // pred_region
      // Predicated region
      $region49: #{simple_unet_forward.1} parent=47 // pred_check
        %p278 = pneg %p35
      $region50: #{simple_unet_forward.1} parent=47 // pred_check_branch
        %280 = sbr.rel (%p278) target = $region52
      $region51: #{simple_unet_forward.1} parent=47 // pred_region
        %p281 = scmp.lt.s32.totalorder %s15, 1
        %s282 = scalar_select %p281, %s15, 1
        %s283 = smul.addr %s282, 32
        %s284 = smul.addr %s283, 8
        %s285 = scalar_lea.vmem %s0, %s284
      $region52: #{simple_unet_forward.1} parent=47 // pred_fallthru
        _
    $region48: #{simple_unet_forward.1} parent=5 // pred_fallthru
      _
    %p286 = scmp.le.s32.totalorder 1, %s15
    %p287 = scmp.lt.s32.totalorder %s15, 3
    %p288 = pnand %p286, %p287
    %p289 = pneg %p288
    // Predicated region
    $region53: #{simple_unet_forward.1} parent=5 // pred_check
      _
    $region54: #{simple_unet_forward.1} parent=5 // pred_check_branch
      %291 = sbr.rel (%p288) target = $region56
    $region55: #{simple_unet_forward.1} parent=5 // pred_region
      %s292 = ssub.s32 %s15, 1
      %p293 = scmp.lt.s32.totalorder %s20, 1
      %s294 = scalar_select %p293, %s20, 1
      %s295 = smul.addr %s294, 32
      %s296 = smul.addr %s295, 8
      %s297 = scalar_lea.vmem %s0, %s296
      %p298 = pneg %p41
      %p299 = pneg %p38
      %p300 = pneg %p62
      %p301 = pneg %p59
      %p302 = pneg %p83
      %p303 = pneg %p80
      %p304 = pneg %p104
      %p305 = pneg %p101
      %p306 = pneg %p125
      %p307 = pneg %p122
      %p308 = pneg %p146
      %p309 = pneg %p143
      %p310 = pneg %p167
      %p311 = pneg %p164
      %p312 = pneg %p188
      %p313 = pneg %p185
      %p314 = pneg %p209
      %p315 = pneg %p206
      %p316 = pneg %p235
      %p317 = pneg %p232
      %p318 = scmp.lt.s32.totalorder %s20, 1
      %s319 = scalar_select %p318, %s20, 1
      %s320 = smul.addr %s319, 4
      %s321 = smul.addr %s320, 4
      %s322 = scalar_lea.vmem %s9, %s321
      %p323 = scmp.lt.s32.totalorder %s20, 1
      %s324 = scalar_select %p323, %s20, 1
      %s325 = smul.addr %s324, 32
      %s326 = smul.addr %s325, 8
      %s327 = scalar_lea.vmem %s0, %s326
      %p328 = scmp.lt.s32.totalorder %s20, 1
      %s329 = scalar_select %p328, %s20, 1
      %s330 = smul.addr %s329, 4
      %s331 = smul.addr %s330, 4
      %s332 = scalar_lea.vmem %s9, %s331
      %vm333 = vcmask 23552
      %334 = vst.msk [vmem:[#allocation2] sm:$0xff] %vm333, 0.0
      %335 = vst.msk [vmem:[#allocation2 + $0x8] sm:$0xff] %vm333, 0.0
      %336 = vst.msk [vmem:[#allocation2 + $0x10] sm:$0xff] %vm333, 0.0
      %vm337 = vcmask 16384
      %338 = vst.msk [vmem:[#allocation2 + $0x18] sm:$0x1] %vm337, 0.0
      %339 = vst.msk [vmem:[#allocation2 + $0x20] sm:$0xff] %vm333, 0.0
      %340 = vst.msk [vmem:[#allocation2 + $0x28] sm:$0xff] %vm333, 0.0
      %341 = vst.msk [vmem:[#allocation2 + $0x30] sm:$0xff] %vm333, 0.0
      %342 = vst.msk [vmem:[#allocation2 + $0x38] sm:$0x1] %vm337, 0.0
      %343 = vst.msk [vmem:[#allocation2 + $0x40] sm:$0xff] %vm333, 0.0
      %344 = vst.msk [vmem:[#allocation2 + $0x48] sm:$0xff] %vm333, 0.0
      %345 = vst.msk [vmem:[#allocation2 + $0x50] sm:$0xff] %vm333, 0.0
      %346 = vst.msk [vmem:[#allocation2 + $0x58] sm:$0x1] %vm337, 0.0
      %347 = vst.msk [vmem:[#allocation2 + $0x60] sm:$0xff] %vm333, 0.0
      %348 = vst.msk [vmem:[#allocation2 + $0x68] sm:$0xff] %vm333, 0.0
      %349 = vst.msk [vmem:[#allocation2 + $0x70] sm:$0xff] %vm333, 0.0
      %350 = vst.msk [vmem:[#allocation2 + $0x78] sm:$0x1] %vm337, 0.0
      %351 = vst.msk [vmem:[#allocation2 + $0x80] sm:$0xff] %vm333, 0.0
      %352 = vst.msk [vmem:[#allocation2 + $0x88] sm:$0xff] %vm333, 0.0
      %353 = vst.msk [vmem:[#allocation2 + $0x90] sm:$0xff] %vm333, 0.0
      %354 = vst.msk [vmem:[#allocation2 + $0x98] sm:$0x1] %vm337, 0.0
      %355 = vst.msk [vmem:[#allocation2 + $0xa0] sm:$0xff] %vm333, 0.0
      %356 = vst.msk [vmem:[#allocation2 + $0xa8] sm:$0xff] %vm333, 0.0
      %357 = vst.msk [vmem:[#allocation2 + $0xb0] sm:$0xff] %vm333, 0.0
      %358 = vst.msk [vmem:[#allocation2 + $0xb8] sm:$0x1] %vm337, 0.0
      %359 = vst.msk [vmem:[#allocation2 + $0xc0] sm:$0xff] %vm333, 0.0
      %360 = vst.msk [vmem:[#allocation2 + $0xc8] sm:$0xff] %vm333, 0.0
      %361 = vst.msk [vmem:[#allocation2 + $0xd0] sm:$0xff] %vm333, 0.0
      %362 = vst.msk [vmem:[#allocation2 + $0xd8] sm:$0x1] %vm337, 0.0
      %363 = vst.msk [vmem:[#allocation2 + $0xe0] sm:$0xff] %vm333, 0.0
      %364 = vst.msk [vmem:[#allocation2 + $0xe8] sm:$0xff] %vm333, 0.0
      %365 = vst.msk [vmem:[#allocation2 + $0xf0] sm:$0xff] %vm333, 0.0
      %366 = vst.msk [vmem:[#allocation2 + $0xf8] sm:$0x1] %vm337, 0.0
      %367 = vst.msk [vmem:[#allocation2 + $0x100] sm:$0xff] %vm333, 0.0
      %368 = vst.msk [vmem:[#allocation2 + $0x108] sm:$0xff] %vm333, 0.0
      %369 = vst.msk [vmem:[#allocation2 + $0x110] sm:$0xff] %vm333, 0.0
      %370 = vst.msk [vmem:[#allocation2 + $0x118] sm:$0x1] %vm337, 0.0
      %371 = vst.msk [vmem:[#allocation2 + $0x120] sm:$0xff] %vm333, 0.0
      %372 = vst.msk [vmem:[#allocation2 + $0x128] sm:$0xff] %vm333, 0.0
      %373 = vst.msk [vmem:[#allocation2 + $0x130] sm:$0xff] %vm333, 0.0
      %374 = vst.msk [vmem:[#allocation2 + $0x138] sm:$0x1] %vm337, 0.0
      %375 = vst.msk [vmem:[#allocation2 + $0x140] sm:$0xff] %vm333, 0.0
      %376 = vst.msk [vmem:[#allocation2 + $0x148] sm:$0xff] %vm333, 0.0
      %377 = vst.msk [vmem:[#allocation2 + $0x150] sm:$0xff] %vm333, 0.0
      %378 = vst.msk [vmem:[#allocation2 + $0x158] sm:$0x1] %vm337, 0.0
      %379 = vst.msk [vmem:[#allocation2 + $0x160] sm:$0xff] %vm333, 0.0
      %380 = vst.msk [vmem:[#allocation2 + $0x168] sm:$0xff] %vm333, 0.0
      %381 = vst.msk [vmem:[#allocation2 + $0x170] sm:$0xff] %vm333, 0.0
      %382 = vst.msk [vmem:[#allocation2 + $0x178] sm:$0x1] %vm337, 0.0
      %383 = vst.msk [vmem:[#allocation2 + $0x180] sm:$0xff] %vm333, 0.0
      %384 = vst.msk [vmem:[#allocation2 + $0x188] sm:$0xff] %vm333, 0.0
      %385 = vst.msk [vmem:[#allocation2 + $0x190] sm:$0xff] %vm333, 0.0
      %386 = vst.msk [vmem:[#allocation2 + $0x198] sm:$0x1] %vm337, 0.0
      %387 = vst.msk [vmem:[#allocation2 + $0x1a0] sm:$0xff] %vm333, 0.0
      %388 = vst.msk [vmem:[#allocation2 + $0x1a8] sm:$0xff] %vm333, 0.0
      %389 = vst.msk [vmem:[#allocation2 + $0x1b0] sm:$0xff] %vm333, 0.0
      %390 = vst.msk [vmem:[#allocation2 + $0x1b8] sm:$0x1] %vm337, 0.0
      %391 = vst.msk [vmem:[#allocation2 + $0x1c0] sm:$0xff] %vm333, 0.0
      %392 = vst.msk [vmem:[#allocation2 + $0x1c8] sm:$0xff] %vm333, 0.0
      %393 = vst.msk [vmem:[#allocation2 + $0x1d0] sm:$0xff] %vm333, 0.0
      %394 = vst.msk [vmem:[#allocation2 + $0x1d8] sm:$0x1] %vm337, 0.0
      %395 = vst.msk [vmem:[#allocation2 + $0x1e0] sm:$0xff] %vm333, 0.0
      %396 = vst.msk [vmem:[#allocation2 + $0x1e8] sm:$0xff] %vm333, 0.0
      %397 = vst.msk [vmem:[#allocation2 + $0x1f0] sm:$0xff] %vm333, 0.0
      %398 = vst.msk [vmem:[#allocation2 + $0x1f8] sm:$0x1] %vm337, 0.0
      %399 = vst.msk [vmem:[#allocation2 + $0x200] sm:$0xff] %vm333, 0.0
      %400 = vst.msk [vmem:[#allocation2 + $0x208] sm:$0xff] %vm333, 0.0
      %401 = vst.msk [vmem:[#allocation2 + $0x210] sm:$0xff] %vm333, 0.0
      %402 = vst.msk [vmem:[#allocation2 + $0x218] sm:$0x1] %vm337, 0.0
      %403 = vst.msk [vmem:[#allocation2 + $0x220] sm:$0xff] %vm333, 0.0
      %404 = vst.msk [vmem:[#allocation2 + $0x228] sm:$0xff] %vm333, 0.0
      %405 = vst.msk [vmem:[#allocation2 + $0x230] sm:$0xff] %vm333, 0.0
      %406 = vst.msk [vmem:[#allocation2 + $0x238] sm:$0x1] %vm337, 0.0
      %v407 = vld [vmem:[%s327] sm:$0xff]
      %v408 = vld [vmem:[%s327 + $0x8] sm:$0xff]
      %v409 = vld [vmem:[%s327 + $0x10] sm:$0xff]
      %v410 = vld [vmem:[%s327 + $0x18] sm:$0xff]
      %v411 = vld [vmem:[%s327 + $0x20] sm:$0xff]
      %v412 = vld [vmem:[%s327 + $0x28] sm:$0xff]
      %v413 = vld [vmem:[%s327 + $0x30] sm:$0xff]
      %v414 = vld [vmem:[%s327 + $0x38] sm:$0xff]
      %v415 = vld [vmem:[%s327 + $0x40] sm:$0xff]
      %v416 = vld [vmem:[%s327 + $0x48] sm:$0xff]
      %v417 = vld [vmem:[%s327 + $0x50] sm:$0xff]
      %v418 = vld [vmem:[%s327 + $0x58] sm:$0xff]
      %v419 = vld [vmem:[%s327 + $0x60] sm:$0xff]
      %v420 = vld [vmem:[%s327 + $0x68] sm:$0xff]
      %v421 = vld [vmem:[%s327 + $0x70] sm:$0xff]
      %v422 = vld [vmem:[%s327 + $0x78] sm:$0xff]
      %v423 = vld [vmem:[%s327 + $0x80] sm:$0xff]
      %v424 = vld [vmem:[%s327 + $0x88] sm:$0xff]
      %v425 = vld [vmem:[%s327 + $0x90] sm:$0xff]
      %v426 = vld [vmem:[%s327 + $0x98] sm:$0xff]
      %v427 = vld [vmem:[%s327 + $0xa0] sm:$0xff]
      %v428 = vld [vmem:[%s327 + $0xa8] sm:$0xff]
      %v429 = vld [vmem:[%s327 + $0xb0] sm:$0xff]
      %v430 = vld [vmem:[%s327 + $0xb8] sm:$0xff]
      %v431 = vld [vmem:[%s327 + $0xc0] sm:$0xff]
      %v432 = vld [vmem:[%s327 + $0xc8] sm:$0xff]
      %v433 = vld [vmem:[%s327 + $0xd0] sm:$0xff]
      %v434 = vld [vmem:[%s327 + $0xd8] sm:$0xff]
      %v435 = vld [vmem:[%s327 + $0xe0] sm:$0xff]
      %v436 = vld [vmem:[%s327 + $0xe8] sm:$0xff]
      %v437 = vld [vmem:[%s327 + $0xf0] sm:$0xff]
      %v438 = vld [vmem:[%s327 + $0xf8] sm:$0xff]
      %s439 = scalar_lea.vmem [#allocation2], 32
      %440 = vst.msk [vmem:[%s439 + $0x8] sm:$0xff] %vm333, %v407
      %441 = vst.msk [vmem:[%s439 + $0x10] sm:$0xff] %vm333, %v408
      %442 = vst.msk [vmem:[%s439 + $0x28] sm:$0xff] %vm333, %v409
      %443 = vst.msk [vmem:[%s439 + $0x30] sm:$0xff] %vm333, %v410
      %444 = vst.msk [vmem:[%s439 + $0x48] sm:$0xff] %vm333, %v411
      %445 = vst.msk [vmem:[%s439 + $0x50] sm:$0xff] %vm333, %v412
      %446 = vst.msk [vmem:[%s439 + $0x68] sm:$0xff] %vm333, %v413
      %447 = vst.msk [vmem:[%s439 + $0x70] sm:$0xff] %vm333, %v414
      %448 = vst.msk [vmem:[%s439 + $0x88] sm:$0xff] %vm333, %v415
      %449 = vst.msk [vmem:[%s439 + $0x90] sm:$0xff] %vm333, %v416
      %450 = vst.msk [vmem:[%s439 + $0xa8] sm:$0xff] %vm333, %v417
      %451 = vst.msk [vmem:[%s439 + $0xb0] sm:$0xff] %vm333, %v418
      %452 = vst.msk [vmem:[%s439 + $0xc8] sm:$0xff] %vm333, %v419
      %453 = vst.msk [vmem:[%s439 + $0xd0] sm:$0xff] %vm333, %v420
      %454 = vst.msk [vmem:[%s439 + $0xe8] sm:$0xff] %vm333, %v421
      %455 = vst.msk [vmem:[%s439 + $0xf0] sm:$0xff] %vm333, %v422
      %456 = vst.msk [vmem:[%s439 + $0x108] sm:$0xff] %vm333, %v423
      %457 = vst.msk [vmem:[%s439 + $0x110] sm:$0xff] %vm333, %v424
      %458 = vst.msk [vmem:[%s439 + $0x128] sm:$0xff] %vm333, %v425
      %459 = vst.msk [vmem:[%s439 + $0x130] sm:$0xff] %vm333, %v426
      %460 = vst.msk [vmem:[%s439 + $0x148] sm:$0xff] %vm333, %v427
      %461 = vst.msk [vmem:[%s439 + $0x150] sm:$0xff] %vm333, %v428
      %462 = vst.msk [vmem:[%s439 + $0x168] sm:$0xff] %vm333, %v429
      %463 = vst.msk [vmem:[%s439 + $0x170] sm:$0xff] %vm333, %v430
      %464 = vst.msk [vmem:[%s439 + $0x188] sm:$0xff] %vm333, %v431
      %465 = vst.msk [vmem:[%s439 + $0x190] sm:$0xff] %vm333, %v432
      %466 = vst.msk [vmem:[%s439 + $0x1a8] sm:$0xff] %vm333, %v433
      %467 = vst.msk [vmem:[%s439 + $0x1b0] sm:$0xff] %vm333, %v434
      %468 = vst.msk [vmem:[%s439 + $0x1c8] sm:$0xff] %vm333, %v435
      %469 = vst.msk [vmem:[%s439 + $0x1d0] sm:$0xff] %vm333, %v436
      %470 = vst.msk [vmem:[%s439 + $0x1e8] sm:$0xff] %vm333, %v437
      %471 = vst.msk [vmem:[%s439 + $0x1f0] sm:$0xff] %vm333, %v438
      %v472 = vld [vmem:[#allocation2 + $0x7] sm:$0xff]
      %v473 = vld [vmem:[#allocation2 + $0xf] sm:$0xff]
      %v474 = vld [vmem:[#allocation2 + $0x27] sm:$0xff]
      %v475 = vld [vmem:[#allocation2 + $0x2f] sm:$0xff]
      %v476 = vld [vmem:[#allocation2 + $0x47] sm:$0xff]
      %v477 = vld [vmem:[#allocation2 + $0x4f] sm:$0xff]
      %v478 = vld [vmem:[#allocation2 + $0x67] sm:$0xff]
      %v479 = vld [vmem:[#allocation2 + $0x6f] sm:$0xff]
      %v480 = vld [vmem:[#allocation2 + $0x87] sm:$0xff]
      %v481 = vld [vmem:[#allocation2 + $0x8f] sm:$0xff]
      %v482 = vld [vmem:[#allocation2 + $0xa7] sm:$0xff]
      %v483 = vld [vmem:[#allocation2 + $0xaf] sm:$0xff]
      %v484 = vld [vmem:[#allocation2 + $0xc7] sm:$0xff]
      %v485 = vld [vmem:[#allocation2 + $0xcf] sm:$0xff]
      %v486 = vld [vmem:[#allocation2 + $0xe7] sm:$0xff]
      %v487 = vld [vmem:[#allocation2 + $0xef] sm:$0xff]
      %v488 = vld [vmem:[#allocation2 + $0x107] sm:$0xff]
      %v489 = vld [vmem:[#allocation2 + $0x10f] sm:$0xff]
      %v490 = vld [vmem:[#allocation2 + $0x127] sm:$0xff]
      %v491 = vld [vmem:[#allocation2 + $0x12f] sm:$0xff]
      %v492 = vld [vmem:[#allocation2 + $0x147] sm:$0xff]
      %v493 = vld [vmem:[#allocation2 + $0x14f] sm:$0xff]
      %v494 = vld [vmem:[#allocation2 + $0x167] sm:$0xff]
      %v495 = vld [vmem:[#allocation2 + $0x16f] sm:$0xff]
      %v496 = vld [vmem:[#allocation2 + $0x187] sm:$0xff]
      %v497 = vld [vmem:[#allocation2 + $0x18f] sm:$0xff]
      %v498 = vld [vmem:[#allocation2 + $0x1a7] sm:$0xff]
      %v499 = vld [vmem:[#allocation2 + $0x1af] sm:$0xff]
      %v500 = vld [vmem:[#allocation2 + $0x1c7] sm:$0xff]
      %v501 = vld [vmem:[#allocation2 + $0x1cf] sm:$0xff]
      %v502 = vld [vmem:[#allocation2 + $0x1e7] sm:$0xff]
      %v503 = vld [vmem:[#allocation2 + $0x1ef] sm:$0xff]
      %v504 = vld [vmem:[%s1] sm:$0x7]
      %v505 = vld [vmem:[#allocation2 + $0x8] sm:$0xff]
      %v506 = vld [vmem:[#allocation2 + $0x10] sm:$0xff]
      %v507 = vld [vmem:[#allocation2 + $0x28] sm:$0xff]
      %v508 = vld [vmem:[#allocation2 + $0x30] sm:$0xff]
      %v509 = vld [vmem:[#allocation2 + $0x48] sm:$0xff]
      %v510 = vld [vmem:[#allocation2 + $0x50] sm:$0xff]
      %v511 = vld [vmem:[#allocation2 + $0x68] sm:$0xff]
      %v512 = vld [vmem:[#allocation2 + $0x70] sm:$0xff]
      %v513 = vld [vmem:[#allocation2 + $0x88] sm:$0xff]
      %v514 = vld [vmem:[#allocation2 + $0x90] sm:$0xff]
      %v515 = vld [vmem:[#allocation2 + $0xa8] sm:$0xff]
      %v516 = vld [vmem:[#allocation2 + $0xb0] sm:$0xff]
      %v517 = vld [vmem:[#allocation2 + $0xc8] sm:$0xff]
      %v518 = vld [vmem:[#allocation2 + $0xd0] sm:$0xff]
      %v519 = vld [vmem:[#allocation2 + $0xe8] sm:$0xff]
      %v520 = vld [vmem:[#allocation2 + $0xf0] sm:$0xff]
      %v521 = vld [vmem:[#allocation2 + $0x108] sm:$0xff]
      %v522 = vld [vmem:[#allocation2 + $0x110] sm:$0xff]
      %v523 = vld [vmem:[#allocation2 + $0x128] sm:$0xff]
      %v524 = vld [vmem:[#allocation2 + $0x130] sm:$0xff]
      %v525 = vld [vmem:[#allocation2 + $0x148] sm:$0xff]
      %v526 = vld [vmem:[#allocation2 + $0x150] sm:$0xff]
      %v527 = vld [vmem:[#allocation2 + $0x168] sm:$0xff]
      %v528 = vld [vmem:[#allocation2 + $0x170] sm:$0xff]
      %v529 = vld [vmem:[#allocation2 + $0x188] sm:$0xff]
      %v530 = vld [vmem:[#allocation2 + $0x190] sm:$0xff]
      %v531 = vld [vmem:[#allocation2 + $0x1a8] sm:$0xff]
      %v532 = vld [vmem:[#allocation2 + $0x1b0] sm:$0xff]
      %v533 = vld [vmem:[#allocation2 + $0x1c8] sm:$0xff]
      %v534 = vld [vmem:[#allocation2 + $0x1d0] sm:$0xff]
      %v535 = vld [vmem:[#allocation2 + $0x1e8] sm:$0xff]
      %v536 = vld [vmem:[#allocation2 + $0x1f0] sm:$0xff]
      %s537 = scalar_lea.vmem %s1, 4
      %v538 = vld [vmem:[%s537] sm:$0x7]
      %v540 = vsel %vm333, %v505, 0
      %v543 = vsel %vm333, %v506, 0
      %v546 = vsel %vm333, %v507, 0
      %v549 = vsel %vm333, %v508, 0
      %v552 = vsel %vm333, %v509, 0
      %v555 = vsel %vm333, %v510, 0
      %v558 = vsel %vm333, %v511, 0
      %v561 = vsel %vm333, %v512, 0
      %v564 = vsel %vm333, %v513, 0
      %v567 = vsel %vm333, %v514, 0
      %v570 = vsel %vm333, %v515, 0
      %v573 = vsel %vm333, %v516, 0
      %v576 = vsel %vm333, %v517, 0
      %v579 = vsel %vm333, %v518, 0
      %v582 = vsel %vm333, %v519, 0
      %v585 = vsel %vm333, %v520, 0
      %v588 = vsel %vm333, %v521, 0
      %v591 = vsel %vm333, %v522, 0
      %v594 = vsel %vm333, %v523, 0
      %v597 = vsel %vm333, %v524, 0
      %v600 = vsel %vm333, %v525, 0
      %v603 = vsel %vm333, %v526, 0
      %v606 = vsel %vm333, %v527, 0
      %v609 = vsel %vm333, %v528, 0
      %v612 = vsel %vm333, %v529, 0
      %v615 = vsel %vm333, %v530, 0
      %v618 = vsel %vm333, %v531, 0
      %v621 = vsel %vm333, %v532, 0
      %v624 = vsel %vm333, %v533, 0
      %v627 = vsel %vm333, %v534, 0
      %v630 = vsel %vm333, %v535, 0
      %v633 = vsel %vm333, %v536, 0
      %vm635 = vcmask 1042432
      %v637 = vsel %vm635, %v538, 0
      %639 = vmatprep.subr.mxu0 0.0
      %640 = vmatpush1.msra.mxu0 %v637
      %641 = vmatprep.subr.mxu0 0.0
      %642 = vmatpush1.msra.mxu0 0.0
      %643 = vmatprep.subr.mxu0 0.0
      %644 = vmatpush1.msra.mxu0 0.0
      %645 = vmatprep.subr.mxu0 0.0
      %646 = vmatpush1.msra.mxu0 0.0
      %647 = vmatprep.subr.mxu0 0.0
      %648 = vmatpush1.msra.mxu0 0.0
      %649 = vmatprep.subr.mxu0 0.0
      %650 = vmatpush1.msra.mxu0 0.0
      %651 = vmatprep.subr.mxu0 0.0
      %652 = vmatpush1.msra.mxu0 0.0
      %653 = vmatprep.subr.mxu0 0.0
      %654 = vmatpush1.msra.mxu0 0.0
      %655 = vmatprep.subr.mxu0 0.0
      %656 = vmatpush1.msra.mxu0 0.0
      %657 = vmatprep.subr.mxu0 0.0
      %658 = vmatpush1.msra.mxu0 0.0
      %659 = vmatprep.subr.mxu0 0.0
      %660 = vmatpush1.msra.mxu0 0.0
      %661 = vmatprep.subr.mxu0 0.0
      %662 = vmatpush1.msra.mxu0 0.0
      %663 = vmatprep.subr.mxu0 0.0
      %664 = vmatpush1.msra.mxu0 0.0
      %665 = vmatprep.subr.mxu0 0.0
      %666 = vmatpush1.msra.mxu0 0.0
      %667 = vmatprep.subr.mxu0 0.0
      %668 = vmatpush1.msra.mxu0 0.0
      %669 = vmatprep.subr.mxu0 0.0
      %670 = vmatpush1.msra.mxu0 0.0
      %671 = vmatprep.subr.mxu0 0.0
      %672 = vmatpush1.msra.mxu0 0.0
      %673 = vmatprep.subr.mxu0 0.0
      %674 = vmatpush1.msra.mxu0 0.0
      %675 = vmatprep.subr.mxu0 0.0
      %676 = vmatpush1.msra.mxu0 0.0
      %677 = vmatprep.subr.mxu0 0.0
      %678 = vmatpush1.msra.mxu0 0.0
      %679 = vmatprep.subr.mxu0 0.0
      %680 = vmatpush1.msra.mxu0 0.0
      %681 = vmatprep.subr.mxu0 0.0
      %682 = vmatpush1.msra.mxu0 0.0
      %683 = vmatprep.subr.mxu0 0.0
      %684 = vmatpush1.msra.mxu0 0.0
      %685 = vmatprep.subr.mxu0 0.0
      %686 = vmatpush1.msra.mxu0 0.0
      %687 = vmatprep.subr.mxu0 0.0
      %688 = vmatpush1.msra.mxu0 0.0
      %689 = vmatprep.subr.mxu0 0.0
      %690 = vmatpush1.msra.mxu0 0.0
      %691 = vmatprep.subr.mxu0 0.0
      %692 = vmatpush1.msra.mxu0 0.0
      %693 = vmatprep.subr.mxu0 0.0
      %694 = vmatpush1.msra.mxu0 0.0
      %695 = vmatprep.subr.mxu0 0.0
      %696 = vmatpush1.msra.mxu0 0.0
      %697 = vmatprep.subr.mxu0 0.0
      %698 = vmatpush1.msra.mxu0 0.0
      %699 = vmatprep.subr.mxu0 0.0
      %700 = vmatpush1.msra.mxu0 0.0
      %701 = vmatprep.subr.mxu0 0.0
      %702 = vmatpush1.msra.mxu0 0.0
      %703 = vmatprep.mubr.f32.mxu0 0.0
      %704 = vmatmul.mubr.f32.gmra.mrb[0].mxu0 %v540
      %v705 = vpop.f32.mrb[0].mxu0
      %v706 = vadd.f32 0.0, %v705
      %v707 = vpop.f32.mrb[0].mxu0
      %708 = vmatprep.mubr.f32.mxu0 0.0
      %709 = vmatmul.mubr.f32.gmra.mrb[0].mxu0 %v543
      %v710 = vpop.f32.mrb[0].mxu0
      %v711 = vadd.f32 0.0, %v710
      %v712 = vpop.f32.mrb[0].mxu0
      %713 = vmatprep.mubr.f32.mxu0 0.0
      %714 = vmatmul.mubr.f32.gmra.mrb[0].mxu0 %v546
      %v715 = vpop.f32.mrb[0].mxu0
      %v716 = vadd.f32 0.0, %v715
      %v717 = vpop.f32.mrb[0].mxu0
      %718 = vmatprep.mubr.f32.mxu0 0.0
      %719 = vmatmul.mubr.f32.gmra.mrb[0].mxu0 %v549
      %v720 = vpop.f32.mrb[0].mxu0
      %v721 = vadd.f32 0.0, %v720
      %v722 = vpop.f32.mrb[0].mxu0
      %723 = vmatprep.mubr.f32.mxu0 0.0
      %724 = vmatmul.mubr.f32.gmra.mrb[0].mxu0 %v552
      %v725 = vpop.f32.mrb[0].mxu0
      %v726 = vadd.f32 0.0, %v725
      %v727 = vpop.f32.mrb[0].mxu0
      %728 = vmatprep.mubr.f32.mxu0 0.0
      %729 = vmatmul.mubr.f32.gmra.mrb[0].mxu0 %v555
      %v730 = vpop.f32.mrb[0].mxu0
      %v731 = vadd.f32 0.0, %v730
      %v732 = vpop.f32.mrb[0].mxu0
      %733 = vmatprep.mubr.f32.mxu0 0.0
      %734 = vmatmul.mubr.f32.gmra.mrb[0].mxu0 %v558
      %v735 = vpop.f32.mrb[0].mxu0
      %v736 = vadd.f32 0.0, %v735
      %v737 = vpop.f32.mrb[0].mxu0
      %738 = vmatprep.mubr.f32.mxu0 0.0
      %739 = vmatmul.mubr.f32.gmra.mrb[0].mxu0 %v561
      %v740 = vpop.f32.mrb[0].mxu0
      %v741 = vadd.f32 0.0, %v740
      %v742 = vpop.f32.mrb[0].mxu0
      %743 = vmatprep.mubr.f32.mxu0 0.0
      %744 = vmatmul.mubr.f32.gmra.mrb[0].mxu0 %v564
      %v745 = vpop.f32.mrb[0].mxu0
      %v746 = vadd.f32 0.0, %v745
      %v747 = vpop.f32.mrb[0].mxu0
      %748 = vmatprep.mubr.f32.mxu0 0.0
      %749 = vmatmul.mubr.f32.gmra.mrb[0].mxu0 %v567
      %v750 = vpop.f32.mrb[0].mxu0
      %v751 = vadd.f32 0.0, %v750
      %v752 = vpop.f32.mrb[0].mxu0
      %753 = vmatprep.mubr.f32.mxu0 0.0
      %754 = vmatmul.mubr.f32.gmra.mrb[0].mxu0 %v570
      %v755 = vpop.f32.mrb[0].mxu0
      %v756 = vadd.f32 0.0, %v755
      %v757 = vpop.f32.mrb[0].mxu0
      %758 = vmatprep.mubr.f32.mxu0 0.0
      %759 = vmatmul.mubr.f32.gmra.mrb[0].mxu0 %v573
      %v760 = vpop.f32.mrb[0].mxu0
      %v761 = vadd.f32 0.0, %v760
      %v762 = vpop.f32.mrb[0].mxu0
      %763 = vmatprep.mubr.f32.mxu0 0.0
      %764 = vmatmul.mubr.f32.gmra.mrb[0].mxu0 %v576
      %v765 = vpop.f32.mrb[0].mxu0
      %v766 = vadd.f32 0.0, %v765
      %v767 = vpop.f32.mrb[0].mxu0
      %768 = vmatprep.mubr.f32.mxu0 0.0
      %769 = vmatmul.mubr.f32.gmra.mrb[0].mxu0 %v579
      %v770 = vpop.f32.mrb[0].mxu0
      %v771 = vadd.f32 0.0, %v770
      %v772 = vpop.f32.mrb[0].mxu0
      %773 = vmatprep.mubr.f32.mxu0 0.0
      %774 = vmatmul.mubr.f32.gmra.mrb[0].mxu0 %v582
      %v775 = vpop.f32.mrb[0].mxu0
      %v776 = vadd.f32 0.0, %v775
      %v777 = vpop.f32.mrb[0].mxu0
      %778 = vmatprep.mubr.f32.mxu0 0.0
      %779 = vmatmul.mubr.f32.gmra.mrb[0].mxu0 %v585
      %v780 = vpop.f32.mrb[0].mxu0
      %v781 = vadd.f32 0.0, %v780
      %v782 = vpop.f32.mrb[0].mxu0
      %783 = vmatprep.mubr.f32.mxu0 0.0
      %784 = vmatmul.mubr.f32.gmra.mrb[0].mxu0 %v588
      %v785 = vpop.f32.mrb[0].mxu0
      %v786 = vadd.f32 0.0, %v785
      %v787 = vpop.f32.mrb[0].mxu0
      %788 = vmatprep.mubr.f32.mxu0 0.0
      %789 = vmatmul.mubr.f32.gmra.mrb[0].mxu0 %v591
      %v790 = vpop.f32.mrb[0].mxu0
      %v791 = vadd.f32 0.0, %v790
      %v792 = vpop.f32.mrb[0].mxu0
      %793 = vmatprep.mubr.f32.mxu0 0.0
      %794 = vmatmul.mubr.f32.gmra.mrb[0].mxu0 %v594
      %v795 = vpop.f32.mrb[0].mxu0
      %v796 = vadd.f32 0.0, %v795
      %v797 = vpop.f32.mrb[0].mxu0
      %798 = vmatprep.mubr.f32.mxu0 0.0
      %799 = vmatmul.mubr.f32.gmra.mrb[0].mxu0 %v597
      %v800 = vpop.f32.mrb[0].mxu0
      %v801 = vadd.f32 0.0, %v800
      %v802 = vpop.f32.mrb[0].mxu0
      %803 = vmatprep.mubr.f32.mxu0 0.0
      %804 = vmatmul.mubr.f32.gmra.mrb[0].mxu0 %v600
      %v805 = vpop.f32.mrb[0].mxu0
      %v806 = vadd.f32 0.0, %v805
      %v807 = vpop.f32.mrb[0].mxu0
      %808 = vmatprep.mubr.f32.mxu0 0.0
      %809 = vmatmul.mubr.f32.gmra.mrb[0].mxu0 %v603
      %v810 = vpop.f32.mrb[0].mxu0
      %v811 = vadd.f32 0.0, %v810
      %v812 = vpop.f32.mrb[0].mxu0
      %813 = vmatprep.mubr.f32.mxu0 0.0
      %814 = vmatmul.mubr.f32.gmra.mrb[0].mxu0 %v606
      %v815 = vpop.f32.mrb[0].mxu0
      %v816 = vadd.f32 0.0, %v815
      %v817 = vpop.f32.mrb[0].mxu0
      %818 = vmatprep.mubr.f32.mxu0 0.0
      %819 = vmatmul.mubr.f32.gmra.mrb[0].mxu0 %v609
      %v820 = vpop.f32.mrb[0].mxu0
      %v821 = vadd.f32 0.0, %v820
      %v822 = vpop.f32.mrb[0].mxu0
      %823 = vmatprep.mubr.f32.mxu0 0.0
      %824 = vmatmul.mubr.f32.gmra.mrb[0].mxu0 %v612
      %v825 = vpop.f32.mrb[0].mxu0
      %v826 = vadd.f32 0.0, %v825
      %v827 = vpop.f32.mrb[0].mxu0
      %828 = vmatprep.mubr.f32.mxu0 0.0
      %829 = vmatmul.mubr.f32.gmra.mrb[0].mxu0 %v615
      %v830 = vpop.f32.mrb[0].mxu0
      %v831 = vadd.f32 0.0, %v830
      %v832 = vpop.f32.mrb[0].mxu0
      %833 = vmatprep.mubr.f32.mxu0 0.0
      %834 = vmatmul.mubr.f32.gmra.mrb[0].mxu0 %v618
      %v835 = vpop.f32.mrb[0].mxu0
      %v836 = vadd.f32 0.0, %v835
      %v837 = vpop.f32.mrb[0].mxu0
      %838 = vmatprep.mubr.f32.mxu0 0.0
      %839 = vmatmul.mubr.f32.gmra.mrb[0].mxu0 %v621
      %v840 = vpop.f32.mrb[0].mxu0
      %v841 = vadd.f32 0.0, %v840
      %v842 = vpop.f32.mrb[0].mxu0
      %843 = vmatprep.mubr.f32.mxu0 0.0
      %844 = vmatmul.mubr.f32.gmra.mrb[0].mxu0 %v624
      %v845 = vpop.f32.mrb[0].mxu0
      %v846 = vadd.f32 0.0, %v845
      %v847 = vpop.f32.mrb[0].mxu0
      %848 = vmatprep.mubr.f32.mxu0 0.0
      %849 = vmatmul.mubr.f32.gmra.mrb[0].mxu0 %v627
      %v850 = vpop.f32.mrb[0].mxu0
      %v851 = vadd.f32 0.0, %v850
      %v852 = vpop.f32.mrb[0].mxu0
      %853 = vmatprep.mubr.f32.mxu0 0.0
      %854 = vmatmul.mubr.f32.gmra.mrb[0].mxu0 %v630
      %v855 = vpop.f32.mrb[0].mxu0
      %v856 = vadd.f32 0.0, %v855
      %v857 = vpop.f32.mrb[0].mxu0
      %858 = vmatprep.mubr.f32.mxu0 0.0
      %859 = vmatmul.mubr.f32.gmra.mrb[0].mxu0 %v633
      %v860 = vpop.f32.mrb[0].mxu0
      %v861 = vadd.f32 0.0, %v860
      %v862 = vpop.f32.mrb[0].mxu0
      %863 = vdwg.mxu0
      %v865 = vsel %vm333, %v472, 0
      %v868 = vsel %vm333, %v473, 0
      %v871 = vsel %vm333, %v474, 0
      %v874 = vsel %vm333, %v475, 0
      %v877 = vsel %vm333, %v476, 0
      %v880 = vsel %vm333, %v477, 0
      %v883 = vsel %vm333, %v478, 0
      %v886 = vsel %vm333, %v479, 0
      %v889 = vsel %vm333, %v480, 0
      %v892 = vsel %vm333, %v481, 0
      %v895 = vsel %vm333, %v482, 0
      %v898 = vsel %vm333, %v483, 0
      %v901 = vsel %vm333, %v484, 0
      %v904 = vsel %vm333, %v485, 0
      %v907 = vsel %vm333, %v486, 0
      %v910 = vsel %vm333, %v487, 0
      %v913 = vsel %vm333, %v488, 0
      %v916 = vsel %vm333, %v489, 0
      %v919 = vsel %vm333, %v490, 0
      %v922 = vsel %vm333, %v491, 0
      %v925 = vsel %vm333, %v492, 0
      %v928 = vsel %vm333, %v493, 0
      %v931 = vsel %vm333, %v494, 0
      %v934 = vsel %vm333, %v495, 0
      %v937 = vsel %vm333, %v496, 0
      %v940 = vsel %vm333, %v497, 0
      %v943 = vsel %vm333, %v498, 0
      %v946 = vsel %vm333, %v499, 0
      %v949 = vsel %vm333, %v500, 0
      %v952 = vsel %vm333, %v501, 0
      %v955 = vsel %vm333, %v502, 0
      %v958 = vsel %vm333, %v503, 0
      %v961 = vsel %vm635, %v504, 0
      %963 = vmatprep.subr.mxu0 0.0
      %964 = vmatpush1.msra.mxu0 %v961
      %965 = vmatprep.subr.mxu0 0.0
      %966 = vmatpush1.msra.mxu0 0.0
      %967 = vmatprep.subr.mxu0 0.0
      %968 = vmatpush1.msra.mxu0 0.0
      %969 = vmatprep.subr.mxu0 0.0
      %970 = vmatpush1.msra.mxu0 0.0
      %971 = vmatprep.subr.mxu0 0.0
      %972 = vmatpush1.msra.mxu0 0.0
      %973 = vmatprep.subr.mxu0 0.0
      %974 = vmatpush1.msra.mxu0 0.0
      %975 = vmatprep.subr.mxu0 0.0
      %976 = vmatpush1.msra.mxu0 0.0
      %977 = vmatprep.subr.mxu0 0.0
      %978 = vmatpush1.msra.mxu0 0.0
      %979 = vmatprep.subr.mxu0 0.0
      %980 = vmatpush1.msra.mxu0 0.0
      %981 = vmatprep.subr.mxu0 0.0
      %982 = vmatpush1.msra.mxu0 0.0
      %983 = vmatprep.subr.mxu0 0.0
      %984 = vmatpush1.msra.mxu0 0.0
      %985 = vmatprep.subr.mxu0 0.0
      %986 = vmatpush1.msra.mxu0 0.0
      %987 = vmatprep.subr.mxu0 0.0
      %988 = vmatpush1.msra.mxu0 0.0
      %989 = vmatprep.subr.mxu0 0.0
      %990 = vmatpush1.msra.mxu0 0.0
      %991 = vmatprep.subr.mxu0 0.0
      %992 = vmatpush1.msra.mxu0 0.0
      %993 = vmatprep.subr.mxu0 0.0
      %994 = vmatpush1.msra.mxu0 0.0
      %995 = vmatprep.subr.mxu0 0.0
      %996 = vmatpush1.msra.mxu0 0.0
      %997 = vmatprep.subr.mxu0 0.0
      %998 = vmatpush1.msra.mxu0 0.0
      %999 = vmatprep.subr.mxu0 0.0
      %1000 = vmatpush1.msra.mxu0 0.0
      %1001 = vmatprep.subr.mxu0 0.0
      %1002 = vmatpush1.msra.mxu0 0.0
      %1003 = vmatprep.subr.mxu0 0.0
      %1004 = vmatpush1.msra.mxu0 0.0
      %1005 = vmatprep.subr.mxu0 0.0
      %1006 = vmatpush1.msra.mxu0 0.0
      %1007 = vmatprep.subr.mxu0 0.0
      %1008 = vmatpush1.msra.mxu0 0.0
      %1009 = vmatprep.subr.mxu0 0.0
      %1010 = vmatpush1.msra.mxu0 0.0
      %1011 = vmatprep.subr.mxu0 0.0
      %1012 = vmatpush1.msra.mxu0 0.0
      %1013 = vmatprep.subr.mxu0 0.0
      %1014 = vmatpush1.msra.mxu0 0.0
      %1015 = vmatprep.subr.mxu0 0.0
      %1016 = vmatpush1.msra.mxu0 0.0
      %1017 = vmatprep.subr.mxu0 0.0
      %1018 = vmatpush1.msra.mxu0 0.0
      %1019 = vmatprep.subr.mxu0 0.0
      %1020 = vmatpush1.msra.mxu0 0.0
      %1021 = vmatprep.subr.mxu0 0.0
      %1022 = vmatpush1.msra.mxu0 0.0
      %1023 = vmatprep.subr.mxu0 0.0
      %1024 = vmatpush1.msra.mxu0 0.0
      %1025 = vmatprep.subr.mxu0 0.0
      %1026 = vmatpush1.msra.mxu0 0.0
      %1027 = vmatprep.mubr.f32.mxu0 0.0
      %1028 = vmatmul.mubr.f32.gmra.mrb[0].mxu0 %v865
      %v1029 = vpop.f32.mrb[0].mxu0
      %v1030 = vadd.f32 %v706, %v1029
      %v1031 = vpop.f32.mrb[0].mxu0
      %1032 = vmatprep.mubr.f32.mxu0 0.0
      %1033 = vmatmul.mubr.f32.gmra.mrb[0].mxu0 %v868
      %v1034 = vpop.f32.mrb[0].mxu0
      %v1035 = vadd.f32 %v711, %v1034
      %v1036 = vpop.f32.mrb[0].mxu0
      %1037 = vmatprep.mubr.f32.mxu0 0.0
      %1038 = vmatmul.mubr.f32.gmra.mrb[0].mxu0 %v871
      %v1039 = vpop.f32.mrb[0].mxu0
      %v1040 = vadd.f32 %v716, %v1039
      %v1041 = vpop.f32.mrb[0].mxu0
      %1042 = vmatprep.mubr.f32.mxu0 0.0
      %1043 = vmatmul.mubr.f32.gmra.mrb[0].mxu0 %v874
      %v1044 = vpop.f32.mrb[0].mxu0
      %v1045 = vadd.f32 %v721, %v1044
      %v1046 = vpop.f32.mrb[0].mxu0
      %1047 = vmatprep.mubr.f32.mxu0 0.0
      %1048 = vmatmul.mubr.f32.gmra.mrb[0].mxu0 %v877
      %v1049 = vpop.f32.mrb[0].mxu0
      %v1050 = vadd.f32 %v726, %v1049
      %v1051 = vpop.f32.mrb[0].mxu0
      %1052 = vmatprep.mubr.f32.mxu0 0.0
      %1053 = vmatmul.mubr.f32.gmra.mrb[0].mxu0 %v880
      %v1054 = vpop.f32.mrb[0].mxu0
      %v1055 = vadd.f32 %v731, %v1054
      %v1056 = vpop.f32.mrb[0].mxu0
      %1057 = vmatprep.mubr.f32.mxu0 0.0
      %1058 = vmatmul.mubr.f32.gmra.mrb[0].mxu0 %v883
      %v1059 = vpop.f32.mrb[0].mxu0
      %v1060 = vadd.f32 %v736, %v1059
      %v1061 = vpop.f32.mrb[0].mxu0
      %1062 = vmatprep.mubr.f32.mxu0 0.0
      %1063 = vmatmul.mubr.f32.gmra.mrb[0].mxu0 %v886
      %v1064 = vpop.f32.mrb[0].mxu0
      %v1065 = vadd.f32 %v741, %v1064
      %v1066 = vpop.f32.mrb[0].mxu0
      %1067 = vmatprep.mubr.f32.mxu0 0.0
      %1068 = vmatmul.mubr.f32.gmra.mrb[0].mxu0 %v889
      %v1069 = vpop.f32.mrb[0].mxu0
      %v1070 = vadd.f32 %v746, %v1069
      %v1071 = vpop.f32.mrb[0].mxu0
      %1072 = vmatprep.mubr.f32.mxu0 0.0
      %1073 = vmatmul.mubr.f32.gmra.mrb[0].mxu0 %v892
      %v1074 = vpop.f32.mrb[0].mxu0
      %v1075 = vadd.f32 %v751, %v1074
      %v1076 = vpop.f32.mrb[0].mxu0
      %1077 = vmatprep.mubr.f32.mxu0 0.0
      %1078 = vmatmul.mubr.f32.gmra.mrb[0].mxu0 %v895
      %v1079 = vpop.f32.mrb[0].mxu0
      %v1080 = vadd.f32 %v756, %v1079
      %v1081 = vpop.f32.mrb[0].mxu0
      %1082 = vmatprep.mubr.f32.mxu0 0.0
      %1083 = vmatmul.mubr.f32.gmra.mrb[0].mxu0 %v898
      %v1084 = vpop.f32.mrb[0].mxu0
      %v1085 = vadd.f32 %v761, %v1084
      %v1086 = vpop.f32.mrb[0].mxu0
      %1087 = vmatprep.mubr.f32.mxu0 0.0
      %1088 = vmatmul.mubr.f32.gmra.mrb[0].mxu0 %v901
      %v1089 = vpop.f32.mrb[0].mxu0
      %v1090 = vadd.f32 %v766, %v1089
      %v1091 = vpop.f32.mrb[0].mxu0
      %1092 = vmatprep.mubr.f32.mxu0 0.0
      %1093 = vmatmul.mubr.f32.gmra.mrb[0].mxu0 %v904
      %v1094 = vpop.f32.mrb[0].mxu0
      %v1095 = vadd.f32 %v771, %v1094
      %v1096 = vpop.f32.mrb[0].mxu0
      %1097 = vmatprep.mubr.f32.mxu0 0.0
      %1098 = vmatmul.mubr.f32.gmra.mrb[0].mxu0 %v907
      %v1099 = vpop.f32.mrb[0].mxu0
      %v1100 = vadd.f32 %v776, %v1099
      %v1101 = vpop.f32.mrb[0].mxu0
      %1102 = vmatprep.mubr.f32.mxu0 0.0
      %1103 = vmatmul.mubr.f32.gmra.mrb[0].mxu0 %v910
      %v1104 = vpop.f32.mrb[0].mxu0
      %v1105 = vadd.f32 %v781, %v1104
      %v1106 = vpop.f32.mrb[0].mxu0
      %1107 = vmatprep.mubr.f32.mxu0 0.0
      %1108 = vmatmul.mubr.f32.gmra.mrb[0].mxu0 %v913
      %v1109 = vpop.f32.mrb[0].mxu0
      %v1110 = vadd.f32 %v786, %v1109
      %v1111 = vpop.f32.mrb[0].mxu0
      %1112 = vmatprep.mubr.f32.mxu0 0.0
      %1113 = vmatmul.mubr.f32.gmra.mrb[0].mxu0 %v916
      %v1114 = vpop.f32.mrb[0].mxu0
      %v1115 = vadd.f32 %v791, %v1114
      %v1116 = vpop.f32.mrb[0].mxu0
      %1117 = vmatprep.mubr.f32.mxu0 0.0
      %1118 = vmatmul.mubr.f32.gmra.mrb[0].mxu0 %v919
      %v1119 = vpop.f32.mrb[0].mxu0
      %v1120 = vadd.f32 %v796, %v1119
      %v1121 = vpop.f32.mrb[0].mxu0
      %1122 = vmatprep.mubr.f32.mxu0 0.0
      %1123 = vmatmul.mubr.f32.gmra.mrb[0].mxu0 %v922
      %v1124 = vpop.f32.mrb[0].mxu0
      %v1125 = vadd.f32 %v801, %v1124
      %v1126 = vpop.f32.mrb[0].mxu0
      %1127 = vmatprep.mubr.f32.mxu0 0.0
      %1128 = vmatmul.mubr.f32.gmra.mrb[0].mxu0 %v925
      %v1129 = vpop.f32.mrb[0].mxu0
      %v1130 = vadd.f32 %v806, %v1129
      %v1131 = vpop.f32.mrb[0].mxu0
      %1132 = vmatprep.mubr.f32.mxu0 0.0
      %1133 = vmatmul.mubr.f32.gmra.mrb[0].mxu0 %v928
      %v1134 = vpop.f32.mrb[0].mxu0
      %v1135 = vadd.f32 %v811, %v1134
      %v1136 = vpop.f32.mrb[0].mxu0
      %1137 = vmatprep.mubr.f32.mxu0 0.0
      %1138 = vmatmul.mubr.f32.gmra.mrb[0].mxu0 %v931
      %v1139 = vpop.f32.mrb[0].mxu0
      %v1140 = vadd.f32 %v816, %v1139
      %v1141 = vpop.f32.mrb[0].mxu0
      %1142 = vmatprep.mubr.f32.mxu0 0.0
      %1143 = vmatmul.mubr.f32.gmra.mrb[0].mxu0 %v934
      %v1144 = vpop.f32.mrb[0].mxu0
      %v1145 = vadd.f32 %v821, %v1144
      %v1146 = vpop.f32.mrb[0].mxu0
      %1147 = vmatprep.mubr.f32.mxu0 0.0
      %1148 = vmatmul.mubr.f32.gmra.mrb[0].mxu0 %v937
      %v1149 = vpop.f32.mrb[0].mxu0
      %v1150 = vadd.f32 %v826, %v1149
      %v1151 = vpop.f32.mrb[0].mxu0
      %1152 = vmatprep.mubr.f32.mxu0 0.0
      %1153 = vmatmul.mubr.f32.gmra.mrb[0].mxu0 %v940
      %v1154 = vpop.f32.mrb[0].mxu0
      %v1155 = vadd.f32 %v831, %v1154
      %v1156 = vpop.f32.mrb[0].mxu0
      %1157 = vmatprep.mubr.f32.mxu0 0.0
      %1158 = vmatmul.mubr.f32.gmra.mrb[0].mxu0 %v943
      %v1159 = vpop.f32.mrb[0].mxu0
      %v1160 = vadd.f32 %v836, %v1159
      %v1161 = vpop.f32.mrb[0].mxu0
      %1162 = vmatprep.mubr.f32.mxu0 0.0
      %1163 = vmatmul.mubr.f32.gmra.mrb[0].mxu0 %v946
      %v1164 = vpop.f32.mrb[0].mxu0
      %v1165 = vadd.f32 %v841, %v1164
      %v1166 = vpop.f32.mrb[0].mxu0
      %1167 = vmatprep.mubr.f32.mxu0 0.0
      %1168 = vmatmul.mubr.f32.gmra.mrb[0].mxu0 %v949
      %v1169 = vpop.f32.mrb[0].mxu0
      %v1170 = vadd.f32 %v846, %v1169
      %v1171 = vpop.f32.mrb[0].mxu0
      %1172 = vmatprep.mubr.f32.mxu0 0.0
      %1173 = vmatmul.mubr.f32.gmra.mrb[0].mxu0 %v952
      %v1174 = vpop.f32.mrb[0].mxu0
      %v1175 = vadd.f32 %v851, %v1174
      %v1176 = vpop.f32.mrb[0].mxu0
      %1177 = vmatprep.mubr.f32.mxu0 0.0
      %1178 = vmatmul.mubr.f32.gmra.mrb[0].mxu0 %v955
      %v1179 = vpop.f32.mrb[0].mxu0
      %v1180 = vadd.f32 %v856, %v1179
      %v1181 = vpop.f32.mrb[0].mxu0
      %1182 = vmatprep.mubr.f32.mxu0 0.0
      %1183 = vmatmul.mubr.f32.gmra.mrb[0].mxu0 %v958
      %v1184 = vpop.f32.mrb[0].mxu0
      %v1185 = vadd.f32 %v861, %v1184
      %v1186 = vpop.f32.mrb[0].mxu0
      %1187 = vdwg.mxu0
      %v1188 = vld [vmem:[#allocation2 + $0x9] sm:$0xff]
      %v1189 = vld [vmem:[#allocation2 + $0x11] sm:$0xff]
      %v1190 = vld [vmem:[#allocation2 + $0x29] sm:$0xff]
      %v1191 = vld [vmem:[#allocation2 + $0x31] sm:$0xff]
      %v1192 = vld [vmem:[#allocation2 + $0x49] sm:$0xff]
      %v1193 = vld [vmem:[#allocation2 + $0x51] sm:$0xff]
      %v1194 = vld [vmem:[#allocation2 + $0x69] sm:$0xff]
      %v1195 = vld [vmem:[#allocation2 + $0x71] sm:$0xff]
      %v1196 = vld [vmem:[#allocation2 + $0x89] sm:$0xff]
      %v1197 = vld [vmem:[#allocation2 + $0x91] sm:$0xff]
      %v1198 = vld [vmem:[#allocation2 + $0xa9] sm:$0xff]
      %v1199 = vld [vmem:[#allocation2 + $0xb1] sm:$0xff]
      %v1200 = vld [vmem:[#allocation2 + $0xc9] sm:$0xff]
      %v1201 = vld [vmem:[#allocation2 + $0xd1] sm:$0xff]
      %v1202 = vld [vmem:[#allocation2 + $0xe9] sm:$0xff]
      %v1203 = vld [vmem:[#allocation2 + $0xf1] sm:$0xff]
      %v1204 = vld [vmem:[#allocation2 + $0x109] sm:$0xff]
      %v1205 = vld [vmem:[#allocation2 + $0x111] sm:$0xff]
      %v1206 = vld [vmem:[#allocation2 + $0x129] sm:$0xff]
      %v1207 = vld [vmem:[#allocation2 + $0x131] sm:$0xff]
      %v1208 = vld [vmem:[#allocation2 + $0x149] sm:$0xff]
      %v1209 = vld [vmem:[#allocation2 + $0x151] sm:$0xff]
      %v1210 = vld [vmem:[#allocation2 + $0x169] sm:$0xff]
      %v1211 = vld [vmem:[#allocation2 + $0x171] sm:$0xff]
      %v1212 = vld [vmem:[#allocation2 + $0x189] sm:$0xff]
      %v1213 = vld [vmem:[#allocation2 + $0x191] sm:$0xff]
      %v1214 = vld [vmem:[#allocation2 + $0x1a9] sm:$0xff]
      %v1215 = vld [vmem:[#allocation2 + $0x1b1] sm:$0xff]
      %v1216 = vld [vmem:[#allocation2 + $0x1c9] sm:$0xff]
      %v1217 = vld [vmem:[#allocation2 + $0x1d1] sm:$0xff]
      %v1218 = vld [vmem:[#allocation2 + $0x1e9] sm:$0xff]
      %v1219 = vld [vmem:[#allocation2 + $0x1f1] sm:$0xff]
      %s1220 = scalar_lea.vmem %s1, 8
      %v1221 = vld [vmem:[%s1220] sm:$0x7]
      %v1223 = vsel %vm333, %v1188, 0
      %v1226 = vsel %vm333, %v1189, 0
      %v1229 = vsel %vm333, %v1190, 0
      %v1232 = vsel %vm333, %v1191, 0
      %v1235 = vsel %vm333, %v1192, 0
      %v1238 = vsel %vm333, %v1193, 0
      %v1241 = vsel %vm333, %v1194, 0
      %v1244 = vsel %vm333, %v1195, 0
      %v1247 = vsel %vm333, %v1196, 0
      %v1250 = vsel %vm333, %v1197, 0
      %v1253 = vsel %vm333, %v1198, 0
      %v1256 = vsel %vm333, %v1199, 0
      %v1259 = vsel %vm333, %v1200, 0
      %v1262 = vsel %vm333, %v1201, 0
      %v1265 = vsel %vm333, %v1202, 0
      %v1268 = vsel %vm333, %v1203, 0
      %v1271 = vsel %vm333, %v1204, 0
      %v1274 = vsel %vm333, %v1205, 0
      %v1277 = vsel %vm333, %v1206, 0
      %v1280 = vsel %vm333, %v1207, 0
      %v1283 = vsel %vm333, %v1208, 0
      %v1286 = vsel %vm333, %v1209, 0
      %v1289 = vsel %vm333, %v1210, 0
      %v1292 = vsel %vm333, %v1211, 0
      %v1295 = vsel %vm333, %v1212, 0
      %v1298 = vsel %vm333, %v1213, 0
      %v1301 = vsel %vm333, %v1214, 0
      %v1304 = vsel %vm333, %v1215, 0
      %v1307 = vsel %vm333, %v1216, 0
      %v1310 = vsel %vm333, %v1217, 0
      %v1313 = vsel %vm333, %v1218, 0
      %v1316 = vsel %vm333, %v1219, 0
      %v1319 = vsel %vm635, %v1221, 0
      %1321 = vmatprep.subr.mxu0 0.0
      %1322 = vmatpush1.msra.mxu0 %v1319
      %1323 = vmatprep.subr.mxu0 0.0
      %1324 = vmatpush1.msra.mxu0 0.0
      %1325 = vmatprep.subr.mxu0 0.0
      %1326 = vmatpush1.msra.mxu0 0.0
      %1327 = vmatprep.subr.mxu0 0.0
      %1328 = vmatpush1.msra.mxu0 0.0
      %1329 = vmatprep.subr.mxu0 0.0
      %1330 = vmatpush1.msra.mxu0 0.0
      %1331 = vmatprep.subr.mxu0 0.0
      %1332 = vmatpush1.msra.mxu0 0.0
      %1333 = vmatprep.subr.mxu0 0.0
      %1334 = vmatpush1.msra.mxu0 0.0
      %1335 = vmatprep.subr.mxu0 0.0
      %1336 = vmatpush1.msra.mxu0 0.0
      %1337 = vmatprep.subr.mxu0 0.0
      %1338 = vmatpush1.msra.mxu0 0.0
      %1339 = vmatprep.subr.mxu0 0.0
      %1340 = vmatpush1.msra.mxu0 0.0
      %1341 = vmatprep.subr.mxu0 0.0
      %1342 = vmatpush1.msra.mxu0 0.0
      %1343 = vmatprep.subr.mxu0 0.0
      %1344 = vmatpush1.msra.mxu0 0.0
      %1345 = vmatprep.subr.mxu0 0.0
      %1346 = vmatpush1.msra.mxu0 0.0
      %1347 = vmatprep.subr.mxu0 0.0
      %1348 = vmatpush1.msra.mxu0 0.0
      %1349 = vmatprep.subr.mxu0 0.0
      %1350 = vmatpush1.msra.mxu0 0.0
      %1351 = vmatprep.subr.mxu0 0.0
      %1352 = vmatpush1.msra.mxu0 0.0
      %1353 = vmatprep.subr.mxu0 0.0
      %1354 = vmatpush1.msra.mxu0 0.0
      %1355 = vmatprep.subr.mxu0 0.0
      %1356 = vmatpush1.msra.mxu0 0.0
      %1357 = vmatprep.subr.mxu0 0.0
      %1358 = vmatpush1.msra.mxu0 0.0
      %1359 = vmatprep.subr.mxu0 0.0
      %1360 = vmatpush1.msra.mxu0 0.0
      %1361 = vmatprep.subr.mxu0 0.0
      %1362 = vmatpush1.msra.mxu0 0.0
      %1363 = vmatprep.subr.mxu0 0.0
      %1364 = vmatpush1.msra.mxu0 0.0
      %1365 = vmatprep.subr.mxu0 0.0
      %1366 = vmatpush1.msra.mxu0 0.0
      %1367 = vmatprep.subr.mxu0 0.0
      %1368 = vmatpush1.msra.mxu0 0.0
      %1369 = vmatprep.subr.mxu0 0.0
      %1370 = vmatpush1.msra.mxu0 0.0
      %1371 = vmatprep.subr.mxu0 0.0
      %1372 = vmatpush1.msra.mxu0 0.0
      %1373 = vmatprep.subr.mxu0 0.0
      %1374 = vmatpush1.msra.mxu0 0.0
      %1375 = vmatprep.subr.mxu0 0.0
      %1376 = vmatpush1.msra.mxu0 0.0
      %1377 = vmatprep.subr.mxu0 0.0
      %1378 = vmatpush1.msra.mxu0 0.0
      %1379 = vmatprep.subr.mxu0 0.0
      %1380 = vmatpush1.msra.mxu0 0.0
      %1381 = vmatprep.subr.mxu0 0.0
      %1382 = vmatpush1.msra.mxu0 0.0
      %1383 = vmatprep.subr.mxu0 0.0
      %1384 = vmatpush1.msra.mxu0 0.0
      %1385 = vmatprep.mubr.f32.mxu0 0.0
      %1386 = vmatmul.mubr.f32.gmra.mrb[0].mxu0 %v1223
      %v1387 = vpop.f32.mrb[0].mxu0
      %v1388 = vadd.f32 0.0, %v1387
      %v1389 = vpop.f32.mrb[0].mxu0
      %1390 = vmatprep.mubr.f32.mxu0 0.0
      %1391 = vmatmul.mubr.f32.gmra.mrb[0].mxu0 %v1226
      %v1392 = vpop.f32.mrb[0].mxu0
      %v1393 = vadd.f32 0.0, %v1392
      %v1394 = vpop.f32.mrb[0].mxu0
      %1395 = vmatprep.mubr.f32.mxu0 0.0
      %1396 = vmatmul.mubr.f32.gmra.mrb[0].mxu0 %v1229
      %v1397 = vpop.f32.mrb[0].mxu0
      %v1398 = vadd.f32 0.0, %v1397
      %v1399 = vpop.f32.mrb[0].mxu0
      %1400 = vmatprep.mubr.f32.mxu0 0.0
      %1401 = vmatmul.mubr.f32.gmra.mrb[0].mxu0 %v1232
      %v1402 = vpop.f32.mrb[0].mxu0
      %v1403 = vadd.f32 0.0, %v1402
      %v1404 = vpop.f32.mrb[0].mxu0
      %1405 = vmatprep.mubr.f32.mxu0 0.0
      %1406 = vmatmul.mubr.f32.gmra.mrb[0].mxu0 %v1235
      %v1407 = vpop.f32.mrb[0].mxu0
      %v1408 = vadd.f32 0.0, %v1407
      %v1409 = vpop.f32.mrb[0].mxu0
      %1410 = vmatprep.mubr.f32.mxu0 0.0
      %1411 = vmatmul.mubr.f32.gmra.mrb[0].mxu0 %v1238
      %v1412 = vpop.f32.mrb[0].mxu0
      %v1413 = vadd.f32 0.0, %v1412
      %v1414 = vpop.f32.mrb[0].mxu0
      %1415 = vmatprep.mubr.f32.mxu0 0.0
      %1416 = vmatmul.mubr.f32.gmra.mrb[0].mxu0 %v1241
      %v1417 = vpop.f32.mrb[0].mxu0
      %v1418 = vadd.f32 0.0, %v1417
      %v1419 = vpop.f32.mrb[0].mxu0
      %1420 = vmatprep.mubr.f32.mxu0 0.0
      %1421 = vmatmul.mubr.f32.gmra.mrb[0].mxu0 %v1244
      %v1422 = vpop.f32.mrb[0].mxu0
      %v1423 = vadd.f32 0.0, %v1422
      %v1424 = vpop.f32.mrb[0].mxu0
      %1425 = vmatprep.mubr.f32.mxu0 0.0
      %1426 = vmatmul.mubr.f32.gmra.mrb[0].mxu0 %v1247
      %v1427 = vpop.f32.mrb[0].mxu0
      %v1428 = vadd.f32 0.0, %v1427
      %v1429 = vpop.f32.mrb[0].mxu0
      %1430 = vmatprep.mubr.f32.mxu0 0.0
      %1431 = vmatmul.mubr.f32.gmra.mrb[0].mxu0 %v1250
      %v1432 = vpop.f32.mrb[0].mxu0
      %v1433 = vadd.f32 0.0, %v1432
      %v1434 = vpop.f32.mrb[0].mxu0
      %1435 = vmatprep.mubr.f32.mxu0 0.0
      %1436 = vmatmul.mubr.f32.gmra.mrb[0].mxu0 %v1253
      %v1437 = vpop.f32.mrb[0].mxu0
      %v1438 = vadd.f32 0.0, %v1437
      %v1439 = vpop.f32.mrb[0].mxu0
      %1440 = vmatprep.mubr.f32.mxu0 0.0
      %1441 = vmatmul.mubr.f32.gmra.mrb[0].mxu0 %v1256
      %v1442 = vpop.f32.mrb[0].mxu0
      %v1443 = vadd.f32 0.0, %v1442
      %v1444 = vpop.f32.mrb[0].mxu0
      %1445 = vmatprep.mubr.f32.mxu0 0.0
      %1446 = vmatmul.mubr.f32.gmra.mrb[0].mxu0 %v1259
      %v1447 = vpop.f32.mrb[0].mxu0
      %v1448 = vadd.f32 0.0, %v1447
      %v1449 = vpop.f32.mrb[0].mxu0
      %1450 = vmatprep.mubr.f32.mxu0 0.0
      %1451 = vmatmul.mubr.f32.gmra.mrb[0].mxu0 %v1262
      %v1452 = vpop.f32.mrb[0].mxu0
      %v1453 = vadd.f32 0.0, %v1452
      %v1454 = vpop.f32.mrb[0].mxu0
      %1455 = vmatprep.mubr.f32.mxu0 0.0
      %1456 = vmatmul.mubr.f32.gmra.mrb[0].mxu0 %v1265
      %v1457 = vpop.f32.mrb[0].mxu0
      %v1458 = vadd.f32 0.0, %v1457
      %v1459 = vpop.f32.mrb[0].mxu0
      %1460 = vmatprep.mubr.f32.mxu0 0.0
      %1461 = vmatmul.mubr.f32.gmra.mrb[0].mxu0 %v1268
      %v1462 = vpop.f32.mrb[0].mxu0
      %v1463 = vadd.f32 0.0, %v1462
      %v1464 = vpop.f32.mrb[0].mxu0
      %1465 = vmatprep.mubr.f32.mxu0 0.0
      %1466 = vmatmul.mubr.f32.gmra.mrb[0].mxu0 %v1271
      %v1467 = vpop.f32.mrb[0].mxu0
      %v1468 = vadd.f32 0.0, %v1467
      %v1469 = vpop.f32.mrb[0].mxu0
      %1470 = vmatprep.mubr.f32.mxu0 0.0
      %1471 = vmatmul.mubr.f32.gmra.mrb[0].mxu0 %v1274
      %v1472 = vpop.f32.mrb[0].mxu0
      %v1473 = vadd.f32 0.0, %v1472
      %v1474 = vpop.f32.mrb[0].mxu0
      %1475 = vmatprep.mubr.f32.mxu0 0.0
      %1476 = vmatmul.mubr.f32.gmra.mrb[0].mxu0 %v1277
      %v1477 = vpop.f32.mrb[0].mxu0
      %v1478 = vadd.f32 0.0, %v1477
      %v1479 = vpop.f32.mrb[0].mxu0
      %1480 = vmatprep.mubr.f32.mxu0 0.0
      %1481 = vmatmul.mubr.f32.gmra.mrb[0].mxu0 %v1280
      %v1482 = vpop.f32.mrb[0].mxu0
      %v1483 = vadd.f32 0.0, %v1482
      %v1484 = vpop.f32.mrb[0].mxu0
      %1485 = vmatprep.mubr.f32.mxu0 0.0
      %1486 = vmatmul.mubr.f32.gmra.mrb[0].mxu0 %v1283
      %v1487 = vpop.f32.mrb[0].mxu0
      %v1488 = vadd.f32 0.0, %v1487
      %v1489 = vpop.f32.mrb[0].mxu0
      %1490 = vmatprep.mubr.f32.mxu0 0.0
      %1491 = vmatmul.mubr.f32.gmra.mrb[0].mxu0 %v1286
      %v1492 = vpop.f32.mrb[0].mxu0
      %v1493 = vadd.f32 0.0, %v1492
      %v1494 = vpop.f32.mrb[0].mxu0
      %1495 = vmatprep.mubr.f32.mxu0 0.0
      %1496 = vmatmul.mubr.f32.gmra.mrb[0].mxu0 %v1289
      %v1497 = vpop.f32.mrb[0].mxu0
      %v1498 = vadd.f32 0.0, %v1497
      %v1499 = vpop.f32.mrb[0].mxu0
      %1500 = vmatprep.mubr.f32.mxu0 0.0
      %1501 = vmatmul.mubr.f32.gmra.mrb[0].mxu0 %v1292
      %v1502 = vpop.f32.mrb[0].mxu0
      %v1503 = vadd.f32 0.0, %v1502
      %v1504 = vpop.f32.mrb[0].mxu0
      %1505 = vmatprep.mubr.f32.mxu0 0.0
      %1506 = vmatmul.mubr.f32.gmra.mrb[0].mxu0 %v1295
      %v1507 = vpop.f32.mrb[0].mxu0
      %v1508 = vadd.f32 0.0, %v1507
      %v1509 = vpop.f32.mrb[0].mxu0
      %1510 = vmatprep.mubr.f32.mxu0 0.0
      %1511 = vmatmul.mubr.f32.gmra.mrb[0].mxu0 %v1298
      %v1512 = vpop.f32.mrb[0].mxu0
      %v1513 = vadd.f32 0.0, %v1512
      %v1514 = vpop.f32.mrb[0].mxu0
      %1515 = vmatprep.mubr.f32.mxu0 0.0
      %1516 = vmatmul.mubr.f32.gmra.mrb[0].mxu0 %v1301
      %v1517 = vpop.f32.mrb[0].mxu0
      %v1518 = vadd.f32 0.0, %v1517
      %v1519 = vpop.f32.mrb[0].mxu0
      %1520 = vmatprep.mubr.f32.mxu0 0.0
      %1521 = vmatmul.mubr.f32.gmra.mrb[0].mxu0 %v1304
      %v1522 = vpop.f32.mrb[0].mxu0
      %v1523 = vadd.f32 0.0, %v1522
      %v1524 = vpop.f32.mrb[0].mxu0
      %1525 = vmatprep.mubr.f32.mxu0 0.0
      %1526 = vmatmul.mubr.f32.gmra.mrb[0].mxu0 %v1307
      %v1527 = vpop.f32.mrb[0].mxu0
      %v1528 = vadd.f32 0.0, %v1527
      %v1529 = vpop.f32.mrb[0].mxu0
      %1530 = vmatprep.mubr.f32.mxu0 0.0
      %1531 = vmatmul.mubr.f32.gmra.mrb[0].mxu0 %v1310
      %v1532 = vpop.f32.mrb[0].mxu0
      %v1533 = vadd.f32 0.0, %v1532
      %v1534 = vpop.f32.mrb[0].mxu0
      %1535 = vmatprep.mubr.f32.mxu0 0.0
      %1536 = vmatmul.mubr.f32.gmra.mrb[0].mxu0 %v1313
      %v1537 = vpop.f32.mrb[0].mxu0
      %v1538 = vadd.f32 0.0, %v1537
      %v1539 = vpop.f32.mrb[0].mxu0
      %1540 = vmatprep.mubr.f32.mxu0 0.0
      %1541 = vmatmul.mubr.f32.gmra.mrb[0].mxu0 %v1316
      %v1542 = vpop.f32.mrb[0].mxu0
      %v1543 = vadd.f32 0.0, %v1542
      %v1544 = vpop.f32.mrb[0].mxu0
      %1545 = vdwg.mxu0
      %v1546 = vadd.f32 %v1030, %v1388
      %v1547 = vadd.f32 %v1035, %v1393
      %v1548 = vadd.f32 %v1040, %v1398
      %v1549 = vadd.f32 %v1045, %v1403
      %v1550 = vadd.f32 %v1050, %v1408
      %v1551 = vadd.f32 %v1055, %v1413
      %v1552 = vadd.f32 %v1060, %v1418
      %v1553 = vadd.f32 %v1065, %v1423
      %v1554 = vadd.f32 %v1070, %v1428
      %v1555 = vadd.f32 %v1075, %v1433
      %v1556 = vadd.f32 %v1080, %v1438
      %v1557 = vadd.f32 %v1085, %v1443
      %v1558 = vadd.f32 %v1090, %v1448
      %v1559 = vadd.f32 %v1095, %v1453
      %v1560 = vadd.f32 %v1100, %v1458
      %v1561 = vadd.f32 %v1105, %v1463
      %v1562 = vadd.f32 %v1110, %v1468
      %v1563 = vadd.f32 %v1115, %v1473
      %v1564 = vadd.f32 %v1120, %v1478
      %v1565 = vadd.f32 %v1125, %v1483
      %v1566 = vadd.f32 %v1130, %v1488
      %v1567 = vadd.f32 %v1135, %v1493
      %v1568 = vadd.f32 %v1140, %v1498
      %v1569 = vadd.f32 %v1145, %v1503
      %v1570 = vadd.f32 %v1150, %v1508
      %v1571 = vadd.f32 %v1155, %v1513
      %v1572 = vadd.f32 %v1160, %v1518
      %v1573 = vadd.f32 %v1165, %v1523
      %v1574 = vadd.f32 %v1170, %v1528
      %v1575 = vadd.f32 %v1175, %v1533
      %v1576 = vadd.f32 %v1180, %v1538
      %v1577 = vadd.f32 %v1185, %v1543
      %v1578 = vld [vmem:[%s439 + $0x7] sm:$0xff]
      %v1579 = vld [vmem:[%s439 + $0xf] sm:$0xff]
      %v1580 = vld [vmem:[%s439 + $0x27] sm:$0xff]
      %v1581 = vld [vmem:[%s439 + $0x2f] sm:$0xff]
      %v1582 = vld [vmem:[%s439 + $0x47] sm:$0xff]
      %v1583 = vld [vmem:[%s439 + $0x4f] sm:$0xff]
      %v1584 = vld [vmem:[%s439 + $0x67] sm:$0xff]
      %v1585 = vld [vmem:[%s439 + $0x6f] sm:$0xff]
      %v1586 = vld [vmem:[%s439 + $0x87] sm:$0xff]
      %v1587 = vld [vmem:[%s439 + $0x8f] sm:$0xff]
      %v1588 = vld [vmem:[%s439 + $0xa7] sm:$0xff]
      %v1589 = vld [vmem:[%s439 + $0xaf] sm:$0xff]
      %v1590 = vld [vmem:[%s439 + $0xc7] sm:$0xff]
      %v1591 = vld [vmem:[%s439 + $0xcf] sm:$0xff]
      %v1592 = vld [vmem:[%s439 + $0xe7] sm:$0xff]
      %v1593 = vld [vmem:[%s439 + $0xef] sm:$0xff]
      %v1594 = vld [vmem:[%s439 + $0x107] sm:$0xff]
      %v1595 = vld [vmem:[%s439 + $0x10f] sm:$0xff]
      %v1596 = vld [vmem:[%s439 + $0x127] sm:$0xff]
      %v1597 = vld [vmem:[%s439 + $0x12f] sm:$0xff]
      %v1598 = vld [vmem:[%s439 + $0x147] sm:$0xff]
      %v1599 = vld [vmem:[%s439 + $0x14f] sm:$0xff]
      %v1600 = vld [vmem:[%s439 + $0x167] sm:$0xff]
      %v1601 = vld [vmem:[%s439 + $0x16f] sm:$0xff]
      %v1602 = vld [vmem:[%s439 + $0x187] sm:$0xff]
      %v1603 = vld [vmem:[%s439 + $0x18f] sm:$0xff]
      %v1604 = vld [vmem:[%s439 + $0x1a7] sm:$0xff]
      %v1605 = vld [vmem:[%s439 + $0x1af] sm:$0xff]
      %v1606 = vld [vmem:[%s439 + $0x1c7] sm:$0xff]
      %v1607 = vld [vmem:[%s439 + $0x1cf] sm:$0xff]
      %v1608 = vld [vmem:[%s439 + $0x1e7] sm:$0xff]
      %v1609 = vld [vmem:[%s439 + $0x1ef] sm:$0xff]
      %s1610 = scalar_lea.vmem %s1, 12
      %v1611 = vld [vmem:[%s1610] sm:$0x7]
      %v1613 = vsel %vm333, %v1578, 0
      %v1616 = vsel %vm333, %v1579, 0
      %v1619 = vsel %vm333, %v1580, 0
      %v1622 = vsel %vm333, %v1581, 0
      %v1625 = vsel %vm333, %v1582, 0
      %v1628 = vsel %vm333, %v1583, 0
      %v1631 = vsel %vm333, %v1584, 0
      %v1634 = vsel %vm333, %v1585, 0
      %v1637 = vsel %vm333, %v1586, 0
      %v1640 = vsel %vm333, %v1587, 0
      %v1643 = vsel %vm333, %v1588, 0
      %v1646 = vsel %vm333, %v1589, 0
      %v1649 = vsel %vm333, %v1590, 0
      %v1652 = vsel %vm333, %v1591, 0
      %v1655 = vsel %vm333, %v1592, 0
      %v1658 = vsel %vm333, %v1593, 0
      %v1661 = vsel %vm333, %v1594, 0
      %v1664 = vsel %vm333, %v1595, 0
      %v1667 = vsel %vm333, %v1596, 0
      %v1670 = vsel %vm333, %v1597, 0
      %v1673 = vsel %vm333, %v1598, 0
      %v1676 = vsel %vm333, %v1599, 0
      %v1679 = vsel %vm333, %v1600, 0
      %v1682 = vsel %vm333, %v1601, 0
      %v1685 = vsel %vm333, %v1602, 0
      %v1688 = vsel %vm333, %v1603, 0
      %v1691 = vsel %vm333, %v1604, 0
      %v1694 = vsel %vm333, %v1605, 0
      %v1697 = vsel %vm333, %v1606, 0
      %v1700 = vsel %vm333, %v1607, 0
      %v1703 = vsel %vm333, %v1608, 0
      %v1706 = vsel %vm333, %v1609, 0
      %v1709 = vsel %vm635, %v1611, 0
      %1711 = vmatprep.subr.mxu0 0.0
      %1712 = vmatpush1.msra.mxu0 %v1709
      %1713 = vmatprep.subr.mxu0 0.0
      %1714 = vmatpush1.msra.mxu0 0.0
      %1715 = vmatprep.subr.mxu0 0.0
      %1716 = vmatpush1.msra.mxu0 0.0
      %1717 = vmatprep.subr.mxu0 0.0
      %1718 = vmatpush1.msra.mxu0 0.0
      %1719 = vmatprep.subr.mxu0 0.0
      %1720 = vmatpush1.msra.mxu0 0.0
      %1721 = vmatprep.subr.mxu0 0.0
      %1722 = vmatpush1.msra.mxu0 0.0
      %1723 = vmatprep.subr.mxu0 0.0
      %1724 = vmatpush1.msra.mxu0 0.0
      %1725 = vmatprep.subr.mxu0 0.0
      %1726 = vmatpush1.msra.mxu0 0.0
      %1727 = vmatprep.subr.mxu0 0.0
      %1728 = vmatpush1.msra.mxu0 0.0
      %1729 = vmatprep.subr.mxu0 0.0
      %1730 = vmatpush1.msra.mxu0 0.0
      %1731 = vmatprep.subr.mxu0 0.0
      %1732 = vmatpush1.msra.mxu0 0.0
      %1733 = vmatprep.subr.mxu0 0.0
      %1734 = vmatpush1.msra.mxu0 0.0
      %1735 = vmatprep.subr.mxu0 0.0
      %1736 = vmatpush1.msra.mxu0 0.0
      %1737 = vmatprep.subr.mxu0 0.0
      %1738 = vmatpush1.msra.mxu0 0.0
      %1739 = vmatprep.subr.mxu0 0.0
      %1740 = vmatpush1.msra.mxu0 0.0
      %1741 = vmatprep.subr.mxu0 0.0
      %1742 = vmatpush1.msra.mxu0 0.0
      %1743 = vmatprep.subr.mxu0 0.0
      %1744 = vmatpush1.msra.mxu0 0.0
      %1745 = vmatprep.subr.mxu0 0.0
      %1746 = vmatpush1.msra.mxu0 0.0
      %1747 = vmatprep.subr.mxu0 0.0
      %1748 = vmatpush1.msra.mxu0 0.0
      %1749 = vmatprep.subr.mxu0 0.0
      %1750 = vmatpush1.msra.mxu0 0.0
      %1751 = vmatprep.subr.mxu0 0.0
      %1752 = vmatpush1.msra.mxu0 0.0
      %1753 = vmatprep.subr.mxu0 0.0
      %1754 = vmatpush1.msra.mxu0 0.0
      %1755 = vmatprep.subr.mxu0 0.0
      %1756 = vmatpush1.msra.mxu0 0.0
      %1757 = vmatprep.subr.mxu0 0.0
      %1758 = vmatpush1.msra.mxu0 0.0
      %1759 = vmatprep.subr.mxu0 0.0
      %1760 = vmatpush1.msra.mxu0 0.0
      %1761 = vmatprep.subr.mxu0 0.0
      %1762 = vmatpush1.msra.mxu0 0.0
      %1763 = vmatprep.subr.mxu0 0.0
      %1764 = vmatpush1.msra.mxu0 0.0
      %1765 = vmatprep.subr.mxu0 0.0
      %1766 = vmatpush1.msra.mxu0 0.0
      %1767 = vmatprep.subr.mxu0 0.0
      %1768 = vmatpush1.msra.mxu0 0.0
      %1769 = vmatprep.subr.mxu0 0.0
      %1770 = vmatpush1.msra.mxu0 0.0
      %1771 = vmatprep.subr.mxu0 0.0
      %1772 = vmatpush1.msra.mxu0 0.0
      %1773 = vmatprep.subr.mxu0 0.0
      %1774 = vmatpush1.msra.mxu0 0.0
      %1775 = vmatprep.mubr.f32.mxu0 0.0
      %1776 = vmatmul.mubr.f32.gmra.mrb[0].mxu0 %v1613
      %v1777 = vpop.f32.mrb[0].mxu0
      %v1778 = vadd.f32 0.0, %v1777
      %v1779 = vpop.f32.mrb[0].mxu0
      %1780 = vmatprep.mubr.f32.mxu0 0.0
      %1781 = vmatmul.mubr.f32.gmra.mrb[0].mxu0 %v1616
      %v1782 = vpop.f32.mrb[0].mxu0
      %v1783 = vadd.f32 0.0, %v1782
      %v1784 = vpop.f32.mrb[0].mxu0
      %1785 = vmatprep.mubr.f32.mxu0 0.0
      %1786 = vmatmul.mubr.f32.gmra.mrb[0].mxu0 %v1619
      %v1787 = vpop.f32.mrb[0].mxu0
      %v1788 = vadd.f32 0.0, %v1787
      %v1789 = vpop.f32.mrb[0].mxu0
      %1790 = vmatprep.mubr.f32.mxu0 0.0
      %1791 = vmatmul.mubr.f32.gmra.mrb[0].mxu0 %v1622
      %v1792 = vpop.f32.mrb[0].mxu0
      %v1793 = vadd.f32 0.0, %v1792
      %v1794 = vpop.f32.mrb[0].mxu0
      %1795 = vmatprep.mubr.f32.mxu0 0.0
      %1796 = vmatmul.mubr.f32.gmra.mrb[0].mxu0 %v1625
      %v1797 = vpop.f32.mrb[0].mxu0
      %v1798 = vadd.f32 0.0, %v1797
      %v1799 = vpop.f32.mrb[0].mxu0
      %1800 = vmatprep.mubr.f32.mxu0 0.0
      %1801 = vmatmul.mubr.f32.gmra.mrb[0].mxu0 %v1628
      %v1802 = vpop.f32.mrb[0].mxu0
      %v1803 = vadd.f32 0.0, %v1802
      %v1804 = vpop.f32.mrb[0].mxu0
      %1805 = vmatprep.mubr.f32.mxu0 0.0
      %1806 = vmatmul.mubr.f32.gmra.mrb[0].mxu0 %v1631
      %v1807 = vpop.f32.mrb[0].mxu0
      %v1808 = vadd.f32 0.0, %v1807
      %v1809 = vpop.f32.mrb[0].mxu0
      %1810 = vmatprep.mubr.f32.mxu0 0.0
      %1811 = vmatmul.mubr.f32.gmra.mrb[0].mxu0 %v1634
      %v1812 = vpop.f32.mrb[0].mxu0
      %v1813 = vadd.f32 0.0, %v1812
      %v1814 = vpop.f32.mrb[0].mxu0
      %1815 = vmatprep.mubr.f32.mxu0 0.0
      %1816 = vmatmul.mubr.f32.gmra.mrb[0].mxu0 %v1637
      %v1817 = vpop.f32.mrb[0].mxu0
      %v1818 = vadd.f32 0.0, %v1817
      %v1819 = vpop.f32.mrb[0].mxu0
      %1820 = vmatprep.mubr.f32.mxu0 0.0
      %1821 = vmatmul.mubr.f32.gmra.mrb[0].mxu0 %v1640
      %v1822 = vpop.f32.mrb[0].mxu0
      %v1823 = vadd.f32 0.0, %v1822
      %v1824 = vpop.f32.mrb[0].mxu0
      %1825 = vmatprep.mubr.f32.mxu0 0.0
      %1826 = vmatmul.mubr.f32.gmra.mrb[0].mxu0 %v1643
      %v1827 = vpop.f32.mrb[0].mxu0
      %v1828 = vadd.f32 0.0, %v1827
      %v1829 = vpop.f32.mrb[0].mxu0
      %1830 = vmatprep.mubr.f32.mxu0 0.0
      %1831 = vmatmul.mubr.f32.gmra.mrb[0].mxu0 %v1646
      %v1832 = vpop.f32.mrb[0].mxu0
      %v1833 = vadd.f32 0.0, %v1832
      %v1834 = vpop.f32.mrb[0].mxu0
      %1835 = vmatprep.mubr.f32.mxu0 0.0
      %1836 = vmatmul.mubr.f32.gmra.mrb[0].mxu0 %v1649
      %v1837 = vpop.f32.mrb[0].mxu0
      %v1838 = vadd.f32 0.0, %v1837
      %v1839 = vpop.f32.mrb[0].mxu0
      %1840 = vmatprep.mubr.f32.mxu0 0.0
      %1841 = vmatmul.mubr.f32.gmra.mrb[0].mxu0 %v1652
      %v1842 = vpop.f32.mrb[0].mxu0
      %v1843 = vadd.f32 0.0, %v1842
      %v1844 = vpop.f32.mrb[0].mxu0
      %1845 = vmatprep.mubr.f32.mxu0 0.0
      %1846 = vmatmul.mubr.f32.gmra.mrb[0].mxu0 %v1655
      %v1847 = vpop.f32.mrb[0].mxu0
      %v1848 = vadd.f32 0.0, %v1847
      %v1849 = vpop.f32.mrb[0].mxu0
      %1850 = vmatprep.mubr.f32.mxu0 0.0
      %1851 = vmatmul.mubr.f32.gmra.mrb[0].mxu0 %v1658
      %v1852 = vpop.f32.mrb[0].mxu0
      %v1853 = vadd.f32 0.0, %v1852
      %v1854 = vpop.f32.mrb[0].mxu0
      %1855 = vmatprep.mubr.f32.mxu0 0.0
      %1856 = vmatmul.mubr.f32.gmra.mrb[0].mxu0 %v1661
      %v1857 = vpop.f32.mrb[0].mxu0
      %v1858 = vadd.f32 0.0, %v1857
      %v1859 = vpop.f32.mrb[0].mxu0
      %1860 = vmatprep.mubr.f32.mxu0 0.0
      %1861 = vmatmul.mubr.f32.gmra.mrb[0].mxu0 %v1664
      %v1862 = vpop.f32.mrb[0].mxu0
      %v1863 = vadd.f32 0.0, %v1862
      %v1864 = vpop.f32.mrb[0].mxu0
      %1865 = vmatprep.mubr.f32.mxu0 0.0
      %1866 = vmatmul.mubr.f32.gmra.mrb[0].mxu0 %v1667
      %v1867 = vpop.f32.mrb[0].mxu0
      %v1868 = vadd.f32 0.0, %v1867
      %v1869 = vpop.f32.mrb[0].mxu0
      %1870 = vmatprep.mubr.f32.mxu0 0.0
      %1871 = vmatmul.mubr.f32.gmra.mrb[0].mxu0 %v1670
      %v1872 = vpop.f32.mrb[0].mxu0
      %v1873 = vadd.f32 0.0, %v1872
      %v1874 = vpop.f32.mrb[0].mxu0
      %1875 = vmatprep.mubr.f32.mxu0 0.0
      %1876 = vmatmul.mubr.f32.gmra.mrb[0].mxu0 %v1673
      %v1877 = vpop.f32.mrb[0].mxu0
      %v1878 = vadd.f32 0.0, %v1877
      %v1879 = vpop.f32.mrb[0].mxu0
      %1880 = vmatprep.mubr.f32.mxu0 0.0
      %1881 = vmatmul.mubr.f32.gmra.mrb[0].mxu0 %v1676
      %v1882 = vpop.f32.mrb[0].mxu0
      %v1883 = vadd.f32 0.0, %v1882
      %v1884 = vpop.f32.mrb[0].mxu0
      %1885 = vmatprep.mubr.f32.mxu0 0.0
      %1886 = vmatmul.mubr.f32.gmra.mrb[0].mxu0 %v1679
      %v1887 = vpop.f32.mrb[0].mxu0
      %v1888 = vadd.f32 0.0, %v1887
      %v1889 = vpop.f32.mrb[0].mxu0
      %1890 = vmatprep.mubr.f32.mxu0 0.0
      %1891 = vmatmul.mubr.f32.gmra.mrb[0].mxu0 %v1682
      %v1892 = vpop.f32.mrb[0].mxu0
      %v1893 = vadd.f32 0.0, %v1892
      %v1894 = vpop.f32.mrb[0].mxu0
      %1895 = vmatprep.mubr.f32.mxu0 0.0
      %1896 = vmatmul.mubr.f32.gmra.mrb[0].mxu0 %v1685
      %v1897 = vpop.f32.mrb[0].mxu0
      %v1898 = vadd.f32 0.0, %v1897
      %v1899 = vpop.f32.mrb[0].mxu0
      %1900 = vmatprep.mubr.f32.mxu0 0.0
      %1901 = vmatmul.mubr.f32.gmra.mrb[0].mxu0 %v1688
      %v1902 = vpop.f32.mrb[0].mxu0
      %v1903 = vadd.f32 0.0, %v1902
      %v1904 = vpop.f32.mrb[0].mxu0
      %1905 = vmatprep.mubr.f32.mxu0 0.0
      %1906 = vmatmul.mubr.f32.gmra.mrb[0].mxu0 %v1691
      %v1907 = vpop.f32.mrb[0].mxu0
      %v1908 = vadd.f32 0.0, %v1907
      %v1909 = vpop.f32.mrb[0].mxu0
      %1910 = vmatprep.mubr.f32.mxu0 0.0
      %1911 = vmatmul.mubr.f32.gmra.mrb[0].mxu0 %v1694
      %v1912 = vpop.f32.mrb[0].mxu0
      %v1913 = vadd.f32 0.0, %v1912
      %v1914 = vpop.f32.mrb[0].mxu0
      %1915 = vmatprep.mubr.f32.mxu0 0.0
      %1916 = vmatmul.mubr.f32.gmra.mrb[0].mxu0 %v1697
      %v1917 = vpop.f32.mrb[0].mxu0
      %v1918 = vadd.f32 0.0, %v1917
      %v1919 = vpop.f32.mrb[0].mxu0
      %1920 = vmatprep.mubr.f32.mxu0 0.0
      %1921 = vmatmul.mubr.f32.gmra.mrb[0].mxu0 %v1700
      %v1922 = vpop.f32.mrb[0].mxu0
      %v1923 = vadd.f32 0.0, %v1922
      %v1924 = vpop.f32.mrb[0].mxu0
      %1925 = vmatprep.mubr.f32.mxu0 0.0
      %1926 = vmatmul.mubr.f32.gmra.mrb[0].mxu0 %v1703
      %v1927 = vpop.f32.mrb[0].mxu0
      %v1928 = vadd.f32 0.0, %v1927
      %v1929 = vpop.f32.mrb[0].mxu0
      %1930 = vmatprep.mubr.f32.mxu0 0.0
      %1931 = vmatmul.mubr.f32.gmra.mrb[0].mxu0 %v1706
      %v1932 = vpop.f32.mrb[0].mxu0
      %v1933 = vadd.f32 0.0, %v1932
      %v1934 = vpop.f32.mrb[0].mxu0
      %1935 = vdwg.mxu0
      %v1936 = vadd.f32 %v1546, %v1778
      %v1937 = vadd.f32 %v1547, %v1783
      %v1938 = vadd.f32 %v1548, %v1788
      %v1939 = vadd.f32 %v1549, %v1793
      %v1940 = vadd.f32 %v1550, %v1798
      %v1941 = vadd.f32 %v1551, %v1803
      %v1942 = vadd.f32 %v1552, %v1808
      %v1943 = vadd.f32 %v1553, %v1813
      %v1944 = vadd.f32 %v1554, %v1818
      %v1945 = vadd.f32 %v1555, %v1823
      %v1946 = vadd.f32 %v1556, %v1828
      %v1947 = vadd.f32 %v1557, %v1833
      %v1948 = vadd.f32 %v1558, %v1838
      %v1949 = vadd.f32 %v1559, %v1843
      %v1950 = vadd.f32 %v1560, %v1848
      %v1951 = vadd.f32 %v1561, %v1853
      %v1952 = vadd.f32 %v1562, %v1858
      %v1953 = vadd.f32 %v1563, %v1863
      %v1954 = vadd.f32 %v1564, %v1868
      %v1955 = vadd.f32 %v1565, %v1873
      %v1956 = vadd.f32 %v1566, %v1878
      %v1957 = vadd.f32 %v1567, %v1883
      %v1958 = vadd.f32 %v1568, %v1888
      %v1959 = vadd.f32 %v1569, %v1893
      %v1960 = vadd.f32 %v1570, %v1898
      %v1961 = vadd.f32 %v1571, %v1903
      %v1962 = vadd.f32 %v1572, %v1908
      %v1963 = vadd.f32 %v1573, %v1913
      %v1964 = vadd.f32 %v1574, %v1918
      %v1965 = vadd.f32 %v1575, %v1923
      %v1966 = vadd.f32 %v1576, %v1928
      %v1967 = vadd.f32 %v1577, %v1933
      %v1968 = vld [vmem:[%s439 + $0x8] sm:$0xff]
      %v1969 = vld [vmem:[%s439 + $0x10] sm:$0xff]
      %v1970 = vld [vmem:[%s439 + $0x28] sm:$0xff]
      %v1971 = vld [vmem:[%s439 + $0x30] sm:$0xff]
      %v1972 = vld [vmem:[%s439 + $0x48] sm:$0xff]
      %v1973 = vld [vmem:[%s439 + $0x50] sm:$0xff]
      %v1974 = vld [vmem:[%s439 + $0x68] sm:$0xff]
      %v1975 = vld [vmem:[%s439 + $0x70] sm:$0xff]
      %v1976 = vld [vmem:[%s439 + $0x88] sm:$0xff]
      %v1977 = vld [vmem:[%s439 + $0x90] sm:$0xff]
      %v1978 = vld [vmem:[%s439 + $0xa8] sm:$0xff]
      %v1979 = vld [vmem:[%s439 + $0xb0] sm:$0xff]
      %v1980 = vld [vmem:[%s439 + $0xc8] sm:$0xff]
      %v1981 = vld [vmem:[%s439 + $0xd0] sm:$0xff]
      %v1982 = vld [vmem:[%s439 + $0xe8] sm:$0xff]
      %v1983 = vld [vmem:[%s439 + $0xf0] sm:$0xff]
      %v1984 = vld [vmem:[%s439 + $0x108] sm:$0xff]
      %v1985 = vld [vmem:[%s439 + $0x110] sm:$0xff]
      %v1986 = vld [vmem:[%s439 + $0x128] sm:$0xff]
      %v1987 = vld [vmem:[%s439 + $0x130] sm:$0xff]
      %v1988 = vld [vmem:[%s439 + $0x148] sm:$0xff]
      %v1989 = vld [vmem:[%s439 + $0x150] sm:$0xff]
      %v1990 = vld [vmem:[%s439 + $0x168] sm:$0xff]
      %v1991 = vld [vmem:[%s439 + $0x170] sm:$0xff]
      %v1992 = vld [vmem:[%s439 + $0x188] sm:$0xff]
      %v1993 = vld [vmem:[%s439 + $0x190] sm:$0xff]
      %v1994 = vld [vmem:[%s439 + $0x1a8] sm:$0xff]
      %v1995 = vld [vmem:[%s439 + $0x1b0] sm:$0xff]
      %v1996 = vld [vmem:[%s439 + $0x1c8] sm:$0xff]
      %v1997 = vld [vmem:[%s439 + $0x1d0] sm:$0xff]
      %v1998 = vld [vmem:[%s439 + $0x1e8] sm:$0xff]
      %v1999 = vld [vmem:[%s439 + $0x1f0] sm:$0xff]
      %s2000 = scalar_lea.vmem %s1, 16
      %v2001 = vld [vmem:[%s2000] sm:$0x7]
      %v2003 = vsel %vm333, %v1968, 0
      %v2006 = vsel %vm333, %v1969, 0
      %v2009 = vsel %vm333, %v1970, 0
      %v2012 = vsel %vm333, %v1971, 0
      %v2015 = vsel %vm333, %v1972, 0
      %v2018 = vsel %vm333, %v1973, 0
      %v2021 = vsel %vm333, %v1974, 0
      %v2024 = vsel %vm333, %v1975, 0
      %v2027 = vsel %vm333, %v1976, 0
      %v2030 = vsel %vm333, %v1977, 0
      %v2033 = vsel %vm333, %v1978, 0
      %v2036 = vsel %vm333, %v1979, 0
      %v2039 = vsel %vm333, %v1980, 0
      %v2042 = vsel %vm333, %v1981, 0
      %v2045 = vsel %vm333, %v1982, 0
      %v2048 = vsel %vm333, %v1983, 0
      %v2051 = vsel %vm333, %v1984, 0
      %v2054 = vsel %vm333, %v1985, 0
      %v2057 = vsel %vm333, %v1986, 0
      %v2060 = vsel %vm333, %v1987, 0
      %v2063 = vsel %vm333, %v1988, 0
      %v2066 = vsel %vm333, %v1989, 0
      %v2069 = vsel %vm333, %v1990, 0
      %v2072 = vsel %vm333, %v1991, 0
      %v2075 = vsel %vm333, %v1992, 0
      %v2078 = vsel %vm333, %v1993, 0
      %v2081 = vsel %vm333, %v1994, 0
      %v2084 = vsel %vm333, %v1995, 0
      %v2087 = vsel %vm333, %v1996, 0
      %v2090 = vsel %vm333, %v1997, 0
      %v2093 = vsel %vm333, %v1998, 0
      %v2096 = vsel %vm333, %v1999, 0
      %v2099 = vsel %vm635, %v2001, 0
      %2101 = vmatprep.subr.mxu0 0.0
      %2102 = vmatpush1.msra.mxu0 %v2099
      %2103 = vmatprep.subr.mxu0 0.0
      %2104 = vmatpush1.msra.mxu0 0.0
      %2105 = vmatprep.subr.mxu0 0.0
      %2106 = vmatpush1.msra.mxu0 0.0
      %2107 = vmatprep.subr.mxu0 0.0
      %2108 = vmatpush1.msra.mxu0 0.0
      %2109 = vmatprep.subr.mxu0 0.0
      %2110 = vmatpush1.msra.mxu0 0.0
      %2111 = vmatprep.subr.mxu0 0.0
      %2112 = vmatpush1.msra.mxu0 0.0
      %2113 = vmatprep.subr.mxu0 0.0
      %2114 = vmatpush1.msra.mxu0 0.0
      %2115 = vmatprep.subr.mxu0 0.0
      %2116 = vmatpush1.msra.mxu0 0.0
      %2117 = vmatprep.subr.mxu0 0.0
      %2118 = vmatpush1.msra.mxu0 0.0
      %2119 = vmatprep.subr.mxu0 0.0
      %2120 = vmatpush1.msra.mxu0 0.0
      %2121 = vmatprep.subr.mxu0 0.0
      %2122 = vmatpush1.msra.mxu0 0.0
      %2123 = vmatprep.subr.mxu0 0.0
      %2124 = vmatpush1.msra.mxu0 0.0
      %2125 = vmatprep.subr.mxu0 0.0
      %2126 = vmatpush1.msra.mxu0 0.0
      %2127 = vmatprep.subr.mxu0 0.0
      %2128 = vmatpush1.msra.mxu0 0.0
      %2129 = vmatprep.subr.mxu0 0.0
      %2130 = vmatpush1.msra.mxu0 0.0
      %2131 = vmatprep.subr.mxu0 0.0
      %2132 = vmatpush1.msra.mxu0 0.0
      %2133 = vmatprep.subr.mxu0 0.0
      %2134 = vmatpush1.msra.mxu0 0.0
      %2135 = vmatprep.subr.mxu0 0.0
      %2136 = vmatpush1.msra.mxu0 0.0
      %2137 = vmatprep.subr.mxu0 0.0
      %2138 = vmatpush1.msra.mxu0 0.0
      %2139 = vmatprep.subr.mxu0 0.0
      %2140 = vmatpush1.msra.mxu0 0.0
      %2141 = vmatprep.subr.mxu0 0.0
      %2142 = vmatpush1.msra.mxu0 0.0
      %2143 = vmatprep.subr.mxu0 0.0
      %2144 = vmatpush1.msra.mxu0 0.0
      %2145 = vmatprep.subr.mxu0 0.0
      %2146 = vmatpush1.msra.mxu0 0.0
      %2147 = vmatprep.subr.mxu0 0.0
      %2148 = vmatpush1.msra.mxu0 0.0
      %2149 = vmatprep.subr.mxu0 0.0
      %2150 = vmatpush1.msra.mxu0 0.0
      %2151 = vmatprep.subr.mxu0 0.0
      %2152 = vmatpush1.msra.mxu0 0.0
      %2153 = vmatprep.subr.mxu0 0.0
      %2154 = vmatpush1.msra.mxu0 0.0
      %2155 = vmatprep.subr.mxu0 0.0
      %2156 = vmatpush1.msra.mxu0 0.0
      %2157 = vmatprep.subr.mxu0 0.0
      %2158 = vmatpush1.msra.mxu0 0.0
      %2159 = vmatprep.subr.mxu0 0.0
      %2160 = vmatpush1.msra.mxu0 0.0
      %2161 = vmatprep.subr.mxu0 0.0
      %2162 = vmatpush1.msra.mxu0 0.0
      %2163 = vmatprep.subr.mxu0 0.0
      %2164 = vmatpush1.msra.mxu0 0.0
      %2165 = vmatprep.mubr.f32.mxu0 0.0
      %2166 = vmatmul.mubr.f32.gmra.mrb[0].mxu0 %v2003
      %v2167 = vpop.f32.mrb[0].mxu0
      %v2168 = vadd.f32 0.0, %v2167
      %v2169 = vpop.f32.mrb[0].mxu0
      %2170 = vmatprep.mubr.f32.mxu0 0.0
      %2171 = vmatmul.mubr.f32.gmra.mrb[0].mxu0 %v2006
      %v2172 = vpop.f32.mrb[0].mxu0
      %v2173 = vadd.f32 0.0, %v2172
      %v2174 = vpop.f32.mrb[0].mxu0
      %2175 = vmatprep.mubr.f32.mxu0 0.0
      %2176 = vmatmul.mubr.f32.gmra.mrb[0].mxu0 %v2009
      %v2177 = vpop.f32.mrb[0].mxu0
      %v2178 = vadd.f32 0.0, %v2177
      %v2179 = vpop.f32.mrb[0].mxu0
      %2180 = vmatprep.mubr.f32.mxu0 0.0
      %2181 = vmatmul.mubr.f32.gmra.mrb[0].mxu0 %v2012
      %v2182 = vpop.f32.mrb[0].mxu0
      %v2183 = vadd.f32 0.0, %v2182
      %v2184 = vpop.f32.mrb[0].mxu0
      %2185 = vmatprep.mubr.f32.mxu0 0.0
      %2186 = vmatmul.mubr.f32.gmra.mrb[0].mxu0 %v2015
      %v2187 = vpop.f32.mrb[0].mxu0
      %v2188 = vadd.f32 0.0, %v2187
      %v2189 = vpop.f32.mrb[0].mxu0
      %2190 = vmatprep.mubr.f32.mxu0 0.0
      %2191 = vmatmul.mubr.f32.gmra.mrb[0].mxu0 %v2018
      %v2192 = vpop.f32.mrb[0].mxu0
      %v2193 = vadd.f32 0.0, %v2192
      %v2194 = vpop.f32.mrb[0].mxu0
      %2195 = vmatprep.mubr.f32.mxu0 0.0
      %2196 = vmatmul.mubr.f32.gmra.mrb[0].mxu0 %v2021
      %v2197 = vpop.f32.mrb[0].mxu0
      %v2198 = vadd.f32 0.0, %v2197
      %v2199 = vpop.f32.mrb[0].mxu0
      %2200 = vmatprep.mubr.f32.mxu0 0.0
      %2201 = vmatmul.mubr.f32.gmra.mrb[0].mxu0 %v2024
      %v2202 = vpop.f32.mrb[0].mxu0
      %v2203 = vadd.f32 0.0, %v2202
      %v2204 = vpop.f32.mrb[0].mxu0
      %2205 = vmatprep.mubr.f32.mxu0 0.0
      %2206 = vmatmul.mubr.f32.gmra.mrb[0].mxu0 %v2027
      %v2207 = vpop.f32.mrb[0].mxu0
      %v2208 = vadd.f32 0.0, %v2207
      %v2209 = vpop.f32.mrb[0].mxu0
      %2210 = vmatprep.mubr.f32.mxu0 0.0
      %2211 = vmatmul.mubr.f32.gmra.mrb[0].mxu0 %v2030
      %v2212 = vpop.f32.mrb[0].mxu0
      %v2213 = vadd.f32 0.0, %v2212
      %v2214 = vpop.f32.mrb[0].mxu0
      %2215 = vmatprep.mubr.f32.mxu0 0.0
      %2216 = vmatmul.mubr.f32.gmra.mrb[0].mxu0 %v2033
      %v2217 = vpop.f32.mrb[0].mxu0
      %v2218 = vadd.f32 0.0, %v2217
      %v2219 = vpop.f32.mrb[0].mxu0
      %2220 = vmatprep.mubr.f32.mxu0 0.0
      %2221 = vmatmul.mubr.f32.gmra.mrb[0].mxu0 %v2036
      %v2222 = vpop.f32.mrb[0].mxu0
      %v2223 = vadd.f32 0.0, %v2222
      %v2224 = vpop.f32.mrb[0].mxu0
      %2225 = vmatprep.mubr.f32.mxu0 0.0
      %2226 = vmatmul.mubr.f32.gmra.mrb[0].mxu0 %v2039
      %v2227 = vpop.f32.mrb[0].mxu0
      %v2228 = vadd.f32 0.0, %v2227
      %v2229 = vpop.f32.mrb[0].mxu0
      %2230 = vmatprep.mubr.f32.mxu0 0.0
      %2231 = vmatmul.mubr.f32.gmra.mrb[0].mxu0 %v2042
      %v2232 = vpop.f32.mrb[0].mxu0
      %v2233 = vadd.f32 0.0, %v2232
      %v2234 = vpop.f32.mrb[0].mxu0
      %2235 = vmatprep.mubr.f32.mxu0 0.0
      %2236 = vmatmul.mubr.f32.gmra.mrb[0].mxu0 %v2045
      %v2237 = vpop.f32.mrb[0].mxu0
      %v2238 = vadd.f32 0.0, %v2237
      %v2239 = vpop.f32.mrb[0].mxu0
      %2240 = vmatprep.mubr.f32.mxu0 0.0
      %2241 = vmatmul.mubr.f32.gmra.mrb[0].mxu0 %v2048
      %v2242 = vpop.f32.mrb[0].mxu0
      %v2243 = vadd.f32 0.0, %v2242
      %v2244 = vpop.f32.mrb[0].mxu0
      %2245 = vmatprep.mubr.f32.mxu0 0.0
      %2246 = vmatmul.mubr.f32.gmra.mrb[0].mxu0 %v2051
      %v2247 = vpop.f32.mrb[0].mxu0
      %v2248 = vadd.f32 0.0, %v2247
      %v2249 = vpop.f32.mrb[0].mxu0
      %2250 = vmatprep.mubr.f32.mxu0 0.0
      %2251 = vmatmul.mubr.f32.gmra.mrb[0].mxu0 %v2054
      %v2252 = vpop.f32.mrb[0].mxu0
      %v2253 = vadd.f32 0.0, %v2252
      %v2254 = vpop.f32.mrb[0].mxu0
      %2255 = vmatprep.mubr.f32.mxu0 0.0
      %2256 = vmatmul.mubr.f32.gmra.mrb[0].mxu0 %v2057
      %v2257 = vpop.f32.mrb[0].mxu0
      %v2258 = vadd.f32 0.0, %v2257
      %v2259 = vpop.f32.mrb[0].mxu0
      %2260 = vmatprep.mubr.f32.mxu0 0.0
      %2261 = vmatmul.mubr.f32.gmra.mrb[0].mxu0 %v2060
      %v2262 = vpop.f32.mrb[0].mxu0
      %v2263 = vadd.f32 0.0, %v2262
      %v2264 = vpop.f32.mrb[0].mxu0
      %2265 = vmatprep.mubr.f32.mxu0 0.0
      %2266 = vmatmul.mubr.f32.gmra.mrb[0].mxu0 %v2063
      %v2267 = vpop.f32.mrb[0].mxu0
      %v2268 = vadd.f32 0.0, %v2267
      %v2269 = vpop.f32.mrb[0].mxu0
      %2270 = vmatprep.mubr.f32.mxu0 0.0
      %2271 = vmatmul.mubr.f32.gmra.mrb[0].mxu0 %v2066
      %v2272 = vpop.f32.mrb[0].mxu0
      %v2273 = vadd.f32 0.0, %v2272
      %v2274 = vpop.f32.mrb[0].mxu0
      %2275 = vmatprep.mubr.f32.mxu0 0.0
      %2276 = vmatmul.mubr.f32.gmra.mrb[0].mxu0 %v2069
      %v2277 = vpop.f32.mrb[0].mxu0
      %v2278 = vadd.f32 0.0, %v2277
      %v2279 = vpop.f32.mrb[0].mxu0
      %2280 = vmatprep.mubr.f32.mxu0 0.0
      %2281 = vmatmul.mubr.f32.gmra.mrb[0].mxu0 %v2072
      %v2282 = vpop.f32.mrb[0].mxu0
      %v2283 = vadd.f32 0.0, %v2282
      %v2284 = vpop.f32.mrb[0].mxu0
      %2285 = vmatprep.mubr.f32.mxu0 0.0
      %2286 = vmatmul.mubr.f32.gmra.mrb[0].mxu0 %v2075
      %v2287 = vpop.f32.mrb[0].mxu0
      %v2288 = vadd.f32 0.0, %v2287
      %v2289 = vpop.f32.mrb[0].mxu0
      %2290 = vmatprep.mubr.f32.mxu0 0.0
      %2291 = vmatmul.mubr.f32.gmra.mrb[0].mxu0 %v2078
      %v2292 = vpop.f32.mrb[0].mxu0
      %v2293 = vadd.f32 0.0, %v2292
      %v2294 = vpop.f32.mrb[0].mxu0
      %2295 = vmatprep.mubr.f32.mxu0 0.0
      %2296 = vmatmul.mubr.f32.gmra.mrb[0].mxu0 %v2081
      %v2297 = vpop.f32.mrb[0].mxu0
      %v2298 = vadd.f32 0.0, %v2297
      %v2299 = vpop.f32.mrb[0].mxu0
      %2300 = vmatprep.mubr.f32.mxu0 0.0
      %2301 = vmatmul.mubr.f32.gmra.mrb[0].mxu0 %v2084
      %v2302 = vpop.f32.mrb[0].mxu0
      %v2303 = vadd.f32 0.0, %v2302
      %v2304 = vpop.f32.mrb[0].mxu0
      %2305 = vmatprep.mubr.f32.mxu0 0.0
      %2306 = vmatmul.mubr.f32.gmra.mrb[0].mxu0 %v2087
      %v2307 = vpop.f32.mrb[0].mxu0
      %v2308 = vadd.f32 0.0, %v2307
      %v2309 = vpop.f32.mrb[0].mxu0
      %2310 = vmatprep.mubr.f32.mxu0 0.0
      %2311 = vmatmul.mubr.f32.gmra.mrb[0].mxu0 %v2090
      %v2312 = vpop.f32.mrb[0].mxu0
      %v2313 = vadd.f32 0.0, %v2312
      %v2314 = vpop.f32.mrb[0].mxu0
      %2315 = vmatprep.mubr.f32.mxu0 0.0
      %2316 = vmatmul.mubr.f32.gmra.mrb[0].mxu0 %v2093
      %v2317 = vpop.f32.mrb[0].mxu0
      %v2318 = vadd.f32 0.0, %v2317
      %v2319 = vpop.f32.mrb[0].mxu0
      %2320 = vmatprep.mubr.f32.mxu0 0.0
      %2321 = vmatmul.mubr.f32.gmra.mrb[0].mxu0 %v2096
      %v2322 = vpop.f32.mrb[0].mxu0
      %v2323 = vadd.f32 0.0, %v2322
      %v2324 = vpop.f32.mrb[0].mxu0
      %2325 = vdwg.mxu0
      %v2326 = vadd.f32 %v1936, %v2168
      %v2327 = vadd.f32 %v1937, %v2173
      %v2328 = vadd.f32 %v1938, %v2178
      %v2329 = vadd.f32 %v1939, %v2183
      %v2330 = vadd.f32 %v1940, %v2188
      %v2331 = vadd.f32 %v1941, %v2193
      %v2332 = vadd.f32 %v1942, %v2198
      %v2333 = vadd.f32 %v1943, %v2203
      %v2334 = vadd.f32 %v1944, %v2208
      %v2335 = vadd.f32 %v1945, %v2213
      %v2336 = vadd.f32 %v1946, %v2218
      %v2337 = vadd.f32 %v1947, %v2223
      %v2338 = vadd.f32 %v1948, %v2228
      %v2339 = vadd.f32 %v1949, %v2233
      %v2340 = vadd.f32 %v1950, %v2238
      %v2341 = vadd.f32 %v1951, %v2243
      %v2342 = vadd.f32 %v1952, %v2248
      %v2343 = vadd.f32 %v1953, %v2253
      %v2344 = vadd.f32 %v1954, %v2258
      %v2345 = vadd.f32 %v1955, %v2263
      %v2346 = vadd.f32 %v1956, %v2268
      %v2347 = vadd.f32 %v1957, %v2273
      %v2348 = vadd.f32 %v1958, %v2278
      %v2349 = vadd.f32 %v1959, %v2283
      %v2350 = vadd.f32 %v1960, %v2288
      %v2351 = vadd.f32 %v1961, %v2293
      %v2352 = vadd.f32 %v1962, %v2298
      %v2353 = vadd.f32 %v1963, %v2303
      %v2354 = vadd.f32 %v1964, %v2308
      %v2355 = vadd.f32 %v1965, %v2313
      %v2356 = vadd.f32 %v1966, %v2318
      %v2357 = vadd.f32 %v1967, %v2323
      %v2358 = vld [vmem:[%s439 + $0x9] sm:$0xff]
      %v2359 = vld [vmem:[%s439 + $0x11] sm:$0xff]
      %v2360 = vld [vmem:[%s439 + $0x29] sm:$0xff]
      %v2361 = vld [vmem:[%s439 + $0x31] sm:$0xff]
      %v2362 = vld [vmem:[%s439 + $0x49] sm:$0xff]
      %v2363 = vld [vmem:[%s439 + $0x51] sm:$0xff]
      %v2364 = vld [vmem:[%s439 + $0x69] sm:$0xff]
      %v2365 = vld [vmem:[%s439 + $0x71] sm:$0xff]
      %v2366 = vld [vmem:[%s439 + $0x89] sm:$0xff]
      %v2367 = vld [vmem:[%s439 + $0x91] sm:$0xff]
      %v2368 = vld [vmem:[%s439 + $0xa9] sm:$0xff]
      %v2369 = vld [vmem:[%s439 + $0xb1] sm:$0xff]
      %v2370 = vld [vmem:[%s439 + $0xc9] sm:$0xff]
      %v2371 = vld [vmem:[%s439 + $0xd1] sm:$0xff]
      %v2372 = vld [vmem:[%s439 + $0xe9] sm:$0xff]
      %v2373 = vld [vmem:[%s439 + $0xf1] sm:$0xff]
      %v2374 = vld [vmem:[%s439 + $0x109] sm:$0xff]
      %v2375 = vld [vmem:[%s439 + $0x111] sm:$0xff]
      %v2376 = vld [vmem:[%s439 + $0x129] sm:$0xff]
      %v2377 = vld [vmem:[%s439 + $0x131] sm:$0xff]
      %v2378 = vld [vmem:[%s439 + $0x149] sm:$0xff]
      %v2379 = vld [vmem:[%s439 + $0x151] sm:$0xff]
      %v2380 = vld [vmem:[%s439 + $0x169] sm:$0xff]
      %v2381 = vld [vmem:[%s439 + $0x171] sm:$0xff]
      %v2382 = vld [vmem:[%s439 + $0x189] sm:$0xff]
      %v2383 = vld [vmem:[%s439 + $0x191] sm:$0xff]
      %v2384 = vld [vmem:[%s439 + $0x1a9] sm:$0xff]
      %v2385 = vld [vmem:[%s439 + $0x1b1] sm:$0xff]
      %v2386 = vld [vmem:[%s439 + $0x1c9] sm:$0xff]
      %v2387 = vld [vmem:[%s439 + $0x1d1] sm:$0xff]
      %v2388 = vld [vmem:[%s439 + $0x1e9] sm:$0xff]
      %v2389 = vld [vmem:[%s439 + $0x1f1] sm:$0xff]
      %s2390 = scalar_lea.vmem %s1, 20
      %v2391 = vld [vmem:[%s2390] sm:$0x7]
      %v2393 = vsel %vm333, %v2358, 0
      %v2396 = vsel %vm333, %v2359, 0
      %v2399 = vsel %vm333, %v2360, 0
      %v2402 = vsel %vm333, %v2361, 0
      %v2405 = vsel %vm333, %v2362, 0
      %v2408 = vsel %vm333, %v2363, 0
      %v2411 = vsel %vm333, %v2364, 0
      %v2414 = vsel %vm333, %v2365, 0
      %v2417 = vsel %vm333, %v2366, 0
      %v2420 = vsel %vm333, %v2367, 0
      %v2423 = vsel %vm333, %v2368, 0
      %v2426 = vsel %vm333, %v2369, 0
      %v2429 = vsel %vm333, %v2370, 0
      %v2432 = vsel %vm333, %v2371, 0
      %v2435 = vsel %vm333, %v2372, 0
      %v2438 = vsel %vm333, %v2373, 0
      %v2441 = vsel %vm333, %v2374, 0
      %v2444 = vsel %vm333, %v2375, 0
      %v2447 = vsel %vm333, %v2376, 0
      %v2450 = vsel %vm333, %v2377, 0
      %v2453 = vsel %vm333, %v2378, 0
      %v2456 = vsel %vm333, %v2379, 0
      %v2459 = vsel %vm333, %v2380, 0
      %v2462 = vsel %vm333, %v2381, 0
      %v2465 = vsel %vm333, %v2382, 0
      %v2468 = vsel %vm333, %v2383, 0
      %v2471 = vsel %vm333, %v2384, 0
      %v2474 = vsel %vm333, %v2385, 0
      %v2477 = vsel %vm333, %v2386, 0
      %v2480 = vsel %vm333, %v2387, 0
      %v2483 = vsel %vm333, %v2388, 0
      %v2486 = vsel %vm333, %v2389, 0
      %v2489 = vsel %vm635, %v2391, 0
      %2491 = vmatprep.subr.mxu0 0.0
      %2492 = vmatpush1.msra.mxu0 %v2489
      %2493 = vmatprep.subr.mxu0 0.0
      %2494 = vmatpush1.msra.mxu0 0.0
      %2495 = vmatprep.subr.mxu0 0.0
      %2496 = vmatpush1.msra.mxu0 0.0
      %2497 = vmatprep.subr.mxu0 0.0
      %2498 = vmatpush1.msra.mxu0 0.0
      %2499 = vmatprep.subr.mxu0 0.0
      %2500 = vmatpush1.msra.mxu0 0.0
      %2501 = vmatprep.subr.mxu0 0.0
      %2502 = vmatpush1.msra.mxu0 0.0
      %2503 = vmatprep.subr.mxu0 0.0
      %2504 = vmatpush1.msra.mxu0 0.0
      %2505 = vmatprep.subr.mxu0 0.0
      %2506 = vmatpush1.msra.mxu0 0.0
      %2507 = vmatprep.subr.mxu0 0.0
      %2508 = vmatpush1.msra.mxu0 0.0
      %2509 = vmatprep.subr.mxu0 0.0
      %2510 = vmatpush1.msra.mxu0 0.0
      %2511 = vmatprep.subr.mxu0 0.0
      %2512 = vmatpush1.msra.mxu0 0.0
      %2513 = vmatprep.subr.mxu0 0.0
      %2514 = vmatpush1.msra.mxu0 0.0
      %2515 = vmatprep.subr.mxu0 0.0
      %2516 = vmatpush1.msra.mxu0 0.0
      %2517 = vmatprep.subr.mxu0 0.0
      %2518 = vmatpush1.msra.mxu0 0.0
      %2519 = vmatprep.subr.mxu0 0.0
      %2520 = vmatpush1.msra.mxu0 0.0
      %2521 = vmatprep.subr.mxu0 0.0
      %2522 = vmatpush1.msra.mxu0 0.0
      %2523 = vmatprep.subr.mxu0 0.0
      %2524 = vmatpush1.msra.mxu0 0.0
      %2525 = vmatprep.subr.mxu0 0.0
      %2526 = vmatpush1.msra.mxu0 0.0
      %2527 = vmatprep.subr.mxu0 0.0
      %2528 = vmatpush1.msra.mxu0 0.0
      %2529 = vmatprep.subr.mxu0 0.0
      %2530 = vmatpush1.msra.mxu0 0.0
      %2531 = vmatprep.subr.mxu0 0.0
      %2532 = vmatpush1.msra.mxu0 0.0
      %2533 = vmatprep.subr.mxu0 0.0
      %2534 = vmatpush1.msra.mxu0 0.0
      %2535 = vmatprep.subr.mxu0 0.0
      %2536 = vmatpush1.msra.mxu0 0.0
      %2537 = vmatprep.subr.mxu0 0.0
      %2538 = vmatpush1.msra.mxu0 0.0
      %2539 = vmatprep.subr.mxu0 0.0
      %2540 = vmatpush1.msra.mxu0 0.0
      %2541 = vmatprep.subr.mxu0 0.0
      %2542 = vmatpush1.msra.mxu0 0.0
      %2543 = vmatprep.subr.mxu0 0.0
      %2544 = vmatpush1.msra.mxu0 0.0
      %2545 = vmatprep.subr.mxu0 0.0
      %2546 = vmatpush1.msra.mxu0 0.0
      %2547 = vmatprep.subr.mxu0 0.0
      %2548 = vmatpush1.msra.mxu0 0.0
      %2549 = vmatprep.subr.mxu0 0.0
      %2550 = vmatpush1.msra.mxu0 0.0
      %2551 = vmatprep.subr.mxu0 0.0
      %2552 = vmatpush1.msra.mxu0 0.0
      %2553 = vmatprep.subr.mxu0 0.0
      %2554 = vmatpush1.msra.mxu0 0.0
      %2555 = vmatprep.mubr.f32.mxu0 0.0
      %2556 = vmatmul.mubr.f32.gmra.mrb[0].mxu0 %v2393
      %v2557 = vpop.f32.mrb[0].mxu0
      %v2558 = vadd.f32 0.0, %v2557
      %v2559 = vpop.f32.mrb[0].mxu0
      %2560 = vmatprep.mubr.f32.mxu0 0.0
      %2561 = vmatmul.mubr.f32.gmra.mrb[0].mxu0 %v2396
      %v2562 = vpop.f32.mrb[0].mxu0
      %v2563 = vadd.f32 0.0, %v2562
      %v2564 = vpop.f32.mrb[0].mxu0
      %2565 = vmatprep.mubr.f32.mxu0 0.0
      %2566 = vmatmul.mubr.f32.gmra.mrb[0].mxu0 %v2399
      %v2567 = vpop.f32.mrb[0].mxu0
      %v2568 = vadd.f32 0.0, %v2567
      %v2569 = vpop.f32.mrb[0].mxu0
      %2570 = vmatprep.mubr.f32.mxu0 0.0
      %2571 = vmatmul.mubr.f32.gmra.mrb[0].mxu0 %v2402
      %v2572 = vpop.f32.mrb[0].mxu0
      %v2573 = vadd.f32 0.0, %v2572
      %v2574 = vpop.f32.mrb[0].mxu0
      %2575 = vmatprep.mubr.f32.mxu0 0.0
      %2576 = vmatmul.mubr.f32.gmra.mrb[0].mxu0 %v2405
      %v2577 = vpop.f32.mrb[0].mxu0
      %v2578 = vadd.f32 0.0, %v2577
      %v2579 = vpop.f32.mrb[0].mxu0
      %2580 = vmatprep.mubr.f32.mxu0 0.0
      %2581 = vmatmul.mubr.f32.gmra.mrb[0].mxu0 %v2408
      %v2582 = vpop.f32.mrb[0].mxu0
      %v2583 = vadd.f32 0.0, %v2582
      %v2584 = vpop.f32.mrb[0].mxu0
      %2585 = vmatprep.mubr.f32.mxu0 0.0
      %2586 = vmatmul.mubr.f32.gmra.mrb[0].mxu0 %v2411
      %v2587 = vpop.f32.mrb[0].mxu0
      %v2588 = vadd.f32 0.0, %v2587
      %v2589 = vpop.f32.mrb[0].mxu0
      %2590 = vmatprep.mubr.f32.mxu0 0.0
      %2591 = vmatmul.mubr.f32.gmra.mrb[0].mxu0 %v2414
      %v2592 = vpop.f32.mrb[0].mxu0
      %v2593 = vadd.f32 0.0, %v2592
      %v2594 = vpop.f32.mrb[0].mxu0
      %2595 = vmatprep.mubr.f32.mxu0 0.0
      %2596 = vmatmul.mubr.f32.gmra.mrb[0].mxu0 %v2417
      %v2597 = vpop.f32.mrb[0].mxu0
      %v2598 = vadd.f32 0.0, %v2597
      %v2599 = vpop.f32.mrb[0].mxu0
      %2600 = vmatprep.mubr.f32.mxu0 0.0
      %2601 = vmatmul.mubr.f32.gmra.mrb[0].mxu0 %v2420
      %v2602 = vpop.f32.mrb[0].mxu0
      %v2603 = vadd.f32 0.0, %v2602
      %v2604 = vpop.f32.mrb[0].mxu0
      %2605 = vmatprep.mubr.f32.mxu0 0.0
      %2606 = vmatmul.mubr.f32.gmra.mrb[0].mxu0 %v2423
      %v2607 = vpop.f32.mrb[0].mxu0
      %v2608 = vadd.f32 0.0, %v2607
      %v2609 = vpop.f32.mrb[0].mxu0
      %2610 = vmatprep.mubr.f32.mxu0 0.0
      %2611 = vmatmul.mubr.f32.gmra.mrb[0].mxu0 %v2426
      %v2612 = vpop.f32.mrb[0].mxu0
      %v2613 = vadd.f32 0.0, %v2612
      %v2614 = vpop.f32.mrb[0].mxu0
      %2615 = vmatprep.mubr.f32.mxu0 0.0
      %2616 = vmatmul.mubr.f32.gmra.mrb[0].mxu0 %v2429
      %v2617 = vpop.f32.mrb[0].mxu0
      %v2618 = vadd.f32 0.0, %v2617
      %v2619 = vpop.f32.mrb[0].mxu0
      %2620 = vmatprep.mubr.f32.mxu0 0.0
      %2621 = vmatmul.mubr.f32.gmra.mrb[0].mxu0 %v2432
      %v2622 = vpop.f32.mrb[0].mxu0
      %v2623 = vadd.f32 0.0, %v2622
      %v2624 = vpop.f32.mrb[0].mxu0
      %2625 = vmatprep.mubr.f32.mxu0 0.0
      %2626 = vmatmul.mubr.f32.gmra.mrb[0].mxu0 %v2435
      %v2627 = vpop.f32.mrb[0].mxu0
      %v2628 = vadd.f32 0.0, %v2627
      %v2629 = vpop.f32.mrb[0].mxu0
      %2630 = vmatprep.mubr.f32.mxu0 0.0
      %2631 = vmatmul.mubr.f32.gmra.mrb[0].mxu0 %v2438
      %v2632 = vpop.f32.mrb[0].mxu0
      %v2633 = vadd.f32 0.0, %v2632
      %v2634 = vpop.f32.mrb[0].mxu0
      %2635 = vmatprep.mubr.f32.mxu0 0.0
      %2636 = vmatmul.mubr.f32.gmra.mrb[0].mxu0 %v2441
      %v2637 = vpop.f32.mrb[0].mxu0
      %v2638 = vadd.f32 0.0, %v2637
      %v2639 = vpop.f32.mrb[0].mxu0
      %2640 = vmatprep.mubr.f32.mxu0 0.0
      %2641 = vmatmul.mubr.f32.gmra.mrb[0].mxu0 %v2444
      %v2642 = vpop.f32.mrb[0].mxu0
      %v2643 = vadd.f32 0.0, %v2642
      %v2644 = vpop.f32.mrb[0].mxu0
      %2645 = vmatprep.mubr.f32.mxu0 0.0
      %2646 = vmatmul.mubr.f32.gmra.mrb[0].mxu0 %v2447
      %v2647 = vpop.f32.mrb[0].mxu0
      %v2648 = vadd.f32 0.0, %v2647
      %v2649 = vpop.f32.mrb[0].mxu0
      %2650 = vmatprep.mubr.f32.mxu0 0.0
      %2651 = vmatmul.mubr.f32.gmra.mrb[0].mxu0 %v2450
      %v2652 = vpop.f32.mrb[0].mxu0
      %v2653 = vadd.f32 0.0, %v2652
      %v2654 = vpop.f32.mrb[0].mxu0
      %2655 = vmatprep.mubr.f32.mxu0 0.0
      %2656 = vmatmul.mubr.f32.gmra.mrb[0].mxu0 %v2453
      %v2657 = vpop.f32.mrb[0].mxu0
      %v2658 = vadd.f32 0.0, %v2657
      %v2659 = vpop.f32.mrb[0].mxu0
      %2660 = vmatprep.mubr.f32.mxu0 0.0
      %2661 = vmatmul.mubr.f32.gmra.mrb[0].mxu0 %v2456
      %v2662 = vpop.f32.mrb[0].mxu0
      %v2663 = vadd.f32 0.0, %v2662
      %v2664 = vpop.f32.mrb[0].mxu0
      %2665 = vmatprep.mubr.f32.mxu0 0.0
      %2666 = vmatmul.mubr.f32.gmra.mrb[0].mxu0 %v2459
      %v2667 = vpop.f32.mrb[0].mxu0
      %v2668 = vadd.f32 0.0, %v2667
      %v2669 = vpop.f32.mrb[0].mxu0
      %2670 = vmatprep.mubr.f32.mxu0 0.0
      %2671 = vmatmul.mubr.f32.gmra.mrb[0].mxu0 %v2462
      %v2672 = vpop.f32.mrb[0].mxu0
      %v2673 = vadd.f32 0.0, %v2672
      %v2674 = vpop.f32.mrb[0].mxu0
      %2675 = vmatprep.mubr.f32.mxu0 0.0
      %2676 = vmatmul.mubr.f32.gmra.mrb[0].mxu0 %v2465
      %v2677 = vpop.f32.mrb[0].mxu0
      %v2678 = vadd.f32 0.0, %v2677
      %v2679 = vpop.f32.mrb[0].mxu0
      %2680 = vmatprep.mubr.f32.mxu0 0.0
      %2681 = vmatmul.mubr.f32.gmra.mrb[0].mxu0 %v2468
      %v2682 = vpop.f32.mrb[0].mxu0
      %v2683 = vadd.f32 0.0, %v2682
      %v2684 = vpop.f32.mrb[0].mxu0
      %2685 = vmatprep.mubr.f32.mxu0 0.0
      %2686 = vmatmul.mubr.f32.gmra.mrb[0].mxu0 %v2471
      %v2687 = vpop.f32.mrb[0].mxu0
      %v2688 = vadd.f32 0.0, %v2687
      %v2689 = vpop.f32.mrb[0].mxu0
      %2690 = vmatprep.mubr.f32.mxu0 0.0
      %2691 = vmatmul.mubr.f32.gmra.mrb[0].mxu0 %v2474
      %v2692 = vpop.f32.mrb[0].mxu0
      %v2693 = vadd.f32 0.0, %v2692
      %v2694 = vpop.f32.mrb[0].mxu0
      %2695 = vmatprep.mubr.f32.mxu0 0.0
      %2696 = vmatmul.mubr.f32.gmra.mrb[0].mxu0 %v2477
      %v2697 = vpop.f32.mrb[0].mxu0
      %v2698 = vadd.f32 0.0, %v2697
      %v2699 = vpop.f32.mrb[0].mxu0
      %2700 = vmatprep.mubr.f32.mxu0 0.0
      %2701 = vmatmul.mubr.f32.gmra.mrb[0].mxu0 %v2480
      %v2702 = vpop.f32.mrb[0].mxu0
      %v2703 = vadd.f32 0.0, %v2702
      %v2704 = vpop.f32.mrb[0].mxu0
      %2705 = vmatprep.mubr.f32.mxu0 0.0
      %2706 = vmatmul.mubr.f32.gmra.mrb[0].mxu0 %v2483
      %v2707 = vpop.f32.mrb[0].mxu0
      %v2708 = vadd.f32 0.0, %v2707
      %v2709 = vpop.f32.mrb[0].mxu0
      %2710 = vmatprep.mubr.f32.mxu0 0.0
      %2711 = vmatmul.mubr.f32.gmra.mrb[0].mxu0 %v2486
      %v2712 = vpop.f32.mrb[0].mxu0
      %v2713 = vadd.f32 0.0, %v2712
      %v2714 = vpop.f32.mrb[0].mxu0
      %2715 = vdwg.mxu0
      %v2716 = vadd.f32 %v2326, %v2558
      %v2717 = vadd.f32 %v2327, %v2563
      %v2718 = vadd.f32 %v2328, %v2568
      %v2719 = vadd.f32 %v2329, %v2573
      %v2720 = vadd.f32 %v2330, %v2578
      %v2721 = vadd.f32 %v2331, %v2583
      %v2722 = vadd.f32 %v2332, %v2588
      %v2723 = vadd.f32 %v2333, %v2593
      %v2724 = vadd.f32 %v2334, %v2598
      %v2725 = vadd.f32 %v2335, %v2603
      %v2726 = vadd.f32 %v2336, %v2608
      %v2727 = vadd.f32 %v2337, %v2613
      %v2728 = vadd.f32 %v2338, %v2618
      %v2729 = vadd.f32 %v2339, %v2623
      %v2730 = vadd.f32 %v2340, %v2628
      %v2731 = vadd.f32 %v2341, %v2633
      %v2732 = vadd.f32 %v2342, %v2638
      %v2733 = vadd.f32 %v2343, %v2643
      %v2734 = vadd.f32 %v2344, %v2648
      %v2735 = vadd.f32 %v2345, %v2653
      %v2736 = vadd.f32 %v2346, %v2658
      %v2737 = vadd.f32 %v2347, %v2663
      %v2738 = vadd.f32 %v2348, %v2668
      %v2739 = vadd.f32 %v2349, %v2673
      %v2740 = vadd.f32 %v2350, %v2678
      %v2741 = vadd.f32 %v2351, %v2683
      %v2742 = vadd.f32 %v2352, %v2688
      %v2743 = vadd.f32 %v2353, %v2693
      %v2744 = vadd.f32 %v2354, %v2698
      %v2745 = vadd.f32 %v2355, %v2703
      %v2746 = vadd.f32 %v2356, %v2708
      %v2747 = vadd.f32 %v2357, %v2713
      %s2748 = scalar_lea.vmem [#allocation2], 64
      %v2749 = vld [vmem:[%s2748 + $0x7] sm:$0xff]
      %v2750 = vld [vmem:[%s2748 + $0xf] sm:$0xff]
      %v2751 = vld [vmem:[%s2748 + $0x27] sm:$0xff]
      %v2752 = vld [vmem:[%s2748 + $0x2f] sm:$0xff]
      %v2753 = vld [vmem:[%s2748 + $0x47] sm:$0xff]
      %v2754 = vld [vmem:[%s2748 + $0x4f] sm:$0xff]
      %v2755 = vld [vmem:[%s2748 + $0x67] sm:$0xff]
      %v2756 = vld [vmem:[%s2748 + $0x6f] sm:$0xff]
      %v2757 = vld [vmem:[%s2748 + $0x87] sm:$0xff]
      %v2758 = vld [vmem:[%s2748 + $0x8f] sm:$0xff]
      %v2759 = vld [vmem:[%s2748 + $0xa7] sm:$0xff]
      %v2760 = vld [vmem:[%s2748 + $0xaf] sm:$0xff]
      %v2761 = vld [vmem:[%s2748 + $0xc7] sm:$0xff]
      %v2762 = vld [vmem:[%s2748 + $0xcf] sm:$0xff]
      %v2763 = vld [vmem:[%s2748 + $0xe7] sm:$0xff]
      %v2764 = vld [vmem:[%s2748 + $0xef] sm:$0xff]
      %v2765 = vld [vmem:[%s2748 + $0x107] sm:$0xff]
      %v2766 = vld [vmem:[%s2748 + $0x10f] sm:$0xff]
      %v2767 = vld [vmem:[%s2748 + $0x127] sm:$0xff]
      %v2768 = vld [vmem:[%s2748 + $0x12f] sm:$0xff]
      %v2769 = vld [vmem:[%s2748 + $0x147] sm:$0xff]
      %v2770 = vld [vmem:[%s2748 + $0x14f] sm:$0xff]
      %v2771 = vld [vmem:[%s2748 + $0x167] sm:$0xff]
      %v2772 = vld [vmem:[%s2748 + $0x16f] sm:$0xff]
      %v2773 = vld [vmem:[%s2748 + $0x187] sm:$0xff]
      %v2774 = vld [vmem:[%s2748 + $0x18f] sm:$0xff]
      %v2775 = vld [vmem:[%s2748 + $0x1a7] sm:$0xff]
      %v2776 = vld [vmem:[%s2748 + $0x1af] sm:$0xff]
      %v2777 = vld [vmem:[%s2748 + $0x1c7] sm:$0xff]
      %v2778 = vld [vmem:[%s2748 + $0x1cf] sm:$0xff]
      %v2779 = vld [vmem:[%s2748 + $0x1e7] sm:$0xff]
      %v2780 = vld [vmem:[%s2748 + $0x1ef] sm:$0xff]
      %s2781 = scalar_lea.vmem %s1, 24
      %v2782 = vld [vmem:[%s2781] sm:$0x7]
      %v2784 = vsel %vm333, %v2749, 0
      %v2787 = vsel %vm333, %v2750, 0
      %v2790 = vsel %vm333, %v2751, 0
      %v2793 = vsel %vm333, %v2752, 0
      %v2796 = vsel %vm333, %v2753, 0
      %v2799 = vsel %vm333, %v2754, 0
      %v2802 = vsel %vm333, %v2755, 0
      %v2805 = vsel %vm333, %v2756, 0
      %v2808 = vsel %vm333, %v2757, 0
      %v2811 = vsel %vm333, %v2758, 0
      %v2814 = vsel %vm333, %v2759, 0
      %v2817 = vsel %vm333, %v2760, 0
      %v2820 = vsel %vm333, %v2761, 0
      %v2823 = vsel %vm333, %v2762, 0
      %v2826 = vsel %vm333, %v2763, 0
      %v2829 = vsel %vm333, %v2764, 0
      %v2832 = vsel %vm333, %v2765, 0
      %v2835 = vsel %vm333, %v2766, 0
      %v2838 = vsel %vm333, %v2767, 0
      %v2841 = vsel %vm333, %v2768, 0
      %v2844 = vsel %vm333, %v2769, 0
      %v2847 = vsel %vm333, %v2770, 0
      %v2850 = vsel %vm333, %v2771, 0
      %v2853 = vsel %vm333, %v2772, 0
      %v2856 = vsel %vm333, %v2773, 0
      %v2859 = vsel %vm333, %v2774, 0
      %v2862 = vsel %vm333, %v2775, 0
      %v2865 = vsel %vm333, %v2776, 0
      %v2868 = vsel %vm333, %v2777, 0
      %v2871 = vsel %vm333, %v2778, 0
      %v2874 = vsel %vm333, %v2779, 0
      %v2877 = vsel %vm333, %v2780, 0
      %v2880 = vsel %vm635, %v2782, 0
      %2882 = vmatprep.subr.mxu0 0.0
      %2883 = vmatpush1.msra.mxu0 %v2880
      %2884 = vmatprep.subr.mxu0 0.0
      %2885 = vmatpush1.msra.mxu0 0.0
      %2886 = vmatprep.subr.mxu0 0.0
      %2887 = vmatpush1.msra.mxu0 0.0
      %2888 = vmatprep.subr.mxu0 0.0
      %2889 = vmatpush1.msra.mxu0 0.0
      %2890 = vmatprep.subr.mxu0 0.0
      %2891 = vmatpush1.msra.mxu0 0.0
      %2892 = vmatprep.subr.mxu0 0.0
      %2893 = vmatpush1.msra.mxu0 0.0
      %2894 = vmatprep.subr.mxu0 0.0
      %2895 = vmatpush1.msra.mxu0 0.0
      %2896 = vmatprep.subr.mxu0 0.0
      %2897 = vmatpush1.msra.mxu0 0.0
      %2898 = vmatprep.subr.mxu0 0.0
      %2899 = vmatpush1.msra.mxu0 0.0
      %2900 = vmatprep.subr.mxu0 0.0
      %2901 = vmatpush1.msra.mxu0 0.0
      %2902 = vmatprep.subr.mxu0 0.0
      %2903 = vmatpush1.msra.mxu0 0.0
      %2904 = vmatprep.subr.mxu0 0.0
      %2905 = vmatpush1.msra.mxu0 0.0
      %2906 = vmatprep.subr.mxu0 0.0
      %2907 = vmatpush1.msra.mxu0 0.0
      %2908 = vmatprep.subr.mxu0 0.0
      %2909 = vmatpush1.msra.mxu0 0.0
      %2910 = vmatprep.subr.mxu0 0.0
      %2911 = vmatpush1.msra.mxu0 0.0
      %2912 = vmatprep.subr.mxu0 0.0
      %2913 = vmatpush1.msra.mxu0 0.0
      %2914 = vmatprep.subr.mxu0 0.0
      %2915 = vmatpush1.msra.mxu0 0.0
      %2916 = vmatprep.subr.mxu0 0.0
      %2917 = vmatpush1.msra.mxu0 0.0
      %2918 = vmatprep.subr.mxu0 0.0
      %2919 = vmatpush1.msra.mxu0 0.0
      %2920 = vmatprep.subr.mxu0 0.0
      %2921 = vmatpush1.msra.mxu0 0.0
      %2922 = vmatprep.subr.mxu0 0.0
      %2923 = vmatpush1.msra.mxu0 0.0
      %2924 = vmatprep.subr.mxu0 0.0
      %2925 = vmatpush1.msra.mxu0 0.0
      %2926 = vmatprep.subr.mxu0 0.0
      %2927 = vmatpush1.msra.mxu0 0.0
      %2928 = vmatprep.subr.mxu0 0.0
      %2929 = vmatpush1.msra.mxu0 0.0
      %2930 = vmatprep.subr.mxu0 0.0
      %2931 = vmatpush1.msra.mxu0 0.0
      %2932 = vmatprep.subr.mxu0 0.0
      %2933 = vmatpush1.msra.mxu0 0.0
      %2934 = vmatprep.subr.mxu0 0.0
      %2935 = vmatpush1.msra.mxu0 0.0
      %2936 = vmatprep.subr.mxu0 0.0
      %2937 = vmatpush1.msra.mxu0 0.0
      %2938 = vmatprep.subr.mxu0 0.0
      %2939 = vmatpush1.msra.mxu0 0.0
      %2940 = vmatprep.subr.mxu0 0.0
      %2941 = vmatpush1.msra.mxu0 0.0
      %2942 = vmatprep.subr.mxu0 0.0
      %2943 = vmatpush1.msra.mxu0 0.0
      %2944 = vmatprep.subr.mxu0 0.0
      %2945 = vmatpush1.msra.mxu0 0.0
      %2946 = vmatprep.mubr.f32.mxu0 0.0
      %2947 = vmatmul.mubr.f32.gmra.mrb[0].mxu0 %v2784
      %v2948 = vpop.f32.mrb[0].mxu0
      %v2949 = vadd.f32 0.0, %v2948
      %v2950 = vpop.f32.mrb[0].mxu0
      %2951 = vmatprep.mubr.f32.mxu0 0.0
      %2952 = vmatmul.mubr.f32.gmra.mrb[0].mxu0 %v2787
      %v2953 = vpop.f32.mrb[0].mxu0
      %v2954 = vadd.f32 0.0, %v2953
      %v2955 = vpop.f32.mrb[0].mxu0
      %2956 = vmatprep.mubr.f32.mxu0 0.0
      %2957 = vmatmul.mubr.f32.gmra.mrb[0].mxu0 %v2790
      %v2958 = vpop.f32.mrb[0].mxu0
      %v2959 = vadd.f32 0.0, %v2958
      %v2960 = vpop.f32.mrb[0].mxu0
      %2961 = vmatprep.mubr.f32.mxu0 0.0
      %2962 = vmatmul.mubr.f32.gmra.mrb[0].mxu0 %v2793
      %v2963 = vpop.f32.mrb[0].mxu0
      %v2964 = vadd.f32 0.0, %v2963
      %v2965 = vpop.f32.mrb[0].mxu0
      %2966 = vmatprep.mubr.f32.mxu0 0.0
      %2967 = vmatmul.mubr.f32.gmra.mrb[0].mxu0 %v2796
      %v2968 = vpop.f32.mrb[0].mxu0
      %v2969 = vadd.f32 0.0, %v2968
      %v2970 = vpop.f32.mrb[0].mxu0
      %2971 = vmatprep.mubr.f32.mxu0 0.0
      %2972 = vmatmul.mubr.f32.gmra.mrb[0].mxu0 %v2799
      %v2973 = vpop.f32.mrb[0].mxu0
      %v2974 = vadd.f32 0.0, %v2973
      %v2975 = vpop.f32.mrb[0].mxu0
      %2976 = vmatprep.mubr.f32.mxu0 0.0
      %2977 = vmatmul.mubr.f32.gmra.mrb[0].mxu0 %v2802
      %v2978 = vpop.f32.mrb[0].mxu0
      %v2979 = vadd.f32 0.0, %v2978
      %v2980 = vpop.f32.mrb[0].mxu0
      %2981 = vmatprep.mubr.f32.mxu0 0.0
      %2982 = vmatmul.mubr.f32.gmra.mrb[0].mxu0 %v2805
      %v2983 = vpop.f32.mrb[0].mxu0
      %v2984 = vadd.f32 0.0, %v2983
      %v2985 = vpop.f32.mrb[0].mxu0
      %2986 = vmatprep.mubr.f32.mxu0 0.0
      %2987 = vmatmul.mubr.f32.gmra.mrb[0].mxu0 %v2808
      %v2988 = vpop.f32.mrb[0].mxu0
      %v2989 = vadd.f32 0.0, %v2988
      %v2990 = vpop.f32.mrb[0].mxu0
      %2991 = vmatprep.mubr.f32.mxu0 0.0
      %2992 = vmatmul.mubr.f32.gmra.mrb[0].mxu0 %v2811
      %v2993 = vpop.f32.mrb[0].mxu0
      %v2994 = vadd.f32 0.0, %v2993
      %v2995 = vpop.f32.mrb[0].mxu0
      %2996 = vmatprep.mubr.f32.mxu0 0.0
      %2997 = vmatmul.mubr.f32.gmra.mrb[0].mxu0 %v2814
      %v2998 = vpop.f32.mrb[0].mxu0
      %v2999 = vadd.f32 0.0, %v2998
      %v3000 = vpop.f32.mrb[0].mxu0
      %3001 = vmatprep.mubr.f32.mxu0 0.0
      %3002 = vmatmul.mubr.f32.gmra.mrb[0].mxu0 %v2817
      %v3003 = vpop.f32.mrb[0].mxu0
      %v3004 = vadd.f32 0.0, %v3003
      %v3005 = vpop.f32.mrb[0].mxu0
      %3006 = vmatprep.mubr.f32.mxu0 0.0
      %3007 = vmatmul.mubr.f32.gmra.mrb[0].mxu0 %v2820
      %v3008 = vpop.f32.mrb[0].mxu0
      %v3009 = vadd.f32 0.0, %v3008
      %v3010 = vpop.f32.mrb[0].mxu0
      %3011 = vmatprep.mubr.f32.mxu0 0.0
      %3012 = vmatmul.mubr.f32.gmra.mrb[0].mxu0 %v2823
      %v3013 = vpop.f32.mrb[0].mxu0
      %v3014 = vadd.f32 0.0, %v3013
      %v3015 = vpop.f32.mrb[0].mxu0
      %3016 = vmatprep.mubr.f32.mxu0 0.0
      %3017 = vmatmul.mubr.f32.gmra.mrb[0].mxu0 %v2826
      %v3018 = vpop.f32.mrb[0].mxu0
      %v3019 = vadd.f32 0.0, %v3018
      %v3020 = vpop.f32.mrb[0].mxu0
      %3021 = vmatprep.mubr.f32.mxu0 0.0
      %3022 = vmatmul.mubr.f32.gmra.mrb[0].mxu0 %v2829
      %v3023 = vpop.f32.mrb[0].mxu0
      %v3024 = vadd.f32 0.0, %v3023
      %v3025 = vpop.f32.mrb[0].mxu0
      %3026 = vmatprep.mubr.f32.mxu0 0.0
      %3027 = vmatmul.mubr.f32.gmra.mrb[0].mxu0 %v2832
      %v3028 = vpop.f32.mrb[0].mxu0
      %v3029 = vadd.f32 0.0, %v3028
      %v3030 = vpop.f32.mrb[0].mxu0
      %3031 = vmatprep.mubr.f32.mxu0 0.0
      %3032 = vmatmul.mubr.f32.gmra.mrb[0].mxu0 %v2835
      %v3033 = vpop.f32.mrb[0].mxu0
      %v3034 = vadd.f32 0.0, %v3033
      %v3035 = vpop.f32.mrb[0].mxu0
      %3036 = vmatprep.mubr.f32.mxu0 0.0
      %3037 = vmatmul.mubr.f32.gmra.mrb[0].mxu0 %v2838
      %v3038 = vpop.f32.mrb[0].mxu0
      %v3039 = vadd.f32 0.0, %v3038
      %v3040 = vpop.f32.mrb[0].mxu0
      %3041 = vmatprep.mubr.f32.mxu0 0.0
      %3042 = vmatmul.mubr.f32.gmra.mrb[0].mxu0 %v2841
      %v3043 = vpop.f32.mrb[0].mxu0
      %v3044 = vadd.f32 0.0, %v3043
      %v3045 = vpop.f32.mrb[0].mxu0
      %3046 = vmatprep.mubr.f32.mxu0 0.0
      %3047 = vmatmul.mubr.f32.gmra.mrb[0].mxu0 %v2844
      %v3048 = vpop.f32.mrb[0].mxu0
      %v3049 = vadd.f32 0.0, %v3048
      %v3050 = vpop.f32.mrb[0].mxu0
      %3051 = vmatprep.mubr.f32.mxu0 0.0
      %3052 = vmatmul.mubr.f32.gmra.mrb[0].mxu0 %v2847
      %v3053 = vpop.f32.mrb[0].mxu0
      %v3054 = vadd.f32 0.0, %v3053
      %v3055 = vpop.f32.mrb[0].mxu0
      %3056 = vmatprep.mubr.f32.mxu0 0.0
      %3057 = vmatmul.mubr.f32.gmra.mrb[0].mxu0 %v2850
      %v3058 = vpop.f32.mrb[0].mxu0
      %v3059 = vadd.f32 0.0, %v3058
      %v3060 = vpop.f32.mrb[0].mxu0
      %3061 = vmatprep.mubr.f32.mxu0 0.0
      %3062 = vmatmul.mubr.f32.gmra.mrb[0].mxu0 %v2853
      %v3063 = vpop.f32.mrb[0].mxu0
      %v3064 = vadd.f32 0.0, %v3063
      %v3065 = vpop.f32.mrb[0].mxu0
      %3066 = vmatprep.mubr.f32.mxu0 0.0
      %3067 = vmatmul.mubr.f32.gmra.mrb[0].mxu0 %v2856
      %v3068 = vpop.f32.mrb[0].mxu0
      %v3069 = vadd.f32 0.0, %v3068
      %v3070 = vpop.f32.mrb[0].mxu0
      %3071 = vmatprep.mubr.f32.mxu0 0.0
      %3072 = vmatmul.mubr.f32.gmra.mrb[0].mxu0 %v2859
      %v3073 = vpop.f32.mrb[0].mxu0
      %v3074 = vadd.f32 0.0, %v3073
      %v3075 = vpop.f32.mrb[0].mxu0
      %3076 = vmatprep.mubr.f32.mxu0 0.0
      %3077 = vmatmul.mubr.f32.gmra.mrb[0].mxu0 %v2862
      %v3078 = vpop.f32.mrb[0].mxu0
      %v3079 = vadd.f32 0.0, %v3078
      %v3080 = vpop.f32.mrb[0].mxu0
      %3081 = vmatprep.mubr.f32.mxu0 0.0
      %3082 = vmatmul.mubr.f32.gmra.mrb[0].mxu0 %v2865
      %v3083 = vpop.f32.mrb[0].mxu0
      %v3084 = vadd.f32 0.0, %v3083
      %v3085 = vpop.f32.mrb[0].mxu0
      %3086 = vmatprep.mubr.f32.mxu0 0.0
      %3087 = vmatmul.mubr.f32.gmra.mrb[0].mxu0 %v2868
      %v3088 = vpop.f32.mrb[0].mxu0
      %v3089 = vadd.f32 0.0, %v3088
      %v3090 = vpop.f32.mrb[0].mxu0
      %3091 = vmatprep.mubr.f32.mxu0 0.0
      %3092 = vmatmul.mubr.f32.gmra.mrb[0].mxu0 %v2871
      %v3093 = vpop.f32.mrb[0].mxu0
      %v3094 = vadd.f32 0.0, %v3093
      %v3095 = vpop.f32.mrb[0].mxu0
      %3096 = vmatprep.mubr.f32.mxu0 0.0
      %3097 = vmatmul.mubr.f32.gmra.mrb[0].mxu0 %v2874
      %v3098 = vpop.f32.mrb[0].mxu0
      %v3099 = vadd.f32 0.0, %v3098
      %v3100 = vpop.f32.mrb[0].mxu0
      %3101 = vmatprep.mubr.f32.mxu0 0.0
      %3102 = vmatmul.mubr.f32.gmra.mrb[0].mxu0 %v2877
      %v3103 = vpop.f32.mrb[0].mxu0
      %v3104 = vadd.f32 0.0, %v3103
      %v3105 = vpop.f32.mrb[0].mxu0
      %3106 = vdwg.mxu0
      %v3107 = vadd.f32 %v2716, %v2949
      %v3108 = vadd.f32 %v2717, %v2954
      %v3109 = vadd.f32 %v2718, %v2959
      %v3110 = vadd.f32 %v2719, %v2964
      %v3111 = vadd.f32 %v2720, %v2969
      %v3112 = vadd.f32 %v2721, %v2974
      %v3113 = vadd.f32 %v2722, %v2979
      %v3114 = vadd.f32 %v2723, %v2984
      %v3115 = vadd.f32 %v2724, %v2989
      %v3116 = vadd.f32 %v2725, %v2994
      %v3117 = vadd.f32 %v2726, %v2999
      %v3118 = vadd.f32 %v2727, %v3004
      %v3119 = vadd.f32 %v2728, %v3009
      %v3120 = vadd.f32 %v2729, %v3014
      %v3121 = vadd.f32 %v2730, %v3019
      %v3122 = vadd.f32 %v2731, %v3024
      %v3123 = vadd.f32 %v2732, %v3029
      %v3124 = vadd.f32 %v2733, %v3034
      %v3125 = vadd.f32 %v2734, %v3039
      %v3126 = vadd.f32 %v2735, %v3044
      %v3127 = vadd.f32 %v2736, %v3049
      %v3128 = vadd.f32 %v2737, %v3054
      %v3129 = vadd.f32 %v2738, %v3059
      %v3130 = vadd.f32 %v2739, %v3064
      %v3131 = vadd.f32 %v2740, %v3069
      %v3132 = vadd.f32 %v2741, %v3074
      %v3133 = vadd.f32 %v2742, %v3079
      %v3134 = vadd.f32 %v2743, %v3084
      %v3135 = vadd.f32 %v2744, %v3089
      %v3136 = vadd.f32 %v2745, %v3094
      %v3137 = vadd.f32 %v2746, %v3099
      %v3138 = vadd.f32 %v2747, %v3104
      %v3139 = vld [vmem:[%s2748 + $0x8] sm:$0xff]
      %v3140 = vld [vmem:[%s2748 + $0x10] sm:$0xff]
      %v3141 = vld [vmem:[%s2748 + $0x28] sm:$0xff]
      %v3142 = vld [vmem:[%s2748 + $0x30] sm:$0xff]
      %v3143 = vld [vmem:[%s2748 + $0x48] sm:$0xff]
      %v3144 = vld [vmem:[%s2748 + $0x50] sm:$0xff]
      %v3145 = vld [vmem:[%s2748 + $0x68] sm:$0xff]
      %v3146 = vld [vmem:[%s2748 + $0x70] sm:$0xff]
      %v3147 = vld [vmem:[%s2748 + $0x88] sm:$0xff]
      %v3148 = vld [vmem:[%s2748 + $0x90] sm:$0xff]
      %v3149 = vld [vmem:[%s2748 + $0xa8] sm:$0xff]
      %v3150 = vld [vmem:[%s2748 + $0xb0] sm:$0xff]
      %v3151 = vld [vmem:[%s2748 + $0xc8] sm:$0xff]
      %v3152 = vld [vmem:[%s2748 + $0xd0] sm:$0xff]
      %v3153 = vld [vmem:[%s2748 + $0xe8] sm:$0xff]
      %v3154 = vld [vmem:[%s2748 + $0xf0] sm:$0xff]
      %v3155 = vld [vmem:[%s2748 + $0x108] sm:$0xff]
      %v3156 = vld [vmem:[%s2748 + $0x110] sm:$0xff]
      %v3157 = vld [vmem:[%s2748 + $0x128] sm:$0xff]
      %v3158 = vld [vmem:[%s2748 + $0x130] sm:$0xff]
      %v3159 = vld [vmem:[%s2748 + $0x148] sm:$0xff]
      %v3160 = vld [vmem:[%s2748 + $0x150] sm:$0xff]
      %v3161 = vld [vmem:[%s2748 + $0x168] sm:$0xff]
      %v3162 = vld [vmem:[%s2748 + $0x170] sm:$0xff]
      %v3163 = vld [vmem:[%s2748 + $0x188] sm:$0xff]
      %v3164 = vld [vmem:[%s2748 + $0x190] sm:$0xff]
      %v3165 = vld [vmem:[%s2748 + $0x1a8] sm:$0xff]
      %v3166 = vld [vmem:[%s2748 + $0x1b0] sm:$0xff]
      %v3167 = vld [vmem:[%s2748 + $0x1c8] sm:$0xff]
      %v3168 = vld [vmem:[%s2748 + $0x1d0] sm:$0xff]
      %v3169 = vld [vmem:[%s2748 + $0x1e8] sm:$0xff]
      %v3170 = vld [vmem:[%s2748 + $0x1f0] sm:$0xff]
      %s3171 = scalar_lea.vmem %s1, 28
      %v3172 = vld [vmem:[%s3171] sm:$0x7]
      %v3174 = vsel %vm333, %v3139, 0
      %v3177 = vsel %vm333, %v3140, 0
      %v3180 = vsel %vm333, %v3141, 0
      %v3183 = vsel %vm333, %v3142, 0
      %v3186 = vsel %vm333, %v3143, 0
      %v3189 = vsel %vm333, %v3144, 0
      %v3192 = vsel %vm333, %v3145, 0
      %v3195 = vsel %vm333, %v3146, 0
      %v3198 = vsel %vm333, %v3147, 0
      %v3201 = vsel %vm333, %v3148, 0
      %v3204 = vsel %vm333, %v3149, 0
      %v3207 = vsel %vm333, %v3150, 0
      %v3210 = vsel %vm333, %v3151, 0
      %v3213 = vsel %vm333, %v3152, 0
      %v3216 = vsel %vm333, %v3153, 0
      %v3219 = vsel %vm333, %v3154, 0
      %v3222 = vsel %vm333, %v3155, 0
      %v3225 = vsel %vm333, %v3156, 0
      %v3228 = vsel %vm333, %v3157, 0
      %v3231 = vsel %vm333, %v3158, 0
      %v3234 = vsel %vm333, %v3159, 0
      %v3237 = vsel %vm333, %v3160, 0
      %v3240 = vsel %vm333, %v3161, 0
      %v3243 = vsel %vm333, %v3162, 0
      %v3246 = vsel %vm333, %v3163, 0
      %v3249 = vsel %vm333, %v3164, 0
      %v3252 = vsel %vm333, %v3165, 0
      %v3255 = vsel %vm333, %v3166, 0
      %v3258 = vsel %vm333, %v3167, 0
      %v3261 = vsel %vm333, %v3168, 0
      %v3264 = vsel %vm333, %v3169, 0
      %v3267 = vsel %vm333, %v3170, 0
      %v3270 = vsel %vm635, %v3172, 0
      %3272 = vmatprep.subr.mxu0 0.0
      %3273 = vmatpush1.msra.mxu0 %v3270
      %3274 = vmatprep.subr.mxu0 0.0
      %3275 = vmatpush1.msra.mxu0 0.0
      %3276 = vmatprep.subr.mxu0 0.0
      %3277 = vmatpush1.msra.mxu0 0.0
      %3278 = vmatprep.subr.mxu0 0.0
      %3279 = vmatpush1.msra.mxu0 0.0
      %3280 = vmatprep.subr.mxu0 0.0
      %3281 = vmatpush1.msra.mxu0 0.0
      %3282 = vmatprep.subr.mxu0 0.0
      %3283 = vmatpush1.msra.mxu0 0.0
      %3284 = vmatprep.subr.mxu0 0.0
      %3285 = vmatpush1.msra.mxu0 0.0
      %3286 = vmatprep.subr.mxu0 0.0
      %3287 = vmatpush1.msra.mxu0 0.0
      %3288 = vmatprep.subr.mxu0 0.0
      %3289 = vmatpush1.msra.mxu0 0.0
      %3290 = vmatprep.subr.mxu0 0.0
      %3291 = vmatpush1.msra.mxu0 0.0
      %3292 = vmatprep.subr.mxu0 0.0
      %3293 = vmatpush1.msra.mxu0 0.0
      %3294 = vmatprep.subr.mxu0 0.0
      %3295 = vmatpush1.msra.mxu0 0.0
      %3296 = vmatprep.subr.mxu0 0.0
      %3297 = vmatpush1.msra.mxu0 0.0
      %3298 = vmatprep.subr.mxu0 0.0
      %3299 = vmatpush1.msra.mxu0 0.0
      %3300 = vmatprep.subr.mxu0 0.0
      %3301 = vmatpush1.msra.mxu0 0.0
      %3302 = vmatprep.subr.mxu0 0.0
      %3303 = vmatpush1.msra.mxu0 0.0
      %3304 = vmatprep.subr.mxu0 0.0
      %3305 = vmatpush1.msra.mxu0 0.0
      %3306 = vmatprep.subr.mxu0 0.0
      %3307 = vmatpush1.msra.mxu0 0.0
      %3308 = vmatprep.subr.mxu0 0.0
      %3309 = vmatpush1.msra.mxu0 0.0
      %3310 = vmatprep.subr.mxu0 0.0
      %3311 = vmatpush1.msra.mxu0 0.0
      %3312 = vmatprep.subr.mxu0 0.0
      %3313 = vmatpush1.msra.mxu0 0.0
      %3314 = vmatprep.subr.mxu0 0.0
      %3315 = vmatpush1.msra.mxu0 0.0
      %3316 = vmatprep.subr.mxu0 0.0
      %3317 = vmatpush1.msra.mxu0 0.0
      %3318 = vmatprep.subr.mxu0 0.0
      %3319 = vmatpush1.msra.mxu0 0.0
      %3320 = vmatprep.subr.mxu0 0.0
      %3321 = vmatpush1.msra.mxu0 0.0
      %3322 = vmatprep.subr.mxu0 0.0
      %3323 = vmatpush1.msra.mxu0 0.0
      %3324 = vmatprep.subr.mxu0 0.0
      %3325 = vmatpush1.msra.mxu0 0.0
      %3326 = vmatprep.subr.mxu0 0.0
      %3327 = vmatpush1.msra.mxu0 0.0
      %3328 = vmatprep.subr.mxu0 0.0
      %3329 = vmatpush1.msra.mxu0 0.0
      %3330 = vmatprep.subr.mxu0 0.0
      %3331 = vmatpush1.msra.mxu0 0.0
      %3332 = vmatprep.subr.mxu0 0.0
      %3333 = vmatpush1.msra.mxu0 0.0
      %3334 = vmatprep.subr.mxu0 0.0
      %3335 = vmatpush1.msra.mxu0 0.0
      %3336 = vmatprep.mubr.f32.mxu0 0.0
      %3337 = vmatmul.mubr.f32.gmra.mrb[0].mxu0 %v3174
      %v3338 = vpop.f32.mrb[0].mxu0
      %v3339 = vadd.f32 0.0, %v3338
      %v3340 = vpop.f32.mrb[0].mxu0
      %3341 = vmatprep.mubr.f32.mxu0 0.0
      %3342 = vmatmul.mubr.f32.gmra.mrb[0].mxu0 %v3177
      %v3343 = vpop.f32.mrb[0].mxu0
      %v3344 = vadd.f32 0.0, %v3343
      %v3345 = vpop.f32.mrb[0].mxu0
      %3346 = vmatprep.mubr.f32.mxu0 0.0
      %3347 = vmatmul.mubr.f32.gmra.mrb[0].mxu0 %v3180
      %v3348 = vpop.f32.mrb[0].mxu0
      %v3349 = vadd.f32 0.0, %v3348
      %v3350 = vpop.f32.mrb[0].mxu0
      %3351 = vmatprep.mubr.f32.mxu0 0.0
      %3352 = vmatmul.mubr.f32.gmra.mrb[0].mxu0 %v3183
      %v3353 = vpop.f32.mrb[0].mxu0
      %v3354 = vadd.f32 0.0, %v3353
      %v3355 = vpop.f32.mrb[0].mxu0
      %3356 = vmatprep.mubr.f32.mxu0 0.0
      %3357 = vmatmul.mubr.f32.gmra.mrb[0].mxu0 %v3186
      %v3358 = vpop.f32.mrb[0].mxu0
      %v3359 = vadd.f32 0.0, %v3358
      %v3360 = vpop.f32.mrb[0].mxu0
      %3361 = vmatprep.mubr.f32.mxu0 0.0
      %3362 = vmatmul.mubr.f32.gmra.mrb[0].mxu0 %v3189
      %v3363 = vpop.f32.mrb[0].mxu0
      %v3364 = vadd.f32 0.0, %v3363
      %v3365 = vpop.f32.mrb[0].mxu0
      %3366 = vmatprep.mubr.f32.mxu0 0.0
      %3367 = vmatmul.mubr.f32.gmra.mrb[0].mxu0 %v3192
      %v3368 = vpop.f32.mrb[0].mxu0
      %v3369 = vadd.f32 0.0, %v3368
      %v3370 = vpop.f32.mrb[0].mxu0
      %3371 = vmatprep.mubr.f32.mxu0 0.0
      %3372 = vmatmul.mubr.f32.gmra.mrb[0].mxu0 %v3195
      %v3373 = vpop.f32.mrb[0].mxu0
      %v3374 = vadd.f32 0.0, %v3373
      %v3375 = vpop.f32.mrb[0].mxu0
      %3376 = vmatprep.mubr.f32.mxu0 0.0
      %3377 = vmatmul.mubr.f32.gmra.mrb[0].mxu0 %v3198
      %v3378 = vpop.f32.mrb[0].mxu0
      %v3379 = vadd.f32 0.0, %v3378
      %v3380 = vpop.f32.mrb[0].mxu0
      %3381 = vmatprep.mubr.f32.mxu0 0.0
      %3382 = vmatmul.mubr.f32.gmra.mrb[0].mxu0 %v3201
      %v3383 = vpop.f32.mrb[0].mxu0
      %v3384 = vadd.f32 0.0, %v3383
      %v3385 = vpop.f32.mrb[0].mxu0
      %3386 = vmatprep.mubr.f32.mxu0 0.0
      %3387 = vmatmul.mubr.f32.gmra.mrb[0].mxu0 %v3204
      %v3388 = vpop.f32.mrb[0].mxu0
      %v3389 = vadd.f32 0.0, %v3388
      %v3390 = vpop.f32.mrb[0].mxu0
      %3391 = vmatprep.mubr.f32.mxu0 0.0
      %3392 = vmatmul.mubr.f32.gmra.mrb[0].mxu0 %v3207
      %v3393 = vpop.f32.mrb[0].mxu0
      %v3394 = vadd.f32 0.0, %v3393
      %v3395 = vpop.f32.mrb[0].mxu0
      %3396 = vmatprep.mubr.f32.mxu0 0.0
      %3397 = vmatmul.mubr.f32.gmra.mrb[0].mxu0 %v3210
      %v3398 = vpop.f32.mrb[0].mxu0
      %v3399 = vadd.f32 0.0, %v3398
      %v3400 = vpop.f32.mrb[0].mxu0
      %3401 = vmatprep.mubr.f32.mxu0 0.0
      %3402 = vmatmul.mubr.f32.gmra.mrb[0].mxu0 %v3213
      %v3403 = vpop.f32.mrb[0].mxu0
      %v3404 = vadd.f32 0.0, %v3403
      %v3405 = vpop.f32.mrb[0].mxu0
      %3406 = vmatprep.mubr.f32.mxu0 0.0
      %3407 = vmatmul.mubr.f32.gmra.mrb[0].mxu0 %v3216
      %v3408 = vpop.f32.mrb[0].mxu0
      %v3409 = vadd.f32 0.0, %v3408
      %v3410 = vpop.f32.mrb[0].mxu0
      %3411 = vmatprep.mubr.f32.mxu0 0.0
      %3412 = vmatmul.mubr.f32.gmra.mrb[0].mxu0 %v3219
      %v3413 = vpop.f32.mrb[0].mxu0
      %v3414 = vadd.f32 0.0, %v3413
      %v3415 = vpop.f32.mrb[0].mxu0
      %3416 = vmatprep.mubr.f32.mxu0 0.0
      %3417 = vmatmul.mubr.f32.gmra.mrb[0].mxu0 %v3222
      %v3418 = vpop.f32.mrb[0].mxu0
      %v3419 = vadd.f32 0.0, %v3418
      %v3420 = vpop.f32.mrb[0].mxu0
      %3421 = vmatprep.mubr.f32.mxu0 0.0
      %3422 = vmatmul.mubr.f32.gmra.mrb[0].mxu0 %v3225
      %v3423 = vpop.f32.mrb[0].mxu0
      %v3424 = vadd.f32 0.0, %v3423
      %v3425 = vpop.f32.mrb[0].mxu0
      %3426 = vmatprep.mubr.f32.mxu0 0.0
      %3427 = vmatmul.mubr.f32.gmra.mrb[0].mxu0 %v3228
      %v3428 = vpop.f32.mrb[0].mxu0
      %v3429 = vadd.f32 0.0, %v3428
      %v3430 = vpop.f32.mrb[0].mxu0
      %3431 = vmatprep.mubr.f32.mxu0 0.0
      %3432 = vmatmul.mubr.f32.gmra.mrb[0].mxu0 %v3231
      %v3433 = vpop.f32.mrb[0].mxu0
      %v3434 = vadd.f32 0.0, %v3433
      %v3435 = vpop.f32.mrb[0].mxu0
      %3436 = vmatprep.mubr.f32.mxu0 0.0
      %3437 = vmatmul.mubr.f32.gmra.mrb[0].mxu0 %v3234
      %v3438 = vpop.f32.mrb[0].mxu0
      %v3439 = vadd.f32 0.0, %v3438
      %v3440 = vpop.f32.mrb[0].mxu0
      %3441 = vmatprep.mubr.f32.mxu0 0.0
      %3442 = vmatmul.mubr.f32.gmra.mrb[0].mxu0 %v3237
      %v3443 = vpop.f32.mrb[0].mxu0
      %v3444 = vadd.f32 0.0, %v3443
      %v3445 = vpop.f32.mrb[0].mxu0
      %3446 = vmatprep.mubr.f32.mxu0 0.0
      %3447 = vmatmul.mubr.f32.gmra.mrb[0].mxu0 %v3240
      %v3448 = vpop.f32.mrb[0].mxu0
      %v3449 = vadd.f32 0.0, %v3448
      %v3450 = vpop.f32.mrb[0].mxu0
      %3451 = vmatprep.mubr.f32.mxu0 0.0
      %3452 = vmatmul.mubr.f32.gmra.mrb[0].mxu0 %v3243
      %v3453 = vpop.f32.mrb[0].mxu0
      %v3454 = vadd.f32 0.0, %v3453
      %v3455 = vpop.f32.mrb[0].mxu0
      %3456 = vmatprep.mubr.f32.mxu0 0.0
      %3457 = vmatmul.mubr.f32.gmra.mrb[0].mxu0 %v3246
      %v3458 = vpop.f32.mrb[0].mxu0
      %v3459 = vadd.f32 0.0, %v3458
      %v3460 = vpop.f32.mrb[0].mxu0
      %3461 = vmatprep.mubr.f32.mxu0 0.0
      %3462 = vmatmul.mubr.f32.gmra.mrb[0].mxu0 %v3249
      %v3463 = vpop.f32.mrb[0].mxu0
      %v3464 = vadd.f32 0.0, %v3463
      %v3465 = vpop.f32.mrb[0].mxu0
      %3466 = vmatprep.mubr.f32.mxu0 0.0
      %3467 = vmatmul.mubr.f32.gmra.mrb[0].mxu0 %v3252
      %v3468 = vpop.f32.mrb[0].mxu0
      %v3469 = vadd.f32 0.0, %v3468
      %v3470 = vpop.f32.mrb[0].mxu0
      %3471 = vmatprep.mubr.f32.mxu0 0.0
      %3472 = vmatmul.mubr.f32.gmra.mrb[0].mxu0 %v3255
      %v3473 = vpop.f32.mrb[0].mxu0
      %v3474 = vadd.f32 0.0, %v3473
      %v3475 = vpop.f32.mrb[0].mxu0
      %3476 = vmatprep.mubr.f32.mxu0 0.0
      %3477 = vmatmul.mubr.f32.gmra.mrb[0].mxu0 %v3258
      %v3478 = vpop.f32.mrb[0].mxu0
      %v3479 = vadd.f32 0.0, %v3478
      %v3480 = vpop.f32.mrb[0].mxu0
      %3481 = vmatprep.mubr.f32.mxu0 0.0
      %3482 = vmatmul.mubr.f32.gmra.mrb[0].mxu0 %v3261
      %v3483 = vpop.f32.mrb[0].mxu0
      %v3484 = vadd.f32 0.0, %v3483
      %v3485 = vpop.f32.mrb[0].mxu0
      %3486 = vmatprep.mubr.f32.mxu0 0.0
      %3487 = vmatmul.mubr.f32.gmra.mrb[0].mxu0 %v3264
      %v3488 = vpop.f32.mrb[0].mxu0
      %v3489 = vadd.f32 0.0, %v3488
      %v3490 = vpop.f32.mrb[0].mxu0
      %3491 = vmatprep.mubr.f32.mxu0 0.0
      %3492 = vmatmul.mubr.f32.gmra.mrb[0].mxu0 %v3267
      %v3493 = vpop.f32.mrb[0].mxu0
      %v3494 = vadd.f32 0.0, %v3493
      %v3495 = vpop.f32.mrb[0].mxu0
      %3496 = vdwg.mxu0
      %v3497 = vadd.f32 %v3107, %v3339
      %v3498 = vadd.f32 %v3108, %v3344
      %v3499 = vadd.f32 %v3109, %v3349
      %v3500 = vadd.f32 %v3110, %v3354
      %v3501 = vadd.f32 %v3111, %v3359
      %v3502 = vadd.f32 %v3112, %v3364
      %v3503 = vadd.f32 %v3113, %v3369
      %v3504 = vadd.f32 %v3114, %v3374
      %v3505 = vadd.f32 %v3115, %v3379
      %v3506 = vadd.f32 %v3116, %v3384
      %v3507 = vadd.f32 %v3117, %v3389
      %v3508 = vadd.f32 %v3118, %v3394
      %v3509 = vadd.f32 %v3119, %v3399
      %v3510 = vadd.f32 %v3120, %v3404
      %v3511 = vadd.f32 %v3121, %v3409
      %v3512 = vadd.f32 %v3122, %v3414
      %v3513 = vadd.f32 %v3123, %v3419
      %v3514 = vadd.f32 %v3124, %v3424
      %v3515 = vadd.f32 %v3125, %v3429
      %v3516 = vadd.f32 %v3126, %v3434
      %v3517 = vadd.f32 %v3127, %v3439
      %v3518 = vadd.f32 %v3128, %v3444
      %v3519 = vadd.f32 %v3129, %v3449
      %v3520 = vadd.f32 %v3130, %v3454
      %v3521 = vadd.f32 %v3131, %v3459
      %v3522 = vadd.f32 %v3132, %v3464
      %v3523 = vadd.f32 %v3133, %v3469
      %v3524 = vadd.f32 %v3134, %v3474
      %v3525 = vadd.f32 %v3135, %v3479
      %v3526 = vadd.f32 %v3136, %v3484
      %v3527 = vadd.f32 %v3137, %v3489
      %v3528 = vadd.f32 %v3138, %v3494
      %v3529 = vld [vmem:[%s2748 + $0x9] sm:$0xff]
      %v3530 = vld [vmem:[%s2748 + $0x11] sm:$0xff]
      %v3531 = vld [vmem:[%s2748 + $0x29] sm:$0xff]
      %v3532 = vld [vmem:[%s2748 + $0x31] sm:$0xff]
      %v3533 = vld [vmem:[%s2748 + $0x49] sm:$0xff]
      %v3534 = vld [vmem:[%s2748 + $0x51] sm:$0xff]
      %v3535 = vld [vmem:[%s2748 + $0x69] sm:$0xff]
      %v3536 = vld [vmem:[%s2748 + $0x71] sm:$0xff]
      %v3537 = vld [vmem:[%s2748 + $0x89] sm:$0xff]
      %v3538 = vld [vmem:[%s2748 + $0x91] sm:$0xff]
      %v3539 = vld [vmem:[%s2748 + $0xa9] sm:$0xff]
      %v3540 = vld [vmem:[%s2748 + $0xb1] sm:$0xff]
      %v3541 = vld [vmem:[%s2748 + $0xc9] sm:$0xff]
      %v3542 = vld [vmem:[%s2748 + $0xd1] sm:$0xff]
      %v3543 = vld [vmem:[%s2748 + $0xe9] sm:$0xff]
      %v3544 = vld [vmem:[%s2748 + $0xf1] sm:$0xff]
      %v3545 = vld [vmem:[%s2748 + $0x109] sm:$0xff]
      %v3546 = vld [vmem:[%s2748 + $0x111] sm:$0xff]
      %v3547 = vld [vmem:[%s2748 + $0x129] sm:$0xff]
      %v3548 = vld [vmem:[%s2748 + $0x131] sm:$0xff]
      %v3549 = vld [vmem:[%s2748 + $0x149] sm:$0xff]
      %v3550 = vld [vmem:[%s2748 + $0x151] sm:$0xff]
      %v3551 = vld [vmem:[%s2748 + $0x169] sm:$0xff]
      %v3552 = vld [vmem:[%s2748 + $0x171] sm:$0xff]
      %v3553 = vld [vmem:[%s2748 + $0x189] sm:$0xff]
      %v3554 = vld [vmem:[%s2748 + $0x191] sm:$0xff]
      %v3555 = vld [vmem:[%s2748 + $0x1a9] sm:$0xff]
      %v3556 = vld [vmem:[%s2748 + $0x1b1] sm:$0xff]
      %v3557 = vld [vmem:[%s2748 + $0x1c9] sm:$0xff]
      %v3558 = vld [vmem:[%s2748 + $0x1d1] sm:$0xff]
      %v3559 = vld [vmem:[%s2748 + $0x1e9] sm:$0xff]
      %v3560 = vld [vmem:[%s2748 + $0x1f1] sm:$0xff]
      %s3561 = scalar_lea.vmem %s1, 32
      %v3562 = vld [vmem:[%s3561] sm:$0x7]
      %v3564 = vsel %vm333, %v3529, 0
      %v3567 = vsel %vm333, %v3530, 0
      %v3570 = vsel %vm333, %v3531, 0
      %v3573 = vsel %vm333, %v3532, 0
      %v3576 = vsel %vm333, %v3533, 0
      %v3579 = vsel %vm333, %v3534, 0
      %v3582 = vsel %vm333, %v3535, 0
      %v3585 = vsel %vm333, %v3536, 0
      %v3588 = vsel %vm333, %v3537, 0
      %v3591 = vsel %vm333, %v3538, 0
      %v3594 = vsel %vm333, %v3539, 0
      %v3597 = vsel %vm333, %v3540, 0
      %v3600 = vsel %vm333, %v3541, 0
      %v3603 = vsel %vm333, %v3542, 0
      %v3606 = vsel %vm333, %v3543, 0
      %v3609 = vsel %vm333, %v3544, 0
      %v3612 = vsel %vm333, %v3545, 0
      %v3615 = vsel %vm333, %v3546, 0
      %v3618 = vsel %vm333, %v3547, 0
      %v3621 = vsel %vm333, %v3548, 0
      %v3624 = vsel %vm333, %v3549, 0
      %v3627 = vsel %vm333, %v3550, 0
      %v3630 = vsel %vm333, %v3551, 0
      %v3633 = vsel %vm333, %v3552, 0
      %v3636 = vsel %vm333, %v3553, 0
      %v3639 = vsel %vm333, %v3554, 0
      %v3642 = vsel %vm333, %v3555, 0
      %v3645 = vsel %vm333, %v3556, 0
      %v3648 = vsel %vm333, %v3557, 0
      %v3651 = vsel %vm333, %v3558, 0
      %v3654 = vsel %vm333, %v3559, 0
      %v3657 = vsel %vm333, %v3560, 0
      %v3660 = vsel %vm635, %v3562, 0
      %3662 = vmatprep.subr.mxu0 0.0
      %3663 = vmatpush1.msra.mxu0 %v3660
      %3664 = vmatprep.subr.mxu0 0.0
      %3665 = vmatpush1.msra.mxu0 0.0
      %3666 = vmatprep.subr.mxu0 0.0
      %3667 = vmatpush1.msra.mxu0 0.0
      %3668 = vmatprep.subr.mxu0 0.0
      %3669 = vmatpush1.msra.mxu0 0.0
      %3670 = vmatprep.subr.mxu0 0.0
      %3671 = vmatpush1.msra.mxu0 0.0
      %3672 = vmatprep.subr.mxu0 0.0
      %3673 = vmatpush1.msra.mxu0 0.0
      %3674 = vmatprep.subr.mxu0 0.0
      %3675 = vmatpush1.msra.mxu0 0.0
      %3676 = vmatprep.subr.mxu0 0.0
      %3677 = vmatpush1.msra.mxu0 0.0
      %3678 = vmatprep.subr.mxu0 0.0
      %3679 = vmatpush1.msra.mxu0 0.0
      %3680 = vmatprep.subr.mxu0 0.0
      %3681 = vmatpush1.msra.mxu0 0.0
      %3682 = vmatprep.subr.mxu0 0.0
      %3683 = vmatpush1.msra.mxu0 0.0
      %3684 = vmatprep.subr.mxu0 0.0
      %3685 = vmatpush1.msra.mxu0 0.0
      %3686 = vmatprep.subr.mxu0 0.0
      %3687 = vmatpush1.msra.mxu0 0.0
      %3688 = vmatprep.subr.mxu0 0.0
      %3689 = vmatpush1.msra.mxu0 0.0
      %3690 = vmatprep.subr.mxu0 0.0
      %3691 = vmatpush1.msra.mxu0 0.0
      %3692 = vmatprep.subr.mxu0 0.0
      %3693 = vmatpush1.msra.mxu0 0.0
      %3694 = vmatprep.subr.mxu0 0.0
      %3695 = vmatpush1.msra.mxu0 0.0
      %3696 = vmatprep.subr.mxu0 0.0
      %3697 = vmatpush1.msra.mxu0 0.0
      %3698 = vmatprep.subr.mxu0 0.0
      %3699 = vmatpush1.msra.mxu0 0.0
      %3700 = vmatprep.subr.mxu0 0.0
      %3701 = vmatpush1.msra.mxu0 0.0
      %3702 = vmatprep.subr.mxu0 0.0
      %3703 = vmatpush1.msra.mxu0 0.0
      %3704 = vmatprep.subr.mxu0 0.0
      %3705 = vmatpush1.msra.mxu0 0.0
      %3706 = vmatprep.subr.mxu0 0.0
      %3707 = vmatpush1.msra.mxu0 0.0
      %3708 = vmatprep.subr.mxu0 0.0
      %3709 = vmatpush1.msra.mxu0 0.0
      %3710 = vmatprep.subr.mxu0 0.0
      %3711 = vmatpush1.msra.mxu0 0.0
      %3712 = vmatprep.subr.mxu0 0.0
      %3713 = vmatpush1.msra.mxu0 0.0
      %3714 = vmatprep.subr.mxu0 0.0
      %3715 = vmatpush1.msra.mxu0 0.0
      %3716 = vmatprep.subr.mxu0 0.0
      %3717 = vmatpush1.msra.mxu0 0.0
      %3718 = vmatprep.subr.mxu0 0.0
      %3719 = vmatpush1.msra.mxu0 0.0
      %3720 = vmatprep.subr.mxu0 0.0
      %3721 = vmatpush1.msra.mxu0 0.0
      %3722 = vmatprep.subr.mxu0 0.0
      %3723 = vmatpush1.msra.mxu0 0.0
      %3724 = vmatprep.subr.mxu0 0.0
      %3725 = vmatpush1.msra.mxu0 0.0
      %3726 = vmatprep.mubr.f32.mxu0 0.0
      %3727 = vmatmul.mubr.f32.gmra.mrb[0].mxu0 %v3564
      %v3728 = vpop.f32.mrb[0].mxu0
      %v3729 = vadd.f32 0.0, %v3728
      %v3730 = vpop.f32.mrb[0].mxu0
      %3731 = vmatprep.mubr.f32.mxu0 0.0
      %3732 = vmatmul.mubr.f32.gmra.mrb[0].mxu0 %v3567
      %v3733 = vpop.f32.mrb[0].mxu0
      %v3734 = vadd.f32 0.0, %v3733
      %v3735 = vpop.f32.mrb[0].mxu0
      %3736 = vmatprep.mubr.f32.mxu0 0.0
      %3737 = vmatmul.mubr.f32.gmra.mrb[0].mxu0 %v3570
      %v3738 = vpop.f32.mrb[0].mxu0
      %v3739 = vadd.f32 0.0, %v3738
      %v3740 = vpop.f32.mrb[0].mxu0
      %3741 = vmatprep.mubr.f32.mxu0 0.0
      %3742 = vmatmul.mubr.f32.gmra.mrb[0].mxu0 %v3573
      %v3743 = vpop.f32.mrb[0].mxu0
      %v3744 = vadd.f32 0.0, %v3743
      %v3745 = vpop.f32.mrb[0].mxu0
      %3746 = vmatprep.mubr.f32.mxu0 0.0
      %3747 = vmatmul.mubr.f32.gmra.mrb[0].mxu0 %v3576
      %v3748 = vpop.f32.mrb[0].mxu0
      %v3749 = vadd.f32 0.0, %v3748
      %v3750 = vpop.f32.mrb[0].mxu0
      %3751 = vmatprep.mubr.f32.mxu0 0.0
      %3752 = vmatmul.mubr.f32.gmra.mrb[0].mxu0 %v3579
      %v3753 = vpop.f32.mrb[0].mxu0
      %v3754 = vadd.f32 0.0, %v3753
      %v3755 = vpop.f32.mrb[0].mxu0
      %3756 = vmatprep.mubr.f32.mxu0 0.0
      %3757 = vmatmul.mubr.f32.gmra.mrb[0].mxu0 %v3582
      %v3758 = vpop.f32.mrb[0].mxu0
      %v3759 = vadd.f32 0.0, %v3758
      %v3760 = vpop.f32.mrb[0].mxu0
      %3761 = vmatprep.mubr.f32.mxu0 0.0
      %3762 = vmatmul.mubr.f32.gmra.mrb[0].mxu0 %v3585
      %v3763 = vpop.f32.mrb[0].mxu0
      %v3764 = vadd.f32 0.0, %v3763
      %v3765 = vpop.f32.mrb[0].mxu0
      %3766 = vmatprep.mubr.f32.mxu0 0.0
      %3767 = vmatmul.mubr.f32.gmra.mrb[0].mxu0 %v3588
      %v3768 = vpop.f32.mrb[0].mxu0
      %v3769 = vadd.f32 0.0, %v3768
      %v3770 = vpop.f32.mrb[0].mxu0
      %3771 = vmatprep.mubr.f32.mxu0 0.0
      %3772 = vmatmul.mubr.f32.gmra.mrb[0].mxu0 %v3591
      %v3773 = vpop.f32.mrb[0].mxu0
      %v3774 = vadd.f32 0.0, %v3773
      %v3775 = vpop.f32.mrb[0].mxu0
      %3776 = vmatprep.mubr.f32.mxu0 0.0
      %3777 = vmatmul.mubr.f32.gmra.mrb[0].mxu0 %v3594
      %v3778 = vpop.f32.mrb[0].mxu0
      %v3779 = vadd.f32 0.0, %v3778
      %v3780 = vpop.f32.mrb[0].mxu0
      %3781 = vmatprep.mubr.f32.mxu0 0.0
      %3782 = vmatmul.mubr.f32.gmra.mrb[0].mxu0 %v3597
      %v3783 = vpop.f32.mrb[0].mxu0
      %v3784 = vadd.f32 0.0, %v3783
      %v3785 = vpop.f32.mrb[0].mxu0
      %3786 = vmatprep.mubr.f32.mxu0 0.0
      %3787 = vmatmul.mubr.f32.gmra.mrb[0].mxu0 %v3600
      %v3788 = vpop.f32.mrb[0].mxu0
      %v3789 = vadd.f32 0.0, %v3788
      %v3790 = vpop.f32.mrb[0].mxu0
      %3791 = vmatprep.mubr.f32.mxu0 0.0
      %3792 = vmatmul.mubr.f32.gmra.mrb[0].mxu0 %v3603
      %v3793 = vpop.f32.mrb[0].mxu0
      %v3794 = vadd.f32 0.0, %v3793
      %v3795 = vpop.f32.mrb[0].mxu0
      %3796 = vmatprep.mubr.f32.mxu0 0.0
      %3797 = vmatmul.mubr.f32.gmra.mrb[0].mxu0 %v3606
      %v3798 = vpop.f32.mrb[0].mxu0
      %v3799 = vadd.f32 0.0, %v3798
      %v3800 = vpop.f32.mrb[0].mxu0
      %3801 = vmatprep.mubr.f32.mxu0 0.0
      %3802 = vmatmul.mubr.f32.gmra.mrb[0].mxu0 %v3609
      %v3803 = vpop.f32.mrb[0].mxu0
      %v3804 = vadd.f32 0.0, %v3803
      %v3805 = vpop.f32.mrb[0].mxu0
      %3806 = vmatprep.mubr.f32.mxu0 0.0
      %3807 = vmatmul.mubr.f32.gmra.mrb[0].mxu0 %v3612
      %v3808 = vpop.f32.mrb[0].mxu0
      %v3809 = vadd.f32 0.0, %v3808
      %v3810 = vpop.f32.mrb[0].mxu0
      %3811 = vmatprep.mubr.f32.mxu0 0.0
      %3812 = vmatmul.mubr.f32.gmra.mrb[0].mxu0 %v3615
      %v3813 = vpop.f32.mrb[0].mxu0
      %v3814 = vadd.f32 0.0, %v3813
      %v3815 = vpop.f32.mrb[0].mxu0
      %3816 = vmatprep.mubr.f32.mxu0 0.0
      %3817 = vmatmul.mubr.f32.gmra.mrb[0].mxu0 %v3618
      %v3818 = vpop.f32.mrb[0].mxu0
      %v3819 = vadd.f32 0.0, %v3818
      %v3820 = vpop.f32.mrb[0].mxu0
      %3821 = vmatprep.mubr.f32.mxu0 0.0
      %3822 = vmatmul.mubr.f32.gmra.mrb[0].mxu0 %v3621
      %v3823 = vpop.f32.mrb[0].mxu0
      %v3824 = vadd.f32 0.0, %v3823
      %v3825 = vpop.f32.mrb[0].mxu0
      %3826 = vmatprep.mubr.f32.mxu0 0.0
      %3827 = vmatmul.mubr.f32.gmra.mrb[0].mxu0 %v3624
      %v3828 = vpop.f32.mrb[0].mxu0
      %v3829 = vadd.f32 0.0, %v3828
      %v3830 = vpop.f32.mrb[0].mxu0
      %3831 = vmatprep.mubr.f32.mxu0 0.0
      %3832 = vmatmul.mubr.f32.gmra.mrb[0].mxu0 %v3627
      %v3833 = vpop.f32.mrb[0].mxu0
      %v3834 = vadd.f32 0.0, %v3833
      %v3835 = vpop.f32.mrb[0].mxu0
      %3836 = vmatprep.mubr.f32.mxu0 0.0
      %3837 = vmatmul.mubr.f32.gmra.mrb[0].mxu0 %v3630
      %v3838 = vpop.f32.mrb[0].mxu0
      %v3839 = vadd.f32 0.0, %v3838
      %v3840 = vpop.f32.mrb[0].mxu0
      %3841 = vmatprep.mubr.f32.mxu0 0.0
      %3842 = vmatmul.mubr.f32.gmra.mrb[0].mxu0 %v3633
      %v3843 = vpop.f32.mrb[0].mxu0
      %v3844 = vadd.f32 0.0, %v3843
      %v3845 = vpop.f32.mrb[0].mxu0
      %3846 = vmatprep.mubr.f32.mxu0 0.0
      %3847 = vmatmul.mubr.f32.gmra.mrb[0].mxu0 %v3636
      %v3848 = vpop.f32.mrb[0].mxu0
      %v3849 = vadd.f32 0.0, %v3848
      %v3850 = vpop.f32.mrb[0].mxu0
      %3851 = vmatprep.mubr.f32.mxu0 0.0
      %3852 = vmatmul.mubr.f32.gmra.mrb[0].mxu0 %v3639
      %v3853 = vpop.f32.mrb[0].mxu0
      %v3854 = vadd.f32 0.0, %v3853
      %v3855 = vpop.f32.mrb[0].mxu0
      %3856 = vmatprep.mubr.f32.mxu0 0.0
      %3857 = vmatmul.mubr.f32.gmra.mrb[0].mxu0 %v3642
      %v3858 = vpop.f32.mrb[0].mxu0
      %v3859 = vadd.f32 0.0, %v3858
      %v3860 = vpop.f32.mrb[0].mxu0
      %3861 = vmatprep.mubr.f32.mxu0 0.0
      %3862 = vmatmul.mubr.f32.gmra.mrb[0].mxu0 %v3645
      %v3863 = vpop.f32.mrb[0].mxu0
      %v3864 = vadd.f32 0.0, %v3863
      %v3865 = vpop.f32.mrb[0].mxu0
      %3866 = vmatprep.mubr.f32.mxu0 0.0
      %3867 = vmatmul.mubr.f32.gmra.mrb[0].mxu0 %v3648
      %v3868 = vpop.f32.mrb[0].mxu0
      %v3869 = vadd.f32 0.0, %v3868
      %v3870 = vpop.f32.mrb[0].mxu0
      %3871 = vmatprep.mubr.f32.mxu0 0.0
      %3872 = vmatmul.mubr.f32.gmra.mrb[0].mxu0 %v3651
      %v3873 = vpop.f32.mrb[0].mxu0
      %v3874 = vadd.f32 0.0, %v3873
      %v3875 = vpop.f32.mrb[0].mxu0
      %3876 = vmatprep.mubr.f32.mxu0 0.0
      %3877 = vmatmul.mubr.f32.gmra.mrb[0].mxu0 %v3654
      %v3878 = vpop.f32.mrb[0].mxu0
      %v3879 = vadd.f32 0.0, %v3878
      %v3880 = vpop.f32.mrb[0].mxu0
      %3881 = vmatprep.mubr.f32.mxu0 0.0
      %3882 = vmatmul.mubr.f32.gmra.mrb[0].mxu0 %v3657
      %v3883 = vpop.f32.mrb[0].mxu0
      %v3884 = vadd.f32 0.0, %v3883
      %v3885 = vpop.f32.mrb[0].mxu0
      %3886 = vdwg.mxu0
      %v3887 = vadd.f32 %v3497, %v3729
      %v3888 = vadd.f32 %v3498, %v3734
      %v3889 = vadd.f32 %v3499, %v3739
      %v3890 = vadd.f32 %v3500, %v3744
      %v3891 = vadd.f32 %v3501, %v3749
      %v3892 = vadd.f32 %v3502, %v3754
      %v3893 = vadd.f32 %v3503, %v3759
      %v3894 = vadd.f32 %v3504, %v3764
      %v3895 = vadd.f32 %v3505, %v3769
      %v3896 = vadd.f32 %v3506, %v3774
      %v3897 = vadd.f32 %v3507, %v3779
      %v3898 = vadd.f32 %v3508, %v3784
      %v3899 = vadd.f32 %v3509, %v3789
      %v3900 = vadd.f32 %v3510, %v3794
      %v3901 = vadd.f32 %v3511, %v3799
      %v3902 = vadd.f32 %v3512, %v3804
      %v3903 = vadd.f32 %v3513, %v3809
      %v3904 = vadd.f32 %v3514, %v3814
      %v3905 = vadd.f32 %v3515, %v3819
      %v3906 = vadd.f32 %v3516, %v3824
      %v3907 = vadd.f32 %v3517, %v3829
      %v3908 = vadd.f32 %v3518, %v3834
      %v3909 = vadd.f32 %v3519, %v3839
      %v3910 = vadd.f32 %v3520, %v3844
      %v3911 = vadd.f32 %v3521, %v3849
      %v3912 = vadd.f32 %v3522, %v3854
      %v3913 = vadd.f32 %v3523, %v3859
      %v3914 = vadd.f32 %v3524, %v3864
      %v3915 = vadd.f32 %v3525, %v3869
      %v3916 = vadd.f32 %v3526, %v3874
      %v3917 = vadd.f32 %v3527, %v3879
      %v3918 = vadd.f32 %v3528, %v3884
      %v3919 = vld [vmem:[%s2] sm:$0x1]
      %v3921 = vlaneseq
      %v3922 = vshrl.u32 %v3921, 7
      %v3923 = vsub.s32 0, %v3922
      %v3924 = vrot.slane %v3919, %v3923
      %v3926 = vadd.f32 %v3887, %v3924
      %v3927 = vadd.f32 %v3888, %v3924
      %v3928 = vadd.f32 %v3889, %v3924
      %v3929 = vadd.f32 %v3890, %v3924
      %v3930 = vadd.f32 %v3891, %v3924
      %v3931 = vadd.f32 %v3892, %v3924
      %v3932 = vadd.f32 %v3893, %v3924
      %v3933 = vadd.f32 %v3894, %v3924
      %v3934 = vadd.f32 %v3895, %v3924
      %v3935 = vadd.f32 %v3896, %v3924
      %v3936 = vadd.f32 %v3897, %v3924
      %v3937 = vadd.f32 %v3898, %v3924
      %v3938 = vadd.f32 %v3899, %v3924
      %v3939 = vadd.f32 %v3900, %v3924
      %v3940 = vadd.f32 %v3901, %v3924
      %v3941 = vadd.f32 %v3902, %v3924
      %v3942 = vadd.f32 %v3903, %v3924
      %v3943 = vadd.f32 %v3904, %v3924
      %v3944 = vadd.f32 %v3905, %v3924
      %v3945 = vadd.f32 %v3906, %v3924
      %v3946 = vadd.f32 %v3907, %v3924
      %v3947 = vadd.f32 %v3908, %v3924
      %v3948 = vadd.f32 %v3909, %v3924
      %v3949 = vadd.f32 %v3910, %v3924
      %v3950 = vadd.f32 %v3911, %v3924
      %v3951 = vadd.f32 %v3912, %v3924
      %v3952 = vadd.f32 %v3913, %v3924
      %v3953 = vadd.f32 %v3914, %v3924
      %v3954 = vadd.f32 %v3915, %v3924
      %v3955 = vadd.f32 %v3916, %v3924
      %v3956 = vadd.f32 %v3917, %v3924
      %v3957 = vadd.f32 %v3918, %v3924
      %v3958 = vmax.f32 %v3926, 0.0
      %v3959 = vmax.f32 %v3927, 0.0
      %v3960 = vmax.f32 %v3928, 0.0
      %v3961 = vmax.f32 %v3929, 0.0
      %v3962 = vmax.f32 %v3930, 0.0
      %v3963 = vmax.f32 %v3931, 0.0
      %v3964 = vmax.f32 %v3932, 0.0
      %v3965 = vmax.f32 %v3933, 0.0
      %v3966 = vmax.f32 %v3934, 0.0
      %v3967 = vmax.f32 %v3935, 0.0
      %v3968 = vmax.f32 %v3936, 0.0
      %v3969 = vmax.f32 %v3937, 0.0
      %v3970 = vmax.f32 %v3938, 0.0
      %v3971 = vmax.f32 %v3939, 0.0
      %v3972 = vmax.f32 %v3940, 0.0
      %v3973 = vmax.f32 %v3941, 0.0
      %v3974 = vmax.f32 %v3942, 0.0
      %v3975 = vmax.f32 %v3943, 0.0
      %v3976 = vmax.f32 %v3944, 0.0
      %v3977 = vmax.f32 %v3945, 0.0
      %v3978 = vmax.f32 %v3946, 0.0
      %v3979 = vmax.f32 %v3947, 0.0
      %v3980 = vmax.f32 %v3948, 0.0
      %v3981 = vmax.f32 %v3949, 0.0
      %v3982 = vmax.f32 %v3950, 0.0
      %v3983 = vmax.f32 %v3951, 0.0
      %v3984 = vmax.f32 %v3952, 0.0
      %v3985 = vmax.f32 %v3953, 0.0
      %v3986 = vmax.f32 %v3954, 0.0
      %v3987 = vmax.f32 %v3955, 0.0
      %v3988 = vmax.f32 %v3956, 0.0
      %v3989 = vmax.f32 %v3957, 0.0
      %v3990 = vmax.f32 %v3958, %v3960
      %v3991 = vmax.f32 %v3959, %v3961
      %v3992 = vmax.f32 %v3962, %v3964
      %v3993 = vmax.f32 %v3963, %v3965
      %v3994 = vmax.f32 %v3966, %v3968
      %v3995 = vmax.f32 %v3967, %v3969
      %v3996 = vmax.f32 %v3970, %v3972
      %v3997 = vmax.f32 %v3971, %v3973
      %v3998 = vmax.f32 %v3974, %v3976
      %v3999 = vmax.f32 %v3975, %v3977
      %v4000 = vmax.f32 %v3978, %v3980
      %v4001 = vmax.f32 %v3979, %v3981
      %v4002 = vmax.f32 %v3982, %v3984
      %v4003 = vmax.f32 %v3983, %v3985
      %v4004 = vmax.f32 %v3986, %v3988
      %v4005 = vmax.f32 %v3987, %v3989
      %v4022 = vcombine.high %v3990, %v3990
      %v4024 = vunpack.c.l.s4 1983009808
      %v4025 = vunpack.c.0.s8 %v4024
      %v4026 = vlaneseq
      %v4027 = vshrl.u32 %v4026, 7
      %v4028 = vsub.s32 %v4025, %v4027
      %v4029 = vrot.slane %v3990, %v4028
      %v4031 = vunpack.c.l.s4 1983009808
      %v4032 = vunpack.c.0.s8 %v4031
      %v4033 = vlaneseq
      %v4034 = vshrl.u32 %v4033, 7
      %v4035 = vsub.s32 %v4032, %v4034
      %v4036 = vrot.slane %v4022, %v4035
      %v4037 = vcombine.high %v4029, %v4029
      %v4038 = vcombine.high %v4036, %v4036
      %v4039 = vcombine.high %v3991, %v3991
      %v4041 = vunpack.c.l.s4 1983009808
      %v4042 = vunpack.c.0.s8 %v4041
      %v4043 = vlaneseq
      %v4044 = vshrl.u32 %v4043, 7
      %v4045 = vsub.s32 %v4042, %v4044
      %v4046 = vrot.slane %v3991, %v4045
      %v4048 = vunpack.c.l.s4 1983009808
      %v4049 = vunpack.c.0.s8 %v4048
      %v4050 = vlaneseq
      %v4051 = vshrl.u32 %v4050, 7
      %v4052 = vsub.s32 %v4049, %v4051
      %v4053 = vrot.slane %v4039, %v4052
      %v4054 = vcombine.high %v4046, %v4046
      %v4055 = vcombine.high %v4053, %v4053
      %v4056 = vcombine.high %v3992, %v3992
      %v4058 = vunpack.c.l.s4 1983009808
      %v4059 = vunpack.c.0.s8 %v4058
      %v4060 = vlaneseq
      %v4061 = vshrl.u32 %v4060, 7
      %v4062 = vsub.s32 %v4059, %v4061
      %v4063 = vrot.slane %v3992, %v4062
      %v4065 = vunpack.c.l.s4 1983009808
      %v4066 = vunpack.c.0.s8 %v4065
      %v4067 = vlaneseq
      %v4068 = vshrl.u32 %v4067, 7
      %v4069 = vsub.s32 %v4066, %v4068
      %v4070 = vrot.slane %v4056, %v4069
      %v4071 = vcombine.high %v4063, %v4063
      %v4072 = vcombine.high %v4070, %v4070
      %v4073 = vcombine.high %v3993, %v3993
      %v4075 = vunpack.c.l.s4 1983009808
      %v4076 = vunpack.c.0.s8 %v4075
      %v4077 = vlaneseq
      %v4078 = vshrl.u32 %v4077, 7
      %v4079 = vsub.s32 %v4076, %v4078
      %v4080 = vrot.slane %v3993, %v4079
      %v4082 = vunpack.c.l.s4 1983009808
      %v4083 = vunpack.c.0.s8 %v4082
      %v4084 = vlaneseq
      %v4085 = vshrl.u32 %v4084, 7
      %v4086 = vsub.s32 %v4083, %v4085
      %v4087 = vrot.slane %v4073, %v4086
      %v4088 = vcombine.high %v4080, %v4080
      %v4089 = vcombine.high %v4087, %v4087
      %v4090 = vcombine.high %v3994, %v3994
      %v4092 = vunpack.c.l.s4 1983009808
      %v4093 = vunpack.c.0.s8 %v4092
      %v4094 = vlaneseq
      %v4095 = vshrl.u32 %v4094, 7
      %v4096 = vsub.s32 %v4093, %v4095
      %v4097 = vrot.slane %v3994, %v4096
      %v4099 = vunpack.c.l.s4 1983009808
      %v4100 = vunpack.c.0.s8 %v4099
      %v4101 = vlaneseq
      %v4102 = vshrl.u32 %v4101, 7
      %v4103 = vsub.s32 %v4100, %v4102
      %v4104 = vrot.slane %v4090, %v4103
      %v4105 = vcombine.high %v4097, %v4097
      %v4106 = vcombine.high %v4104, %v4104
      %v4107 = vcombine.high %v3995, %v3995
      %v4109 = vunpack.c.l.s4 1983009808
      %v4110 = vunpack.c.0.s8 %v4109
      %v4111 = vlaneseq
      %v4112 = vshrl.u32 %v4111, 7
      %v4113 = vsub.s32 %v4110, %v4112
      %v4114 = vrot.slane %v3995, %v4113
      %v4116 = vunpack.c.l.s4 1983009808
      %v4117 = vunpack.c.0.s8 %v4116
      %v4118 = vlaneseq
      %v4119 = vshrl.u32 %v4118, 7
      %v4120 = vsub.s32 %v4117, %v4119
      %v4121 = vrot.slane %v4107, %v4120
      %v4122 = vcombine.high %v4114, %v4114
      %v4123 = vcombine.high %v4121, %v4121
      %v4124 = vcombine.high %v3996, %v3996
      %v4126 = vunpack.c.l.s4 1983009808
      %v4127 = vunpack.c.0.s8 %v4126
      %v4128 = vlaneseq
      %v4129 = vshrl.u32 %v4128, 7
      %v4130 = vsub.s32 %v4127, %v4129
      %v4131 = vrot.slane %v3996, %v4130
      %v4133 = vunpack.c.l.s4 1983009808
      %v4134 = vunpack.c.0.s8 %v4133
      %v4135 = vlaneseq
      %v4136 = vshrl.u32 %v4135, 7
      %v4137 = vsub.s32 %v4134, %v4136
      %v4138 = vrot.slane %v4124, %v4137
      %v4139 = vcombine.high %v4131, %v4131
      %v4140 = vcombine.high %v4138, %v4138
      %v4141 = vcombine.high %v3997, %v3997
      %v4143 = vunpack.c.l.s4 1983009808
      %v4144 = vunpack.c.0.s8 %v4143
      %v4145 = vlaneseq
      %v4146 = vshrl.u32 %v4145, 7
      %v4147 = vsub.s32 %v4144, %v4146
      %v4148 = vrot.slane %v3997, %v4147
      %v4150 = vunpack.c.l.s4 1983009808
      %v4151 = vunpack.c.0.s8 %v4150
      %v4152 = vlaneseq
      %v4153 = vshrl.u32 %v4152, 7
      %v4154 = vsub.s32 %v4151, %v4153
      %v4155 = vrot.slane %v4141, %v4154
      %v4156 = vcombine.high %v4148, %v4148
      %v4157 = vcombine.high %v4155, %v4155
      %v4158 = vcombine.high %v3998, %v3998
      %v4160 = vunpack.c.l.s4 1983009808
      %v4161 = vunpack.c.0.s8 %v4160
      %v4162 = vlaneseq
      %v4163 = vshrl.u32 %v4162, 7
      %v4164 = vsub.s32 %v4161, %v4163
      %v4165 = vrot.slane %v3998, %v4164
      %v4167 = vunpack.c.l.s4 1983009808
      %v4168 = vunpack.c.0.s8 %v4167
      %v4169 = vlaneseq
      %v4170 = vshrl.u32 %v4169, 7
      %v4171 = vsub.s32 %v4168, %v4170
      %v4172 = vrot.slane %v4158, %v4171
      %v4173 = vcombine.high %v4165, %v4165
      %v4174 = vcombine.high %v4172, %v4172
      %v4175 = vcombine.high %v3999, %v3999
      %v4177 = vunpack.c.l.s4 1983009808
      %v4178 = vunpack.c.0.s8 %v4177
      %v4179 = vlaneseq
      %v4180 = vshrl.u32 %v4179, 7
      %v4181 = vsub.s32 %v4178, %v4180
      %v4182 = vrot.slane %v3999, %v4181
      %v4184 = vunpack.c.l.s4 1983009808
      %v4185 = vunpack.c.0.s8 %v4184
      %v4186 = vlaneseq
      %v4187 = vshrl.u32 %v4186, 7
      %v4188 = vsub.s32 %v4185, %v4187
      %v4189 = vrot.slane %v4175, %v4188
      %v4190 = vcombine.high %v4182, %v4182
      %v4191 = vcombine.high %v4189, %v4189
      %v4192 = vcombine.high %v4000, %v4000
      %v4194 = vunpack.c.l.s4 1983009808
      %v4195 = vunpack.c.0.s8 %v4194
      %v4196 = vlaneseq
      %v4197 = vshrl.u32 %v4196, 7
      %v4198 = vsub.s32 %v4195, %v4197
      %v4199 = vrot.slane %v4000, %v4198
      %v4201 = vunpack.c.l.s4 1983009808
      %v4202 = vunpack.c.0.s8 %v4201
      %v4203 = vlaneseq
      %v4204 = vshrl.u32 %v4203, 7
      %v4205 = vsub.s32 %v4202, %v4204
      %v4206 = vrot.slane %v4192, %v4205
      %v4207 = vcombine.high %v4199, %v4199
      %v4208 = vcombine.high %v4206, %v4206
      %v4209 = vcombine.high %v4001, %v4001
      %v4211 = vunpack.c.l.s4 1983009808
      %v4212 = vunpack.c.0.s8 %v4211
      %v4213 = vlaneseq
      %v4214 = vshrl.u32 %v4213, 7
      %v4215 = vsub.s32 %v4212, %v4214
      %v4216 = vrot.slane %v4001, %v4215
      %v4218 = vunpack.c.l.s4 1983009808
      %v4219 = vunpack.c.0.s8 %v4218
      %v4220 = vlaneseq
      %v4221 = vshrl.u32 %v4220, 7
      %v4222 = vsub.s32 %v4219, %v4221
      %v4223 = vrot.slane %v4209, %v4222
      %v4224 = vcombine.high %v4216, %v4216
      %v4225 = vcombine.high %v4223, %v4223
      %v4226 = vcombine.high %v4002, %v4002
      %v4228 = vunpack.c.l.s4 1983009808
      %v4229 = vunpack.c.0.s8 %v4228
      %v4230 = vlaneseq
      %v4231 = vshrl.u32 %v4230, 7
      %v4232 = vsub.s32 %v4229, %v4231
      %v4233 = vrot.slane %v4002, %v4232
      %v4235 = vunpack.c.l.s4 1983009808
      %v4236 = vunpack.c.0.s8 %v4235
      %v4237 = vlaneseq
      %v4238 = vshrl.u32 %v4237, 7
      %v4239 = vsub.s32 %v4236, %v4238
      %v4240 = vrot.slane %v4226, %v4239
      %v4241 = vcombine.high %v4233, %v4233
      %v4242 = vcombine.high %v4240, %v4240
      %v4243 = vcombine.high %v4003, %v4003
      %v4245 = vunpack.c.l.s4 1983009808
      %v4246 = vunpack.c.0.s8 %v4245
      %v4247 = vlaneseq
      %v4248 = vshrl.u32 %v4247, 7
      %v4249 = vsub.s32 %v4246, %v4248
      %v4250 = vrot.slane %v4003, %v4249
      %v4252 = vunpack.c.l.s4 1983009808
      %v4253 = vunpack.c.0.s8 %v4252
      %v4254 = vlaneseq
      %v4255 = vshrl.u32 %v4254, 7
      %v4256 = vsub.s32 %v4253, %v4255
      %v4257 = vrot.slane %v4243, %v4256
      %v4258 = vcombine.high %v4250, %v4250
      %v4259 = vcombine.high %v4257, %v4257
      %v4260 = vcombine.high %v4004, %v4004
      %v4262 = vunpack.c.l.s4 1983009808
      %v4263 = vunpack.c.0.s8 %v4262
      %v4264 = vlaneseq
      %v4265 = vshrl.u32 %v4264, 7
      %v4266 = vsub.s32 %v4263, %v4265
      %v4267 = vrot.slane %v4004, %v4266
      %v4269 = vunpack.c.l.s4 1983009808
      %v4270 = vunpack.c.0.s8 %v4269
      %v4271 = vlaneseq
      %v4272 = vshrl.u32 %v4271, 7
      %v4273 = vsub.s32 %v4270, %v4272
      %v4274 = vrot.slane %v4260, %v4273
      %v4275 = vcombine.high %v4267, %v4267
      %v4276 = vcombine.high %v4274, %v4274
      %v4277 = vcombine.high %v4005, %v4005
      %v4279 = vunpack.c.l.s4 1983009808
      %v4280 = vunpack.c.0.s8 %v4279
      %v4281 = vlaneseq
      %v4282 = vshrl.u32 %v4281, 7
      %v4283 = vsub.s32 %v4280, %v4282
      %v4284 = vrot.slane %v4005, %v4283
      %v4286 = vunpack.c.l.s4 1983009808
      %v4287 = vunpack.c.0.s8 %v4286
      %v4288 = vlaneseq
      %v4289 = vshrl.u32 %v4288, 7
      %v4290 = vsub.s32 %v4287, %v4289
      %v4291 = vrot.slane %v4277, %v4290
      %v4292 = vcombine.high %v4284, %v4284
      %v4293 = vcombine.high %v4291, %v4291
      %v4358 = vrot.slane %v4029, 7
      %v4359 = vrot.slane %v4358, 2
      %v4360 = vrot.slane %v4037, 7
      %v4361 = vrot.slane %v4360, 2
      %v4362 = vrot.slane %v4036, 7
      %v4363 = vrot.slane %v4362, 2
      %v4364 = vrot.slane %v4038, 7
      %v4365 = vrot.slane %v4364, 2
      %v4366 = vrot.slane %v4046, 7
      %v4367 = vrot.slane %v4366, 2
      %v4368 = vrot.slane %v4054, 7
      %v4369 = vrot.slane %v4368, 2
      %v4370 = vrot.slane %v4053, 7
      %v4371 = vrot.slane %v4370, 2
      %v4372 = vrot.slane %v4055, 7
      %v4373 = vrot.slane %v4372, 2
      %v4374 = vrot.slane %v4063, 7
      %v4375 = vrot.slane %v4374, 2
      %v4376 = vrot.slane %v4071, 7
      %v4377 = vrot.slane %v4376, 2
      %v4378 = vrot.slane %v4070, 7
      %v4379 = vrot.slane %v4378, 2
      %v4380 = vrot.slane %v4072, 7
      %v4381 = vrot.slane %v4380, 2
      %v4382 = vrot.slane %v4080, 7
      %v4383 = vrot.slane %v4382, 2
      %v4384 = vrot.slane %v4088, 7
      %v4385 = vrot.slane %v4384, 2
      %v4386 = vrot.slane %v4087, 7
      %v4387 = vrot.slane %v4386, 2
      %v4388 = vrot.slane %v4089, 7
      %v4389 = vrot.slane %v4388, 2
      %v4390 = vrot.slane %v4097, 7
      %v4391 = vrot.slane %v4390, 2
      %v4392 = vrot.slane %v4105, 7
      %v4393 = vrot.slane %v4392, 2
      %v4394 = vrot.slane %v4104, 7
      %v4395 = vrot.slane %v4394, 2
      %v4396 = vrot.slane %v4106, 7
      %v4397 = vrot.slane %v4396, 2
      %v4398 = vrot.slane %v4114, 7
      %v4399 = vrot.slane %v4398, 2
      %v4400 = vrot.slane %v4122, 7
      %v4401 = vrot.slane %v4400, 2
      %v4402 = vrot.slane %v4121, 7
      %v4403 = vrot.slane %v4402, 2
      %v4404 = vrot.slane %v4123, 7
      %v4405 = vrot.slane %v4404, 2
      %v4406 = vrot.slane %v4131, 7
      %v4407 = vrot.slane %v4406, 2
      %v4408 = vrot.slane %v4139, 7
      %v4409 = vrot.slane %v4408, 2
      %v4410 = vrot.slane %v4138, 7
      %v4411 = vrot.slane %v4410, 2
      %v4412 = vrot.slane %v4140, 7
      %v4413 = vrot.slane %v4412, 2
      %v4414 = vrot.slane %v4148, 7
      %v4415 = vrot.slane %v4414, 2
      %v4416 = vrot.slane %v4156, 7
      %v4417 = vrot.slane %v4416, 2
      %v4418 = vrot.slane %v4155, 7
      %v4419 = vrot.slane %v4418, 2
      %v4420 = vrot.slane %v4157, 7
      %v4421 = vrot.slane %v4420, 2
      %v4422 = vrot.slane %v4165, 7
      %v4423 = vrot.slane %v4422, 2
      %v4424 = vrot.slane %v4173, 7
      %v4425 = vrot.slane %v4424, 2
      %v4426 = vrot.slane %v4172, 7
      %v4427 = vrot.slane %v4426, 2
      %v4428 = vrot.slane %v4174, 7
      %v4429 = vrot.slane %v4428, 2
      %v4430 = vrot.slane %v4182, 7
      %v4431 = vrot.slane %v4430, 2
      %v4432 = vrot.slane %v4190, 7
      %v4433 = vrot.slane %v4432, 2
      %v4434 = vrot.slane %v4189, 7
      %v4435 = vrot.slane %v4434, 2
      %v4436 = vrot.slane %v4191, 7
      %v4437 = vrot.slane %v4436, 2
      %v4438 = vrot.slane %v4199, 7
      %v4439 = vrot.slane %v4438, 2
      %v4440 = vrot.slane %v4207, 7
      %v4441 = vrot.slane %v4440, 2
      %v4442 = vrot.slane %v4206, 7
      %v4443 = vrot.slane %v4442, 2
      %v4444 = vrot.slane %v4208, 7
      %v4445 = vrot.slane %v4444, 2
      %v4446 = vrot.slane %v4216, 7
      %v4447 = vrot.slane %v4446, 2
      %v4448 = vrot.slane %v4224, 7
      %v4449 = vrot.slane %v4448, 2
      %v4450 = vrot.slane %v4223, 7
      %v4451 = vrot.slane %v4450, 2
      %v4452 = vrot.slane %v4225, 7
      %v4453 = vrot.slane %v4452, 2
      %v4454 = vrot.slane %v4233, 7
      %v4455 = vrot.slane %v4454, 2
      %v4456 = vrot.slane %v4241, 7
      %v4457 = vrot.slane %v4456, 2
      %v4458 = vrot.slane %v4240, 7
      %v4459 = vrot.slane %v4458, 2
      %v4460 = vrot.slane %v4242, 7
      %v4461 = vrot.slane %v4460, 2
      %v4462 = vrot.slane %v4250, 7
      %v4463 = vrot.slane %v4462, 2
      %v4464 = vrot.slane %v4258, 7
      %v4465 = vrot.slane %v4464, 2
      %v4466 = vrot.slane %v4257, 7
      %v4467 = vrot.slane %v4466, 2
      %v4468 = vrot.slane %v4259, 7
      %v4469 = vrot.slane %v4468, 2
      %v4470 = vrot.slane %v4267, 7
      %v4471 = vrot.slane %v4470, 2
      %v4472 = vrot.slane %v4275, 7
      %v4473 = vrot.slane %v4472, 2
      %v4474 = vrot.slane %v4274, 7
      %v4475 = vrot.slane %v4474, 2
      %v4476 = vrot.slane %v4276, 7
      %v4477 = vrot.slane %v4476, 2
      %v4478 = vrot.slane %v4284, 7
      %v4479 = vrot.slane %v4478, 2
      %v4480 = vrot.slane %v4292, 7
      %v4481 = vrot.slane %v4480, 2
      %v4482 = vrot.slane %v4291, 7
      %v4483 = vrot.slane %v4482, 2
      %v4484 = vrot.slane %v4293, 7
      %v4485 = vrot.slane %v4484, 2
      %v4550 = vmax.f32 %v4029, %v4359
      %v4551 = vmax.f32 %v4037, %v4361
      %v4552 = vmax.f32 %v4036, %v4363
      %v4553 = vmax.f32 %v4038, %v4365
      %v4554 = vmax.f32 %v4046, %v4367
      %v4555 = vmax.f32 %v4054, %v4369
      %v4556 = vmax.f32 %v4053, %v4371
      %v4557 = vmax.f32 %v4055, %v4373
      %v4558 = vmax.f32 %v4063, %v4375
      %v4559 = vmax.f32 %v4071, %v4377
      %v4560 = vmax.f32 %v4070, %v4379
      %v4561 = vmax.f32 %v4072, %v4381
      %v4562 = vmax.f32 %v4080, %v4383
      %v4563 = vmax.f32 %v4088, %v4385
      %v4564 = vmax.f32 %v4087, %v4387
      %v4565 = vmax.f32 %v4089, %v4389
      %v4566 = vmax.f32 %v4097, %v4391
      %v4567 = vmax.f32 %v4105, %v4393
      %v4568 = vmax.f32 %v4104, %v4395
      %v4569 = vmax.f32 %v4106, %v4397
      %v4570 = vmax.f32 %v4114, %v4399
      %v4571 = vmax.f32 %v4122, %v4401
      %v4572 = vmax.f32 %v4121, %v4403
      %v4573 = vmax.f32 %v4123, %v4405
      %v4574 = vmax.f32 %v4131, %v4407
      %v4575 = vmax.f32 %v4139, %v4409
      %v4576 = vmax.f32 %v4138, %v4411
      %v4577 = vmax.f32 %v4140, %v4413
      %v4578 = vmax.f32 %v4148, %v4415
      %v4579 = vmax.f32 %v4156, %v4417
      %v4580 = vmax.f32 %v4155, %v4419
      %v4581 = vmax.f32 %v4157, %v4421
      %v4582 = vmax.f32 %v4165, %v4423
      %v4583 = vmax.f32 %v4173, %v4425
      %v4584 = vmax.f32 %v4172, %v4427
      %v4585 = vmax.f32 %v4174, %v4429
      %v4586 = vmax.f32 %v4182, %v4431
      %v4587 = vmax.f32 %v4190, %v4433
      %v4588 = vmax.f32 %v4189, %v4435
      %v4589 = vmax.f32 %v4191, %v4437
      %v4590 = vmax.f32 %v4199, %v4439
      %v4591 = vmax.f32 %v4207, %v4441
      %v4592 = vmax.f32 %v4206, %v4443
      %v4593 = vmax.f32 %v4208, %v4445
      %v4594 = vmax.f32 %v4216, %v4447
      %v4595 = vmax.f32 %v4224, %v4449
      %v4596 = vmax.f32 %v4223, %v4451
      %v4597 = vmax.f32 %v4225, %v4453
      %v4598 = vmax.f32 %v4233, %v4455
      %v4599 = vmax.f32 %v4241, %v4457
      %v4600 = vmax.f32 %v4240, %v4459
      %v4601 = vmax.f32 %v4242, %v4461
      %v4602 = vmax.f32 %v4250, %v4463
      %v4603 = vmax.f32 %v4258, %v4465
      %v4604 = vmax.f32 %v4257, %v4467
      %v4605 = vmax.f32 %v4259, %v4469
      %v4606 = vmax.f32 %v4267, %v4471
      %v4607 = vmax.f32 %v4275, %v4473
      %v4608 = vmax.f32 %v4274, %v4475
      %v4609 = vmax.f32 %v4276, %v4477
      %v4610 = vmax.f32 %v4284, %v4479
      %v4611 = vmax.f32 %v4292, %v4481
      %v4612 = vmax.f32 %v4291, %v4483
      %v4613 = vmax.f32 %v4293, %v4485
      %vm4614 = vcmask 261120
      %4615 = vst.msk [vmem:[#allocation3] sm:$0xff] %vm4614, 0.0
      %4616 = vst.msk [vmem:[#allocation3 + $0x8] sm:$0xff] %vm4614, 0.0
      %vm4617 = vcmask 253952
      %4618 = vst.msk [vmem:[#allocation3 + $0x10] sm:$0x1] %vm4617, 0.0
      %4619 = vst.msk [vmem:[#allocation3 + $0x18] sm:$0xff] %vm4614, 0.0
      %4620 = vst.msk [vmem:[#allocation3 + $0x20] sm:$0xff] %vm4614, 0.0
      %4621 = vst.msk [vmem:[#allocation3 + $0x28] sm:$0x1] %vm4617, 0.0
      %4622 = vst.msk [vmem:[#allocation3 + $0x30] sm:$0xff] %vm4614, 0.0
      %4623 = vst.msk [vmem:[#allocation3 + $0x38] sm:$0xff] %vm4614, 0.0
      %4624 = vst.msk [vmem:[#allocation3 + $0x40] sm:$0x1] %vm4617, 0.0
      %4625 = vst.msk [vmem:[#allocation3 + $0x48] sm:$0xff] %vm4614, 0.0
      %4626 = vst.msk [vmem:[#allocation3 + $0x50] sm:$0xff] %vm4614, 0.0
      %4627 = vst.msk [vmem:[#allocation3 + $0x58] sm:$0x1] %vm4617, 0.0
      %4628 = vst.msk [vmem:[#allocation3 + $0x60] sm:$0xff] %vm4614, 0.0
      %4629 = vst.msk [vmem:[#allocation3 + $0x68] sm:$0xff] %vm4614, 0.0
      %4630 = vst.msk [vmem:[#allocation3 + $0x70] sm:$0x1] %vm4617, 0.0
      %4631 = vst.msk [vmem:[#allocation3 + $0x78] sm:$0xff] %vm4614, 0.0
      %4632 = vst.msk [vmem:[#allocation3 + $0x80] sm:$0xff] %vm4614, 0.0
      %4633 = vst.msk [vmem:[#allocation3 + $0x88] sm:$0x1] %vm4617, 0.0
      %4634 = vst.msk [vmem:[#allocation3 + $0x90] sm:$0xff] %vm4614, 0.0
      %4635 = vst.msk [vmem:[#allocation3 + $0x98] sm:$0xff] %vm4614, 0.0
      %4636 = vst.msk [vmem:[#allocation3 + $0xa0] sm:$0x1] %vm4617, 0.0
      %4637 = vst.msk [vmem:[#allocation3 + $0xa8] sm:$0xff] %vm4614, 0.0
      %4638 = vst.msk [vmem:[#allocation3 + $0xb0] sm:$0xff] %vm4614, 0.0
      %4639 = vst.msk [vmem:[#allocation3 + $0xb8] sm:$0x1] %vm4617, 0.0
      %4640 = vst.msk [vmem:[#allocation3 + $0xc0] sm:$0xff] %vm4614, 0.0
      %4641 = vst.msk [vmem:[#allocation3 + $0xc8] sm:$0xff] %vm4614, 0.0
      %4642 = vst.msk [vmem:[#allocation3 + $0xd0] sm:$0x1] %vm4617, 0.0
      %4643 = vst.msk [vmem:[#allocation3 + $0xd8] sm:$0xff] %vm4614, 0.0
      %4644 = vst.msk [vmem:[#allocation3 + $0xe0] sm:$0xff] %vm4614, 0.0
      %4645 = vst.msk [vmem:[#allocation3 + $0xe8] sm:$0x1] %vm4617, 0.0
      %v4710 = vlaneseq
      %v4711 = vshrl.u32 %v4710, 7
      %v4712 = vsub.s32 0, %v4711
      %v4713 = vrot.slane %v4550, %v4712
      %v4714 = vlaneseq
      %v4715 = vshrl.u32 %v4714, 7
      %v4716 = vsub.s32 0, %v4715
      %v4717 = vrot.slane %v4551, %v4716
      %v4718 = vlaneseq
      %v4719 = vshrl.u32 %v4718, 7
      %v4720 = vsub.s32 0, %v4719
      %v4721 = vrot.slane %v4552, %v4720
      %v4722 = vlaneseq
      %v4723 = vshrl.u32 %v4722, 7
      %v4724 = vsub.s32 0, %v4723
      %v4725 = vrot.slane %v4553, %v4724
      %v4726 = vlaneseq
      %v4727 = vshrl.u32 %v4726, 7
      %v4728 = vsub.s32 0, %v4727
      %v4729 = vrot.slane %v4554, %v4728
      %v4730 = vlaneseq
      %v4731 = vshrl.u32 %v4730, 7
      %v4732 = vsub.s32 0, %v4731
      %v4733 = vrot.slane %v4555, %v4732
      %v4734 = vlaneseq
      %v4735 = vshrl.u32 %v4734, 7
      %v4736 = vsub.s32 0, %v4735
      %v4737 = vrot.slane %v4556, %v4736
      %v4738 = vlaneseq
      %v4739 = vshrl.u32 %v4738, 7
      %v4740 = vsub.s32 0, %v4739
      %v4741 = vrot.slane %v4557, %v4740
      %v4742 = vlaneseq
      %v4743 = vshrl.u32 %v4742, 7
      %v4744 = vsub.s32 0, %v4743
      %v4745 = vrot.slane %v4558, %v4744
      %v4746 = vlaneseq
      %v4747 = vshrl.u32 %v4746, 7
      %v4748 = vsub.s32 0, %v4747
      %v4749 = vrot.slane %v4559, %v4748
      %v4750 = vlaneseq
      %v4751 = vshrl.u32 %v4750, 7
      %v4752 = vsub.s32 0, %v4751
      %v4753 = vrot.slane %v4560, %v4752
      %v4754 = vlaneseq
      %v4755 = vshrl.u32 %v4754, 7
      %v4756 = vsub.s32 0, %v4755
      %v4757 = vrot.slane %v4561, %v4756
      %v4758 = vlaneseq
      %v4759 = vshrl.u32 %v4758, 7
      %v4760 = vsub.s32 0, %v4759
      %v4761 = vrot.slane %v4562, %v4760
      %v4762 = vlaneseq
      %v4763 = vshrl.u32 %v4762, 7
      %v4764 = vsub.s32 0, %v4763
      %v4765 = vrot.slane %v4563, %v4764
      %v4766 = vlaneseq
      %v4767 = vshrl.u32 %v4766, 7
      %v4768 = vsub.s32 0, %v4767
      %v4769 = vrot.slane %v4564, %v4768
      %v4770 = vlaneseq
      %v4771 = vshrl.u32 %v4770, 7
      %v4772 = vsub.s32 0, %v4771
      %v4773 = vrot.slane %v4565, %v4772
      %v4774 = vlaneseq
      %v4775 = vshrl.u32 %v4774, 7
      %v4776 = vsub.s32 0, %v4775
      %v4777 = vrot.slane %v4566, %v4776
      %v4778 = vlaneseq
      %v4779 = vshrl.u32 %v4778, 7
      %v4780 = vsub.s32 0, %v4779
      %v4781 = vrot.slane %v4567, %v4780
      %v4782 = vlaneseq
      %v4783 = vshrl.u32 %v4782, 7
      %v4784 = vsub.s32 0, %v4783
      %v4785 = vrot.slane %v4568, %v4784
      %v4786 = vlaneseq
      %v4787 = vshrl.u32 %v4786, 7
      %v4788 = vsub.s32 0, %v4787
      %v4789 = vrot.slane %v4569, %v4788
      %v4790 = vlaneseq
      %v4791 = vshrl.u32 %v4790, 7
      %v4792 = vsub.s32 0, %v4791
      %v4793 = vrot.slane %v4570, %v4792
      %v4794 = vlaneseq
      %v4795 = vshrl.u32 %v4794, 7
      %v4796 = vsub.s32 0, %v4795
      %v4797 = vrot.slane %v4571, %v4796
      %v4798 = vlaneseq
      %v4799 = vshrl.u32 %v4798, 7
      %v4800 = vsub.s32 0, %v4799
      %v4801 = vrot.slane %v4572, %v4800
      %v4802 = vlaneseq
      %v4803 = vshrl.u32 %v4802, 7
      %v4804 = vsub.s32 0, %v4803
      %v4805 = vrot.slane %v4573, %v4804
      %v4806 = vlaneseq
      %v4807 = vshrl.u32 %v4806, 7
      %v4808 = vsub.s32 0, %v4807
      %v4809 = vrot.slane %v4574, %v4808
      %v4810 = vlaneseq
      %v4811 = vshrl.u32 %v4810, 7
      %v4812 = vsub.s32 0, %v4811
      %v4813 = vrot.slane %v4575, %v4812
      %v4814 = vlaneseq
      %v4815 = vshrl.u32 %v4814, 7
      %v4816 = vsub.s32 0, %v4815
      %v4817 = vrot.slane %v4576, %v4816
      %v4818 = vlaneseq
      %v4819 = vshrl.u32 %v4818, 7
      %v4820 = vsub.s32 0, %v4819
      %v4821 = vrot.slane %v4577, %v4820
      %v4822 = vlaneseq
      %v4823 = vshrl.u32 %v4822, 7
      %v4824 = vsub.s32 0, %v4823
      %v4825 = vrot.slane %v4578, %v4824
      %v4826 = vlaneseq
      %v4827 = vshrl.u32 %v4826, 7
      %v4828 = vsub.s32 0, %v4827
      %v4829 = vrot.slane %v4579, %v4828
      %v4830 = vlaneseq
      %v4831 = vshrl.u32 %v4830, 7
      %v4832 = vsub.s32 0, %v4831
      %v4833 = vrot.slane %v4580, %v4832
      %v4834 = vlaneseq
      %v4835 = vshrl.u32 %v4834, 7
      %v4836 = vsub.s32 0, %v4835
      %v4837 = vrot.slane %v4581, %v4836
      %v4838 = vlaneseq
      %v4839 = vshrl.u32 %v4838, 7
      %v4840 = vsub.s32 0, %v4839
      %v4841 = vrot.slane %v4582, %v4840
      %v4842 = vlaneseq
      %v4843 = vshrl.u32 %v4842, 7
      %v4844 = vsub.s32 0, %v4843
      %v4845 = vrot.slane %v4583, %v4844
      %v4846 = vlaneseq
      %v4847 = vshrl.u32 %v4846, 7
      %v4848 = vsub.s32 0, %v4847
      %v4849 = vrot.slane %v4584, %v4848
      %v4850 = vlaneseq
      %v4851 = vshrl.u32 %v4850, 7
      %v4852 = vsub.s32 0, %v4851
      %v4853 = vrot.slane %v4585, %v4852
      %v4854 = vlaneseq
      %v4855 = vshrl.u32 %v4854, 7
      %v4856 = vsub.s32 0, %v4855
      %v4857 = vrot.slane %v4586, %v4856
      %v4858 = vlaneseq
      %v4859 = vshrl.u32 %v4858, 7
      %v4860 = vsub.s32 0, %v4859
      %v4861 = vrot.slane %v4587, %v4860
      %v4862 = vlaneseq
      %v4863 = vshrl.u32 %v4862, 7
      %v4864 = vsub.s32 0, %v4863
      %v4865 = vrot.slane %v4588, %v4864
      %v4866 = vlaneseq
      %v4867 = vshrl.u32 %v4866, 7
      %v4868 = vsub.s32 0, %v4867
      %v4869 = vrot.slane %v4589, %v4868
      %v4870 = vlaneseq
      %v4871 = vshrl.u32 %v4870, 7
      %v4872 = vsub.s32 0, %v4871
      %v4873 = vrot.slane %v4590, %v4872
      %v4874 = vlaneseq
      %v4875 = vshrl.u32 %v4874, 7
      %v4876 = vsub.s32 0, %v4875
      %v4877 = vrot.slane %v4591, %v4876
      %v4878 = vlaneseq
      %v4879 = vshrl.u32 %v4878, 7
      %v4880 = vsub.s32 0, %v4879
      %v4881 = vrot.slane %v4592, %v4880
      %v4882 = vlaneseq
      %v4883 = vshrl.u32 %v4882, 7
      %v4884 = vsub.s32 0, %v4883
      %v4885 = vrot.slane %v4593, %v4884
      %v4886 = vlaneseq
      %v4887 = vshrl.u32 %v4886, 7
      %v4888 = vsub.s32 0, %v4887
      %v4889 = vrot.slane %v4594, %v4888
      %v4890 = vlaneseq
      %v4891 = vshrl.u32 %v4890, 7
      %v4892 = vsub.s32 0, %v4891
      %v4893 = vrot.slane %v4595, %v4892
      %v4894 = vlaneseq
      %v4895 = vshrl.u32 %v4894, 7
      %v4896 = vsub.s32 0, %v4895
      %v4897 = vrot.slane %v4596, %v4896
      %v4898 = vlaneseq
      %v4899 = vshrl.u32 %v4898, 7
      %v4900 = vsub.s32 0, %v4899
      %v4901 = vrot.slane %v4597, %v4900
      %v4902 = vlaneseq
      %v4903 = vshrl.u32 %v4902, 7
      %v4904 = vsub.s32 0, %v4903
      %v4905 = vrot.slane %v4598, %v4904
      %v4906 = vlaneseq
      %v4907 = vshrl.u32 %v4906, 7
      %v4908 = vsub.s32 0, %v4907
      %v4909 = vrot.slane %v4599, %v4908
      %v4910 = vlaneseq
      %v4911 = vshrl.u32 %v4910, 7
      %v4912 = vsub.s32 0, %v4911
      %v4913 = vrot.slane %v4600, %v4912
      %v4914 = vlaneseq
      %v4915 = vshrl.u32 %v4914, 7
      %v4916 = vsub.s32 0, %v4915
      %v4917 = vrot.slane %v4601, %v4916
      %v4918 = vlaneseq
      %v4919 = vshrl.u32 %v4918, 7
      %v4920 = vsub.s32 0, %v4919
      %v4921 = vrot.slane %v4602, %v4920
      %v4922 = vlaneseq
      %v4923 = vshrl.u32 %v4922, 7
      %v4924 = vsub.s32 0, %v4923
      %v4925 = vrot.slane %v4603, %v4924
      %v4926 = vlaneseq
      %v4927 = vshrl.u32 %v4926, 7
      %v4928 = vsub.s32 0, %v4927
      %v4929 = vrot.slane %v4604, %v4928
      %v4930 = vlaneseq
      %v4931 = vshrl.u32 %v4930, 7
      %v4932 = vsub.s32 0, %v4931
      %v4933 = vrot.slane %v4605, %v4932
      %v4934 = vlaneseq
      %v4935 = vshrl.u32 %v4934, 7
      %v4936 = vsub.s32 0, %v4935
      %v4937 = vrot.slane %v4606, %v4936
      %v4938 = vlaneseq
      %v4939 = vshrl.u32 %v4938, 7
      %v4940 = vsub.s32 0, %v4939
      %v4941 = vrot.slane %v4607, %v4940
      %v4942 = vlaneseq
      %v4943 = vshrl.u32 %v4942, 7
      %v4944 = vsub.s32 0, %v4943
      %v4945 = vrot.slane %v4608, %v4944
      %v4946 = vlaneseq
      %v4947 = vshrl.u32 %v4946, 7
      %v4948 = vsub.s32 0, %v4947
      %v4949 = vrot.slane %v4609, %v4948
      %v4950 = vlaneseq
      %v4951 = vshrl.u32 %v4950, 7
      %v4952 = vsub.s32 0, %v4951
      %v4953 = vrot.slane %v4610, %v4952
      %v4954 = vlaneseq
      %v4955 = vshrl.u32 %v4954, 7
      %v4956 = vsub.s32 0, %v4955
      %v4957 = vrot.slane %v4611, %v4956
      %v4958 = vlaneseq
      %v4959 = vshrl.u32 %v4958, 7
      %v4960 = vsub.s32 0, %v4959
      %v4961 = vrot.slane %v4612, %v4960
      %v4962 = vlaneseq
      %v4963 = vshrl.u32 %v4962, 7
      %v4964 = vsub.s32 0, %v4963
      %v4965 = vrot.slane %v4613, %v4964
      %vm4966 = vcmask 1041409
      %v4967 = vsel %vm4966, %v4717, %v4713
      %vm4968 = vcmask 1042434
      %v4969 = vsel %vm4968, %v4721, %v4967
      %vm4970 = vcmask 1043459
      %v4971 = vsel %vm4970, %v4725, %v4969
      %vm4972 = vcmask 1044484
      %v4973 = vsel %vm4972, %v4729, %v4971
      %vm4974 = vcmask 1045509
      %v4975 = vsel %vm4974, %v4733, %v4973
      %vm4976 = vcmask 1046534
      %v4977 = vsel %vm4976, %v4737, %v4975
      %vm4978 = vcmask 1047559
      %v4979 = vsel %vm4978, %v4741, %v4977
      %v4980 = vsel %vm4966, %v4749, %v4745
      %v4981 = vsel %vm4968, %v4753, %v4980
      %v4982 = vsel %vm4970, %v4757, %v4981
      %v4983 = vsel %vm4972, %v4761, %v4982
      %v4984 = vsel %vm4974, %v4765, %v4983
      %v4985 = vsel %vm4976, %v4769, %v4984
      %v4986 = vsel %vm4978, %v4773, %v4985
      %v4987 = vsel %vm4966, %v4781, %v4777
      %v4988 = vsel %vm4968, %v4785, %v4987
      %v4989 = vsel %vm4970, %v4789, %v4988
      %v4990 = vsel %vm4972, %v4793, %v4989
      %v4991 = vsel %vm4974, %v4797, %v4990
      %v4992 = vsel %vm4976, %v4801, %v4991
      %v4993 = vsel %vm4978, %v4805, %v4992
      %v4994 = vsel %vm4966, %v4813, %v4809
      %v4995 = vsel %vm4968, %v4817, %v4994
      %v4996 = vsel %vm4970, %v4821, %v4995
      %v4997 = vsel %vm4972, %v4825, %v4996
      %v4998 = vsel %vm4974, %v4829, %v4997
      %v4999 = vsel %vm4976, %v4833, %v4998
      %v5000 = vsel %vm4978, %v4837, %v4999
      %v5001 = vsel %vm4966, %v4845, %v4841
      %v5002 = vsel %vm4968, %v4849, %v5001
      %v5003 = vsel %vm4970, %v4853, %v5002
      %v5004 = vsel %vm4972, %v4857, %v5003
      %v5005 = vsel %vm4974, %v4861, %v5004
      %v5006 = vsel %vm4976, %v4865, %v5005
      %v5007 = vsel %vm4978, %v4869, %v5006
      %v5008 = vsel %vm4966, %v4877, %v4873
      %v5009 = vsel %vm4968, %v4881, %v5008
      %v5010 = vsel %vm4970, %v4885, %v5009
      %v5011 = vsel %vm4972, %v4889, %v5010
      %v5012 = vsel %vm4974, %v4893, %v5011
      %v5013 = vsel %vm4976, %v4897, %v5012
      %v5014 = vsel %vm4978, %v4901, %v5013
      %v5015 = vsel %vm4966, %v4909, %v4905
      %v5016 = vsel %vm4968, %v4913, %v5015
      %v5017 = vsel %vm4970, %v4917, %v5016
      %v5018 = vsel %vm4972, %v4921, %v5017
      %v5019 = vsel %vm4974, %v4925, %v5018
      %v5020 = vsel %vm4976, %v4929, %v5019
      %v5021 = vsel %vm4978, %v4933, %v5020
      %v5022 = vsel %vm4966, %v4941, %v4937
      %v5023 = vsel %vm4968, %v4945, %v5022
      %v5024 = vsel %vm4970, %v4949, %v5023
      %v5025 = vsel %vm4972, %v4953, %v5024
      %v5026 = vsel %vm4974, %v4957, %v5025
      %v5027 = vsel %vm4976, %v4961, %v5026
      %v5028 = vsel %vm4978, %v4965, %v5027
      %s5037 = scalar_lea.vmem [#allocation3], 24
      %5038 = vst.msk [vmem:[%s5037 + $0x8] sm:$0xff] %vm4614, %v4979
      %5039 = vst.msk [vmem:[%s5037 + $0x20] sm:$0xff] %vm4614, %v4986
      %5040 = vst.msk [vmem:[%s5037 + $0x38] sm:$0xff] %vm4614, %v4993
      %5041 = vst.msk [vmem:[%s5037 + $0x50] sm:$0xff] %vm4614, %v5000
      %5042 = vst.msk [vmem:[%s5037 + $0x68] sm:$0xff] %vm4614, %v5007
      %5043 = vst.msk [vmem:[%s5037 + $0x80] sm:$0xff] %vm4614, %v5014
      %5044 = vst.msk [vmem:[%s5037 + $0x98] sm:$0xff] %vm4614, %v5021
      %5045 = vst.msk [vmem:[%s5037 + $0xb0] sm:$0xff] %vm4614, %v5028
      %v5046 = vld [vmem:[#allocation3 + $0x7] sm:$0xff]
      %v5047 = vld [vmem:[#allocation3 + $0x1f] sm:$0xff]
      %v5048 = vld [vmem:[#allocation3 + $0x37] sm:$0xff]
      %v5049 = vld [vmem:[#allocation3 + $0x4f] sm:$0xff]
      %v5050 = vld [vmem:[#allocation3 + $0x67] sm:$0xff]
      %v5051 = vld [vmem:[#allocation3 + $0x7f] sm:$0xff]
      %v5052 = vld [vmem:[#allocation3 + $0x97] sm:$0xff]
      %v5053 = vld [vmem:[#allocation3 + $0xaf] sm:$0xff]
      %v5054 = vld [vmem:[%s3] sm:$0xff]
      %v5055 = vld [vmem:[%s3 + $0x8] sm:$0xff]
      %v5056 = vld [vmem:[%s3 + $0x10] sm:$0xff]
      %v5057 = vld [vmem:[%s3 + $0x18] sm:$0xff]
      %v5058 = vld [vmem:[#allocation3 + $0x8] sm:$0xff]
      %v5059 = vld [vmem:[#allocation3 + $0x20] sm:$0xff]
      %v5060 = vld [vmem:[#allocation3 + $0x38] sm:$0xff]
      %v5061 = vld [vmem:[#allocation3 + $0x50] sm:$0xff]
      %v5062 = vld [vmem:[#allocation3 + $0x68] sm:$0xff]
      %v5063 = vld [vmem:[#allocation3 + $0x80] sm:$0xff]
      %v5064 = vld [vmem:[#allocation3 + $0x98] sm:$0xff]
      %v5065 = vld [vmem:[#allocation3 + $0xb0] sm:$0xff]
      %s5066 = scalar_lea.vmem %s3, 32
      %v5067 = vld [vmem:[%s5066] sm:$0xff]
      %v5068 = vld [vmem:[%s5066 + $0x8] sm:$0xff]
      %v5069 = vld [vmem:[%s5066 + $0x10] sm:$0xff]
      %v5070 = vld [vmem:[%s5066 + $0x18] sm:$0xff]
      %v5072 = vsel %vm4614, %v5058, 0
      %v5075 = vsel %vm4614, %v5059, 0
      %v5078 = vsel %vm4614, %v5060, 0
      %v5081 = vsel %vm4614, %v5061, 0
      %v5084 = vsel %vm4614, %v5062, 0
      %v5087 = vsel %vm4614, %v5063, 0
      %v5090 = vsel %vm4614, %v5064, 0
      %v5093 = vsel %vm4614, %v5065, 0
      %5095 = vmatprep.subr.mxu0 0.0
      %5096 = vmatpush1.msra.mxu0 %v5067
      %5097 = vmatprep.subr.mxu0 0.0
      %5098 = vmatpush1.msra.mxu0 %v5068
      %5099 = vmatprep.subr.mxu0 0.0
      %5100 = vmatpush1.msra.mxu0 %v5069
      %5101 = vmatprep.subr.mxu0 0.0
      %5102 = vmatpush1.msra.mxu0 %v5070
      %5103 = vmatprep.subr.mxu0 0.0
      %5104 = vmatpush1.msra.mxu0 0.0
      %5105 = vmatprep.subr.mxu0 0.0
      %5106 = vmatpush1.msra.mxu0 0.0
      %5107 = vmatprep.subr.mxu0 0.0
      %5108 = vmatpush1.msra.mxu0 0.0
      %5109 = vmatprep.subr.mxu0 0.0
      %5110 = vmatpush1.msra.mxu0 0.0
      %5111 = vmatprep.subr.mxu0 0.0
      %5112 = vmatpush1.msra.mxu0 0.0
      %5113 = vmatprep.subr.mxu0 0.0
      %5114 = vmatpush1.msra.mxu0 0.0
      %5115 = vmatprep.subr.mxu0 0.0
      %5116 = vmatpush1.msra.mxu0 0.0
      %5117 = vmatprep.subr.mxu0 0.0
      %5118 = vmatpush1.msra.mxu0 0.0
      %5119 = vmatprep.subr.mxu0 0.0
      %5120 = vmatpush1.msra.mxu0 0.0
      %5121 = vmatprep.subr.mxu0 0.0
      %5122 = vmatpush1.msra.mxu0 0.0
      %5123 = vmatprep.subr.mxu0 0.0
      %5124 = vmatpush1.msra.mxu0 0.0
      %5125 = vmatprep.subr.mxu0 0.0
      %5126 = vmatpush1.msra.mxu0 0.0
      %5127 = vmatprep.subr.mxu0 0.0
      %5128 = vmatpush1.msra.mxu0 0.0
      %5129 = vmatprep.subr.mxu0 0.0
      %5130 = vmatpush1.msra.mxu0 0.0
      %5131 = vmatprep.subr.mxu0 0.0
      %5132 = vmatpush1.msra.mxu0 0.0
      %5133 = vmatprep.subr.mxu0 0.0
      %5134 = vmatpush1.msra.mxu0 0.0
      %5135 = vmatprep.subr.mxu0 0.0
      %5136 = vmatpush1.msra.mxu0 0.0
      %5137 = vmatprep.subr.mxu0 0.0
      %5138 = vmatpush1.msra.mxu0 0.0
      %5139 = vmatprep.subr.mxu0 0.0
      %5140 = vmatpush1.msra.mxu0 0.0
      %5141 = vmatprep.subr.mxu0 0.0
      %5142 = vmatpush1.msra.mxu0 0.0
      %5143 = vmatprep.subr.mxu0 0.0
      %5144 = vmatpush1.msra.mxu0 0.0
      %5145 = vmatprep.subr.mxu0 0.0
      %5146 = vmatpush1.msra.mxu0 0.0
      %5147 = vmatprep.subr.mxu0 0.0
      %5148 = vmatpush1.msra.mxu0 0.0
      %5149 = vmatprep.subr.mxu0 0.0
      %5150 = vmatpush1.msra.mxu0 0.0
      %5151 = vmatprep.subr.mxu0 0.0
      %5152 = vmatpush1.msra.mxu0 0.0
      %5153 = vmatprep.subr.mxu0 0.0
      %5154 = vmatpush1.msra.mxu0 0.0
      %5155 = vmatprep.subr.mxu0 0.0
      %5156 = vmatpush1.msra.mxu0 0.0
      %5157 = vmatprep.subr.mxu0 0.0
      %5158 = vmatpush1.msra.mxu0 0.0
      %5159 = vmatprep.mubr.f32.mxu0 0.0
      %5160 = vmatmul.mubr.f32.gmra.mrb[0].mxu0 %v5072
      %v5161 = vpop.f32.mrb[0].mxu0
      %v5162 = vadd.f32 0.0, %v5161
      %v5163 = vpop.f32.mrb[0].mxu0
      %5164 = vmatprep.mubr.f32.mxu0 0.0
      %5165 = vmatmul.mubr.f32.gmra.mrb[0].mxu0 %v5075
      %v5166 = vpop.f32.mrb[0].mxu0
      %v5167 = vadd.f32 0.0, %v5166
      %v5168 = vpop.f32.mrb[0].mxu0
      %5169 = vmatprep.mubr.f32.mxu0 0.0
      %5170 = vmatmul.mubr.f32.gmra.mrb[0].mxu0 %v5078
      %v5171 = vpop.f32.mrb[0].mxu0
      %v5172 = vadd.f32 0.0, %v5171
      %v5173 = vpop.f32.mrb[0].mxu0
      %5174 = vmatprep.mubr.f32.mxu0 0.0
      %5175 = vmatmul.mubr.f32.gmra.mrb[0].mxu0 %v5081
      %v5176 = vpop.f32.mrb[0].mxu0
      %v5177 = vadd.f32 0.0, %v5176
      %v5178 = vpop.f32.mrb[0].mxu0
      %5179 = vmatprep.mubr.f32.mxu0 0.0
      %5180 = vmatmul.mubr.f32.gmra.mrb[0].mxu0 %v5084
      %v5181 = vpop.f32.mrb[0].mxu0
      %v5182 = vadd.f32 0.0, %v5181
      %v5183 = vpop.f32.mrb[0].mxu0
      %5184 = vmatprep.mubr.f32.mxu0 0.0
      %5185 = vmatmul.mubr.f32.gmra.mrb[0].mxu0 %v5087
      %v5186 = vpop.f32.mrb[0].mxu0
      %v5187 = vadd.f32 0.0, %v5186
      %v5188 = vpop.f32.mrb[0].mxu0
      %5189 = vmatprep.mubr.f32.mxu0 0.0
      %5190 = vmatmul.mubr.f32.gmra.mrb[0].mxu0 %v5090
      %v5191 = vpop.f32.mrb[0].mxu0
      %v5192 = vadd.f32 0.0, %v5191
      %v5193 = vpop.f32.mrb[0].mxu0
      %5194 = vmatprep.mubr.f32.mxu0 0.0
      %5195 = vmatmul.mubr.f32.gmra.mrb[0].mxu0 %v5093
      %v5196 = vpop.f32.mrb[0].mxu0
      %v5197 = vadd.f32 0.0, %v5196
      %v5198 = vpop.f32.mrb[0].mxu0
      %5199 = vdwg.mxu0
      %v5201 = vsel %vm4614, %v5046, 0
      %v5204 = vsel %vm4614, %v5047, 0
      %v5207 = vsel %vm4614, %v5048, 0
      %v5210 = vsel %vm4614, %v5049, 0
      %v5213 = vsel %vm4614, %v5050, 0
      %v5216 = vsel %vm4614, %v5051, 0
      %v5219 = vsel %vm4614, %v5052, 0
      %v5222 = vsel %vm4614, %v5053, 0
      %5224 = vmatprep.subr.mxu0 0.0
      %5225 = vmatpush1.msra.mxu0 %v5054
      %5226 = vmatprep.subr.mxu0 0.0
      %5227 = vmatpush1.msra.mxu0 %v5055
      %5228 = vmatprep.subr.mxu0 0.0
      %5229 = vmatpush1.msra.mxu0 %v5056
      %5230 = vmatprep.subr.mxu0 0.0
      %5231 = vmatpush1.msra.mxu0 %v5057
      %5232 = vmatprep.subr.mxu0 0.0
      %5233 = vmatpush1.msra.mxu0 0.0
      %5234 = vmatprep.subr.mxu0 0.0
      %5235 = vmatpush1.msra.mxu0 0.0
      %5236 = vmatprep.subr.mxu0 0.0
      %5237 = vmatpush1.msra.mxu0 0.0
      %5238 = vmatprep.subr.mxu0 0.0
      %5239 = vmatpush1.msra.mxu0 0.0
      %5240 = vmatprep.subr.mxu0 0.0
      %5241 = vmatpush1.msra.mxu0 0.0
      %5242 = vmatprep.subr.mxu0 0.0
      %5243 = vmatpush1.msra.mxu0 0.0
      %5244 = vmatprep.subr.mxu0 0.0
      %5245 = vmatpush1.msra.mxu0 0.0
      %5246 = vmatprep.subr.mxu0 0.0
      %5247 = vmatpush1.msra.mxu0 0.0
      %5248 = vmatprep.subr.mxu0 0.0
      %5249 = vmatpush1.msra.mxu0 0.0
      %5250 = vmatprep.subr.mxu0 0.0
      %5251 = vmatpush1.msra.mxu0 0.0
      %5252 = vmatprep.subr.mxu0 0.0
      %5253 = vmatpush1.msra.mxu0 0.0
      %5254 = vmatprep.subr.mxu0 0.0
      %5255 = vmatpush1.msra.mxu0 0.0
      %5256 = vmatprep.subr.mxu0 0.0
      %5257 = vmatpush1.msra.mxu0 0.0
      %5258 = vmatprep.subr.mxu0 0.0
      %5259 = vmatpush1.msra.mxu0 0.0
      %5260 = vmatprep.subr.mxu0 0.0
      %5261 = vmatpush1.msra.mxu0 0.0
      %5262 = vmatprep.subr.mxu0 0.0
      %5263 = vmatpush1.msra.mxu0 0.0
      %5264 = vmatprep.subr.mxu0 0.0
      %5265 = vmatpush1.msra.mxu0 0.0
      %5266 = vmatprep.subr.mxu0 0.0
      %5267 = vmatpush1.msra.mxu0 0.0
      %5268 = vmatprep.subr.mxu0 0.0
      %5269 = vmatpush1.msra.mxu0 0.0
      %5270 = vmatprep.subr.mxu0 0.0
      %5271 = vmatpush1.msra.mxu0 0.0
      %5272 = vmatprep.subr.mxu0 0.0
      %5273 = vmatpush1.msra.mxu0 0.0
      %5274 = vmatprep.subr.mxu0 0.0
      %5275 = vmatpush1.msra.mxu0 0.0
      %5276 = vmatprep.subr.mxu0 0.0
      %5277 = vmatpush1.msra.mxu0 0.0
      %5278 = vmatprep.subr.mxu0 0.0
      %5279 = vmatpush1.msra.mxu0 0.0
      %5280 = vmatprep.subr.mxu0 0.0
      %5281 = vmatpush1.msra.mxu0 0.0
      %5282 = vmatprep.subr.mxu0 0.0
      %5283 = vmatpush1.msra.mxu0 0.0
      %5284 = vmatprep.subr.mxu0 0.0
      %5285 = vmatpush1.msra.mxu0 0.0
      %5286 = vmatprep.subr.mxu0 0.0
      %5287 = vmatpush1.msra.mxu0 0.0
      %5288 = vmatprep.mubr.f32.mxu0 0.0
      %5289 = vmatmul.mubr.f32.gmra.mrb[0].mxu0 %v5201
      %v5290 = vpop.f32.mrb[0].mxu0
      %v5291 = vadd.f32 %v5162, %v5290
      %v5292 = vpop.f32.mrb[0].mxu0
      %5293 = vmatprep.mubr.f32.mxu0 0.0
      %5294 = vmatmul.mubr.f32.gmra.mrb[0].mxu0 %v5204
      %v5295 = vpop.f32.mrb[0].mxu0
      %v5296 = vadd.f32 %v5167, %v5295
      %v5297 = vpop.f32.mrb[0].mxu0
      %5298 = vmatprep.mubr.f32.mxu0 0.0
      %5299 = vmatmul.mubr.f32.gmra.mrb[0].mxu0 %v5207
      %v5300 = vpop.f32.mrb[0].mxu0
      %v5301 = vadd.f32 %v5172, %v5300
      %v5302 = vpop.f32.mrb[0].mxu0
      %5303 = vmatprep.mubr.f32.mxu0 0.0
      %5304 = vmatmul.mubr.f32.gmra.mrb[0].mxu0 %v5210
      %v5305 = vpop.f32.mrb[0].mxu0
      %v5306 = vadd.f32 %v5177, %v5305
      %v5307 = vpop.f32.mrb[0].mxu0
      %5308 = vmatprep.mubr.f32.mxu0 0.0
      %5309 = vmatmul.mubr.f32.gmra.mrb[0].mxu0 %v5213
      %v5310 = vpop.f32.mrb[0].mxu0
      %v5311 = vadd.f32 %v5182, %v5310
      %v5312 = vpop.f32.mrb[0].mxu0
      %5313 = vmatprep.mubr.f32.mxu0 0.0
      %5314 = vmatmul.mubr.f32.gmra.mrb[0].mxu0 %v5216
      %v5315 = vpop.f32.mrb[0].mxu0
      %v5316 = vadd.f32 %v5187, %v5315
      %v5317 = vpop.f32.mrb[0].mxu0
      %5318 = vmatprep.mubr.f32.mxu0 0.0
      %5319 = vmatmul.mubr.f32.gmra.mrb[0].mxu0 %v5219
      %v5320 = vpop.f32.mrb[0].mxu0
      %v5321 = vadd.f32 %v5192, %v5320
      %v5322 = vpop.f32.mrb[0].mxu0
      %5323 = vmatprep.mubr.f32.mxu0 0.0
      %5324 = vmatmul.mubr.f32.gmra.mrb[0].mxu0 %v5222
      %v5325 = vpop.f32.mrb[0].mxu0
      %v5326 = vadd.f32 %v5197, %v5325
      %v5327 = vpop.f32.mrb[0].mxu0
      %5328 = vdwg.mxu0
      %v5329 = vld [vmem:[#allocation3 + $0x9] sm:$0xff]
      %v5330 = vld [vmem:[#allocation3 + $0x21] sm:$0xff]
      %v5331 = vld [vmem:[#allocation3 + $0x39] sm:$0xff]
      %v5332 = vld [vmem:[#allocation3 + $0x51] sm:$0xff]
      %v5333 = vld [vmem:[#allocation3 + $0x69] sm:$0xff]
      %v5334 = vld [vmem:[#allocation3 + $0x81] sm:$0xff]
      %v5335 = vld [vmem:[#allocation3 + $0x99] sm:$0xff]
      %v5336 = vld [vmem:[#allocation3 + $0xb1] sm:$0xff]
      %s5337 = scalar_lea.vmem %s3, 64
      %v5338 = vld [vmem:[%s5337] sm:$0xff]
      %v5339 = vld [vmem:[%s5337 + $0x8] sm:$0xff]
      %v5340 = vld [vmem:[%s5337 + $0x10] sm:$0xff]
      %v5341 = vld [vmem:[%s5337 + $0x18] sm:$0xff]
      %v5343 = vsel %vm4614, %v5329, 0
      %v5346 = vsel %vm4614, %v5330, 0
      %v5349 = vsel %vm4614, %v5331, 0
      %v5352 = vsel %vm4614, %v5332, 0
      %v5355 = vsel %vm4614, %v5333, 0
      %v5358 = vsel %vm4614, %v5334, 0
      %v5361 = vsel %vm4614, %v5335, 0
      %v5364 = vsel %vm4614, %v5336, 0
      %5366 = vmatprep.subr.mxu0 0.0
      %5367 = vmatpush1.msra.mxu0 %v5338
      %5368 = vmatprep.subr.mxu0 0.0
      %5369 = vmatpush1.msra.mxu0 %v5339
      %5370 = vmatprep.subr.mxu0 0.0
      %5371 = vmatpush1.msra.mxu0 %v5340
      %5372 = vmatprep.subr.mxu0 0.0
      %5373 = vmatpush1.msra.mxu0 %v5341
      %5374 = vmatprep.subr.mxu0 0.0
      %5375 = vmatpush1.msra.mxu0 0.0
      %5376 = vmatprep.subr.mxu0 0.0
      %5377 = vmatpush1.msra.mxu0 0.0
      %5378 = vmatprep.subr.mxu0 0.0
      %5379 = vmatpush1.msra.mxu0 0.0
      %5380 = vmatprep.subr.mxu0 0.0
      %5381 = vmatpush1.msra.mxu0 0.0
      %5382 = vmatprep.subr.mxu0 0.0
      %5383 = vmatpush1.msra.mxu0 0.0
      %5384 = vmatprep.subr.mxu0 0.0
      %5385 = vmatpush1.msra.mxu0 0.0
      %5386 = vmatprep.subr.mxu0 0.0
      %5387 = vmatpush1.msra.mxu0 0.0
      %5388 = vmatprep.subr.mxu0 0.0
      %5389 = vmatpush1.msra.mxu0 0.0
      %5390 = vmatprep.subr.mxu0 0.0
      %5391 = vmatpush1.msra.mxu0 0.0
      %5392 = vmatprep.subr.mxu0 0.0
      %5393 = vmatpush1.msra.mxu0 0.0
      %5394 = vmatprep.subr.mxu0 0.0
      %5395 = vmatpush1.msra.mxu0 0.0
      %5396 = vmatprep.subr.mxu0 0.0
      %5397 = vmatpush1.msra.mxu0 0.0
      %5398 = vmatprep.subr.mxu0 0.0
      %5399 = vmatpush1.msra.mxu0 0.0
      %5400 = vmatprep.subr.mxu0 0.0
      %5401 = vmatpush1.msra.mxu0 0.0
      %5402 = vmatprep.subr.mxu0 0.0
      %5403 = vmatpush1.msra.mxu0 0.0
      %5404 = vmatprep.subr.mxu0 0.0
      %5405 = vmatpush1.msra.mxu0 0.0
      %5406 = vmatprep.subr.mxu0 0.0
      %5407 = vmatpush1.msra.mxu0 0.0
      %5408 = vmatprep.subr.mxu0 0.0
      %5409 = vmatpush1.msra.mxu0 0.0
      %5410 = vmatprep.subr.mxu0 0.0
      %5411 = vmatpush1.msra.mxu0 0.0
      %5412 = vmatprep.subr.mxu0 0.0
      %5413 = vmatpush1.msra.mxu0 0.0
      %5414 = vmatprep.subr.mxu0 0.0
      %5415 = vmatpush1.msra.mxu0 0.0
      %5416 = vmatprep.subr.mxu0 0.0
      %5417 = vmatpush1.msra.mxu0 0.0
      %5418 = vmatprep.subr.mxu0 0.0
      %5419 = vmatpush1.msra.mxu0 0.0
      %5420 = vmatprep.subr.mxu0 0.0
      %5421 = vmatpush1.msra.mxu0 0.0
      %5422 = vmatprep.subr.mxu0 0.0
      %5423 = vmatpush1.msra.mxu0 0.0
      %5424 = vmatprep.subr.mxu0 0.0
      %5425 = vmatpush1.msra.mxu0 0.0
      %5426 = vmatprep.subr.mxu0 0.0
      %5427 = vmatpush1.msra.mxu0 0.0
      %5428 = vmatprep.subr.mxu0 0.0
      %5429 = vmatpush1.msra.mxu0 0.0
      %5430 = vmatprep.mubr.f32.mxu0 0.0
      %5431 = vmatmul.mubr.f32.gmra.mrb[0].mxu0 %v5343
      %v5432 = vpop.f32.mrb[0].mxu0
      %v5433 = vadd.f32 0.0, %v5432
      %v5434 = vpop.f32.mrb[0].mxu0
      %5435 = vmatprep.mubr.f32.mxu0 0.0
      %5436 = vmatmul.mubr.f32.gmra.mrb[0].mxu0 %v5346
      %v5437 = vpop.f32.mrb[0].mxu0
      %v5438 = vadd.f32 0.0, %v5437
      %v5439 = vpop.f32.mrb[0].mxu0
      %5440 = vmatprep.mubr.f32.mxu0 0.0
      %5441 = vmatmul.mubr.f32.gmra.mrb[0].mxu0 %v5349
      %v5442 = vpop.f32.mrb[0].mxu0
      %v5443 = vadd.f32 0.0, %v5442
      %v5444 = vpop.f32.mrb[0].mxu0
      %5445 = vmatprep.mubr.f32.mxu0 0.0
      %5446 = vmatmul.mubr.f32.gmra.mrb[0].mxu0 %v5352
      %v5447 = vpop.f32.mrb[0].mxu0
      %v5448 = vadd.f32 0.0, %v5447
      %v5449 = vpop.f32.mrb[0].mxu0
      %5450 = vmatprep.mubr.f32.mxu0 0.0
      %5451 = vmatmul.mubr.f32.gmra.mrb[0].mxu0 %v5355
      %v5452 = vpop.f32.mrb[0].mxu0
      %v5453 = vadd.f32 0.0, %v5452
      %v5454 = vpop.f32.mrb[0].mxu0
      %5455 = vmatprep.mubr.f32.mxu0 0.0
      %5456 = vmatmul.mubr.f32.gmra.mrb[0].mxu0 %v5358
      %v5457 = vpop.f32.mrb[0].mxu0
      %v5458 = vadd.f32 0.0, %v5457
      %v5459 = vpop.f32.mrb[0].mxu0
      %5460 = vmatprep.mubr.f32.mxu0 0.0
      %5461 = vmatmul.mubr.f32.gmra.mrb[0].mxu0 %v5361
      %v5462 = vpop.f32.mrb[0].mxu0
      %v5463 = vadd.f32 0.0, %v5462
      %v5464 = vpop.f32.mrb[0].mxu0
      %5465 = vmatprep.mubr.f32.mxu0 0.0
      %5466 = vmatmul.mubr.f32.gmra.mrb[0].mxu0 %v5364
      %v5467 = vpop.f32.mrb[0].mxu0
      %v5468 = vadd.f32 0.0, %v5467
      %v5469 = vpop.f32.mrb[0].mxu0
      %5470 = vdwg.mxu0
      %v5471 = vadd.f32 %v5291, %v5433
      %v5472 = vadd.f32 %v5296, %v5438
      %v5473 = vadd.f32 %v5301, %v5443
      %v5474 = vadd.f32 %v5306, %v5448
      %v5475 = vadd.f32 %v5311, %v5453
      %v5476 = vadd.f32 %v5316, %v5458
      %v5477 = vadd.f32 %v5321, %v5463
      %v5478 = vadd.f32 %v5326, %v5468
      %v5479 = vld [vmem:[%s5037 + $0x7] sm:$0xff]
      %v5480 = vld [vmem:[%s5037 + $0x1f] sm:$0xff]
      %v5481 = vld [vmem:[%s5037 + $0x37] sm:$0xff]
      %v5482 = vld [vmem:[%s5037 + $0x4f] sm:$0xff]
      %v5483 = vld [vmem:[%s5037 + $0x67] sm:$0xff]
      %v5484 = vld [vmem:[%s5037 + $0x7f] sm:$0xff]
      %v5485 = vld [vmem:[%s5037 + $0x97] sm:$0xff]
      %v5486 = vld [vmem:[%s5037 + $0xaf] sm:$0xff]
      %s5487 = scalar_lea.vmem %s3, 96
      %v5488 = vld [vmem:[%s5487] sm:$0xff]
      %v5489 = vld [vmem:[%s5487 + $0x8] sm:$0xff]
      %v5490 = vld [vmem:[%s5487 + $0x10] sm:$0xff]
      %v5491 = vld [vmem:[%s5487 + $0x18] sm:$0xff]
      %v5493 = vsel %vm4614, %v5479, 0
      %v5496 = vsel %vm4614, %v5480, 0
      %v5499 = vsel %vm4614, %v5481, 0
      %v5502 = vsel %vm4614, %v5482, 0
      %v5505 = vsel %vm4614, %v5483, 0
      %v5508 = vsel %vm4614, %v5484, 0
      %v5511 = vsel %vm4614, %v5485, 0
      %v5514 = vsel %vm4614, %v5486, 0
      %5516 = vmatprep.subr.mxu0 0.0
      %5517 = vmatpush1.msra.mxu0 %v5488
      %5518 = vmatprep.subr.mxu0 0.0
      %5519 = vmatpush1.msra.mxu0 %v5489
      %5520 = vmatprep.subr.mxu0 0.0
      %5521 = vmatpush1.msra.mxu0 %v5490
      %5522 = vmatprep.subr.mxu0 0.0
      %5523 = vmatpush1.msra.mxu0 %v5491
      %5524 = vmatprep.subr.mxu0 0.0
      %5525 = vmatpush1.msra.mxu0 0.0
      %5526 = vmatprep.subr.mxu0 0.0
      %5527 = vmatpush1.msra.mxu0 0.0
      %5528 = vmatprep.subr.mxu0 0.0
      %5529 = vmatpush1.msra.mxu0 0.0
      %5530 = vmatprep.subr.mxu0 0.0
      %5531 = vmatpush1.msra.mxu0 0.0
      %5532 = vmatprep.subr.mxu0 0.0
      %5533 = vmatpush1.msra.mxu0 0.0
      %5534 = vmatprep.subr.mxu0 0.0
      %5535 = vmatpush1.msra.mxu0 0.0
      %5536 = vmatprep.subr.mxu0 0.0
      %5537 = vmatpush1.msra.mxu0 0.0
      %5538 = vmatprep.subr.mxu0 0.0
      %5539 = vmatpush1.msra.mxu0 0.0
      %5540 = vmatprep.subr.mxu0 0.0
      %5541 = vmatpush1.msra.mxu0 0.0
      %5542 = vmatprep.subr.mxu0 0.0
      %5543 = vmatpush1.msra.mxu0 0.0
      %5544 = vmatprep.subr.mxu0 0.0
      %5545 = vmatpush1.msra.mxu0 0.0
      %5546 = vmatprep.subr.mxu0 0.0
      %5547 = vmatpush1.msra.mxu0 0.0
      %5548 = vmatprep.subr.mxu0 0.0
      %5549 = vmatpush1.msra.mxu0 0.0
      %5550 = vmatprep.subr.mxu0 0.0
      %5551 = vmatpush1.msra.mxu0 0.0
      %5552 = vmatprep.subr.mxu0 0.0
      %5553 = vmatpush1.msra.mxu0 0.0
      %5554 = vmatprep.subr.mxu0 0.0
      %5555 = vmatpush1.msra.mxu0 0.0
      %5556 = vmatprep.subr.mxu0 0.0
      %5557 = vmatpush1.msra.mxu0 0.0
      %5558 = vmatprep.subr.mxu0 0.0
      %5559 = vmatpush1.msra.mxu0 0.0
      %5560 = vmatprep.subr.mxu0 0.0
      %5561 = vmatpush1.msra.mxu0 0.0
      %5562 = vmatprep.subr.mxu0 0.0
      %5563 = vmatpush1.msra.mxu0 0.0
      %5564 = vmatprep.subr.mxu0 0.0
      %5565 = vmatpush1.msra.mxu0 0.0
      %5566 = vmatprep.subr.mxu0 0.0
      %5567 = vmatpush1.msra.mxu0 0.0
      %5568 = vmatprep.subr.mxu0 0.0
      %5569 = vmatpush1.msra.mxu0 0.0
      %5570 = vmatprep.subr.mxu0 0.0
      %5571 = vmatpush1.msra.mxu0 0.0
      %5572 = vmatprep.subr.mxu0 0.0
      %5573 = vmatpush1.msra.mxu0 0.0
      %5574 = vmatprep.subr.mxu0 0.0
      %5575 = vmatpush1.msra.mxu0 0.0
      %5576 = vmatprep.subr.mxu0 0.0
      %5577 = vmatpush1.msra.mxu0 0.0
      %5578 = vmatprep.subr.mxu0 0.0
      %5579 = vmatpush1.msra.mxu0 0.0
      %5580 = vmatprep.mubr.f32.mxu0 0.0
      %5581 = vmatmul.mubr.f32.gmra.mrb[0].mxu0 %v5493
      %v5582 = vpop.f32.mrb[0].mxu0
      %v5583 = vadd.f32 0.0, %v5582
      %v5584 = vpop.f32.mrb[0].mxu0
      %5585 = vmatprep.mubr.f32.mxu0 0.0
      %5586 = vmatmul.mubr.f32.gmra.mrb[0].mxu0 %v5496
      %v5587 = vpop.f32.mrb[0].mxu0
      %v5588 = vadd.f32 0.0, %v5587
      %v5589 = vpop.f32.mrb[0].mxu0
      %5590 = vmatprep.mubr.f32.mxu0 0.0
      %5591 = vmatmul.mubr.f32.gmra.mrb[0].mxu0 %v5499
      %v5592 = vpop.f32.mrb[0].mxu0
      %v5593 = vadd.f32 0.0, %v5592
      %v5594 = vpop.f32.mrb[0].mxu0
      %5595 = vmatprep.mubr.f32.mxu0 0.0
      %5596 = vmatmul.mubr.f32.gmra.mrb[0].mxu0 %v5502
      %v5597 = vpop.f32.mrb[0].mxu0
      %v5598 = vadd.f32 0.0, %v5597
      %v5599 = vpop.f32.mrb[0].mxu0
      %5600 = vmatprep.mubr.f32.mxu0 0.0
      %5601 = vmatmul.mubr.f32.gmra.mrb[0].mxu0 %v5505
      %v5602 = vpop.f32.mrb[0].mxu0
      %v5603 = vadd.f32 0.0, %v5602
      %v5604 = vpop.f32.mrb[0].mxu0
      %5605 = vmatprep.mubr.f32.mxu0 0.0
      %5606 = vmatmul.mubr.f32.gmra.mrb[0].mxu0 %v5508
      %v5607 = vpop.f32.mrb[0].mxu0
      %v5608 = vadd.f32 0.0, %v5607
      %v5609 = vpop.f32.mrb[0].mxu0
      %5610 = vmatprep.mubr.f32.mxu0 0.0
      %5611 = vmatmul.mubr.f32.gmra.mrb[0].mxu0 %v5511
      %v5612 = vpop.f32.mrb[0].mxu0
      %v5613 = vadd.f32 0.0, %v5612
      %v5614 = vpop.f32.mrb[0].mxu0
      %5615 = vmatprep.mubr.f32.mxu0 0.0
      %5616 = vmatmul.mubr.f32.gmra.mrb[0].mxu0 %v5514
      %v5617 = vpop.f32.mrb[0].mxu0
      %v5618 = vadd.f32 0.0, %v5617
      %v5619 = vpop.f32.mrb[0].mxu0
      %5620 = vdwg.mxu0
      %v5621 = vadd.f32 %v5471, %v5583
      %v5622 = vadd.f32 %v5472, %v5588
      %v5623 = vadd.f32 %v5473, %v5593
      %v5624 = vadd.f32 %v5474, %v5598
      %v5625 = vadd.f32 %v5475, %v5603
      %v5626 = vadd.f32 %v5476, %v5608
      %v5627 = vadd.f32 %v5477, %v5613
      %v5628 = vadd.f32 %v5478, %v5618
      %v5629 = vld [vmem:[%s5037 + $0x8] sm:$0xff]
      %v5630 = vld [vmem:[%s5037 + $0x20] sm:$0xff]
      %v5631 = vld [vmem:[%s5037 + $0x38] sm:$0xff]
      %v5632 = vld [vmem:[%s5037 + $0x50] sm:$0xff]
      %v5633 = vld [vmem:[%s5037 + $0x68] sm:$0xff]
      %v5634 = vld [vmem:[%s5037 + $0x80] sm:$0xff]
      %v5635 = vld [vmem:[%s5037 + $0x98] sm:$0xff]
      %v5636 = vld [vmem:[%s5037 + $0xb0] sm:$0xff]
      %s5637 = scalar_lea.vmem %s3, 128
      %v5638 = vld [vmem:[%s5637] sm:$0xff]
      %v5639 = vld [vmem:[%s5637 + $0x8] sm:$0xff]
      %v5640 = vld [vmem:[%s5637 + $0x10] sm:$0xff]
      %v5641 = vld [vmem:[%s5637 + $0x18] sm:$0xff]
      %v5643 = vsel %vm4614, %v5629, 0
      %v5646 = vsel %vm4614, %v5630, 0
      %v5649 = vsel %vm4614, %v5631, 0
      %v5652 = vsel %vm4614, %v5632, 0
      %v5655 = vsel %vm4614, %v5633, 0
      %v5658 = vsel %vm4614, %v5634, 0
      %v5661 = vsel %vm4614, %v5635, 0
      %v5664 = vsel %vm4614, %v5636, 0
      %5666 = vmatprep.subr.mxu0 0.0
      %5667 = vmatpush1.msra.mxu0 %v5638
      %5668 = vmatprep.subr.mxu0 0.0
      %5669 = vmatpush1.msra.mxu0 %v5639
      %5670 = vmatprep.subr.mxu0 0.0
      %5671 = vmatpush1.msra.mxu0 %v5640
      %5672 = vmatprep.subr.mxu0 0.0
      %5673 = vmatpush1.msra.mxu0 %v5641
      %5674 = vmatprep.subr.mxu0 0.0
      %5675 = vmatpush1.msra.mxu0 0.0
      %5676 = vmatprep.subr.mxu0 0.0
      %5677 = vmatpush1.msra.mxu0 0.0
      %5678 = vmatprep.subr.mxu0 0.0
      %5679 = vmatpush1.msra.mxu0 0.0
      %5680 = vmatprep.subr.mxu0 0.0
      %5681 = vmatpush1.msra.mxu0 0.0
      %5682 = vmatprep.subr.mxu0 0.0
      %5683 = vmatpush1.msra.mxu0 0.0
      %5684 = vmatprep.subr.mxu0 0.0
      %5685 = vmatpush1.msra.mxu0 0.0
      %5686 = vmatprep.subr.mxu0 0.0
      %5687 = vmatpush1.msra.mxu0 0.0
      %5688 = vmatprep.subr.mxu0 0.0
      %5689 = vmatpush1.msra.mxu0 0.0
      %5690 = vmatprep.subr.mxu0 0.0
      %5691 = vmatpush1.msra.mxu0 0.0
      %5692 = vmatprep.subr.mxu0 0.0
      %5693 = vmatpush1.msra.mxu0 0.0
      %5694 = vmatprep.subr.mxu0 0.0
      %5695 = vmatpush1.msra.mxu0 0.0
      %5696 = vmatprep.subr.mxu0 0.0
      %5697 = vmatpush1.msra.mxu0 0.0
      %5698 = vmatprep.subr.mxu0 0.0
      %5699 = vmatpush1.msra.mxu0 0.0
      %5700 = vmatprep.subr.mxu0 0.0
      %5701 = vmatpush1.msra.mxu0 0.0
      %5702 = vmatprep.subr.mxu0 0.0
      %5703 = vmatpush1.msra.mxu0 0.0
      %5704 = vmatprep.subr.mxu0 0.0
      %5705 = vmatpush1.msra.mxu0 0.0
      %5706 = vmatprep.subr.mxu0 0.0
      %5707 = vmatpush1.msra.mxu0 0.0
      %5708 = vmatprep.subr.mxu0 0.0
      %5709 = vmatpush1.msra.mxu0 0.0
      %5710 = vmatprep.subr.mxu0 0.0
      %5711 = vmatpush1.msra.mxu0 0.0
      %5712 = vmatprep.subr.mxu0 0.0
      %5713 = vmatpush1.msra.mxu0 0.0
      %5714 = vmatprep.subr.mxu0 0.0
      %5715 = vmatpush1.msra.mxu0 0.0
      %5716 = vmatprep.subr.mxu0 0.0
      %5717 = vmatpush1.msra.mxu0 0.0
      %5718 = vmatprep.subr.mxu0 0.0
      %5719 = vmatpush1.msra.mxu0 0.0
      %5720 = vmatprep.subr.mxu0 0.0
      %5721 = vmatpush1.msra.mxu0 0.0
      %5722 = vmatprep.subr.mxu0 0.0
      %5723 = vmatpush1.msra.mxu0 0.0
      %5724 = vmatprep.subr.mxu0 0.0
      %5725 = vmatpush1.msra.mxu0 0.0
      %5726 = vmatprep.subr.mxu0 0.0
      %5727 = vmatpush1.msra.mxu0 0.0
      %5728 = vmatprep.subr.mxu0 0.0
      %5729 = vmatpush1.msra.mxu0 0.0
      %5730 = vmatprep.mubr.f32.mxu0 0.0
      %5731 = vmatmul.mubr.f32.gmra.mrb[0].mxu0 %v5643
      %v5732 = vpop.f32.mrb[0].mxu0
      %v5733 = vadd.f32 0.0, %v5732
      %v5734 = vpop.f32.mrb[0].mxu0
      %5735 = vmatprep.mubr.f32.mxu0 0.0
      %5736 = vmatmul.mubr.f32.gmra.mrb[0].mxu0 %v5646
      %v5737 = vpop.f32.mrb[0].mxu0
      %v5738 = vadd.f32 0.0, %v5737
      %v5739 = vpop.f32.mrb[0].mxu0
      %5740 = vmatprep.mubr.f32.mxu0 0.0
      %5741 = vmatmul.mubr.f32.gmra.mrb[0].mxu0 %v5649
      %v5742 = vpop.f32.mrb[0].mxu0
      %v5743 = vadd.f32 0.0, %v5742
      %v5744 = vpop.f32.mrb[0].mxu0
      %5745 = vmatprep.mubr.f32.mxu0 0.0
      %5746 = vmatmul.mubr.f32.gmra.mrb[0].mxu0 %v5652
      %v5747 = vpop.f32.mrb[0].mxu0
      %v5748 = vadd.f32 0.0, %v5747
      %v5749 = vpop.f32.mrb[0].mxu0
      %5750 = vmatprep.mubr.f32.mxu0 0.0
      %5751 = vmatmul.mubr.f32.gmra.mrb[0].mxu0 %v5655
      %v5752 = vpop.f32.mrb[0].mxu0
      %v5753 = vadd.f32 0.0, %v5752
      %v5754 = vpop.f32.mrb[0].mxu0
      %5755 = vmatprep.mubr.f32.mxu0 0.0
      %5756 = vmatmul.mubr.f32.gmra.mrb[0].mxu0 %v5658
      %v5757 = vpop.f32.mrb[0].mxu0
      %v5758 = vadd.f32 0.0, %v5757
      %v5759 = vpop.f32.mrb[0].mxu0
      %5760 = vmatprep.mubr.f32.mxu0 0.0
      %5761 = vmatmul.mubr.f32.gmra.mrb[0].mxu0 %v5661
      %v5762 = vpop.f32.mrb[0].mxu0
      %v5763 = vadd.f32 0.0, %v5762
      %v5764 = vpop.f32.mrb[0].mxu0
      %5765 = vmatprep.mubr.f32.mxu0 0.0
      %5766 = vmatmul.mubr.f32.gmra.mrb[0].mxu0 %v5664
      %v5767 = vpop.f32.mrb[0].mxu0
      %v5768 = vadd.f32 0.0, %v5767
      %v5769 = vpop.f32.mrb[0].mxu0
      %5770 = vdwg.mxu0
      %v5771 = vadd.f32 %v5621, %v5733
      %v5772 = vadd.f32 %v5622, %v5738
      %v5773 = vadd.f32 %v5623, %v5743
      %v5774 = vadd.f32 %v5624, %v5748
      %v5775 = vadd.f32 %v5625, %v5753
      %v5776 = vadd.f32 %v5626, %v5758
      %v5777 = vadd.f32 %v5627, %v5763
      %v5778 = vadd.f32 %v5628, %v5768
      %v5779 = vld [vmem:[%s5037 + $0x9] sm:$0xff]
      %v5780 = vld [vmem:[%s5037 + $0x21] sm:$0xff]
      %v5781 = vld [vmem:[%s5037 + $0x39] sm:$0xff]
      %v5782 = vld [vmem:[%s5037 + $0x51] sm:$0xff]
      %v5783 = vld [vmem:[%s5037 + $0x69] sm:$0xff]
      %v5784 = vld [vmem:[%s5037 + $0x81] sm:$0xff]
      %v5785 = vld [vmem:[%s5037 + $0x99] sm:$0xff]
      %v5786 = vld [vmem:[%s5037 + $0xb1] sm:$0xff]
      %s5787 = scalar_lea.vmem %s3, 160
      %v5788 = vld [vmem:[%s5787] sm:$0xff]
      %v5789 = vld [vmem:[%s5787 + $0x8] sm:$0xff]
      %v5790 = vld [vmem:[%s5787 + $0x10] sm:$0xff]
      %v5791 = vld [vmem:[%s5787 + $0x18] sm:$0xff]
      %v5793 = vsel %vm4614, %v5779, 0
      %v5796 = vsel %vm4614, %v5780, 0
      %v5799 = vsel %vm4614, %v5781, 0
      %v5802 = vsel %vm4614, %v5782, 0
      %v5805 = vsel %vm4614, %v5783, 0
      %v5808 = vsel %vm4614, %v5784, 0
      %v5811 = vsel %vm4614, %v5785, 0
      %v5814 = vsel %vm4614, %v5786, 0
      %5816 = vmatprep.subr.mxu0 0.0
      %5817 = vmatpush1.msra.mxu0 %v5788
      %5818 = vmatprep.subr.mxu0 0.0
      %5819 = vmatpush1.msra.mxu0 %v5789
      %5820 = vmatprep.subr.mxu0 0.0
      %5821 = vmatpush1.msra.mxu0 %v5790
      %5822 = vmatprep.subr.mxu0 0.0
      %5823 = vmatpush1.msra.mxu0 %v5791
      %5824 = vmatprep.subr.mxu0 0.0
      %5825 = vmatpush1.msra.mxu0 0.0
      %5826 = vmatprep.subr.mxu0 0.0
      %5827 = vmatpush1.msra.mxu0 0.0
      %5828 = vmatprep.subr.mxu0 0.0
      %5829 = vmatpush1.msra.mxu0 0.0
      %5830 = vmatprep.subr.mxu0 0.0
      %5831 = vmatpush1.msra.mxu0 0.0
      %5832 = vmatprep.subr.mxu0 0.0
      %5833 = vmatpush1.msra.mxu0 0.0
      %5834 = vmatprep.subr.mxu0 0.0
      %5835 = vmatpush1.msra.mxu0 0.0
      %5836 = vmatprep.subr.mxu0 0.0
      %5837 = vmatpush1.msra.mxu0 0.0
      %5838 = vmatprep.subr.mxu0 0.0
      %5839 = vmatpush1.msra.mxu0 0.0
      %5840 = vmatprep.subr.mxu0 0.0
      %5841 = vmatpush1.msra.mxu0 0.0
      %5842 = vmatprep.subr.mxu0 0.0
      %5843 = vmatpush1.msra.mxu0 0.0
      %5844 = vmatprep.subr.mxu0 0.0
      %5845 = vmatpush1.msra.mxu0 0.0
      %5846 = vmatprep.subr.mxu0 0.0
      %5847 = vmatpush1.msra.mxu0 0.0
      %5848 = vmatprep.subr.mxu0 0.0
      %5849 = vmatpush1.msra.mxu0 0.0
      %5850 = vmatprep.subr.mxu0 0.0
      %5851 = vmatpush1.msra.mxu0 0.0
      %5852 = vmatprep.subr.mxu0 0.0
      %5853 = vmatpush1.msra.mxu0 0.0
      %5854 = vmatprep.subr.mxu0 0.0
      %5855 = vmatpush1.msra.mxu0 0.0
      %5856 = vmatprep.subr.mxu0 0.0
      %5857 = vmatpush1.msra.mxu0 0.0
      %5858 = vmatprep.subr.mxu0 0.0
      %5859 = vmatpush1.msra.mxu0 0.0
      %5860 = vmatprep.subr.mxu0 0.0
      %5861 = vmatpush1.msra.mxu0 0.0
      %5862 = vmatprep.subr.mxu0 0.0
      %5863 = vmatpush1.msra.mxu0 0.0
      %5864 = vmatprep.subr.mxu0 0.0
      %5865 = vmatpush1.msra.mxu0 0.0
      %5866 = vmatprep.subr.mxu0 0.0
      %5867 = vmatpush1.msra.mxu0 0.0
      %5868 = vmatprep.subr.mxu0 0.0
      %5869 = vmatpush1.msra.mxu0 0.0
      %5870 = vmatprep.subr.mxu0 0.0
      %5871 = vmatpush1.msra.mxu0 0.0
      %5872 = vmatprep.subr.mxu0 0.0
      %5873 = vmatpush1.msra.mxu0 0.0
      %5874 = vmatprep.subr.mxu0 0.0
      %5875 = vmatpush1.msra.mxu0 0.0
      %5876 = vmatprep.subr.mxu0 0.0
      %5877 = vmatpush1.msra.mxu0 0.0
      %5878 = vmatprep.subr.mxu0 0.0
      %5879 = vmatpush1.msra.mxu0 0.0
      %5880 = vmatprep.mubr.f32.mxu0 0.0
      %5881 = vmatmul.mubr.f32.gmra.mrb[0].mxu0 %v5793
      %v5882 = vpop.f32.mrb[0].mxu0
      %v5883 = vadd.f32 0.0, %v5882
      %v5884 = vpop.f32.mrb[0].mxu0
      %5885 = vmatprep.mubr.f32.mxu0 0.0
      %5886 = vmatmul.mubr.f32.gmra.mrb[0].mxu0 %v5796
      %v5887 = vpop.f32.mrb[0].mxu0
      %v5888 = vadd.f32 0.0, %v5887
      %v5889 = vpop.f32.mrb[0].mxu0
      %5890 = vmatprep.mubr.f32.mxu0 0.0
      %5891 = vmatmul.mubr.f32.gmra.mrb[0].mxu0 %v5799
      %v5892 = vpop.f32.mrb[0].mxu0
      %v5893 = vadd.f32 0.0, %v5892
      %v5894 = vpop.f32.mrb[0].mxu0
      %5895 = vmatprep.mubr.f32.mxu0 0.0
      %5896 = vmatmul.mubr.f32.gmra.mrb[0].mxu0 %v5802
      %v5897 = vpop.f32.mrb[0].mxu0
      %v5898 = vadd.f32 0.0, %v5897
      %v5899 = vpop.f32.mrb[0].mxu0
      %5900 = vmatprep.mubr.f32.mxu0 0.0
      %5901 = vmatmul.mubr.f32.gmra.mrb[0].mxu0 %v5805
      %v5902 = vpop.f32.mrb[0].mxu0
      %v5903 = vadd.f32 0.0, %v5902
      %v5904 = vpop.f32.mrb[0].mxu0
      %5905 = vmatprep.mubr.f32.mxu0 0.0
      %5906 = vmatmul.mubr.f32.gmra.mrb[0].mxu0 %v5808
      %v5907 = vpop.f32.mrb[0].mxu0
      %v5908 = vadd.f32 0.0, %v5907
      %v5909 = vpop.f32.mrb[0].mxu0
      %5910 = vmatprep.mubr.f32.mxu0 0.0
      %5911 = vmatmul.mubr.f32.gmra.mrb[0].mxu0 %v5811
      %v5912 = vpop.f32.mrb[0].mxu0
      %v5913 = vadd.f32 0.0, %v5912
      %v5914 = vpop.f32.mrb[0].mxu0
      %5915 = vmatprep.mubr.f32.mxu0 0.0
      %5916 = vmatmul.mubr.f32.gmra.mrb[0].mxu0 %v5814
      %v5917 = vpop.f32.mrb[0].mxu0
      %v5918 = vadd.f32 0.0, %v5917
      %v5919 = vpop.f32.mrb[0].mxu0
      %5920 = vdwg.mxu0
      %v5921 = vadd.f32 %v5771, %v5883
      %v5922 = vadd.f32 %v5772, %v5888
      %v5923 = vadd.f32 %v5773, %v5893
      %v5924 = vadd.f32 %v5774, %v5898
      %v5925 = vadd.f32 %v5775, %v5903
      %v5926 = vadd.f32 %v5776, %v5908
      %v5927 = vadd.f32 %v5777, %v5913
      %v5928 = vadd.f32 %v5778, %v5918
      %s5929 = scalar_lea.vmem [#allocation3], 48
      %v5930 = vld [vmem:[%s5929 + $0x7] sm:$0xff]
      %v5931 = vld [vmem:[%s5929 + $0x1f] sm:$0xff]
      %v5932 = vld [vmem:[%s5929 + $0x37] sm:$0xff]
      %v5933 = vld [vmem:[%s5929 + $0x4f] sm:$0xff]
      %v5934 = vld [vmem:[%s5929 + $0x67] sm:$0xff]
      %v5935 = vld [vmem:[%s5929 + $0x7f] sm:$0xff]
      %v5936 = vld [vmem:[%s5929 + $0x97] sm:$0xff]
      %v5937 = vld [vmem:[%s5929 + $0xaf] sm:$0xff]
      %s5938 = scalar_lea.vmem %s3, 192
      %v5939 = vld [vmem:[%s5938] sm:$0xff]
      %v5940 = vld [vmem:[%s5938 + $0x8] sm:$0xff]
      %v5941 = vld [vmem:[%s5938 + $0x10] sm:$0xff]
      %v5942 = vld [vmem:[%s5938 + $0x18] sm:$0xff]
      %v5944 = vsel %vm4614, %v5930, 0
      %v5947 = vsel %vm4614, %v5931, 0
      %v5950 = vsel %vm4614, %v5932, 0
      %v5953 = vsel %vm4614, %v5933, 0
      %v5956 = vsel %vm4614, %v5934, 0
      %v5959 = vsel %vm4614, %v5935, 0
      %v5962 = vsel %vm4614, %v5936, 0
      %v5965 = vsel %vm4614, %v5937, 0
      %5967 = vmatprep.subr.mxu0 0.0
      %5968 = vmatpush1.msra.mxu0 %v5939
      %5969 = vmatprep.subr.mxu0 0.0
      %5970 = vmatpush1.msra.mxu0 %v5940
      %5971 = vmatprep.subr.mxu0 0.0
      %5972 = vmatpush1.msra.mxu0 %v5941
      %5973 = vmatprep.subr.mxu0 0.0
      %5974 = vmatpush1.msra.mxu0 %v5942
      %5975 = vmatprep.subr.mxu0 0.0
      %5976 = vmatpush1.msra.mxu0 0.0
      %5977 = vmatprep.subr.mxu0 0.0
      %5978 = vmatpush1.msra.mxu0 0.0
      %5979 = vmatprep.subr.mxu0 0.0
      %5980 = vmatpush1.msra.mxu0 0.0
      %5981 = vmatprep.subr.mxu0 0.0
      %5982 = vmatpush1.msra.mxu0 0.0
      %5983 = vmatprep.subr.mxu0 0.0
      %5984 = vmatpush1.msra.mxu0 0.0
      %5985 = vmatprep.subr.mxu0 0.0
      %5986 = vmatpush1.msra.mxu0 0.0
      %5987 = vmatprep.subr.mxu0 0.0
      %5988 = vmatpush1.msra.mxu0 0.0
      %5989 = vmatprep.subr.mxu0 0.0
      %5990 = vmatpush1.msra.mxu0 0.0
      %5991 = vmatprep.subr.mxu0 0.0
      %5992 = vmatpush1.msra.mxu0 0.0
      %5993 = vmatprep.subr.mxu0 0.0
      %5994 = vmatpush1.msra.mxu0 0.0
      %5995 = vmatprep.subr.mxu0 0.0
      %5996 = vmatpush1.msra.mxu0 0.0
      %5997 = vmatprep.subr.mxu0 0.0
      %5998 = vmatpush1.msra.mxu0 0.0
      %5999 = vmatprep.subr.mxu0 0.0
      %6000 = vmatpush1.msra.mxu0 0.0
      %6001 = vmatprep.subr.mxu0 0.0
      %6002 = vmatpush1.msra.mxu0 0.0
      %6003 = vmatprep.subr.mxu0 0.0
      %6004 = vmatpush1.msra.mxu0 0.0
      %6005 = vmatprep.subr.mxu0 0.0
      %6006 = vmatpush1.msra.mxu0 0.0
      %6007 = vmatprep.subr.mxu0 0.0
      %6008 = vmatpush1.msra.mxu0 0.0
      %6009 = vmatprep.subr.mxu0 0.0
      %6010 = vmatpush1.msra.mxu0 0.0
      %6011 = vmatprep.subr.mxu0 0.0
      %6012 = vmatpush1.msra.mxu0 0.0
      %6013 = vmatprep.subr.mxu0 0.0
      %6014 = vmatpush1.msra.mxu0 0.0
      %6015 = vmatprep.subr.mxu0 0.0
      %6016 = vmatpush1.msra.mxu0 0.0
      %6017 = vmatprep.subr.mxu0 0.0
      %6018 = vmatpush1.msra.mxu0 0.0
      %6019 = vmatprep.subr.mxu0 0.0
      %6020 = vmatpush1.msra.mxu0 0.0
      %6021 = vmatprep.subr.mxu0 0.0
      %6022 = vmatpush1.msra.mxu0 0.0
      %6023 = vmatprep.subr.mxu0 0.0
      %6024 = vmatpush1.msra.mxu0 0.0
      %6025 = vmatprep.subr.mxu0 0.0
      %6026 = vmatpush1.msra.mxu0 0.0
      %6027 = vmatprep.subr.mxu0 0.0
      %6028 = vmatpush1.msra.mxu0 0.0
      %6029 = vmatprep.subr.mxu0 0.0
      %6030 = vmatpush1.msra.mxu0 0.0
      %6031 = vmatprep.mubr.f32.mxu0 0.0
      %6032 = vmatmul.mubr.f32.gmra.mrb[0].mxu0 %v5944
      %v6033 = vpop.f32.mrb[0].mxu0
      %v6034 = vadd.f32 0.0, %v6033
      %v6035 = vpop.f32.mrb[0].mxu0
      %6036 = vmatprep.mubr.f32.mxu0 0.0
      %6037 = vmatmul.mubr.f32.gmra.mrb[0].mxu0 %v5947
      %v6038 = vpop.f32.mrb[0].mxu0
      %v6039 = vadd.f32 0.0, %v6038
      %v6040 = vpop.f32.mrb[0].mxu0
      %6041 = vmatprep.mubr.f32.mxu0 0.0
      %6042 = vmatmul.mubr.f32.gmra.mrb[0].mxu0 %v5950
      %v6043 = vpop.f32.mrb[0].mxu0
      %v6044 = vadd.f32 0.0, %v6043
      %v6045 = vpop.f32.mrb[0].mxu0
      %6046 = vmatprep.mubr.f32.mxu0 0.0
      %6047 = vmatmul.mubr.f32.gmra.mrb[0].mxu0 %v5953
      %v6048 = vpop.f32.mrb[0].mxu0
      %v6049 = vadd.f32 0.0, %v6048
      %v6050 = vpop.f32.mrb[0].mxu0
      %6051 = vmatprep.mubr.f32.mxu0 0.0
      %6052 = vmatmul.mubr.f32.gmra.mrb[0].mxu0 %v5956
      %v6053 = vpop.f32.mrb[0].mxu0
      %v6054 = vadd.f32 0.0, %v6053
      %v6055 = vpop.f32.mrb[0].mxu0
      %6056 = vmatprep.mubr.f32.mxu0 0.0
      %6057 = vmatmul.mubr.f32.gmra.mrb[0].mxu0 %v5959
      %v6058 = vpop.f32.mrb[0].mxu0
      %v6059 = vadd.f32 0.0, %v6058
      %v6060 = vpop.f32.mrb[0].mxu0
      %6061 = vmatprep.mubr.f32.mxu0 0.0
      %6062 = vmatmul.mubr.f32.gmra.mrb[0].mxu0 %v5962
      %v6063 = vpop.f32.mrb[0].mxu0
      %v6064 = vadd.f32 0.0, %v6063
      %v6065 = vpop.f32.mrb[0].mxu0
      %6066 = vmatprep.mubr.f32.mxu0 0.0
      %6067 = vmatmul.mubr.f32.gmra.mrb[0].mxu0 %v5965
      %v6068 = vpop.f32.mrb[0].mxu0
      %v6069 = vadd.f32 0.0, %v6068
      %v6070 = vpop.f32.mrb[0].mxu0
      %6071 = vdwg.mxu0
      %v6072 = vadd.f32 %v5921, %v6034
      %v6073 = vadd.f32 %v5922, %v6039
      %v6074 = vadd.f32 %v5923, %v6044
      %v6075 = vadd.f32 %v5924, %v6049
      %v6076 = vadd.f32 %v5925, %v6054
      %v6077 = vadd.f32 %v5926, %v6059
      %v6078 = vadd.f32 %v5927, %v6064
      %v6079 = vadd.f32 %v5928, %v6069
      %v6080 = vld [vmem:[%s5929 + $0x8] sm:$0xff]
      %v6081 = vld [vmem:[%s5929 + $0x20] sm:$0xff]
      %v6082 = vld [vmem:[%s5929 + $0x38] sm:$0xff]
      %v6083 = vld [vmem:[%s5929 + $0x50] sm:$0xff]
      %v6084 = vld [vmem:[%s5929 + $0x68] sm:$0xff]
      %v6085 = vld [vmem:[%s5929 + $0x80] sm:$0xff]
      %v6086 = vld [vmem:[%s5929 + $0x98] sm:$0xff]
      %v6087 = vld [vmem:[%s5929 + $0xb0] sm:$0xff]
      %s6088 = scalar_lea.vmem %s3, 224
      %v6089 = vld [vmem:[%s6088] sm:$0xff]
      %v6090 = vld [vmem:[%s6088 + $0x8] sm:$0xff]
      %v6091 = vld [vmem:[%s6088 + $0x10] sm:$0xff]
      %v6092 = vld [vmem:[%s6088 + $0x18] sm:$0xff]
      %v6094 = vsel %vm4614, %v6080, 0
      %v6097 = vsel %vm4614, %v6081, 0
      %v6100 = vsel %vm4614, %v6082, 0
      %v6103 = vsel %vm4614, %v6083, 0
      %v6106 = vsel %vm4614, %v6084, 0
      %v6109 = vsel %vm4614, %v6085, 0
      %v6112 = vsel %vm4614, %v6086, 0
      %v6115 = vsel %vm4614, %v6087, 0
      %6117 = vmatprep.subr.mxu0 0.0
      %6118 = vmatpush1.msra.mxu0 %v6089
      %6119 = vmatprep.subr.mxu0 0.0
      %6120 = vmatpush1.msra.mxu0 %v6090
      %6121 = vmatprep.subr.mxu0 0.0
      %6122 = vmatpush1.msra.mxu0 %v6091
      %6123 = vmatprep.subr.mxu0 0.0
      %6124 = vmatpush1.msra.mxu0 %v6092
      %6125 = vmatprep.subr.mxu0 0.0
      %6126 = vmatpush1.msra.mxu0 0.0
      %6127 = vmatprep.subr.mxu0 0.0
      %6128 = vmatpush1.msra.mxu0 0.0
      %6129 = vmatprep.subr.mxu0 0.0
      %6130 = vmatpush1.msra.mxu0 0.0
      %6131 = vmatprep.subr.mxu0 0.0
      %6132 = vmatpush1.msra.mxu0 0.0
      %6133 = vmatprep.subr.mxu0 0.0
      %6134 = vmatpush1.msra.mxu0 0.0
      %6135 = vmatprep.subr.mxu0 0.0
      %6136 = vmatpush1.msra.mxu0 0.0
      %6137 = vmatprep.subr.mxu0 0.0
      %6138 = vmatpush1.msra.mxu0 0.0
      %6139 = vmatprep.subr.mxu0 0.0
      %6140 = vmatpush1.msra.mxu0 0.0
      %6141 = vmatprep.subr.mxu0 0.0
      %6142 = vmatpush1.msra.mxu0 0.0
      %6143 = vmatprep.subr.mxu0 0.0
      %6144 = vmatpush1.msra.mxu0 0.0
      %6145 = vmatprep.subr.mxu0 0.0
      %6146 = vmatpush1.msra.mxu0 0.0
      %6147 = vmatprep.subr.mxu0 0.0
      %6148 = vmatpush1.msra.mxu0 0.0
      %6149 = vmatprep.subr.mxu0 0.0
      %6150 = vmatpush1.msra.mxu0 0.0
      %6151 = vmatprep.subr.mxu0 0.0
      %6152 = vmatpush1.msra.mxu0 0.0
      %6153 = vmatprep.subr.mxu0 0.0
      %6154 = vmatpush1.msra.mxu0 0.0
      %6155 = vmatprep.subr.mxu0 0.0
      %6156 = vmatpush1.msra.mxu0 0.0
      %6157 = vmatprep.subr.mxu0 0.0
      %6158 = vmatpush1.msra.mxu0 0.0
      %6159 = vmatprep.subr.mxu0 0.0
      %6160 = vmatpush1.msra.mxu0 0.0
      %6161 = vmatprep.subr.mxu0 0.0
      %6162 = vmatpush1.msra.mxu0 0.0
      %6163 = vmatprep.subr.mxu0 0.0
      %6164 = vmatpush1.msra.mxu0 0.0
      %6165 = vmatprep.subr.mxu0 0.0
      %6166 = vmatpush1.msra.mxu0 0.0
      %6167 = vmatprep.subr.mxu0 0.0
      %6168 = vmatpush1.msra.mxu0 0.0
      %6169 = vmatprep.subr.mxu0 0.0
      %6170 = vmatpush1.msra.mxu0 0.0
      %6171 = vmatprep.subr.mxu0 0.0
      %6172 = vmatpush1.msra.mxu0 0.0
      %6173 = vmatprep.subr.mxu0 0.0
      %6174 = vmatpush1.msra.mxu0 0.0
      %6175 = vmatprep.subr.mxu0 0.0
      %6176 = vmatpush1.msra.mxu0 0.0
      %6177 = vmatprep.subr.mxu0 0.0
      %6178 = vmatpush1.msra.mxu0 0.0
      %6179 = vmatprep.subr.mxu0 0.0
      %6180 = vmatpush1.msra.mxu0 0.0
      %6181 = vmatprep.mubr.f32.mxu0 0.0
      %6182 = vmatmul.mubr.f32.gmra.mrb[0].mxu0 %v6094
      %v6183 = vpop.f32.mrb[0].mxu0
      %v6184 = vadd.f32 0.0, %v6183
      %v6185 = vpop.f32.mrb[0].mxu0
      %6186 = vmatprep.mubr.f32.mxu0 0.0
      %6187 = vmatmul.mubr.f32.gmra.mrb[0].mxu0 %v6097
      %v6188 = vpop.f32.mrb[0].mxu0
      %v6189 = vadd.f32 0.0, %v6188
      %v6190 = vpop.f32.mrb[0].mxu0
      %6191 = vmatprep.mubr.f32.mxu0 0.0
      %6192 = vmatmul.mubr.f32.gmra.mrb[0].mxu0 %v6100
      %v6193 = vpop.f32.mrb[0].mxu0
      %v6194 = vadd.f32 0.0, %v6193
      %v6195 = vpop.f32.mrb[0].mxu0
      %6196 = vmatprep.mubr.f32.mxu0 0.0
      %6197 = vmatmul.mubr.f32.gmra.mrb[0].mxu0 %v6103
      %v6198 = vpop.f32.mrb[0].mxu0
      %v6199 = vadd.f32 0.0, %v6198
      %v6200 = vpop.f32.mrb[0].mxu0
      %6201 = vmatprep.mubr.f32.mxu0 0.0
      %6202 = vmatmul.mubr.f32.gmra.mrb[0].mxu0 %v6106
      %v6203 = vpop.f32.mrb[0].mxu0
      %v6204 = vadd.f32 0.0, %v6203
      %v6205 = vpop.f32.mrb[0].mxu0
      %6206 = vmatprep.mubr.f32.mxu0 0.0
      %6207 = vmatmul.mubr.f32.gmra.mrb[0].mxu0 %v6109
      %v6208 = vpop.f32.mrb[0].mxu0
      %v6209 = vadd.f32 0.0, %v6208
      %v6210 = vpop.f32.mrb[0].mxu0
      %6211 = vmatprep.mubr.f32.mxu0 0.0
      %6212 = vmatmul.mubr.f32.gmra.mrb[0].mxu0 %v6112
      %v6213 = vpop.f32.mrb[0].mxu0
      %v6214 = vadd.f32 0.0, %v6213
      %v6215 = vpop.f32.mrb[0].mxu0
      %6216 = vmatprep.mubr.f32.mxu0 0.0
      %6217 = vmatmul.mubr.f32.gmra.mrb[0].mxu0 %v6115
      %v6218 = vpop.f32.mrb[0].mxu0
      %v6219 = vadd.f32 0.0, %v6218
      %v6220 = vpop.f32.mrb[0].mxu0
      %6221 = vdwg.mxu0
      %v6222 = vadd.f32 %v6072, %v6184
      %v6223 = vadd.f32 %v6073, %v6189
      %v6224 = vadd.f32 %v6074, %v6194
      %v6225 = vadd.f32 %v6075, %v6199
      %v6226 = vadd.f32 %v6076, %v6204
      %v6227 = vadd.f32 %v6077, %v6209
      %v6228 = vadd.f32 %v6078, %v6214
      %v6229 = vadd.f32 %v6079, %v6219
      %v6230 = vld [vmem:[%s5929 + $0x9] sm:$0xff]
      %v6231 = vld [vmem:[%s5929 + $0x21] sm:$0xff]
      %v6232 = vld [vmem:[%s5929 + $0x39] sm:$0xff]
      %v6233 = vld [vmem:[%s5929 + $0x51] sm:$0xff]
      %v6234 = vld [vmem:[%s5929 + $0x69] sm:$0xff]
      %v6235 = vld [vmem:[%s5929 + $0x81] sm:$0xff]
      %v6236 = vld [vmem:[%s5929 + $0x99] sm:$0xff]
      %v6237 = vld [vmem:[%s5929 + $0xb1] sm:$0xff]
      %s6238 = scalar_lea.vmem %s3, 256
      %v6239 = vld [vmem:[%s6238] sm:$0xff]
      %v6240 = vld [vmem:[%s6238 + $0x8] sm:$0xff]
      %v6241 = vld [vmem:[%s6238 + $0x10] sm:$0xff]
      %v6242 = vld [vmem:[%s6238 + $0x18] sm:$0xff]
      %v6244 = vsel %vm4614, %v6230, 0
      %v6247 = vsel %vm4614, %v6231, 0
      %v6250 = vsel %vm4614, %v6232, 0
      %v6253 = vsel %vm4614, %v6233, 0
      %v6256 = vsel %vm4614, %v6234, 0
      %v6259 = vsel %vm4614, %v6235, 0
      %v6262 = vsel %vm4614, %v6236, 0
      %v6265 = vsel %vm4614, %v6237, 0
      %6267 = vmatprep.subr.mxu0 0.0
      %6268 = vmatpush1.msra.mxu0 %v6239
      %6269 = vmatprep.subr.mxu0 0.0
      %6270 = vmatpush1.msra.mxu0 %v6240
      %6271 = vmatprep.subr.mxu0 0.0
      %6272 = vmatpush1.msra.mxu0 %v6241
      %6273 = vmatprep.subr.mxu0 0.0
      %6274 = vmatpush1.msra.mxu0 %v6242
      %6275 = vmatprep.subr.mxu0 0.0
      %6276 = vmatpush1.msra.mxu0 0.0
      %6277 = vmatprep.subr.mxu0 0.0
      %6278 = vmatpush1.msra.mxu0 0.0
      %6279 = vmatprep.subr.mxu0 0.0
      %6280 = vmatpush1.msra.mxu0 0.0
      %6281 = vmatprep.subr.mxu0 0.0
      %6282 = vmatpush1.msra.mxu0 0.0
      %6283 = vmatprep.subr.mxu0 0.0
      %6284 = vmatpush1.msra.mxu0 0.0
      %6285 = vmatprep.subr.mxu0 0.0
      %6286 = vmatpush1.msra.mxu0 0.0
      %6287 = vmatprep.subr.mxu0 0.0
      %6288 = vmatpush1.msra.mxu0 0.0
      %6289 = vmatprep.subr.mxu0 0.0
      %6290 = vmatpush1.msra.mxu0 0.0
      %6291 = vmatprep.subr.mxu0 0.0
      %6292 = vmatpush1.msra.mxu0 0.0
      %6293 = vmatprep.subr.mxu0 0.0
      %6294 = vmatpush1.msra.mxu0 0.0
      %6295 = vmatprep.subr.mxu0 0.0
      %6296 = vmatpush1.msra.mxu0 0.0
      %6297 = vmatprep.subr.mxu0 0.0
      %6298 = vmatpush1.msra.mxu0 0.0
      %6299 = vmatprep.subr.mxu0 0.0
      %6300 = vmatpush1.msra.mxu0 0.0
      %6301 = vmatprep.subr.mxu0 0.0
      %6302 = vmatpush1.msra.mxu0 0.0
      %6303 = vmatprep.subr.mxu0 0.0
      %6304 = vmatpush1.msra.mxu0 0.0
      %6305 = vmatprep.subr.mxu0 0.0
      %6306 = vmatpush1.msra.mxu0 0.0
      %6307 = vmatprep.subr.mxu0 0.0
      %6308 = vmatpush1.msra.mxu0 0.0
      %6309 = vmatprep.subr.mxu0 0.0
      %6310 = vmatpush1.msra.mxu0 0.0
      %6311 = vmatprep.subr.mxu0 0.0
      %6312 = vmatpush1.msra.mxu0 0.0
      %6313 = vmatprep.subr.mxu0 0.0
      %6314 = vmatpush1.msra.mxu0 0.0
      %6315 = vmatprep.subr.mxu0 0.0
      %6316 = vmatpush1.msra.mxu0 0.0
      %6317 = vmatprep.subr.mxu0 0.0
      %6318 = vmatpush1.msra.mxu0 0.0
      %6319 = vmatprep.subr.mxu0 0.0
      %6320 = vmatpush1.msra.mxu0 0.0
      %6321 = vmatprep.subr.mxu0 0.0
      %6322 = vmatpush1.msra.mxu0 0.0
      %6323 = vmatprep.subr.mxu0 0.0
      %6324 = vmatpush1.msra.mxu0 0.0
      %6325 = vmatprep.subr.mxu0 0.0
      %6326 = vmatpush1.msra.mxu0 0.0
      %6327 = vmatprep.subr.mxu0 0.0
      %6328 = vmatpush1.msra.mxu0 0.0
      %6329 = vmatprep.subr.mxu0 0.0
      %6330 = vmatpush1.msra.mxu0 0.0
      %6331 = vmatprep.mubr.f32.mxu0 0.0
      %6332 = vmatmul.mubr.f32.gmra.mrb[0].mxu0 %v6244
      %v6333 = vpop.f32.mrb[0].mxu0
      %v6334 = vadd.f32 0.0, %v6333
      %v6335 = vpop.f32.mrb[0].mxu0
      %6336 = vmatprep.mubr.f32.mxu0 0.0
      %6337 = vmatmul.mubr.f32.gmra.mrb[0].mxu0 %v6247
      %v6338 = vpop.f32.mrb[0].mxu0
      %v6339 = vadd.f32 0.0, %v6338
      %v6340 = vpop.f32.mrb[0].mxu0
      %6341 = vmatprep.mubr.f32.mxu0 0.0
      %6342 = vmatmul.mubr.f32.gmra.mrb[0].mxu0 %v6250
      %v6343 = vpop.f32.mrb[0].mxu0
      %v6344 = vadd.f32 0.0, %v6343
      %v6345 = vpop.f32.mrb[0].mxu0
      %6346 = vmatprep.mubr.f32.mxu0 0.0
      %6347 = vmatmul.mubr.f32.gmra.mrb[0].mxu0 %v6253
      %v6348 = vpop.f32.mrb[0].mxu0
      %v6349 = vadd.f32 0.0, %v6348
      %v6350 = vpop.f32.mrb[0].mxu0
      %6351 = vmatprep.mubr.f32.mxu0 0.0
      %6352 = vmatmul.mubr.f32.gmra.mrb[0].mxu0 %v6256
      %v6353 = vpop.f32.mrb[0].mxu0
      %v6354 = vadd.f32 0.0, %v6353
      %v6355 = vpop.f32.mrb[0].mxu0
      %6356 = vmatprep.mubr.f32.mxu0 0.0
      %6357 = vmatmul.mubr.f32.gmra.mrb[0].mxu0 %v6259
      %v6358 = vpop.f32.mrb[0].mxu0
      %v6359 = vadd.f32 0.0, %v6358
      %v6360 = vpop.f32.mrb[0].mxu0
      %6361 = vmatprep.mubr.f32.mxu0 0.0
      %6362 = vmatmul.mubr.f32.gmra.mrb[0].mxu0 %v6262
      %v6363 = vpop.f32.mrb[0].mxu0
      %v6364 = vadd.f32 0.0, %v6363
      %v6365 = vpop.f32.mrb[0].mxu0
      %6366 = vmatprep.mubr.f32.mxu0 0.0
      %6367 = vmatmul.mubr.f32.gmra.mrb[0].mxu0 %v6265
      %v6368 = vpop.f32.mrb[0].mxu0
      %v6369 = vadd.f32 0.0, %v6368
      %v6370 = vpop.f32.mrb[0].mxu0
      %6371 = vdwg.mxu0
      %v6372 = vadd.f32 %v6222, %v6334
      %v6373 = vadd.f32 %v6223, %v6339
      %v6374 = vadd.f32 %v6224, %v6344
      %v6375 = vadd.f32 %v6225, %v6349
      %v6376 = vadd.f32 %v6226, %v6354
      %v6377 = vadd.f32 %v6227, %v6359
      %v6378 = vadd.f32 %v6228, %v6364
      %v6379 = vadd.f32 %v6229, %v6369
      %v6380 = vld [vmem:[%s4] sm:$0x1]
      %v6382 = vlaneseq
      %v6383 = vshrl.u32 %v6382, 7
      %v6384 = vsub.s32 0, %v6383
      %v6385 = vrot.slane %v6380, %v6384
      %v6387 = vadd.f32 %v6372, %v6385
      %v6388 = vadd.f32 %v6373, %v6385
      %v6389 = vadd.f32 %v6374, %v6385
      %v6390 = vadd.f32 %v6375, %v6385
      %v6391 = vadd.f32 %v6376, %v6385
      %v6392 = vadd.f32 %v6377, %v6385
      %v6393 = vadd.f32 %v6378, %v6385
      %v6394 = vadd.f32 %v6379, %v6385
      %v6395 = vmax.f32 %v6387, 0.0
      %v6396 = vmax.f32 %v6388, 0.0
      %v6397 = vmax.f32 %v6389, 0.0
      %v6398 = vmax.f32 %v6390, 0.0
      %v6399 = vmax.f32 %v6391, 0.0
      %v6400 = vmax.f32 %v6392, 0.0
      %v6401 = vmax.f32 %v6393, 0.0
      %v6402 = vmax.f32 %v6394, 0.0
      %v6403 = vmax.f32 %v6395, %v6396
      %v6404 = vmax.f32 %v6397, %v6398
      %v6405 = vmax.f32 %v6399, %v6400
      %v6406 = vmax.f32 %v6401, %v6402
      %v6411 = vcombine.high %v6403, %v6403
      %v6413 = vunpack.c.l.s4 1983009808
      %v6414 = vunpack.c.0.s8 %v6413
      %v6415 = vlaneseq
      %v6416 = vshrl.u32 %v6415, 7
      %v6417 = vsub.s32 %v6414, %v6416
      %v6418 = vrot.slane %v6403, %v6417
      %v6420 = vunpack.c.l.s4 1983009808
      %v6421 = vunpack.c.0.s8 %v6420
      %v6422 = vlaneseq
      %v6423 = vshrl.u32 %v6422, 7
      %v6424 = vsub.s32 %v6421, %v6423
      %v6425 = vrot.slane %v6411, %v6424
      %v6426 = vcombine.high %v6418, %v6418
      %v6427 = vcombine.high %v6425, %v6425
      %v6428 = vcombine.high %v6404, %v6404
      %v6430 = vunpack.c.l.s4 1983009808
      %v6431 = vunpack.c.0.s8 %v6430
      %v6432 = vlaneseq
      %v6433 = vshrl.u32 %v6432, 7
      %v6434 = vsub.s32 %v6431, %v6433
      %v6435 = vrot.slane %v6404, %v6434
      %v6437 = vunpack.c.l.s4 1983009808
      %v6438 = vunpack.c.0.s8 %v6437
      %v6439 = vlaneseq
      %v6440 = vshrl.u32 %v6439, 7
      %v6441 = vsub.s32 %v6438, %v6440
      %v6442 = vrot.slane %v6428, %v6441
      %v6443 = vcombine.high %v6435, %v6435
      %v6444 = vcombine.high %v6442, %v6442
      %v6445 = vcombine.high %v6405, %v6405
      %v6447 = vunpack.c.l.s4 1983009808
      %v6448 = vunpack.c.0.s8 %v6447
      %v6449 = vlaneseq
      %v6450 = vshrl.u32 %v6449, 7
      %v6451 = vsub.s32 %v6448, %v6450
      %v6452 = vrot.slane %v6405, %v6451
      %v6454 = vunpack.c.l.s4 1983009808
      %v6455 = vunpack.c.0.s8 %v6454
      %v6456 = vlaneseq
      %v6457 = vshrl.u32 %v6456, 7
      %v6458 = vsub.s32 %v6455, %v6457
      %v6459 = vrot.slane %v6445, %v6458
      %v6460 = vcombine.high %v6452, %v6452
      %v6461 = vcombine.high %v6459, %v6459
      %v6462 = vcombine.high %v6406, %v6406
      %v6464 = vunpack.c.l.s4 1983009808
      %v6465 = vunpack.c.0.s8 %v6464
      %v6466 = vlaneseq
      %v6467 = vshrl.u32 %v6466, 7
      %v6468 = vsub.s32 %v6465, %v6467
      %v6469 = vrot.slane %v6406, %v6468
      %v6471 = vunpack.c.l.s4 1983009808
      %v6472 = vunpack.c.0.s8 %v6471
      %v6473 = vlaneseq
      %v6474 = vshrl.u32 %v6473, 7
      %v6475 = vsub.s32 %v6472, %v6474
      %v6476 = vrot.slane %v6462, %v6475
      %v6477 = vcombine.high %v6469, %v6469
      %v6478 = vcombine.high %v6476, %v6476
      %v6495 = vrot.slane %v6418, 7
      %v6496 = vrot.slane %v6495, 2
      %v6497 = vrot.slane %v6426, 7
      %v6498 = vrot.slane %v6497, 2
      %v6499 = vrot.slane %v6425, 7
      %v6500 = vrot.slane %v6499, 2
      %v6501 = vrot.slane %v6427, 7
      %v6502 = vrot.slane %v6501, 2
      %v6503 = vrot.slane %v6435, 7
      %v6504 = vrot.slane %v6503, 2
      %v6505 = vrot.slane %v6443, 7
      %v6506 = vrot.slane %v6505, 2
      %v6507 = vrot.slane %v6442, 7
      %v6508 = vrot.slane %v6507, 2
      %v6509 = vrot.slane %v6444, 7
      %v6510 = vrot.slane %v6509, 2
      %v6511 = vrot.slane %v6452, 7
      %v6512 = vrot.slane %v6511, 2
      %v6513 = vrot.slane %v6460, 7
      %v6514 = vrot.slane %v6513, 2
      %v6515 = vrot.slane %v6459, 7
      %v6516 = vrot.slane %v6515, 2
      %v6517 = vrot.slane %v6461, 7
      %v6518 = vrot.slane %v6517, 2
      %v6519 = vrot.slane %v6469, 7
      %v6520 = vrot.slane %v6519, 2
      %v6521 = vrot.slane %v6477, 7
      %v6522 = vrot.slane %v6521, 2
      %v6523 = vrot.slane %v6476, 7
      %v6524 = vrot.slane %v6523, 2
      %v6525 = vrot.slane %v6478, 7
      %v6526 = vrot.slane %v6525, 2
      %v6543 = vmax.f32 %v6418, %v6496
      %v6544 = vmax.f32 %v6426, %v6498
      %v6545 = vmax.f32 %v6425, %v6500
      %v6546 = vmax.f32 %v6427, %v6502
      %v6547 = vmax.f32 %v6435, %v6504
      %v6548 = vmax.f32 %v6443, %v6506
      %v6549 = vmax.f32 %v6442, %v6508
      %v6550 = vmax.f32 %v6444, %v6510
      %v6551 = vmax.f32 %v6452, %v6512
      %v6552 = vmax.f32 %v6460, %v6514
      %v6553 = vmax.f32 %v6459, %v6516
      %v6554 = vmax.f32 %v6461, %v6518
      %v6555 = vmax.f32 %v6469, %v6520
      %v6556 = vmax.f32 %v6477, %v6522
      %v6557 = vmax.f32 %v6476, %v6524
      %v6558 = vmax.f32 %v6478, %v6526
      %v6559 = vld [vmem:[%s5] sm:$0xff]
      %v6560 = vld [vmem:[%s5 + $0x8] sm:$0xff]
      %v6561 = vld [vmem:[%s5 + $0x10] sm:$0xff]
      %v6562 = vld [vmem:[%s5 + $0x18] sm:$0xff]
      %v6563 = vld [vmem:[%s5 + $0x20] sm:$0xff]
      %v6564 = vld [vmem:[%s5 + $0x28] sm:$0xff]
      %v6565 = vld [vmem:[%s5 + $0x30] sm:$0xff]
      %v6566 = vld [vmem:[%s5 + $0x38] sm:$0xff]
      %v6567 = vld [vmem:[%s6] sm:$0x1]
      %v6569 = vlaneseq
      %v6570 = vshrl.u32 %v6569, 7
      %v6571 = vsub.s32 0, %v6570
      %v6572 = vrot.slane %v6567, %v6571
      %v6589 = vlaneseq
      %v6590 = vshrl.u32 %v6589, 7
      %v6591 = vsub.s32 0, %v6590
      %v6592 = vrot.slane %v6543, %v6591
      %v6593 = vlaneseq
      %v6594 = vshrl.u32 %v6593, 7
      %v6595 = vsub.s32 0, %v6594
      %v6596 = vrot.slane %v6544, %v6595
      %v6597 = vlaneseq
      %v6598 = vshrl.u32 %v6597, 7
      %v6599 = vsub.s32 0, %v6598
      %v6600 = vrot.slane %v6545, %v6599
      %v6601 = vlaneseq
      %v6602 = vshrl.u32 %v6601, 7
      %v6603 = vsub.s32 0, %v6602
      %v6604 = vrot.slane %v6546, %v6603
      %v6605 = vlaneseq
      %v6606 = vshrl.u32 %v6605, 7
      %v6607 = vsub.s32 0, %v6606
      %v6608 = vrot.slane %v6547, %v6607
      %v6609 = vlaneseq
      %v6610 = vshrl.u32 %v6609, 7
      %v6611 = vsub.s32 0, %v6610
      %v6612 = vrot.slane %v6548, %v6611
      %v6613 = vlaneseq
      %v6614 = vshrl.u32 %v6613, 7
      %v6615 = vsub.s32 0, %v6614
      %v6616 = vrot.slane %v6549, %v6615
      %v6617 = vlaneseq
      %v6618 = vshrl.u32 %v6617, 7
      %v6619 = vsub.s32 0, %v6618
      %v6620 = vrot.slane %v6550, %v6619
      %v6621 = vlaneseq
      %v6622 = vshrl.u32 %v6621, 7
      %v6623 = vsub.s32 0, %v6622
      %v6624 = vrot.slane %v6551, %v6623
      %v6625 = vlaneseq
      %v6626 = vshrl.u32 %v6625, 7
      %v6627 = vsub.s32 0, %v6626
      %v6628 = vrot.slane %v6552, %v6627
      %v6629 = vlaneseq
      %v6630 = vshrl.u32 %v6629, 7
      %v6631 = vsub.s32 0, %v6630
      %v6632 = vrot.slane %v6553, %v6631
      %v6633 = vlaneseq
      %v6634 = vshrl.u32 %v6633, 7
      %v6635 = vsub.s32 0, %v6634
      %v6636 = vrot.slane %v6554, %v6635
      %v6637 = vlaneseq
      %v6638 = vshrl.u32 %v6637, 7
      %v6639 = vsub.s32 0, %v6638
      %v6640 = vrot.slane %v6555, %v6639
      %v6641 = vlaneseq
      %v6642 = vshrl.u32 %v6641, 7
      %v6643 = vsub.s32 0, %v6642
      %v6644 = vrot.slane %v6556, %v6643
      %v6645 = vlaneseq
      %v6646 = vshrl.u32 %v6645, 7
      %v6647 = vsub.s32 0, %v6646
      %v6648 = vrot.slane %v6557, %v6647
      %v6649 = vlaneseq
      %v6650 = vshrl.u32 %v6649, 7
      %v6651 = vsub.s32 0, %v6650
      %v6652 = vrot.slane %v6558, %v6651
      %v6653 = vsel %vm4966, %v6596, %v6592
      %v6654 = vsel %vm4968, %v6600, %v6653
      %v6655 = vsel %vm4970, %v6604, %v6654
      %v6656 = vsel %vm4972, %v6608, %v6655
      %v6657 = vsel %vm4974, %v6612, %v6656
      %v6658 = vsel %vm4976, %v6616, %v6657
      %v6659 = vsel %vm4978, %v6620, %v6658
      %v6660 = vsel %vm4966, %v6628, %v6624
      %v6661 = vsel %vm4968, %v6632, %v6660
      %v6662 = vsel %vm4970, %v6636, %v6661
      %v6663 = vsel %vm4972, %v6640, %v6662
      %v6664 = vsel %vm4974, %v6644, %v6663
      %v6665 = vsel %vm4976, %v6648, %v6664
      %v6666 = vsel %vm4978, %v6652, %v6665
      %v6667 = vcombine.low %v6572, %v6572
      %vm6669 = vcmask 523264
      %v6670 = vsel %vm6669, %v6659, 0
      %v6672 = vsel %vm6669, %v6666, 0
      %6674 = vmatprep.subr.mxu0 0.0
      %6675 = vmatpush1.msra.mxu0 %v6559
      %6676 = vmatprep.subr.mxu0 0.0
      %6677 = vmatpush1.msra.mxu0 %v6560
      %6678 = vmatprep.subr.mxu0 0.0
      %6679 = vmatpush1.msra.mxu0 %v6561
      %6680 = vmatprep.subr.mxu0 0.0
      %6681 = vmatpush1.msra.mxu0 %v6562
      %6682 = vmatprep.subr.mxu0 0.0
      %6683 = vmatpush1.msra.mxu0 %v6563
      %6684 = vmatprep.subr.mxu0 0.0
      %6685 = vmatpush1.msra.mxu0 %v6564
      %6686 = vmatprep.subr.mxu0 0.0
      %6687 = vmatpush1.msra.mxu0 %v6565
      %6688 = vmatprep.subr.mxu0 0.0
      %6689 = vmatpush1.msra.mxu0 %v6566
      %6690 = vmatprep.subr.mxu0 0.0
      %6691 = vmatpush1.msra.mxu0 0.0
      %6692 = vmatprep.subr.mxu0 0.0
      %6693 = vmatpush1.msra.mxu0 0.0
      %6694 = vmatprep.subr.mxu0 0.0
      %6695 = vmatpush1.msra.mxu0 0.0
      %6696 = vmatprep.subr.mxu0 0.0
      %6697 = vmatpush1.msra.mxu0 0.0
      %6698 = vmatprep.subr.mxu0 0.0
      %6699 = vmatpush1.msra.mxu0 0.0
      %6700 = vmatprep.subr.mxu0 0.0
      %6701 = vmatpush1.msra.mxu0 0.0
      %6702 = vmatprep.subr.mxu0 0.0
      %6703 = vmatpush1.msra.mxu0 0.0
      %6704 = vmatprep.subr.mxu0 0.0
      %6705 = vmatpush1.msra.mxu0 0.0
      %6706 = vmatprep.subr.mxu0 0.0
      %6707 = vmatpush1.msra.mxu0 0.0
      %6708 = vmatprep.subr.mxu0 0.0
      %6709 = vmatpush1.msra.mxu0 0.0
      %6710 = vmatprep.subr.mxu0 0.0
      %6711 = vmatpush1.msra.mxu0 0.0
      %6712 = vmatprep.subr.mxu0 0.0
      %6713 = vmatpush1.msra.mxu0 0.0
      %6714 = vmatprep.subr.mxu0 0.0
      %6715 = vmatpush1.msra.mxu0 0.0
      %6716 = vmatprep.subr.mxu0 0.0
      %6717 = vmatpush1.msra.mxu0 0.0
      %6718 = vmatprep.subr.mxu0 0.0
      %6719 = vmatpush1.msra.mxu0 0.0
      %6720 = vmatprep.subr.mxu0 0.0
      %6721 = vmatpush1.msra.mxu0 0.0
      %6722 = vmatprep.subr.mxu0 0.0
      %6723 = vmatpush1.msra.mxu0 0.0
      %6724 = vmatprep.subr.mxu0 0.0
      %6725 = vmatpush1.msra.mxu0 0.0
      %6726 = vmatprep.subr.mxu0 0.0
      %6727 = vmatpush1.msra.mxu0 0.0
      %6728 = vmatprep.subr.mxu0 0.0
      %6729 = vmatpush1.msra.mxu0 0.0
      %6730 = vmatprep.subr.mxu0 0.0
      %6731 = vmatpush1.msra.mxu0 0.0
      %6732 = vmatprep.subr.mxu0 0.0
      %6733 = vmatpush1.msra.mxu0 0.0
      %6734 = vmatprep.subr.mxu0 0.0
      %6735 = vmatpush1.msra.mxu0 0.0
      %6736 = vmatprep.subr.mxu0 0.0
      %6737 = vmatpush1.msra.mxu0 0.0
      %6738 = vmatprep.mubr.f32.mxu0 0.0
      %6739 = vmatmul.mubr.f32.gmra.mrb[0].mxu0 %v6670
      %v6740 = vpop.f32.mrb[0].mxu0
      %v6741 = vadd.f32 %v6667, %v6740
      %v6742 = vpop.f32.mrb[0].mxu0
      %6743 = vmatprep.mubr.f32.mxu0 0.0
      %6744 = vmatmul.mubr.f32.gmra.mrb[0].mxu0 %v6672
      %v6745 = vpop.f32.mrb[0].mxu0
      %v6746 = vadd.f32 %v6667, %v6745
      %v6747 = vpop.f32.mrb[0].mxu0
      %6748 = vdwg.mxu0
      %v6751 = vcombine.high %v6741, %v6741
      %v6752 = vcombine.high %v6746, %v6746
      %v6755 = vmax.f32 %v6741, 0.0
      %v6756 = vmax.f32 %v6751, 0.0
      %v6757 = vmax.f32 %v6746, 0.0
      %v6758 = vmax.f32 %v6752, 0.0
      %v6759 = vld [vmem:[%s7] sm:$0xff]
      %v6760 = vld [vmem:[%s7 + $0x8] sm:$0xff]
      %v6761 = vld [vmem:[%s7 + $0x10] sm:$0xff]
      %v6762 = vld [vmem:[%s7 + $0x18] sm:$0xff]
      %v6763 = vld [vmem:[%s7 + $0x20] sm:$0xff]
      %v6764 = vld [vmem:[%s7 + $0x28] sm:$0xff]
      %v6765 = vld [vmem:[%s7 + $0x30] sm:$0xff]
      %v6766 = vld [vmem:[%s7 + $0x38] sm:$0xff]
      %v6767 = vld [vmem:[%s7 + $0x40] sm:$0xff]
      %v6768 = vld [vmem:[%s7 + $0x48] sm:$0xff]
      %v6769 = vld [vmem:[%s7 + $0x50] sm:$0xff]
      %v6770 = vld [vmem:[%s7 + $0x58] sm:$0xff]
      %v6771 = vld [vmem:[%s7 + $0x60] sm:$0xff]
      %v6772 = vld [vmem:[%s7 + $0x68] sm:$0xff]
      %v6773 = vld [vmem:[%s7 + $0x70] sm:$0xff]
      %v6774 = vld [vmem:[%s7 + $0x78] sm:$0xff]
      %v6775 = vld [vmem:[%s8] sm:$0x1]
      %v6777 = vlaneseq
      %v6778 = vshrl.u32 %v6777, 7
      %v6779 = vsub.s32 0, %v6778
      %v6780 = vrot.slane %v6775, %v6779
      %v6785 = vcombine.low %v6755, %v6756
      %v6786 = vcombine.low %v6757, %v6758
      %v6789 = vcombine.low %v6780, %v6780
      %6791 = vmatprep.subr.mxu0 0.0
      %6792 = vmatpush1.msra.mxu0 %v6759
      %6793 = vmatprep.subr.mxu0 0.0
      %6794 = vmatpush1.msra.mxu0 %v6760
      %6795 = vmatprep.subr.mxu0 0.0
      %6796 = vmatpush1.msra.mxu0 %v6761
      %6797 = vmatprep.subr.mxu0 0.0
      %6798 = vmatpush1.msra.mxu0 %v6762
      %6799 = vmatprep.subr.mxu0 0.0
      %6800 = vmatpush1.msra.mxu0 %v6763
      %6801 = vmatprep.subr.mxu0 0.0
      %6802 = vmatpush1.msra.mxu0 %v6764
      %6803 = vmatprep.subr.mxu0 0.0
      %6804 = vmatpush1.msra.mxu0 %v6765
      %6805 = vmatprep.subr.mxu0 0.0
      %6806 = vmatpush1.msra.mxu0 %v6766
      %6807 = vmatprep.subr.mxu0 0.0
      %6808 = vmatpush1.msra.mxu0 %v6767
      %6809 = vmatprep.subr.mxu0 0.0
      %6810 = vmatpush1.msra.mxu0 %v6768
      %6811 = vmatprep.subr.mxu0 0.0
      %6812 = vmatpush1.msra.mxu0 %v6769
      %6813 = vmatprep.subr.mxu0 0.0
      %6814 = vmatpush1.msra.mxu0 %v6770
      %6815 = vmatprep.subr.mxu0 0.0
      %6816 = vmatpush1.msra.mxu0 %v6771
      %6817 = vmatprep.subr.mxu0 0.0
      %6818 = vmatpush1.msra.mxu0 %v6772
      %6819 = vmatprep.subr.mxu0 0.0
      %6820 = vmatpush1.msra.mxu0 %v6773
      %6821 = vmatprep.subr.mxu0 0.0
      %6822 = vmatpush1.msra.mxu0 %v6774
      %6823 = vmatprep.subr.mxu0 0.0
      %6824 = vmatpush1.msra.mxu0 0.0
      %6825 = vmatprep.subr.mxu0 0.0
      %6826 = vmatpush1.msra.mxu0 0.0
      %6827 = vmatprep.subr.mxu0 0.0
      %6828 = vmatpush1.msra.mxu0 0.0
      %6829 = vmatprep.subr.mxu0 0.0
      %6830 = vmatpush1.msra.mxu0 0.0
      %6831 = vmatprep.subr.mxu0 0.0
      %6832 = vmatpush1.msra.mxu0 0.0
      %6833 = vmatprep.subr.mxu0 0.0
      %6834 = vmatpush1.msra.mxu0 0.0
      %6835 = vmatprep.subr.mxu0 0.0
      %6836 = vmatpush1.msra.mxu0 0.0
      %6837 = vmatprep.subr.mxu0 0.0
      %6838 = vmatpush1.msra.mxu0 0.0
      %6839 = vmatprep.subr.mxu0 0.0
      %6840 = vmatpush1.msra.mxu0 0.0
      %6841 = vmatprep.subr.mxu0 0.0
      %6842 = vmatpush1.msra.mxu0 0.0
      %6843 = vmatprep.subr.mxu0 0.0
      %6844 = vmatpush1.msra.mxu0 0.0
      %6845 = vmatprep.subr.mxu0 0.0
      %6846 = vmatpush1.msra.mxu0 0.0
      %6847 = vmatprep.subr.mxu0 0.0
      %6848 = vmatpush1.msra.mxu0 0.0
      %6849 = vmatprep.subr.mxu0 0.0
      %6850 = vmatpush1.msra.mxu0 0.0
      %6851 = vmatprep.subr.mxu0 0.0
      %6852 = vmatpush1.msra.mxu0 0.0
      %6853 = vmatprep.subr.mxu0 0.0
      %6854 = vmatpush1.msra.mxu0 0.0
      %6855 = vmatprep.mubr.f32.mxu0 0.0
      %6856 = vmatmul.mubr.f32.gmra.mrb[0].mxu0 %v6785
      %v6857 = vpop.f32.mrb[0].mxu0
      %v6858 = vadd.f32 %v6789, %v6857
      %v6859 = vpop.f32.mrb[0].mxu0
      %6860 = vmatprep.mubr.f32.mxu0 0.0
      %6861 = vmatmul.mubr.f32.gmra.mrb[0].mxu0 %v6786
      %v6862 = vpop.f32.mrb[0].mxu0
      %v6863 = vadd.f32 %v6789, %v6862
      %v6864 = vpop.f32.mrb[0].mxu0
      %6865 = vdwg.mxu0
      %v6868 = vcombine.high %v6858, %v6858
      %v6869 = vcombine.high %v6863, %v6863
      %v6872 = vxor.u32 %v6858, 2147483648
      %v6873 = vxor.u32 %v6868, 2147483648
      %v6874 = vxor.u32 %v6863, 2147483648
      %v6875 = vxor.u32 %v6869, 2147483648
      %v6876 = vmul.f32 %v6872, 1.442695
      %v6877 = vpow.pop %v6876
      %v6878 = vmul.f32 %v6873, 1.442695
      %v6879 = vpow.pop %v6878
      %v6880 = vmul.f32 %v6874, 1.442695
      %v6881 = vpow.pop %v6880
      %v6882 = vmul.f32 %v6875, 1.442695
      %v6883 = vpow.pop %v6882
      %v6884 = vadd.f32 %v6877, 1.0
      %v6885 = vadd.f32 %v6879, 1.0
      %v6886 = vadd.f32 %v6881, 1.0
      %v6887 = vadd.f32 %v6883, 1.0
      %v6888 = vrcp.pop %v6884
      %v6889 = vmul.f32 1.0, %v6888
      %v6890 = vrcp.pop %v6885
      %v6891 = vmul.f32 1.0, %v6890
      %v6892 = vrcp.pop %v6886
      %v6893 = vmul.f32 1.0, %v6892
      %v6894 = vrcp.pop %v6887
      %v6895 = vmul.f32 1.0, %v6894
      %vm6896 = vcmask 125952
      %6897 = vst.msk [vmem:[%s332] sm:$0xf] %vm6896, %v6889
      %6898 = vst.msk [vmem:[%s332 + $0x4] sm:$0xf] %vm6896, %v6891
      %6899 = vst.msk [vmem:[%s332 + $0x8] sm:$0xf] %vm6896, %v6893
      %6900 = vst.msk [vmem:[%s332 + $0xc] sm:$0xf] %vm6896, %v6895
      %p6901 = scmp.lt.s32.totalorder %s20, 1
      %s6902 = scalar_select %p6901, %s20, 1
      %s6903 = smul.addr %s6902, 4
      %s6904 = smul.addr %s6903, 4
      %s6905 = scalar_lea.vmem %s9, %s6904
      // Predicated region
      $region57: #{simple_unet_forward.1} parent=55 // pred_check
        %p6906 = pneg %p232
      $region58: #{simple_unet_forward.1} parent=55 // pred_check_branch
        %6908 = sbr.rel (%p6906) target = $region60
      $region59: #{simple_unet_forward.1} parent=55 // pred_region
        _
      $region60: #{simple_unet_forward.1} parent=55 // pred_fallthru
        _
    $region56: #{simple_unet_forward.1} parent=5 // pred_fallthru
      _
    %p6909 = scmp.le.s32.totalorder 2, %s15
    // Predicated region
    $region61: #{simple_unet_forward.1} parent=5 // pred_check
      %p6910 = pneg %p6909
    $region62: #{simple_unet_forward.1} parent=5 // pred_check_branch
      %6912 = sbr.rel (%p6910) target = $region64
    $region63: #{simple_unet_forward.1} parent=5 // pred_region
      %s6913 = ssub.s32 %s15, 2
      // Predicated region
      $region65: #{simple_unet_forward.1} parent=63 // pred_check
        %p6914 = pneg %p238
      $region66: #{simple_unet_forward.1} parent=63 // pred_check_branch
        %6916 = sbr.rel (%p6914) target = $region68
      $region67: #{simple_unet_forward.1} parent=63 // pred_region
        %p6917 = scmp.lt.s32.totalorder %s21, 1
        %s6918 = scalar_select %p6917, %s21, 1
        %s6919 = smul.addr %s6918, 4
        %s6920 = smul.addr %s6919, 4
        %s6921 = scalar_lea.vmem %s9, %s6920
      $region68: #{simple_unet_forward.1} parent=63 // pred_fallthru
        _
    $region64: #{simple_unet_forward.1} parent=5 // pred_fallthru
      _
  $region6: #{simple_unet_forward.1} parent=0 // loop_footer
    %s19 = sadd.s32 1, %s15
  $region7: #{simple_unet_forward.1} parent=0 // loop_footer_branch
    %14 = sbr.rel target = $region3
  $region8: #{simple_unet_forward.1} parent=0 // loop_exit
    _

</llo_original>
